<compile_context>
chip_gen: v5e
topology: v5e:2x2
jax: 0.10.0
libtpu: 0.0.40
codegen_flags: <defaults>
</compile_context>

<pallas_src>
import functools

import jax
import jax.numpy as jnp
from jax.experimental import pallas as pl
from jax.experimental.pallas import tpu as pltpu


def _pick_row_tile(M, preferred=(2048, 1024, 512, 256, 128)):
    """Largest row tile from `preferred` that evenly divides M (else whole M)."""
    for t in preferred:
        if M >= t and M % t == 0:
            return t
    return M


# ----------------------------------------------------------------------------
# Pallas kernel 1: depthwise 3x3 stride-2 conv + folded BN(eval) + ReLU
# Input is delivered as 4 stride-2 parity planes (space-to-depth), so the kernel
# reads each input element exactly once instead of 9 times.
# ----------------------------------------------------------------------------
def _dw_bn_relu_kernel(xd_ref, w_ref, s_ref, b_ref, o_ref, *, Ho, Wo):
    # xd_ref: (4, Hp, Wp, C) parity planes of one image; plane index = 2*(di%2)+(dj%2)
    # w_ref: (9, C); s_ref/b_ref: (1, C); o_ref: (1, Ho, Wo, C)
    w = w_ref[...].astype(jnp.float32)
    s = s_ref[...].astype(jnp.float32)
    b = b_ref[...].astype(jnp.float32)
    acc = None
    for di in range(3):           # unrolled at trace time
        for dj in range(3):
            p = 2 * (di % 2) + (dj % 2)
            a0 = di // 2
            b0 = dj // 2
            tap = xd_ref[p, a0:a0 + Ho, b0:b0 + Wo, :].astype(jnp.float32)
            term = tap * w[3 * di + dj][None, None, :]
            acc = term if acc is None else acc + term
    y = acc * s[0][None, None, :] + b[0][None, None, :]
    o_ref[0] = jnp.maximum(y, 0.0).astype(o_ref.dtype)


def dw_conv_bn_relu(x, w9, scale, shift):
    """x: (N, H, W, C).  Depthwise 3x3, stride 2, padding 0, folded BN(eval)+ReLU."""
    N, H, W, C = x.shape
    Ho = (H - 3) // 2 + 1
    Wo = (W - 3) // 2 + 1
    He, We = H + (H % 2), W + (W % 2)          # pad to even so parity split works
    if (He, We) != (H, W):
        x = jnp.pad(x, ((0, 0), (0, He - H), (0, We - W), (0, 0)))
    Hp, Wp = He // 2, We // 2
    # space-to-depth deinterleave: x[n, 2a+p, 2b+q, c] -> xd[4n + 2p + q, a, b, c]
    xd = x.reshape(N, Hp, 2, Wp, 2, C).transpose(0, 2, 4, 1, 3, 5)
    xd = xd.reshape(N * 4, Hp, Wp, C)

    kern = functools.partial(_dw_bn_relu_kernel, Ho=Ho, Wo=Wo)
    # TODO(synk): for production H/W (>=128) add a spatial grid axis so the block
    #             fits v7x's smaller VMEM and feeds both TensorCores.
    return pl.pallas_call(
        kern,
        out_shape=jax.ShapeDtypeStruct((N, Ho, Wo, C), x.dtype),
        grid=(N,),
        in_specs=[
            pl.BlockSpec((4, Hp, Wp, C), lambda n: (n, 0, 0, 0)),
            pl.BlockSpec((9, C), lambda n: (0, 0)),
            pl.BlockSpec((1, C), lambda n: (0, 0)),
            pl.BlockSpec((1, C), lambda n: (0, 0)),
        ],
        out_specs=pl.BlockSpec((1, Ho, Wo, C), lambda n: (n, 0, 0, 0)),
        compiler_params=pltpu.CompilerParams(dimension_semantics=("parallel",)),
    )(xd, w9, scale.reshape(1, C), shift.reshape(1, C))


# ----------------------------------------------------------------------------
# Pallas kernel 2: flow_make 3x3 conv (padding=1, stride 1, 128 -> 2, no bias)
# No im2col, no HBM concat: x and seg_down are read (padded) directly and the
# channel-concat is folded into split per-tap weights.  Output channels = 2, so
# the contraction is done as per-tap lane reductions on the VPU/XLU.
# ----------------------------------------------------------------------------
def _flow_kernel(xp_ref, sp_ref, wx_ref, ws_ref, o_ref, *, H, W):
    # xp_ref/sp_ref: (1, H+2, W+2, C) zero-padded inputs for this batch element
    # wx_ref/ws_ref: (9, 2, C) per-tap weights (x half / seg_down half)
    # o_ref: (1, 2, H, W)
    wx = wx_ref[...].astype(jnp.float32)
    ws = ws_ref[...].astype(jnp.float32)
    acc_u = jnp.zeros((H, W), jnp.float32)
    acc_v = jnp.zeros((H, W), jnp.float32)
    for di in range(3):           # unrolled at trace time
        for dj in range(3):
            k = 3 * di + dj
            tx = xp_ref[0, di:di + H, dj:dj + W, :].astype(jnp.float32)
            ts = sp_ref[0, di:di + H, dj:dj + W, :].astype(jnp.float32)
            acc_u = acc_u + jnp.sum(tx * wx[k, 0], axis=-1)
            acc_u = acc_u + jnp.sum(ts * ws[k, 0], axis=-1)
            acc_v = acc_v + jnp.sum(tx * wx[k, 1], axis=-1)
            acc_v = acc_v + jnp.sum(ts * ws[k, 1], axis=-1)
    o_ref[0, 0] = acc_u.astype(o_ref.dtype)
    o_ref[0, 1] = acc_v.astype(o_ref.dtype)


def flow_conv3x3(x, seg_down, wx, ws):
    """conv3x3(concat([x, seg_down], channel)) -> 2 channels, as flow (N, H, W, 2)."""
    N, H, W, C = x.shape
    xp = jnp.pad(x, ((0, 0), (1, 1), (1, 1), (0, 0)))
    sp = jnp.pad(seg_down, ((0, 0), (1, 1), (1, 1), (0, 0)))
    kern = functools.partial(_flow_kernel, H=H, W=W)
    flow = pl.pallas_call(
        kern,
        out_shape=jax.ShapeDtypeStruct((N, 2, H, W), jnp.float32),
        grid=(N,),
        in_specs=[
            pl.BlockSpec((1, H + 2, W + 2, C), lambda n: (n, 0, 0, 0)),
            pl.BlockSpec((1, H + 2, W + 2, C), lambda n: (n, 0, 0, 0)),
            pl.BlockSpec((9, 2, C), lambda n: (0, 0, 0)),
            pl.BlockSpec((9, 2, C), lambda n: (0, 0, 0)),
        ],
        out_specs=pl.BlockSpec((1, 2, H, W), lambda n: (n, 0, 0, 0)),
        compiler_params=pltpu.CompilerParams(dimension_semantics=("parallel",)),
    )(xp, sp, wx, ws)
    return jnp.transpose(flow, (0, 2, 3, 1))                   # (N, H, W, 2)


# ----------------------------------------------------------------------------
# Pallas kernel 3: fused tail
#   seg_edge    = x - seg_flow_warp
#   t           = seg_edge @ Wedge1 + sup @ Wedge2 + b_edge          (edge_fusion)
#   seg_out_pre = t + seg_body  (seg_body == seg_flow_warp)
#   out         = seg_out_pre @ Wseg1 + x @ Wseg2 + b_seg            (seg_out)
# One kernel, split weights -> no (M, 128) HBM concats, no HBM intermediates.
# ----------------------------------------------------------------------------
def _fused_tail_kernel(x_ref, warp_ref, sup_ref, ew1_ref, ew2_ref, eb_ref,
                       sw1_ref, sw2_ref, sb_ref, o_ref):
    x = x_ref[...].astype(jnp.float32)
    warp = warp_ref[...].astype(jnp.float32)
    sup = sup_ref[...].astype(jnp.float32)

    seg_edge = x - warp
    t = jnp.dot(seg_edge, ew1_ref[...].astype(jnp.float32),
                preferred_element_type=jnp.float32)
    t = t + jnp.dot(sup, ew2_ref[...].astype(jnp.float32),
                    preferred_element_type=jnp.float32)
    t = t + eb_ref[...].astype(jnp.float32)     # edge_fusion bias  (1, C) broadcast
    t = t + warp                                # + seg_body

    out = jnp.dot(t, sw1_ref[...].astype(jnp.float32),
                  preferred_element_type=jnp.float32)
    out = out + jnp.dot(x, sw2_ref[...].astype(jnp.float32),
                        preferred_element_type=jnp.float32)
    out = out + sb_ref[...].astype(jnp.float32)
    o_ref[...] = out.astype(o_ref.dtype)


def fused_edge_seg_out(x2, warp2, sup2, edge_w, edge_b, seg_w, seg_b):
    """x2/warp2/sup2: (M, C).  edge_w/seg_w: (2C, C).  Returns (M, C)."""
    M, C = x2.shape
    tm = _pick_row_tile(M)
    ew1, ew2 = edge_w[:C], edge_w[C:]
    sw1, sw2 = seg_w[:C], seg_w[C:]
    row_spec = pl.BlockSpec((tm, C), lambda i: (i, 0))
    w_spec = pl.BlockSpec((C, C), lambda i: (0, 0))
    b_spec = pl.BlockSpec((1, C), lambda i: (0, 0))
    # TODO(synk): output last dim is 64 (module-fixed), so stores stay half-lane;
    #             making them 128-lane-dense would need a sublane->lane relayout.
    return pl.pallas_call(
        _fused_tail_kernel,
        out_shape=jax.ShapeDtypeStruct((M, C), x2.dtype),
        grid=(M // tm,),
        in_specs=[row_spec, row_spec, row_spec,
                  w_spec, w_spec, b_spec, w_spec, w_spec, b_spec],
        out_specs=pl.BlockSpec((tm, C), lambda i: (i, 0)),
        compiler_params=pltpu.CompilerParams(dimension_semantics=("parallel",)),
    )(x2, warp2, sup2, ew1, ew2, edge_b.reshape(1, C), sw1, sw2, seg_b.reshape(1, C))


# ----------------------------------------------------------------------------
# JAX glue: bilinear upsample (align_corners=True) and grid_sample emulation.
# TODO(synk): these are data-dependent gathers; kept in plain JAX rather than
#             inside a Pallas kernel.
# ----------------------------------------------------------------------------
def upsample_bilinear_align_corners(x, H, W):
    N, h, w, C = x.shape

    def coords(out_size, in_size):
        if out_size == 1 or in_size == 1:
            pos = jnp.zeros((out_size,), jnp.float32)
        else:
            pos = jnp.linspace(0.0, in_size - 1.0, out_size)
        i0 = jnp.clip(jnp.floor(pos).astype(jnp.int32), 0, max(in_size - 2, 0))
        frac = pos - i0.astype(jnp.float32)
        i1 = jnp.clip(i0 + 1, 0, in_size - 1)
        return i0, i1, frac

    y0, y1, fy = coords(H, h)
    x0, x1, fx = coords(W, w)
    top = x[:, y0]
    bot = x[:, y1]
    rows = top * (1.0 - fy)[None, :, None, None] + bot * fy[None, :, None, None]
    left = rows[:, :, x0]
    right = rows[:, :, x1]
    return left * (1.0 - fx)[None, None, :, None] + right * fx[None, None, :, None]


def grid_sample_bilinear_zeros(x, grid):
    """Matches F.grid_sample(mode='bilinear', padding_mode='zeros', align_corners=False).
    x: (N,H,W,C); grid: (N,Ho,Wo,2) with [...,0]=x-coord, [...,1]=y-coord in [-1,1]."""
    N, H, W, C = x.shape
    _, Ho, Wo, _ = grid.shape
    gx = grid[..., 0]
    gy = grid[..., 1]
    ix = ((gx + 1.0) * W - 1.0) * 0.5
    iy = ((gy + 1.0) * H - 1.0) * 0.5
    ix0 = jnp.floor(ix).astype(jnp.int32)
    iy0 = jnp.floor(iy).astype(jnp.int32)
    ix1 = ix0 + 1
    iy1 = iy0 + 1
    wx1 = ix - ix0.astype(jnp.float32)
    wx0 = 1.0 - wx1
    wy1 = iy - iy0.astype(jnp.float32)
    wy0 = 1.0 - wy1
    flat = x.reshape(N, H * W, C)

    def gather(iy_, ix_):
        valid = ((iy_ >= 0) & (iy_ < H) & (ix_ >= 0) & (ix_ < W)).astype(x.dtype)
        iyc = jnp.clip(iy_, 0, H - 1)
        ixc = jnp.clip(ix_, 0, W - 1)
        idx = (iyc * W + ixc).reshape(N, Ho * Wo, 1)
        vals = jnp.take_along_axis(flat, idx, axis=1).reshape(N, Ho, Wo, C)
        return vals * valid[..., None]

    v00 = gather(iy0, ix0)
    v01 = gather(iy0, ix1)
    v10 = gather(iy1, ix0)
    v11 = gather(iy1, ix1)
    return (v00 * (wy0 * wx0)[..., None] + v01 * (wy0 * wx1)[..., None]
            + v10 * (wy1 * wx0)[..., None] + v11 * (wy1 * wx1)[..., None])


# ----------------------------------------------------------------------------
# DS forward (NCHW in / NCHW out, matching PyTorch)
# ----------------------------------------------------------------------------
def ds_forward(params, sup_feats_nchw, low_feats_nchw):
    x = jnp.transpose(low_feats_nchw, (0, 2, 3, 1))        # NHWC
    sup = jnp.transpose(sup_feats_nchw, (0, 2, 3, 1))      # NHWC
    N, H, W, C = x.shape

    # SqueezeBodyEdge.down: two depthwise 3x3 s2 convs + BN(eval) + ReLU
    d1 = dw_conv_bn_relu(x, params["dw1_w"], params["bn1_scale"], params["bn1_shift"])
    d2 = dw_conv_bn_relu(d1, params["dw2_w"], params["bn2_scale"], params["bn2_shift"])

    # upsample back to (H, W), align_corners=True
    seg_down = upsample_bilinear_align_corners(d2, H, W)

    # flow_make: 3x3 conv, 128 -> 2, padding=1, no bias (concat folded into weights)
    flow = flow_conv3x3(x, seg_down, params["flow_wx"], params["flow_ws"])

    # flow_warp: base grid + flow / [W, H], then grid_sample
    hs = jnp.linspace(-1.0, 1.0, H)
    ws = jnp.linspace(-1.0, 1.0, W)
    ww, hh = jnp.meshgrid(ws, hs, indexing="xy")           # each (H, W)
    base = jnp.stack([ww, hh], axis=-1)                    # (H, W, 2) = (x, y)
    norm = jnp.array([W, H], jnp.float32)
    grid = base[None] + flow / norm
    seg_flow_warp = grid_sample_bilinear_zeros(x, grid)    # == seg_body

    # Fused tail: seg_edge, edge_fusion(+bias), +seg_body, seg_out(+bias)
    M = N * H * W
    out2 = fused_edge_seg_out(
        x.reshape(M, C), seg_flow_warp.reshape(M, C), sup.reshape(M, C),
        params["edge_w"], params["edge_b"], params["seg_w"], params["seg_b"])
    seg_out = out2.reshape(N, H, W, C)

    return jnp.transpose(seg_out, (0, 3, 1, 2))            # back to NCHW


# ----------------------------------------------------------------------------
# Deterministic parameter init (BatchNorm applied in eval/inference mode, folded
# into a per-channel scale/shift together with the conv bias).
# ----------------------------------------------------------------------------
def init_params(key, C=64):
    ks = jax.random.split(key, 12)

    def nrm(k, shape, s):
        return jax.random.normal(k, shape, jnp.float32) * s

    def bn_fold(kg, kb, conv_bias):
        gamma = 1.0 + nrm(kg, (C,), 0.1)
        beta = nrm(kb, (C,), 0.1)
        running_mean = jnp.zeros((C,), jnp.float32)   # fresh-module running stats
        running_var = jnp.ones((C,), jnp.float32)
        eps = 1e-5
        scale = gamma / jnp.sqrt(running_var + eps)
        shift = scale * (conv_bias - running_mean) + beta
        return scale, shift

    dw1_b = nrm(ks[1], (C,), 0.1)
    dw2_b = nrm(ks[3], (C,), 0.1)
    bn1_scale, bn1_shift = bn_fold(ks[4], ks[5], dw1_b)
    bn2_scale, bn2_shift = bn_fold(ks[6], ks[7], dw2_b)

    return {
        "dw1_w": nrm(ks[0], (3, 3, C), 0.2).reshape(9, C),
        "bn1_scale": bn1_scale, "bn1_shift": bn1_shift,
        "dw2_w": nrm(ks[2], (3, 3, C), 0.2).reshape(9, C),
        "bn2_scale": bn2_scale, "bn2_shift": bn2_shift,
        "flow_wx": nrm(ks[8], (9, 2, C), 0.02),    # flow weights, x half:        [tap, out_ch, in_ch]
        "flow_ws": nrm(ks[9], (9, 2, C), 0.02),    # flow weights, seg_down half
        "edge_w": nrm(ks[10], (2 * C, C), 0.05),
        "edge_b": jnp.zeros((C,), jnp.float32),
        "seg_w": nrm(ks[11], (2 * C, C), 0.05),
        "seg_b": jnp.zeros((C,), jnp.float32),
    }


if __name__ == "__main__":
    key = jax.random.PRNGKey(0)
    k_sup, k_low, k_par = jax.random.split(key, 3)
    N, C, H, W = 2, 64, 16, 16                      # channels fixed to 64 by DS
    sup_feats = jax.random.normal(k_sup, (N, C, H, W), jnp.float32)
    low_feats = jax.random.normal(k_low, (N, C, H, W), jnp.float32)
    params = init_params(k_par, C)

    out = jax.jit(functools.partial(ds_forward, params))(sup_feats, low_feats)
    out = jax.block_until_ready(out)
    assert out.shape == (N, C, H, W), out.shape
    assert bool(jnp.all(jnp.isfinite(out)))
    print("KERNEL_OK")
</pallas_src>

<mosaic_0001>
module attributes {stable_mosaic.version = 11 : i64} {
  func.func @_dw_bn_relu_kernel(%arg0: i32, %arg1: memref<4x8x8x64xf32, #tpu.memory_space<vmem>>, %arg2: memref<9x64xf32, #tpu.memory_space<vmem>>, %arg3: memref<1x64xf32, #tpu.memory_space<vmem>>, %arg4: memref<1x64xf32, #tpu.memory_space<vmem>>, %arg5: memref<1x7x7x64xf32, #tpu.memory_space<vmem>>) attributes {dimension_semantics = [#tpu.dimension_semantics<parallel>], iteration_bounds = array<i64: 2>, scalar_prefetch = 0 : i64, scratch_operands = 0 : i64, tpu.core_type = #tpu.core_type<tc>, window_params = [{transform_indices = @transform_0, window_bounds = array<i64: 4, 8, 8, 64>}, {pipeline_mode = #tpu.pipeline_mode<synchronous>, transform_indices = @transform_1, window_bounds = array<i64: 9, 64>}, {pipeline_mode = #tpu.pipeline_mode<synchronous>, transform_indices = @transform_2, window_bounds = array<i64: 1, 64>}, {pipeline_mode = #tpu.pipeline_mode<synchronous>, transform_indices = @transform_3, window_bounds = array<i64: 1, 64>}, {transform_indices = @transform_4, window_bounds = array<i64: 1, 7, 7, 64>}]} {
    %c0 = arith.constant 0 : index
    %c0_0 = arith.constant 0 : index
    %0 = vector.load %arg2[%c0, %c0_0] : memref<9x64xf32, #tpu.memory_space<vmem>>, vector<9x64xf32>
    %c0_1 = arith.constant 0 : index
    %c0_2 = arith.constant 0 : index
    %1 = vector.load %arg3[%c0_1, %c0_2] : memref<1x64xf32, #tpu.memory_space<vmem>>, vector<1x64xf32>
    %c0_3 = arith.constant 0 : index
    %c0_4 = arith.constant 0 : index
    %2 = vector.load %arg4[%c0_3, %c0_4] : memref<1x64xf32, #tpu.memory_space<vmem>>, vector<1x64xf32>
    %c0_5 = arith.constant 0 : index
    %c0_6 = arith.constant 0 : index
    %c0_7 = arith.constant 0 : index
    %c0_8 = arith.constant 0 : index
    %3 = vector.load %arg1[%c0_5, %c0_6, %c0_7, %c0_8] : memref<4x8x8x64xf32, #tpu.memory_space<vmem>>, vector<1x7x7x64xf32>
    %4 = vector.shape_cast %3 : vector<1x7x7x64xf32> to vector<7x7x64xf32>
    %5 = vector.extract_strided_slice %0 {offsets = [0, 0], sizes = [1, 64], strides = [1, 1]} : vector<9x64xf32> to vector<1x64xf32>
    %6 = vector.shape_cast %5 : vector<1x64xf32> to vector<64xf32>
    %7 = vector.shape_cast %6 : vector<64xf32> to vector<1x1x64xf32>
    %8 = vector.broadcast %7 : vector<1x1x64xf32> to vector<7x7x64xf32>
    %9 = arith.mulf %4, %8 : vector<7x7x64xf32>
    %c1 = arith.constant 1 : index
    %c0_9 = arith.constant 0 : index
    %c0_10 = arith.constant 0 : index
    %c0_11 = arith.constant 0 : index
    %10 = vector.load %arg1[%c1, %c0_9, %c0_10, %c0_11] : memref<4x8x8x64xf32, #tpu.memory_space<vmem>>, vector<1x7x7x64xf32>
    %11 = vector.shape_cast %10 : vector<1x7x7x64xf32> to vector<7x7x64xf32>
    %12 = vector.extract_strided_slice %0 {offsets = [1, 0], sizes = [1, 64], strides = [1, 1]} : vector<9x64xf32> to vector<1x64xf32>
    %13 = vector.shape_cast %12 : vector<1x64xf32> to vector<64xf32>
    %14 = vector.shape_cast %13 : vector<64xf32> to vector<1x1x64xf32>
    %15 = vector.broadcast %14 : vector<1x1x64xf32> to vector<7x7x64xf32>
    %16 = arith.mulf %11, %15 : vector<7x7x64xf32>
    %17 = arith.addf %9, %16 : vector<7x7x64xf32>
    %c0_12 = arith.constant 0 : index
    %c0_13 = arith.constant 0 : index
    %c1_14 = arith.constant 1 : index
    %c0_15 = arith.constant 0 : index
    %18 = vector.load %arg1[%c0_12, %c0_13, %c1_14, %c0_15] : memref<4x8x8x64xf32, #tpu.memory_space<vmem>>, vector<1x7x7x64xf32>
    %19 = vector.shape_cast %18 : vector<1x7x7x64xf32> to vector<7x7x64xf32>
    %20 = vector.extract_strided_slice %0 {offsets = [2, 0], sizes = [1, 64], strides = [1, 1]} : vector<9x64xf32> to vector<1x64xf32>
    %21 = vector.shape_cast %20 : vector<1x64xf32> to vector<64xf32>
    %22 = vector.shape_cast %21 : vector<64xf32> to vector<1x1x64xf32>
    %23 = vector.broadcast %22 : vector<1x1x64xf32> to vector<7x7x64xf32>
    %24 = arith.mulf %19, %23 : vector<7x7x64xf32>
    %25 = arith.addf %17, %24 : vector<7x7x64xf32>
    %c2 = arith.constant 2 : index
    %c0_16 = arith.constant 0 : index
    %c0_17 = arith.constant 0 : index
    %c0_18 = arith.constant 0 : index
    %26 = vector.load %arg1[%c2, %c0_16, %c0_17, %c0_18] : memref<4x8x8x64xf32, #tpu.memory_space<vmem>>, vector<1x7x7x64xf32>
    %27 = vector.shape_cast %26 : vector<1x7x7x64xf32> to vector<7x7x64xf32>
    %28 = vector.extract_strided_slice %0 {offsets = [3, 0], sizes = [1, 64], strides = [1, 1]} : vector<9x64xf32> to vector<1x64xf32>
    %29 = vector.shape_cast %28 : vector<1x64xf32> to vector<64xf32>
    %30 = vector.shape_cast %29 : vector<64xf32> to vector<1x1x64xf32>
    %31 = vector.broadcast %30 : vector<1x1x64xf32> to vector<7x7x64xf32>
    %32 = arith.mulf %27, %31 : vector<7x7x64xf32>
    %33 = arith.addf %25, %32 : vector<7x7x64xf32>
    %c3 = arith.constant 3 : index
    %c0_19 = arith.constant 0 : index
    %c0_20 = arith.constant 0 : index
    %c0_21 = arith.constant 0 : index
    %34 = vector.load %arg1[%c3, %c0_19, %c0_20, %c0_21] : memref<4x8x8x64xf32, #tpu.memory_space<vmem>>, vector<1x7x7x64xf32>
    %35 = vector.shape_cast %34 : vector<1x7x7x64xf32> to vector<7x7x64xf32>
    %36 = vector.extract_strided_slice %0 {offsets = [4, 0], sizes = [1, 64], strides = [1, 1]} : vector<9x64xf32> to vector<1x64xf32>
    %37 = vector.shape_cast %36 : vector<1x64xf32> to vector<64xf32>
    %38 = vector.shape_cast %37 : vector<64xf32> to vector<1x1x64xf32>
    %39 = vector.broadcast %38 : vector<1x1x64xf32> to vector<7x7x64xf32>
    %40 = arith.mulf %35, %39 : vector<7x7x64xf32>
    %41 = arith.addf %33, %40 : vector<7x7x64xf32>
    %c2_22 = arith.constant 2 : index
    %c0_23 = arith.constant 0 : index
    %c1_24 = arith.constant 1 : index
    %c0_25 = arith.constant 0 : index
    %42 = vector.load %arg1[%c2_22, %c0_23, %c1_24, %c0_25] : memref<4x8x8x64xf32, #tpu.memory_space<vmem>>, vector<1x7x7x64xf32>
    %43 = vector.shape_cast %42 : vector<1x7x7x64xf32> to vector<7x7x64xf32>
    %44 = vector.extract_strided_slice %0 {offsets = [5, 0], sizes = [1, 64], strides = [1, 1]} : vector<9x64xf32> to vector<1x64xf32>
    %45 = vector.shape_cast %44 : vector<1x64xf32> to vector<64xf32>
    %46 = vector.shape_cast %45 : vector<64xf32> to vector<1x1x64xf32>
    %47 = vector.broadcast %46 : vector<1x1x64xf32> to vector<7x7x64xf32>
    %48 = arith.mulf %43, %47 : vector<7x7x64xf32>
    %49 = arith.addf %41, %48 : vector<7x7x64xf32>
    %c0_26 = arith.constant 0 : index
    %c1_27 = arith.constant 1 : index
    %c0_28 = arith.constant 0 : index
    %c0_29 = arith.constant 0 : index
    %50 = vector.load %arg1[%c0_26, %c1_27, %c0_28, %c0_29] : memref<4x8x8x64xf32, #tpu.memory_space<vmem>>, vector<1x7x7x64xf32>
    %51 = vector.shape_cast %50 : vector<1x7x7x64xf32> to vector<7x7x64xf32>
    %52 = vector.extract_strided_slice %0 {offsets = [6, 0], sizes = [1, 64], strides = [1, 1]} : vector<9x64xf32> to vector<1x64xf32>
    %53 = vector.shape_cast %52 : vector<1x64xf32> to vector<64xf32>
    %54 = vector.shape_cast %53 : vector<64xf32> to vector<1x1x64xf32>
    %55 = vector.broadcast %54 : vector<1x1x64xf32> to vector<7x7x64xf32>
    %56 = arith.mulf %51, %55 : vector<7x7x64xf32>
    %57 = arith.addf %49, %56 : vector<7x7x64xf32>
    %c1_30 = arith.constant 1 : index
    %c1_31 = arith.constant 1 : index
    %c0_32 = arith.constant 0 : index
    %c0_33 = arith.constant 0 : index
    %58 = vector.load %arg1[%c1_30, %c1_31, %c0_32, %c0_33] : memref<4x8x8x64xf32, #tpu.memory_space<vmem>>, vector<1x7x7x64xf32>
    %59 = vector.shape_cast %58 : vector<1x7x7x64xf32> to vector<7x7x64xf32>
    %60 = vector.extract_strided_slice %0 {offsets = [7, 0], sizes = [1, 64], strides = [1, 1]} : vector<9x64xf32> to vector<1x64xf32>
    %61 = vector.shape_cast %60 : vector<1x64xf32> to vector<64xf32>
    %62 = vector.shape_cast %61 : vector<64xf32> to vector<1x1x64xf32>
    %63 = vector.broadcast %62 : vector<1x1x64xf32> to vector<7x7x64xf32>
    %64 = arith.mulf %59, %63 : vector<7x7x64xf32>
    %65 = arith.addf %57, %64 : vector<7x7x64xf32>
    %c0_34 = arith.constant 0 : index
    %c1_35 = arith.constant 1 : index
    %c1_36 = arith.constant 1 : index
    %c0_37 = arith.constant 0 : index
    %66 = vector.load %arg1[%c0_34, %c1_35, %c1_36, %c0_37] : memref<4x8x8x64xf32, #tpu.memory_space<vmem>>, vector<1x7x7x64xf32>
    %67 = vector.shape_cast %66 : vector<1x7x7x64xf32> to vector<7x7x64xf32>
    %68 = vector.extract_strided_slice %0 {offsets = [8, 0], sizes = [1, 64], strides = [1, 1]} : vector<9x64xf32> to vector<1x64xf32>
    %69 = vector.shape_cast %68 : vector<1x64xf32> to vector<64xf32>
    %70 = vector.shape_cast %69 : vector<64xf32> to vector<1x1x64xf32>
    %71 = vector.broadcast %70 : vector<1x1x64xf32> to vector<7x7x64xf32>
    %72 = arith.mulf %67, %71 : vector<7x7x64xf32>
    %73 = arith.addf %65, %72 : vector<7x7x64xf32>
    %74 = vector.shape_cast %1 : vector<1x64xf32> to vector<64xf32>
    %75 = vector.shape_cast %74 : vector<64xf32> to vector<1x1x64xf32>
    %76 = vector.broadcast %75 : vector<1x1x64xf32> to vector<7x7x64xf32>
    %77 = arith.mulf %73, %76 : vector<7x7x64xf32>
    %78 = vector.shape_cast %2 : vector<1x64xf32> to vector<64xf32>
    %79 = vector.shape_cast %78 : vector<64xf32> to vector<1x1x64xf32>
    %80 = vector.broadcast %79 : vector<1x1x64xf32> to vector<7x7x64xf32>
    %81 = arith.addf %77, %80 : vector<7x7x64xf32>
    %cst = arith.constant 0.000000e+00 : f32
    %82 = vector.broadcast %cst : f32 to vector<7x7x64xf32>
    %83 = arith.maximumf %81, %82 : vector<7x7x64xf32>
    %c0_38 = arith.constant 0 : index
    %c0_39 = arith.constant 0 : index
    %c0_40 = arith.constant 0 : index
    %c0_41 = arith.constant 0 : index
    %84 = vector.load %arg5[%c0_38, %c0_39, %c0_40, %c0_41] : memref<1x7x7x64xf32, #tpu.memory_space<vmem>>, vector<1x7x7x64xf32>
    %85 = vector.shape_cast %84 : vector<1x7x7x64xf32> to vector<7x7x64xf32>
    %86 = vector.shape_cast %83 : vector<7x7x64xf32> to vector<1x7x7x64xf32>
    tpu.vector_store %arg5[%c0_38, %c0_39, %c0_40, %c0_41], %86 {strides = array<i32>} : memref<1x7x7x64xf32, #tpu.memory_space<vmem>>, vector<1x7x7x64xf32>,
    return
  }
  func.func @transform_0(%arg0: i32) -> (i32, i32, i32, i32) {
    %c0_i32 = arith.constant 0 : i32
    %c0_i32_0 = arith.constant 0 : i32
    %c0_i32_1 = arith.constant 0 : i32
    %c0_i32_2 = arith.constant 0 : i32
    return %arg0, %c0_i32, %c0_i32_0, %c0_i32_1 : i32, i32, i32, i32
  }
  func.func @transform_1(%arg0: i32) -> (i32, i32) {
    %c0_i32 = arith.constant 0 : i32
    %c0_i32_0 = arith.constant 0 : i32
    %c0_i32_1 = arith.constant 0 : i32
    return %c0_i32, %c0_i32_0 : i32, i32
  }
  func.func @transform_2(%arg0: i32) -> (i32, i32) {
    %c0_i32 = arith.constant 0 : i32
    %c0_i32_0 = arith.constant 0 : i32
    %c0_i32_1 = arith.constant 0 : i32
    return %c0_i32, %c0_i32_0 : i32, i32
  }
  func.func @transform_3(%arg0: i32) -> (i32, i32) {
    %c0_i32 = arith.constant 0 : i32
    %c0_i32_0 = arith.constant 0 : i32
    %c0_i32_1 = arith.constant 0 : i32
    return %c0_i32, %c0_i32_0 : i32, i32
  }
  func.func @transform_4(%arg0: i32) -> (i32, i32, i32, i32) {
    %c0_i32 = arith.constant 0 : i32
    %c0_i32_0 = arith.constant 0 : i32
    %c0_i32_1 = arith.constant 0 : i32
    %c0_i32_2 = arith.constant 0 : i32
    return %arg0, %c0_i32, %c0_i32_0, %c0_i32_1 : i32, i32, i32, i32
  }
}

module attributes {stable_mosaic.version = 11 : i64} {
  func.func @_dw_bn_relu_kernel(%arg0: i32, %arg1: memref<4x4x4x64xf32, #tpu.memory_space<vmem>>, %arg2: memref<9x64xf32, #tpu.memory_space<vmem>>, %arg3: memref<1x64xf32, #tpu.memory_space<vmem>>, %arg4: memref<1x64xf32, #tpu.memory_space<vmem>>, %arg5: memref<1x3x3x64xf32, #tpu.memory_space<vmem>>) attributes {dimension_semantics = [#tpu.dimension_semantics<parallel>], iteration_bounds = array<i64: 2>, scalar_prefetch = 0 : i64, scratch_operands = 0 : i64, tpu.core_type = #tpu.core_type<tc>, window_params = [{transform_indices = @transform_0, window_bounds = array<i64: 4, 4, 4, 64>}, {pipeline_mode = #tpu.pipeline_mode<synchronous>, transform_indices = @transform_1, window_bounds = array<i64: 9, 64>}, {pipeline_mode = #tpu.pipeline_mode<synchronous>, transform_indices = @transform_2, window_bounds = array<i64: 1, 64>}, {pipeline_mode = #tpu.pipeline_mode<synchronous>, transform_indices = @transform_3, window_bounds = array<i64: 1, 64>}, {transform_indices = @transform_4, window_bounds = array<i64: 1, 3, 3, 64>}]} {
    %c0 = arith.constant 0 : index
    %c0_0 = arith.constant 0 : index
    %0 = vector.load %arg2[%c0, %c0_0] : memref<9x64xf32, #tpu.memory_space<vmem>>, vector<9x64xf32>
    %c0_1 = arith.constant 0 : index
    %c0_2 = arith.constant 0 : index
    %1 = vector.load %arg3[%c0_1, %c0_2] : memref<1x64xf32, #tpu.memory_space<vmem>>, vector<1x64xf32>
    %c0_3 = arith.constant 0 : index
    %c0_4 = arith.constant 0 : index
    %2 = vector.load %arg4[%c0_3, %c0_4] : memref<1x64xf32, #tpu.memory_space<vmem>>, vector<1x64xf32>
    %c0_5 = arith.constant 0 : index
    %c0_6 = arith.constant 0 : index
    %c0_7 = arith.constant 0 : index
    %c0_8 = arith.constant 0 : index
    %3 = vector.load %arg1[%c0_5, %c0_6, %c0_7, %c0_8] : memref<4x4x4x64xf32, #tpu.memory_space<vmem>>, vector<1x3x3x64xf32>
    %4 = vector.shape_cast %3 : vector<1x3x3x64xf32> to vector<3x3x64xf32>
    %5 = vector.extract_strided_slice %0 {offsets = [0, 0], sizes = [1, 64], strides = [1, 1]} : vector<9x64xf32> to vector<1x64xf32>
    %6 = vector.shape_cast %5 : vector<1x64xf32> to vector<64xf32>
    %7 = vector.shape_cast %6 : vector<64xf32> to vector<1x1x64xf32>
    %8 = vector.broadcast %7 : vector<1x1x64xf32> to vector<3x3x64xf32>
    %9 = arith.mulf %4, %8 : vector<3x3x64xf32>
    %c1 = arith.constant 1 : index
    %c0_9 = arith.constant 0 : index
    %c0_10 = arith.constant 0 : index
    %c0_11 = arith.constant 0 : index
    %10 = vector.load %arg1[%c1, %c0_9, %c0_10, %c0_11] : memref<4x4x4x64xf32, #tpu.memory_space<vmem>>, vector<1x3x3x64xf32>
    %11 = vector.shape_cast %10 : vector<1x3x3x64xf32> to vector<3x3x64xf32>
    %12 = vector.extract_strided_slice %0 {offsets = [1, 0], sizes = [1, 64], strides = [1, 1]} : vector<9x64xf32> to vector<1x64xf32>
    %13 = vector.shape_cast %12 : vector<1x64xf32> to vector<64xf32>
    %14 = vector.shape_cast %13 : vector<64xf32> to vector<1x1x64xf32>
    %15 = vector.broadcast %14 : vector<1x1x64xf32> to vector<3x3x64xf32>
    %16 = arith.mulf %11, %15 : vector<3x3x64xf32>
    %17 = arith.addf %9, %16 : vector<3x3x64xf32>
    %c0_12 = arith.constant 0 : index
    %c0_13 = arith.constant 0 : index
    %c1_14 = arith.constant 1 : index
    %c0_15 = arith.constant 0 : index
    %18 = vector.load %arg1[%c0_12, %c0_13, %c1_14, %c0_15] : memref<4x4x4x64xf32, #tpu.memory_space<vmem>>, vector<1x3x3x64xf32>
    %19 = vector.shape_cast %18 : vector<1x3x3x64xf32> to vector<3x3x64xf32>
    %20 = vector.extract_strided_slice %0 {offsets = [2, 0], sizes = [1, 64], strides = [1, 1]} : vector<9x64xf32> to vector<1x64xf32>
    %21 = vector.shape_cast %20 : vector<1x64xf32> to vector<64xf32>
    %22 = vector.shape_cast %21 : vector<64xf32> to vector<1x1x64xf32>
    %23 = vector.broadcast %22 : vector<1x1x64xf32> to vector<3x3x64xf32>
    %24 = arith.mulf %19, %23 : vector<3x3x64xf32>
    %25 = arith.addf %17, %24 : vector<3x3x64xf32>
    %c2 = arith.constant 2 : index
    %c0_16 = arith.constant 0 : index
    %c0_17 = arith.constant 0 : index
    %c0_18 = arith.constant 0 : index
    %26 = vector.load %arg1[%c2, %c0_16, %c0_17, %c0_18] : memref<4x4x4x64xf32, #tpu.memory_space<vmem>>, vector<1x3x3x64xf32>
    %27 = vector.shape_cast %26 : vector<1x3x3x64xf32> to vector<3x3x64xf32>
    %28 = vector.extract_strided_slice %0 {offsets = [3, 0], sizes = [1, 64], strides = [1, 1]} : vector<9x64xf32> to vector<1x64xf32>
    %29 = vector.shape_cast %28 : vector<1x64xf32> to vector<64xf32>
    %30 = vector.shape_cast %29 : vector<64xf32> to vector<1x1x64xf32>
    %31 = vector.broadcast %30 : vector<1x1x64xf32> to vector<3x3x64xf32>
    %32 = arith.mulf %27, %31 : vector<3x3x64xf32>
    %33 = arith.addf %25, %32 : vector<3x3x64xf32>
    %c3 = arith.constant 3 : index
    %c0_19 = arith.constant 0 : index
    %c0_20 = arith.constant 0 : index
    %c0_21 = arith.constant 0 : index
    %34 = vector.load %arg1[%c3, %c0_19, %c0_20, %c0_21] : memref<4x4x4x64xf32, #tpu.memory_space<vmem>>, vector<1x3x3x64xf32>
    %35 = vector.shape_cast %34 : vector<1x3x3x64xf32> to vector<3x3x64xf32>
    %36 = vector.extract_strided_slice %0 {offsets = [4, 0], sizes = [1, 64], strides = [1, 1]} : vector<9x64xf32> to vector<1x64xf32>
    %37 = vector.shape_cast %36 : vector<1x64xf32> to vector<64xf32>
    %38 = vector.shape_cast %37 : vector<64xf32> to vector<1x1x64xf32>
    %39 = vector.broadcast %38 : vector<1x1x64xf32> to vector<3x3x64xf32>
    %40 = arith.mulf %35, %39 : vector<3x3x64xf32>
    %41 = arith.addf %33, %40 : vector<3x3x64xf32>
    %c2_22 = arith.constant 2 : index
    %c0_23 = arith.constant 0 : index
    %c1_24 = arith.constant 1 : index
    %c0_25 = arith.constant 0 : index
    %42 = vector.load %arg1[%c2_22, %c0_23, %c1_24, %c0_25] : memref<4x4x4x64xf32, #tpu.memory_space<vmem>>, vector<1x3x3x64xf32>
    %43 = vector.shape_cast %42 : vector<1x3x3x64xf32> to vector<3x3x64xf32>
    %44 = vector.extract_strided_slice %0 {offsets = [5, 0], sizes = [1, 64], strides = [1, 1]} : vector<9x64xf32> to vector<1x64xf32>
    %45 = vector.shape_cast %44 : vector<1x64xf32> to vector<64xf32>
    %46 = vector.shape_cast %45 : vector<64xf32> to vector<1x1x64xf32>
    %47 = vector.broadcast %46 : vector<1x1x64xf32> to vector<3x3x64xf32>
    %48 = arith.mulf %43, %47 : vector<3x3x64xf32>
    %49 = arith.addf %41, %48 : vector<3x3x64xf32>
    %c0_26 = arith.constant 0 : index
    %c1_27 = arith.constant 1 : index
    %c0_28 = arith.constant 0 : index
    %c0_29 = arith.constant 0 : index
    %50 = vector.load %arg1[%c0_26, %c1_27, %c0_28, %c0_29] : memref<4x4x4x64xf32, #tpu.memory_space<vmem>>, vector<1x3x3x64xf32>
    %51 = vector.shape_cast %50 : vector<1x3x3x64xf32> to vector<3x3x64xf32>
    %52 = vector.extract_strided_slice %0 {offsets = [6, 0], sizes = [1, 64], strides = [1, 1]} : vector<9x64xf32> to vector<1x64xf32>
    %53 = vector.shape_cast %52 : vector<1x64xf32> to vector<64xf32>
    %54 = vector.shape_cast %53 : vector<64xf32> to vector<1x1x64xf32>
    %55 = vector.broadcast %54 : vector<1x1x64xf32> to vector<3x3x64xf32>
    %56 = arith.mulf %51, %55 : vector<3x3x64xf32>
    %57 = arith.addf %49, %56 : vector<3x3x64xf32>
    %c1_30 = arith.constant 1 : index
    %c1_31 = arith.constant 1 : index
    %c0_32 = arith.constant 0 : index
    %c0_33 = arith.constant 0 : index
    %58 = vector.load %arg1[%c1_30, %c1_31, %c0_32, %c0_33] : memref<4x4x4x64xf32, #tpu.memory_space<vmem>>, vector<1x3x3x64xf32>
    %59 = vector.shape_cast %58 : vector<1x3x3x64xf32> to vector<3x3x64xf32>
    %60 = vector.extract_strided_slice %0 {offsets = [7, 0], sizes = [1, 64], strides = [1, 1]} : vector<9x64xf32> to vector<1x64xf32>
    %61 = vector.shape_cast %60 : vector<1x64xf32> to vector<64xf32>
    %62 = vector.shape_cast %61 : vector<64xf32> to vector<1x1x64xf32>
    %63 = vector.broadcast %62 : vector<1x1x64xf32> to vector<3x3x64xf32>
    %64 = arith.mulf %59, %63 : vector<3x3x64xf32>
    %65 = arith.addf %57, %64 : vector<3x3x64xf32>
    %c0_34 = arith.constant 0 : index
    %c1_35 = arith.constant 1 : index
    %c1_36 = arith.constant 1 : index
    %c0_37 = arith.constant 0 : index
    %66 = vector.load %arg1[%c0_34, %c1_35, %c1_36, %c0_37] : memref<4x4x4x64xf32, #tpu.memory_space<vmem>>, vector<1x3x3x64xf32>
    %67 = vector.shape_cast %66 : vector<1x3x3x64xf32> to vector<3x3x64xf32>
    %68 = vector.extract_strided_slice %0 {offsets = [8, 0], sizes = [1, 64], strides = [1, 1]} : vector<9x64xf32> to vector<1x64xf32>
    %69 = vector.shape_cast %68 : vector<1x64xf32> to vector<64xf32>
    %70 = vector.shape_cast %69 : vector<64xf32> to vector<1x1x64xf32>
    %71 = vector.broadcast %70 : vector<1x1x64xf32> to vector<3x3x64xf32>
    %72 = arith.mulf %67, %71 : vector<3x3x64xf32>
    %73 = arith.addf %65, %72 : vector<3x3x64xf32>
    %74 = vector.shape_cast %1 : vector<1x64xf32> to vector<64xf32>
    %75 = vector.shape_cast %74 : vector<64xf32> to vector<1x1x64xf32>
    %76 = vector.broadcast %75 : vector<1x1x64xf32> to vector<3x3x64xf32>
    %77 = arith.mulf %73, %76 : vector<3x3x64xf32>
    %78 = vector.shape_cast %2 : vector<1x64xf32> to vector<64xf32>
    %79 = vector.shape_cast %78 : vector<64xf32> to vector<1x1x64xf32>
    %80 = vector.broadcast %79 : vector<1x1x64xf32> to vector<3x3x64xf32>
    %81 = arith.addf %77, %80 : vector<3x3x64xf32>
    %cst = arith.constant 0.000000e+00 : f32
    %82 = vector.broadcast %cst : f32 to vector<3x3x64xf32>
    %83 = arith.maximumf %81, %82 : vector<3x3x64xf32>
    %c0_38 = arith.constant 0 : index
    %c0_39 = arith.constant 0 : index
    %c0_40 = arith.constant 0 : index
    %c0_41 = arith.constant 0 : index
    %84 = vector.load %arg5[%c0_38, %c0_39, %c0_40, %c0_41] : memref<1x3x3x64xf32, #tpu.memory_space<vmem>>, vector<1x3x3x64xf32>
    %85 = vector.shape_cast %84 : vector<1x3x3x64xf32> to vector<3x3x64xf32>
    %86 = vector.shape_cast %83 : vector<3x3x64xf32> to vector<1x3x3x64xf32>
    tpu.vector_store %arg5[%c0_38, %c0_39, %c0_40, %c0_41], %86 {strides = array<i32>} : memref<1x3x3x64xf32, #tpu.memory_space<vmem>>, vector<1x3x3x64xf32>,
    return
  }
  func.func @transform_0(%arg0: i32) -> (i32, i32, i32, i32) {
    %c0_i32 = arith.constant 0 : i32
    %c0_i32_0 = arith.constant 0 : i32
    %c0_i32_1 = arith.constant 0 : i32
    %c0_i32_2 = arith.constant 0 : i32
    return %arg0, %c0_i32, %c0_i32_0, %c0_i32_1 : i32, i32, i32, i32
  }
  func.func @transform_1(%arg0: i32) -> (i32, i32) {
    %c0_i32 = arith.constant 0 : i32
    %c0_i32_0 = arith.constant 0 : i32
    %c0_i32_1 = arith.constant 0 : i32
    return %c0_i32, %c0_i32_0 : i32, i32
  }
  func.func @transform_2(%arg0: i32) -> (i32, i32) {
    %c0_i32 = arith.constant 0 : i32
    %c0_i32_0 = arith.constant 0 : i32
    %c0_i32_1 = arith.constant 0 : i32
    return %c0_i32, %c0_i32_0 : i32, i32
  }
  func.func @transform_3(%arg0: i32) -> (i32, i32) {
    %c0_i32 = arith.constant 0 : i32
    %c0_i32_0 = arith.constant 0 : i32
    %c0_i32_1 = arith.constant 0 : i32
    return %c0_i32, %c0_i32_0 : i32, i32
  }
  func.func @transform_4(%arg0: i32) -> (i32, i32, i32, i32) {
    %c0_i32 = arith.constant 0 : i32
    %c0_i32_0 = arith.constant 0 : i32
    %c0_i32_1 = arith.constant 0 : i32
    %c0_i32_2 = arith.constant 0 : i32
    return %arg0, %c0_i32, %c0_i32_0, %c0_i32_1 : i32, i32, i32, i32
  }
}

module attributes {stable_mosaic.version = 11 : i64} {
  func.func @_flow_kernel(%arg0: i32, %arg1: memref<1x18x18x64xf32, #tpu.memory_space<vmem>>, %arg2: memref<1x18x18x64xf32, #tpu.memory_space<vmem>>, %arg3: memref<9x2x64xf32, #tpu.memory_space<vmem>>, %arg4: memref<9x2x64xf32, #tpu.memory_space<vmem>>, %arg5: memref<1x2x16x16xf32, #tpu.memory_space<vmem>>) attributes {dimension_semantics = [#tpu.dimension_semantics<parallel>], iteration_bounds = array<i64: 2>, scalar_prefetch = 0 : i64, scratch_operands = 0 : i64, tpu.core_type = #tpu.core_type<tc>, window_params = [{transform_indices = @transform_0, window_bounds = array<i64: 1, 18, 18, 64>}, {transform_indices = @transform_1, window_bounds = array<i64: 1, 18, 18, 64>}, {pipeline_mode = #tpu.pipeline_mode<synchronous>, transform_indices = @transform_2, window_bounds = array<i64: 9, 2, 64>}, {pipeline_mode = #tpu.pipeline_mode<synchronous>, transform_indices = @transform_3, window_bounds = array<i64: 9, 2, 64>}, {transform_indices = @transform_4, window_bounds = array<i64: 1, 2, 16, 16>}]} {
    %c0 = arith.constant 0 : index
    %c0_0 = arith.constant 0 : index
    %c0_1 = arith.constant 0 : index
    %0 = vector.load %arg3[%c0, %c0_0, %c0_1] : memref<9x2x64xf32, #tpu.memory_space<vmem>>, vector<9x2x64xf32>
    %c0_2 = arith.constant 0 : index
    %c0_3 = arith.constant 0 : index
    %c0_4 = arith.constant 0 : index
    %1 = vector.load %arg4[%c0_2, %c0_3, %c0_4] : memref<9x2x64xf32, #tpu.memory_space<vmem>>, vector<9x2x64xf32>
    %cst = arith.constant 0.000000e+00 : f32
    %2 = vector.broadcast %cst : f32 to vector<16x16xf32>
    %cst_5 = arith.constant 0.000000e+00 : f32
    %3 = vector.broadcast %cst_5 : f32 to vector<16x16xf32>
    %c0_6 = arith.constant 0 : index
    %c0_7 = arith.constant 0 : index
    %c0_8 = arith.constant 0 : index
    %c0_9 = arith.constant 0 : index
    %4 = vector.load %arg1[%c0_6, %c0_7, %c0_8, %c0_9] : memref<1x18x18x64xf32, #tpu.memory_space<vmem>>, vector<1x16x16x64xf32>
    %5 = vector.shape_cast %4 : vector<1x16x16x64xf32> to vector<16x16x64xf32>
    %c0_10 = arith.constant 0 : index
    %c0_11 = arith.constant 0 : index
    %c0_12 = arith.constant 0 : index
    %c0_13 = arith.constant 0 : index
    %6 = vector.load %arg2[%c0_10, %c0_11, %c0_12, %c0_13] : memref<1x18x18x64xf32, #tpu.memory_space<vmem>>, vector<1x16x16x64xf32>
    %7 = vector.shape_cast %6 : vector<1x16x16x64xf32> to vector<16x16x64xf32>
    %8 = vector.extract_strided_slice %0 {offsets = [0, 0, 0], sizes = [1, 1, 64], strides = [1, 1, 1]} : vector<9x2x64xf32> to vector<1x1x64xf32>
    %9 = vector.shape_cast %8 : vector<1x1x64xf32> to vector<64xf32>
    %10 = vector.shape_cast %9 : vector<64xf32> to vector<1x1x64xf32>
    %11 = vector.broadcast %10 : vector<1x1x64xf32> to vector<16x16x64xf32>
    %12 = arith.mulf %5, %11 : vector<16x16x64xf32>
    %cst_14 = arith.constant dense<0.000000e+00> : vector<16x16xf32>
    %13 = vector.multi_reduction <add>, %12, %cst_14 [2] : vector<16x16x64xf32> to vector<16x16xf32>
    %14 = arith.addf %2, %13 : vector<16x16xf32>
    %15 = vector.extract_strided_slice %1 {offsets = [0, 0, 0], sizes = [1, 1, 64], strides = [1, 1, 1]} : vector<9x2x64xf32> to vector<1x1x64xf32>
    %16 = vector.shape_cast %15 : vector<1x1x64xf32> to vector<64xf32>
    %17 = vector.shape_cast %16 : vector<64xf32> to vector<1x1x64xf32>
    %18 = vector.broadcast %17 : vector<1x1x64xf32> to vector<16x16x64xf32>
    %19 = arith.mulf %7, %18 : vector<16x16x64xf32>
    %cst_15 = arith.constant dense<0.000000e+00> : vector<16x16xf32>
    %20 = vector.multi_reduction <add>, %19, %cst_15 [2] : vector<16x16x64xf32> to vector<16x16xf32>
    %21 = arith.addf %14, %20 : vector<16x16xf32>
    %22 = vector.extract_strided_slice %0 {offsets = [0, 1, 0], sizes = [1, 1, 64], strides = [1, 1, 1]} : vector<9x2x64xf32> to vector<1x1x64xf32>
    %23 = vector.shape_cast %22 : vector<1x1x64xf32> to vector<64xf32>
    %24 = vector.shape_cast %23 : vector<64xf32> to vector<1x1x64xf32>
    %25 = vector.broadcast %24 : vector<1x1x64xf32> to vector<16x16x64xf32>
    %26 = arith.mulf %5, %25 : vector<16x16x64xf32>
    %cst_16 = arith.constant dense<0.000000e+00> : vector<16x16xf32>
    %27 = vector.multi_reduction <add>, %26, %cst_16 [2] : vector<16x16x64xf32> to vector<16x16xf32>
    %28 = arith.addf %3, %27 : vector<16x16xf32>
    %29 = vector.extract_strided_slice %1 {offsets = [0, 1, 0], sizes = [1, 1, 64], strides = [1, 1, 1]} : vector<9x2x64xf32> to vector<1x1x64xf32>
    %30 = vector.shape_cast %29 : vector<1x1x64xf32> to vector<64xf32>
    %31 = vector.shape_cast %30 : vector<64xf32> to vector<1x1x64xf32>
    %32 = vector.broadcast %31 : vector<1x1x64xf32> to vector<16x16x64xf32>
    %33 = arith.mulf %7, %32 : vector<16x16x64xf32>
    %cst_17 = arith.constant dense<0.000000e+00> : vector<16x16xf32>
    %34 = vector.multi_reduction <add>, %33, %cst_17 [2] : vector<16x16x64xf32> to vector<16x16xf32>
    %35 = arith.addf %28, %34 : vector<16x16xf32>
    %c0_18 = arith.constant 0 : index
    %c0_19 = arith.constant 0 : index
    %c1 = arith.constant 1 : index
    %c0_20 = arith.constant 0 : index
    %36 = vector.load %arg1[%c0_18, %c0_19, %c1, %c0_20] : memref<1x18x18x64xf32, #tpu.memory_space<vmem>>, vector<1x16x16x64xf32>
    %37 = vector.shape_cast %36 : vector<1x16x16x64xf32> to vector<16x16x64xf32>
    %c0_21 = arith.constant 0 : index
    %c0_22 = arith.constant 0 : index
    %c1_23 = arith.constant 1 : index
    %c0_24 = arith.constant 0 : index
    %38 = vector.load %arg2[%c0_21, %c0_22, %c1_23, %c0_24] : memref<1x18x18x64xf32, #tpu.memory_space<vmem>>, vector<1x16x16x64xf32>
    %39 = vector.shape_cast %38 : vector<1x16x16x64xf32> to vector<16x16x64xf32>
    %40 = vector.extract_strided_slice %0 {offsets = [1, 0, 0], sizes = [1, 1, 64], strides = [1, 1, 1]} : vector<9x2x64xf32> to vector<1x1x64xf32>
    %41 = vector.shape_cast %40 : vector<1x1x64xf32> to vector<64xf32>
    %42 = vector.shape_cast %41 : vector<64xf32> to vector<1x1x64xf32>
    %43 = vector.broadcast %42 : vector<1x1x64xf32> to vector<16x16x64xf32>
    %44 = arith.mulf %37, %43 : vector<16x16x64xf32>
    %cst_25 = arith.constant dense<0.000000e+00> : vector<16x16xf32>
    %45 = vector.multi_reduction <add>, %44, %cst_25 [2] : vector<16x16x64xf32> to vector<16x16xf32>
    %46 = arith.addf %21, %45 : vector<16x16xf32>
    %47 = vector.extract_strided_slice %1 {offsets = [1, 0, 0], sizes = [1, 1, 64], strides = [1, 1, 1]} : vector<9x2x64xf32> to vector<1x1x64xf32>
    %48 = vector.shape_cast %47 : vector<1x1x64xf32> to vector<64xf32>
    %49 = vector.shape_cast %48 : vector<64xf32> to vector<1x1x64xf32>
    %50 = vector.broadcast %49 : vector<1x1x64xf32> to vector<16x16x64xf32>
    %51 = arith.mulf %39, %50 : vector<16x16x64xf32>
    %cst_26 = arith.constant dense<0.000000e+00> : vector<16x16xf32>
    %52 = vector.multi_reduction <add>, %51, %cst_26 [2] : vector<16x16x64xf32> to vector<16x16xf32>
    %53 = arith.addf %46, %52 : vector<16x16xf32>
    %54 = vector.extract_strided_slice %0 {offsets = [1, 1, 0], sizes = [1, 1, 64], strides = [1, 1, 1]} : vector<9x2x64xf32> to vector<1x1x64xf32>
    %55 = vector.shape_cast %54 : vector<1x1x64xf32> to vector<64xf32>
    %56 = vector.shape_cast %55 : vector<64xf32> to vector<1x1x64xf32>
    %57 = vector.broadcast %56 : vector<1x1x64xf32> to vector<16x16x64xf32>
    %58 = arith.mulf %37, %57 : vector<16x16x64xf32>
    %cst_27 = arith.constant dense<0.000000e+00> : vector<16x16xf32>
    %59 = vector.multi_reduction <add>, %58, %cst_27 [2] : vector<16x16x64xf32> to vector<16x16xf32>
    %60 = arith.addf %35, %59 : vector<16x16xf32>
    %61 = vector.extract_strided_slice %1 {offsets = [1, 1, 0], sizes = [1, 1, 64], strides = [1, 1, 1]} : vector<9x2x64xf32> to vector<1x1x64xf32>
    %62 = vector.shape_cast %61 : vector<1x1x64xf32> to vector<64xf32>
    %63 = vector.shape_cast %62 : vector<64xf32> to vector<1x1x64xf32>
    %64 = vector.broadcast %63 : vector<1x1x64xf32> to vector<16x16x64xf32>
    %65 = arith.mulf %39, %64 : vector<16x16x64xf32>
    %cst_28 = arith.constant dense<0.000000e+00> : vector<16x16xf32>
    %66 = vector.multi_reduction <add>, %65, %cst_28 [2] : vector<16x16x64xf32> to vector<16x16xf32>
    %67 = arith.addf %60, %66 : vector<16x16xf32>
    %c0_29 = arith.constant 0 : index
    %c0_30 = arith.constant 0 : index
    %c2 = arith.constant 2 : index
    %c0_31 = arith.constant 0 : index
    %68 = vector.load %arg1[%c0_29, %c0_30, %c2, %c0_31] : memref<1x18x18x64xf32, #tpu.memory_space<vmem>>, vector<1x16x16x64xf32>
    %69 = vector.shape_cast %68 : vector<1x16x16x64xf32> to vector<16x16x64xf32>
    %c0_32 = arith.constant 0 : index
    %c0_33 = arith.constant 0 : index
    %c2_34 = arith.constant 2 : index
    %c0_35 = arith.constant 0 : index
    %70 = vector.load %arg2[%c0_32, %c0_33, %c2_34, %c0_35] : memref<1x18x18x64xf32, #tpu.memory_space<vmem>>, vector<1x16x16x64xf32>
    %71 = vector.shape_cast %70 : vector<1x16x16x64xf32> to vector<16x16x64xf32>
    %72 = vector.extract_strided_slice %0 {offsets = [2, 0, 0], sizes = [1, 1, 64], strides = [1, 1, 1]} : vector<9x2x64xf32> to vector<1x1x64xf32>
    %73 = vector.shape_cast %72 : vector<1x1x64xf32> to vector<64xf32>
    %74 = vector.shape_cast %73 : vector<64xf32> to vector<1x1x64xf32>
    %75 = vector.broadcast %74 : vector<1x1x64xf32> to vector<16x16x64xf32>
    %76 = arith.mulf %69, %75 : vector<16x16x64xf32>
    %cst_36 = arith.constant dense<0.000000e+00> : vector<16x16xf32>
    %77 = vector.multi_reduction <add>, %76, %cst_36 [2] : vector<16x16x64xf32> to vector<16x16xf32>
    %78 = arith.addf %53, %77 : vector<16x16xf32>
    %79 = vector.extract_strided_slice %1 {offsets = [2, 0, 0], sizes = [1, 1, 64], strides = [1, 1, 1]} : vector<9x2x64xf32> to vector<1x1x64xf32>
    %80 = vector.shape_cast %79 : vector<1x1x64xf32> to vector<64xf32>
    %81 = vector.shape_cast %80 : vector<64xf32> to vector<1x1x64xf32>
    %82 = vector.broadcast %81 : vector<1x1x64xf32> to vector<16x16x64xf32>
    %83 = arith.mulf %71, %82 : vector<16x16x64xf32>
    %cst_37 = arith.constant dense<0.000000e+00> : vector<16x16xf32>
    %84 = vector.multi_reduction <add>, %83, %cst_37 [2] : vector<16x16x64xf32> to vector<16x16xf32>
    %85 = arith.addf %78, %84 : vector<16x16xf32>
    %86 = vector.extract_strided_slice %0 {offsets = [2, 1, 0], sizes = [1, 1, 64], strides = [1, 1, 1]} : vector<9x2x64xf32> to vector<1x1x64xf32>
    %87 = vector.shape_cast %86 : vector<1x1x64xf32> to vector<64xf32>
    %88 = vector.shape_cast %87 : vector<64xf32> to vector<1x1x64xf32>
    %89 = vector.broadcast %88 : vector<1x1x64xf32> to vector<16x16x64xf32>
    %90 = arith.mulf %69, %89 : vector<16x16x64xf32>
    %cst_38 = arith.constant dense<0.000000e+00> : vector<16x16xf32>
    %91 = vector.multi_reduction <add>, %90, %cst_38 [2] : vector<16x16x64xf32> to vector<16x16xf32>
    %92 = arith.addf %67, %91 : vector<16x16xf32>
    %93 = vector.extract_strided_slice %1 {offsets = [2, 1, 0], sizes = [1, 1, 64], strides = [1, 1, 1]} : vector<9x2x64xf32> to vector<1x1x64xf32>
    %94 = vector.shape_cast %93 : vector<1x1x64xf32> to vector<64xf32>
    %95 = vector.shape_cast %94 : vector<64xf32> to vector<1x1x64xf32>
    %96 = vector.broadcast %95 : vector<1x1x64xf32> to vector<16x16x64xf32>
    %97 = arith.mulf %71, %96 : vector<16x16x64xf32>
    %cst_39 = arith.constant dense<0.000000e+00> : vector<16x16xf32>
    %98 = vector.multi_reduction <add>, %97, %cst_39 [2] : vector<16x16x64xf32> to vector<16x16xf32>
    %99 = arith.addf %92, %98 : vector<16x16xf32>
    %c0_40 = arith.constant 0 : index
    %c1_41 = arith.constant 1 : index
    %c0_42 = arith.constant 0 : index
    %c0_43 = arith.constant 0 : index
    %100 = vector.load %arg1[%c0_40, %c1_41, %c0_42, %c0_43] : memref<1x18x18x64xf32, #tpu.memory_space<vmem>>, vector<1x16x16x64xf32>
    %101 = vector.shape_cast %100 : vector<1x16x16x64xf32> to vector<16x16x64xf32>
    %c0_44 = arith.constant 0 : index
    %c1_45 = arith.constant 1 : index
    %c0_46 = arith.constant 0 : index
    %c0_47 = arith.constant 0 : index
    %102 = vector.load %arg2[%c0_44, %c1_45, %c0_46, %c0_47] : memref<1x18x18x64xf32, #tpu.memory_space<vmem>>, vector<1x16x16x64xf32>
    %103 = vector.shape_cast %102 : vector<1x16x16x64xf32> to vector<16x16x64xf32>
    %104 = vector.extract_strided_slice %0 {offsets = [3, 0, 0], sizes = [1, 1, 64], strides = [1, 1, 1]} : vector<9x2x64xf32> to vector<1x1x64xf32>
    %105 = vector.shape_cast %104 : vector<1x1x64xf32> to vector<64xf32>
    %106 = vector.shape_cast %105 : vector<64xf32> to vector<1x1x64xf32>
    %107 = vector.broadcast %106 : vector<1x1x64xf32> to vector<16x16x64xf32>
    %108 = arith.mulf %101, %107 : vector<16x16x64xf32>
    %cst_48 = arith.constant dense<0.000000e+00> : vector<16x16xf32>
    %109 = vector.multi_reduction <add>, %108, %cst_48 [2] : vector<16x16x64xf32> to vector<16x16xf32>
    %110 = arith.addf %85, %109 : vector<16x16xf32>
    %111 = vector.extract_strided_slice %1 {offsets = [3, 0, 0], sizes = [1, 1, 64], strides = [1, 1, 1]} : vector<9x2x64xf32> to vector<1x1x64xf32>
    %112 = vector.shape_cast %111 : vector<1x1x64xf32> to vector<64xf32>
    %113 = vector.shape_cast %112 : vector<64xf32> to vector<1x1x64xf32>
    %114 = vector.broadcast %113 : vector<1x1x64xf32> to vector<16x16x64xf32>
    %115 = arith.mulf %103, %114 : vector<16x16x64xf32>
    %cst_49 = arith.constant dense<0.000000e+00> : vector<16x16xf32>
    %116 = vector.multi_reduction <add>, %115, %cst_49 [2] : vector<16x16x64xf32> to vector<16x16xf32>
    %117 = arith.addf %110, %116 : vector<16x16xf32>
    %118 = vector.extract_strided_slice %0 {offsets = [3, 1, 0], sizes = [1, 1, 64], strides = [1, 1, 1]} : vector<9x2x64xf32> to vector<1x1x64xf32>
    %119 = vector.shape_cast %118 : vector<1x1x64xf32> to vector<64xf32>
    %120 = vector.shape_cast %119 : vector<64xf32> to vector<1x1x64xf32>
    %121 = vector.broadcast %120 : vector<1x1x64xf32> to vector<16x16x64xf32>
    %122 = arith.mulf %101, %121 : vector<16x16x64xf32>
    %cst_50 = arith.constant dense<0.000000e+00> : vector<16x16xf32>
    %123 = vector.multi_reduction <add>, %122, %cst_50 [2] : vector<16x16x64xf32> to vector<16x16xf32>
    %124 = arith.addf %99, %123 : vector<16x16xf32>
    %125 = vector.extract_strided_slice %1 {offsets = [3, 1, 0], sizes = [1, 1, 64], strides = [1, 1, 1]} : vector<9x2x64xf32> to vector<1x1x64xf32>
    %126 = vector.shape_cast %125 : vector<1x1x64xf32> to vector<64xf32>
    %127 = vector.shape_cast %126 : vector<64xf32> to vector<1x1x64xf32>
    %128 = vector.broadcast %127 : vector<1x1x64xf32> to vector<16x16x64xf32>
    %129 = arith.mulf %103, %128 : vector<16x16x64xf32>
    %cst_51 = arith.constant dense<0.000000e+00> : vector<16x16xf32>
    %130 = vector.multi_reduction <add>, %129, %cst_51 [2] : vector<16x16x64xf32> to vector<16x16xf32>
    %131 = arith.addf %124, %130 : vector<16x16xf32>
    %c0_52 = arith.constant 0 : index
    %c1_53 = arith.constant 1 : index
    %c1_54 = arith.constant 1 : index
    %c0_55 = arith.constant 0 : index
    %132 = vector.load %arg1[%c0_52, %c1_53, %c1_54, %c0_55] : memref<1x18x18x64xf32, #tpu.memory_space<vmem>>, vector<1x16x16x64xf32>
    %133 = vector.shape_cast %132 : vector<1x16x16x64xf32> to vector<16x16x64xf32>
    %c0_56 = arith.constant 0 : index
    %c1_57 = arith.constant 1 : index
    %c1_58 = arith.constant 1 : index
    %c0_59 = arith.constant 0 : index
    %134 = vector.load %arg2[%c0_56, %c1_57, %c1_58, %c0_59] : memref<1x18x18x64xf32, #tpu.memory_space<vmem>>, vector<1x16x16x64xf32>
    %135 = vector.shape_cast %134 : vector<1x16x16x64xf32> to vector<16x16x64xf32>
    %136 = vector.extract_strided_slice %0 {offsets = [4, 0, 0], sizes = [1, 1, 64], strides = [1, 1, 1]} : vector<9x2x64xf32> to vector<1x1x64xf32>
    %137 = vector.shape_cast %136 : vector<1x1x64xf32> to vector<64xf32>
    %138 = vector.shape_cast %137 : vector<64xf32> to vector<1x1x64xf32>
    %139 = vector.broadcast %138 : vector<1x1x64xf32> to vector<16x16x64xf32>
    %140 = arith.mulf %133, %139 : vector<16x16x64xf32>
    %cst_60 = arith.constant dense<0.000000e+00> : vector<16x16xf32>
    %141 = vector.multi_reduction <add>, %140, %cst_60 [2] : vector<16x16x64xf32> to vector<16x16xf32>
    %142 = arith.addf %117, %141 : vector<16x16xf32>
    %143 = vector.extract_strided_slice %1 {offsets = [4, 0, 0], sizes = [1, 1, 64], strides = [1, 1, 1]} : vector<9x2x64xf32> to vector<1x1x64xf32>
    %144 = vector.shape_cast %143 : vector<1x1x64xf32> to vector<64xf32>
    %145 = vector.shape_cast %144 : vector<64xf32> to vector<1x1x64xf32>
    %146 = vector.broadcast %145 : vector<1x1x64xf32> to vector<16x16x64xf32>
    %147 = arith.mulf %135, %146 : vector<16x16x64xf32>
    %cst_61 = arith.constant dense<0.000000e+00> : vector<16x16xf32>
    %148 = vector.multi_reduction <add>, %147, %cst_61 [2] : vector<16x16x64xf32> to vector<16x16xf32>
    %149 = arith.addf %142, %148 : vector<16x16xf32>
    %150 = vector.extract_strided_slice %0 {offsets = [4, 1, 0], sizes = [1, 1, 64], strides = [1, 1, 1]} : vector<9x2x64xf32> to vector<1x1x64xf32>
    %151 = vector.shape_cast %150 : vector<1x1x64xf32> to vector<64xf32>
    %152 = vector.shape_cast %151 : vector<64xf32> to vector<1x1x64xf32>
    %153 = vector.broadcast %152 : vector<1x1x64xf32> to vector<16x16x64xf32>
    %154 = arith.mulf %133, %153 : vector<16x16x64xf32>
    %cst_62 = arith.constant dense<0.000000e+00> : vector<16x16xf32>
    %155 = vector.multi_reduction <add>, %154, %cst_62 [2] : vector<16x16x64xf32> to vector<16x16xf32>
    %156 = arith.addf %131, %155 : vector<16x16xf32>
    %157 = vector.extract_strided_slice %1 {offsets = [4, 1, 0], sizes = [1, 1, 64], strides = [1, 1, 1]} : vector<9x2x64xf32> to vector<1x1x64xf32>
    %158 = vector.shape_cast %157 : vector<1x1x64xf32> to vector<64xf32>
    %159 = vector.shape_cast %158 : vector<64xf32> to vector<1x1x64xf32>
    %160 = vector.broadcast %159 : vector<1x1x64xf32> to vector<16x16x64xf32>
    %161 = arith.mulf %135, %160 : vector<16x16x64xf32>
    %cst_63 = arith.constant dense<0.000000e+00> : vector<16x16xf32>
    %162 = vector.multi_reduction <add>, %161, %cst_63 [2] : vector<16x16x64xf32> to vector<16x16xf32>
    %163 = arith.addf %156, %162 : vector<16x16xf32>
    %c0_64 = arith.constant 0 : index
    %c1_65 = arith.constant 1 : index
    %c2_66 = arith.constant 2 : index
    %c0_67 = arith.constant 0 : index
    %164 = vector.load %arg1[%c0_64, %c1_65, %c2_66, %c0_67] : memref<1x18x18x64xf32, #tpu.memory_space<vmem>>, vector<1x16x16x64xf32>
    %165 = vector.shape_cast %164 : vector<1x16x16x64xf32> to vector<16x16x64xf32>
    %c0_68 = arith.constant 0 : index
    %c1_69 = arith.constant 1 : index
    %c2_70 = arith.constant 2 : index
    %c0_71 = arith.constant 0 : index
    %166 = vector.load %arg2[%c0_68, %c1_69, %c2_70, %c0_71] : memref<1x18x18x64xf32, #tpu.memory_space<vmem>>, vector<1x16x16x64xf32>
    %167 = vector.shape_cast %166 : vector<1x16x16x64xf32> to vector<16x16x64xf32>
    %168 = vector.extract_strided_slice %0 {offsets = [5, 0, 0], sizes = [1, 1, 64], strides = [1, 1, 1]} : vector<9x2x64xf32> to vector<1x1x64xf32>
    %169 = vector.shape_cast %168 : vector<1x1x64xf32> to vector<64xf32>
    %170 = vector.shape_cast %169 : vector<64xf32> to vector<1x1x64xf32>
    %171 = vector.broadcast %170 : vector<1x1x64xf32> to vector<16x16x64xf32>
    %172 = arith.mulf %165, %171 : vector<16x16x64xf32>
    %cst_72 = arith.constant dense<0.000000e+00> : vector<16x16xf32>
    %173 = vector.multi_reduction <add>, %172, %cst_72 [2] : vector<16x16x64xf32> to vector<16x16xf32>
    %174 = arith.addf %149, %173 : vector<16x16xf32>
    %175 = vector.extract_strided_slice %1 {offsets = [5, 0, 0], sizes = [1, 1, 64], strides = [1, 1, 1]} : vector<9x2x64xf32> to vector<1x1x64xf32>
    %176 = vector.shape_cast %175 : vector<1x1x64xf32> to vector<64xf32>
    %177 = vector.shape_cast %176 : vector<64xf32> to vector<1x1x64xf32>
    %178 = vector.broadcast %177 : vector<1x1x64xf32> to vector<16x16x64xf32>
    %179 = arith.mulf %167, %178 : vector<16x16x64xf32>
    %cst_73 = arith.constant dense<0.000000e+00> : vector<16x16xf32>
    %180 = vector.multi_reduction <add>, %179, %cst_73 [2] : vector<16x16x64xf32> to vector<16x16xf32>
    %181 = arith.addf %174, %180 : vector<16x16xf32>
    %182 = vector.extract_strided_slice %0 {offsets = [5, 1, 0], sizes = [1, 1, 64], strides = [1, 1, 1]} : vector<9x2x64xf32> to vector<1x1x64xf32>
    %183 = vector.shape_cast %182 : vector<1x1x64xf32> to vector<64xf32>
    %184 = vector.shape_cast %183 : vector<64xf32> to vector<1x1x64xf32>
    %185 = vector.broadcast %184 : vector<1x1x64xf32> to vector<16x16x64xf32>
    %186 = arith.mulf %165, %185 : vector<16x16x64xf32>
    %cst_74 = arith.constant dense<0.000000e+00> : vector<16x16xf32>
    %187 = vector.multi_reduction <add>, %186, %cst_74 [2] : vector<16x16x64xf32> to vector<16x16xf32>
    %188 = arith.addf %163, %187 : vector<16x16xf32>
    %189 = vector.extract_strided_slice %1 {offsets = [5, 1, 0], sizes = [1, 1, 64], strides = [1, 1, 1]} : vector<9x2x64xf32> to vector<1x1x64xf32>
    %190 = vector.shape_cast %189 : vector<1x1x64xf32> to vector<64xf32>
    %191 = vector.shape_cast %190 : vector<64xf32> to vector<1x1x64xf32>
    %192 = vector.broadcast %191 : vector<1x1x64xf32> to vector<16x16x64xf32>
    %193 = arith.mulf %167, %192 : vector<16x16x64xf32>
    %cst_75 = arith.constant dense<0.000000e+00> : vector<16x16xf32>
    %194 = vector.multi_reduction <add>, %193, %cst_75 [2] : vector<16x16x64xf32> to vector<16x16xf32>
    %195 = arith.addf %188, %194 : vector<16x16xf32>
    %c0_76 = arith.constant 0 : index
    %c2_77 = arith.constant 2 : index
    %c0_78 = arith.constant 0 : index
    %c0_79 = arith.constant 0 : index
    %196 = vector.load %arg1[%c0_76, %c2_77, %c0_78, %c0_79] : memref<1x18x18x64xf32, #tpu.memory_space<vmem>>, vector<1x16x16x64xf32>
    %197 = vector.shape_cast %196 : vector<1x16x16x64xf32> to vector<16x16x64xf32>
    %c0_80 = arith.constant 0 : index
    %c2_81 = arith.constant 2 : index
    %c0_82 = arith.constant 0 : index
    %c0_83 = arith.constant 0 : index
    %198 = vector.load %arg2[%c0_80, %c2_81, %c0_82, %c0_83] : memref<1x18x18x64xf32, #tpu.memory_space<vmem>>, vector<1x16x16x64xf32>
    %199 = vector.shape_cast %198 : vector<1x16x16x64xf32> to vector<16x16x64xf32>
    %200 = vector.extract_strided_slice %0 {offsets = [6, 0, 0], sizes = [1, 1, 64], strides = [1, 1, 1]} : vector<9x2x64xf32> to vector<1x1x64xf32>
    %201 = vector.shape_cast %200 : vector<1x1x64xf32> to vector<64xf32>
    %202 = vector.shape_cast %201 : vector<64xf32> to vector<1x1x64xf32>
    %203 = vector.broadcast %202 : vector<1x1x64xf32> to vector<16x16x64xf32>
    %204 = arith.mulf %197, %203 : vector<16x16x64xf32>
    %cst_84 = arith.constant dense<0.000000e+00> : vector<16x16xf32>
    %205 = vector.multi_reduction <add>, %204, %cst_84 [2] : vector<16x16x64xf32> to vector<16x16xf32>
    %206 = arith.addf %181, %205 : vector<16x16xf32>
    %207 = vector.extract_strided_slice %1 {offsets = [6, 0, 0], sizes = [1, 1, 64], strides = [1, 1, 1]} : vector<9x2x64xf32> to vector<1x1x64xf32>
    %208 = vector.shape_cast %207 : vector<1x1x64xf32> to vector<64xf32>
    %209 = vector.shape_cast %208 : vector<64xf32> to vector<1x1x64xf32>
    %210 = vector.broadcast %209 : vector<1x1x64xf32> to vector<16x16x64xf32>
    %211 = arith.mulf %199, %210 : vector<16x16x64xf32>
    %cst_85 = arith.constant dense<0.000000e+00> : vector<16x16xf32>
    %212 = vector.multi_reduction <add>, %211, %cst_85 [2] : vector<16x16x64xf32> to vector<16x16xf32>
    %213 = arith.addf %206, %212 : vector<16x16xf32>
    %214 = vector.extract_strided_slice %0 {offsets = [6, 1, 0], sizes = [1, 1, 64], strides = [1, 1, 1]} : vector<9x2x64xf32> to vector<1x1x64xf32>
    %215 = vector.shape_cast %214 : vector<1x1x64xf32> to vector<64xf32>
    %216 = vector.shape_cast %215 : vector<64xf32> to vector<1x1x64xf32>
    %217 = vector.broadcast %216 : vector<1x1x64xf32> to vector<16x16x64xf32>
    %218 = arith.mulf %197, %217 : vector<16x16x64xf32>
    %cst_86 = arith.constant dense<0.000000e+00> : vector<16x16xf32>
    %219 = vector.multi_reduction <add>, %218, %cst_86 [2] : vector<16x16x64xf32> to vector<16x16xf32>
    %220 = arith.addf %195, %219 : vector<16x16xf32>
    %221 = vector.extract_strided_slice %1 {offsets = [6, 1, 0], sizes = [1, 1, 64], strides = [1, 1, 1]} : vector<9x2x64xf32> to vector<1x1x64xf32>
    %222 = vector.shape_cast %221 : vector<1x1x64xf32> to vector<64xf32>
    %223 = vector.shape_cast %222 : vector<64xf32> to vector<1x1x64xf32>
    %224 = vector.broadcast %223 : vector<1x1x64xf32> to vector<16x16x64xf32>
    %225 = arith.mulf %199, %224 : vector<16x16x64xf32>
    %cst_87 = arith.constant dense<0.000000e+00> : vector<16x16xf32>
    %226 = vector.multi_reduction <add>, %225, %cst_87 [2] : vector<16x16x64xf32> to vector<16x16xf32>
    %227 = arith.addf %220, %226 : vector<16x16xf32>
    %c0_88 = arith.constant 0 : index
    %c2_89 = arith.constant 2 : index
    %c1_90 = arith.constant 1 : index
    %c0_91 = arith.constant 0 : index
    %228 = vector.load %arg1[%c0_88, %c2_89, %c1_90, %c0_91] : memref<1x18x18x64xf32, #tpu.memory_space<vmem>>, vector<1x16x16x64xf32>
    %229 = vector.shape_cast %228 : vector<1x16x16x64xf32> to vector<16x16x64xf32>
    %c0_92 = arith.constant 0 : index
    %c2_93 = arith.constant 2 : index
    %c1_94 = arith.constant 1 : index
    %c0_95 = arith.constant 0 : index
    %230 = vector.load %arg2[%c0_92, %c2_93, %c1_94, %c0_95] : memref<1x18x18x64xf32, #tpu.memory_space<vmem>>, vector<1x16x16x64xf32>
    %231 = vector.shape_cast %230 : vector<1x16x16x64xf32> to vector<16x16x64xf32>
    %232 = vector.extract_strided_slice %0 {offsets = [7, 0, 0], sizes = [1, 1, 64], strides = [1, 1, 1]} : vector<9x2x64xf32> to vector<1x1x64xf32>
    %233 = vector.shape_cast %232 : vector<1x1x64xf32> to vector<64xf32>
    %234 = vector.shape_cast %233 : vector<64xf32> to vector<1x1x64xf32>
    %235 = vector.broadcast %234 : vector<1x1x64xf32> to vector<16x16x64xf32>
    %236 = arith.mulf %229, %235 : vector<16x16x64xf32>
    %cst_96 = arith.constant dense<0.000000e+00> : vector<16x16xf32>
    %237 = vector.multi_reduction <add>, %236, %cst_96 [2] : vector<16x16x64xf32> to vector<16x16xf32>
    %238 = arith.addf %213, %237 : vector<16x16xf32>
    %239 = vector.extract_strided_slice %1 {offsets = [7, 0, 0], sizes = [1, 1, 64], strides = [1, 1, 1]} : vector<9x2x64xf32> to vector<1x1x64xf32>
    %240 = vector.shape_cast %239 : vector<1x1x64xf32> to vector<64xf32>
    %241 = vector.shape_cast %240 : vector<64xf32> to vector<1x1x64xf32>
    %242 = vector.broadcast %241 : vector<1x1x64xf32> to vector<16x16x64xf32>
    %243 = arith.mulf %231, %242 : vector<16x16x64xf32>
    %cst_97 = arith.constant dense<0.000000e+00> : vector<16x16xf32>
    %244 = vector.multi_reduction <add>, %243, %cst_97 [2] : vector<16x16x64xf32> to vector<16x16xf32>
    %245 = arith.addf %238, %244 : vector<16x16xf32>
    %246 = vector.extract_strided_slice %0 {offsets = [7, 1, 0], sizes = [1, 1, 64], strides = [1, 1, 1]} : vector<9x2x64xf32> to vector<1x1x64xf32>
    %247 = vector.shape_cast %246 : vector<1x1x64xf32> to vector<64xf32>
    %248 = vector.shape_cast %247 : vector<64xf32> to vector<1x1x64xf32>
    %249 = vector.broadcast %248 : vector<1x1x64xf32> to vector<16x16x64xf32>
    %250 = arith.mulf %229, %249 : vector<16x16x64xf32>
    %cst_98 = arith.constant dense<0.000000e+00> : vector<16x16xf32>
    %251 = vector.multi_reduction <add>, %250, %cst_98 [2] : vector<16x16x64xf32> to vector<16x16xf32>
    %252 = arith.addf %227, %251 : vector<16x16xf32>
    %253 = vector.extract_strided_slice %1 {offsets = [7, 1, 0], sizes = [1, 1, 64], strides = [1, 1, 1]} : vector<9x2x64xf32> to vector<1x1x64xf32>
    %254 = vector.shape_cast %253 : vector<1x1x64xf32> to vector<64xf32>
    %255 = vector.shape_cast %254 : vector<64xf32> to vector<1x1x64xf32>
    %256 = vector.broadcast %255 : vector<1x1x64xf32> to vector<16x16x64xf32>
    %257 = arith.mulf %231, %256 : vector<16x16x64xf32>
    %cst_99 = arith.constant dense<0.000000e+00> : vector<16x16xf32>
    %258 = vector.multi_reduction <add>, %257, %cst_99 [2] : vector<16x16x64xf32> to vector<16x16xf32>
    %259 = arith.addf %252, %258 : vector<16x16xf32>
    %c0_100 = arith.constant 0 : index
    %c2_101 = arith.constant 2 : index
    %c2_102 = arith.constant 2 : index
    %c0_103 = arith.constant 0 : index
    %260 = vector.load %arg1[%c0_100, %c2_101, %c2_102, %c0_103] : memref<1x18x18x64xf32, #tpu.memory_space<vmem>>, vector<1x16x16x64xf32>
    %261 = vector.shape_cast %260 : vector<1x16x16x64xf32> to vector<16x16x64xf32>
    %c0_104 = arith.constant 0 : index
    %c2_105 = arith.constant 2 : index
    %c2_106 = arith.constant 2 : index
    %c0_107 = arith.constant 0 : index
    %262 = vector.load %arg2[%c0_104, %c2_105, %c2_106, %c0_107] : memref<1x18x18x64xf32, #tpu.memory_space<vmem>>, vector<1x16x16x64xf32>
    %263 = vector.shape_cast %262 : vector<1x16x16x64xf32> to vector<16x16x64xf32>
    %264 = vector.extract_strided_slice %0 {offsets = [8, 0, 0], sizes = [1, 1, 64], strides = [1, 1, 1]} : vector<9x2x64xf32> to vector<1x1x64xf32>
    %265 = vector.shape_cast %264 : vector<1x1x64xf32> to vector<64xf32>
    %266 = vector.shape_cast %265 : vector<64xf32> to vector<1x1x64xf32>
    %267 = vector.broadcast %266 : vector<1x1x64xf32> to vector<16x16x64xf32>
    %268 = arith.mulf %261, %267 : vector<16x16x64xf32>
    %cst_108 = arith.constant dense<0.000000e+00> : vector<16x16xf32>
    %269 = vector.multi_reduction <add>, %268, %cst_108 [2] : vector<16x16x64xf32> to vector<16x16xf32>
    %270 = arith.addf %245, %269 : vector<16x16xf32>
    %271 = vector.extract_strided_slice %1 {offsets = [8, 0, 0], sizes = [1, 1, 64], strides = [1, 1, 1]} : vector<9x2x64xf32> to vector<1x1x64xf32>
    %272 = vector.shape_cast %271 : vector<1x1x64xf32> to vector<64xf32>
    %273 = vector.shape_cast %272 : vector<64xf32> to vector<1x1x64xf32>
    %274 = vector.broadcast %273 : vector<1x1x64xf32> to vector<16x16x64xf32>
    %275 = arith.mulf %263, %274 : vector<16x16x64xf32>
    %cst_109 = arith.constant dense<0.000000e+00> : vector<16x16xf32>
    %276 = vector.multi_reduction <add>, %275, %cst_109 [2] : vector<16x16x64xf32> to vector<16x16xf32>
    %277 = arith.addf %270, %276 : vector<16x16xf32>
    %278 = vector.extract_strided_slice %0 {offsets = [8, 1, 0], sizes = [1, 1, 64], strides = [1, 1, 1]} : vector<9x2x64xf32> to vector<1x1x64xf32>
    %279 = vector.shape_cast %278 : vector<1x1x64xf32> to vector<64xf32>
    %280 = vector.shape_cast %279 : vector<64xf32> to vector<1x1x64xf32>
    %281 = vector.broadcast %280 : vector<1x1x64xf32> to vector<16x16x64xf32>
    %282 = arith.mulf %261, %281 : vector<16x16x64xf32>
    %cst_110 = arith.constant dense<0.000000e+00> : vector<16x16xf32>
    %283 = vector.multi_reduction <add>, %282, %cst_110 [2] : vector<16x16x64xf32> to vector<16x16xf32>
    %284 = arith.addf %259, %283 : vector<16x16xf32>
    %285 = vector.extract_strided_slice %1 {offsets = [8, 1, 0], sizes = [1, 1, 64], strides = [1, 1, 1]} : vector<9x2x64xf32> to vector<1x1x64xf32>
    %286 = vector.shape_cast %285 : vector<1x1x64xf32> to vector<64xf32>
    %287 = vector.shape_cast %286 : vector<64xf32> to vector<1x1x64xf32>
    %288 = vector.broadcast %287 : vector<1x1x64xf32> to vector<16x16x64xf32>
    %289 = arith.mulf %263, %288 : vector<16x16x64xf32>
    %cst_111 = arith.constant dense<0.000000e+00> : vector<16x16xf32>
    %290 = vector.multi_reduction <add>, %289, %cst_111 [2] : vector<16x16x64xf32> to vector<16x16xf32>
    %291 = arith.addf %284, %290 : vector<16x16xf32>
    %c0_112 = arith.constant 0 : index
    %c0_113 = arith.constant 0 : index
    %c0_114 = arith.constant 0 : index
    %c0_115 = arith.constant 0 : index
    %292 = vector.load %arg5[%c0_112, %c0_113, %c0_114, %c0_115] : memref<1x2x16x16xf32, #tpu.memory_space<vmem>>, vector<1x1x16x16xf32>
    %293 = vector.shape_cast %292 : vector<1x1x16x16xf32> to vector<16x16xf32>
    %294 = vector.shape_cast %277 : vector<16x16xf32> to vector<1x1x16x16xf32>
    tpu.vector_store %arg5[%c0_112, %c0_113, %c0_114, %c0_115], %294 {strides = array<i32>} : memref<1x2x16x16xf32, #tpu.memory_space<vmem>>, vector<1x1x16x16xf32>,
    %c0_116 = arith.constant 0 : index
    %c1_117 = arith.constant 1 : index
    %c0_118 = arith.constant 0 : index
    %c0_119 = arith.constant 0 : index
    %295 = vector.load %arg5[%c0_116, %c1_117, %c0_118, %c0_119] : memref<1x2x16x16xf32, #tpu.memory_space<vmem>>, vector<1x1x16x16xf32>
    %296 = vector.shape_cast %295 : vector<1x1x16x16xf32> to vector<16x16xf32>
    %297 = vector.shape_cast %291 : vector<16x16xf32> to vector<1x1x16x16xf32>
    tpu.vector_store %arg5[%c0_116, %c1_117, %c0_118, %c0_119], %297 {strides = array<i32>} : memref<1x2x16x16xf32, #tpu.memory_space<vmem>>, vector<1x1x16x16xf32>,
    return
  }
  func.func @transform_0(%arg0: i32) -> (i32, i32, i32, i32) {
    %c0_i32 = arith.constant 0 : i32
    %c0_i32_0 = arith.constant 0 : i32
    %c0_i32_1 = arith.constant 0 : i32
    %c0_i32_2 = arith.constant 0 : i32
    return %arg0, %c0_i32, %c0_i32_0, %c0_i32_1 : i32, i32, i32, i32
  }
  func.func @transform_1(%arg0: i32) -> (i32, i32, i32, i32) {
    %c0_i32 = arith.constant 0 : i32
    %c0_i32_0 = arith.constant 0 : i32
    %c0_i32_1 = arith.constant 0 : i32
    %c0_i32_2 = arith.constant 0 : i32
    return %arg0, %c0_i32, %c0_i32_0, %c0_i32_1 : i32, i32, i32, i32
  }
  func.func @transform_2(%arg0: i32) -> (i32, i32, i32) {
    %c0_i32 = arith.constant 0 : i32
    %c0_i32_0 = arith.constant 0 : i32
    %c0_i32_1 = arith.constant 0 : i32
    %c0_i32_2 = arith.constant 0 : i32
    return %c0_i32, %c0_i32_0, %c0_i32_1 : i32, i32, i32
  }
  func.func @transform_3(%arg0: i32) -> (i32, i32, i32) {
    %c0_i32 = arith.constant 0 : i32
    %c0_i32_0 = arith.constant 0 : i32
    %c0_i32_1 = arith.constant 0 : i32
    %c0_i32_2 = arith.constant 0 : i32
    return %c0_i32, %c0_i32_0, %c0_i32_1 : i32, i32, i32
  }
  func.func @transform_4(%arg0: i32) -> (i32, i32, i32, i32) {
    %c0_i32 = arith.constant 0 : i32
    %c0_i32_0 = arith.constant 0 : i32
    %c0_i32_1 = arith.constant 0 : i32
    %c0_i32_2 = arith.constant 0 : i32
    return %arg0, %c0_i32, %c0_i32_0, %c0_i32_1 : i32, i32, i32, i32
  }
}

module attributes {stable_mosaic.version = 11 : i64} {
  func.func @_fused_tail_kernel(%arg0: i32, %arg1: memref<512x64xf32, #tpu.memory_space<vmem>>, %arg2: memref<512x64xf32, #tpu.memory_space<vmem>>, %arg3: memref<512x64xf32, #tpu.memory_space<vmem>>, %arg4: memref<64x64xf32, #tpu.memory_space<vmem>>, %arg5: memref<64x64xf32, #tpu.memory_space<vmem>>, %arg6: memref<1x64xf32, #tpu.memory_space<vmem>>, %arg7: memref<64x64xf32, #tpu.memory_space<vmem>>, %arg8: memref<64x64xf32, #tpu.memory_space<vmem>>, %arg9: memref<1x64xf32, #tpu.memory_space<vmem>>, %arg10: memref<512x64xf32, #tpu.memory_space<vmem>>) attributes {dimension_semantics = [#tpu.dimension_semantics<parallel>], iteration_bounds = array<i64: 1>, scalar_prefetch = 0 : i64, scratch_operands = 0 : i64, tpu.core_type = #tpu.core_type<tc>, window_params = [{transform_indices = @transform_0, window_bounds = array<i64: 512, 64>}, {transform_indices = @transform_1, window_bounds = array<i64: 512, 64>}, {transform_indices = @transform_2, window_bounds = array<i64: 512, 64>}, {pipeline_mode = #tpu.pipeline_mode<synchronous>, transform_indices = @transform_3, window_bounds = array<i64: 64, 64>}, {pipeline_mode = #tpu.pipeline_mode<synchronous>, transform_indices = @transform_4, window_bounds = array<i64: 64, 64>}, {pipeline_mode = #tpu.pipeline_mode<synchronous>, transform_indices = @transform_5, window_bounds = array<i64: 1, 64>}, {pipeline_mode = #tpu.pipeline_mode<synchronous>, transform_indices = @transform_6, window_bounds = array<i64: 64, 64>}, {pipeline_mode = #tpu.pipeline_mode<synchronous>, transform_indices = @transform_7, window_bounds = array<i64: 64, 64>}, {pipeline_mode = #tpu.pipeline_mode<synchronous>, transform_indices = @transform_8, window_bounds = array<i64: 1, 64>}, {transform_indices = @transform_9, window_bounds = array<i64: 512, 64>}]} {
    %c0 = arith.constant 0 : index
    %c0_0 = arith.constant 0 : index
    %0 = vector.load %arg1[%c0, %c0_0] : memref<512x64xf32, #tpu.memory_space<vmem>>, vector<512x64xf32>
    %c0_1 = arith.constant 0 : index
    %c0_2 = arith.constant 0 : index
    %1 = vector.load %arg2[%c0_1, %c0_2] : memref<512x64xf32, #tpu.memory_space<vmem>>, vector<512x64xf32>
    %c0_3 = arith.constant 0 : index
    %c0_4 = arith.constant 0 : index
    %2 = vector.load %arg3[%c0_3, %c0_4] : memref<512x64xf32, #tpu.memory_space<vmem>>, vector<512x64xf32>
    %3 = arith.subf %0, %1 : vector<512x64xf32>
    %c0_5 = arith.constant 0 : index
    %c0_6 = arith.constant 0 : index
    %4 = vector.load %arg4[%c0_5, %c0_6] : memref<64x64xf32, #tpu.memory_space<vmem>>, vector<64x64xf32>
    %cst = arith.constant dense<0.000000e+00> : vector<512x64xf32>
    %5 = tpu.matmul %3, %4, %cst {dimension_numbers = #tpu.dot_dimension_numbers<[1], [0], [0], [1], [0, 0, 1, 1], [], []>} : vector<512x64xf32>, vector<64x64xf32>, vector<512x64xf32> -> vector<512x64xf32>
    %c0_7 = arith.constant 0 : index
    %c0_8 = arith.constant 0 : index
    %6 = vector.load %arg5[%c0_7, %c0_8] : memref<64x64xf32, #tpu.memory_space<vmem>>, vector<64x64xf32>
    %cst_9 = arith.constant dense<0.000000e+00> : vector<512x64xf32>
    %7 = tpu.matmul %2, %6, %cst_9 {dimension_numbers = #tpu.dot_dimension_numbers<[1], [0], [0], [1], [0, 0, 1, 1], [], []>} : vector<512x64xf32>, vector<64x64xf32>, vector<512x64xf32> -> vector<512x64xf32>
    %8 = arith.addf %5, %7 : vector<512x64xf32>
    %c0_10 = arith.constant 0 : index
    %c0_11 = arith.constant 0 : index
    %9 = vector.load %arg6[%c0_10, %c0_11] : memref<1x64xf32, #tpu.memory_space<vmem>>, vector<1x64xf32>
    %10 = vector.broadcast %9 : vector<1x64xf32> to vector<512x64xf32>
    %11 = arith.addf %8, %10 : vector<512x64xf32>
    %12 = arith.addf %11, %1 : vector<512x64xf32>
    %c0_12 = arith.constant 0 : index
    %c0_13 = arith.constant 0 : index
    %13 = vector.load %arg7[%c0_12, %c0_13] : memref<64x64xf32, #tpu.memory_space<vmem>>, vector<64x64xf32>
    %cst_14 = arith.constant dense<0.000000e+00> : vector<512x64xf32>
    %14 = tpu.matmul %12, %13, %cst_14 {dimension_numbers = #tpu.dot_dimension_numbers<[1], [0], [0], [1], [0, 0, 1, 1], [], []>} : vector<512x64xf32>, vector<64x64xf32>, vector<512x64xf32> -> vector<512x64xf32>
    %c0_15 = arith.constant 0 : index
    %c0_16 = arith.constant 0 : index
    %15 = vector.load %arg8[%c0_15, %c0_16] : memref<64x64xf32, #tpu.memory_space<vmem>>, vector<64x64xf32>
    %cst_17 = arith.constant dense<0.000000e+00> : vector<512x64xf32>
    %16 = tpu.matmul %0, %15, %cst_17 {dimension_numbers = #tpu.dot_dimension_numbers<[1], [0], [0], [1], [0, 0, 1, 1], [], []>} : vector<512x64xf32>, vector<64x64xf32>, vector<512x64xf32> -> vector<512x64xf32>
    %17 = arith.addf %14, %16 : vector<512x64xf32>
    %c0_18 = arith.constant 0 : index
    %c0_19 = arith.constant 0 : index
    %18 = vector.load %arg9[%c0_18, %c0_19] : memref<1x64xf32, #tpu.memory_space<vmem>>, vector<1x64xf32>
    %19 = vector.broadcast %18 : vector<1x64xf32> to vector<512x64xf32>
    %20 = arith.addf %17, %19 : vector<512x64xf32>
    %c0_20 = arith.constant 0 : index
    %c0_21 = arith.constant 0 : index
    %21 = vector.load %arg10[%c0_20, %c0_21] : memref<512x64xf32, #tpu.memory_space<vmem>>, vector<512x64xf32>
    tpu.vector_store %arg10[%c0_20, %c0_21], %20 {strides = array<i32>} : memref<512x64xf32, #tpu.memory_space<vmem>>, vector<512x64xf32>,
    return
  }
  func.func @transform_0(%arg0: i32) -> (i32, i32) {
    %c0_i32 = arith.constant 0 : i32
    %c0_i32_0 = arith.constant 0 : i32
    return %arg0, %c0_i32 : i32, i32
  }
  func.func @transform_1(%arg0: i32) -> (i32, i32) {
    %c0_i32 = arith.constant 0 : i32
    %c0_i32_0 = arith.constant 0 : i32
    return %arg0, %c0_i32 : i32, i32
  }
  func.func @transform_2(%arg0: i32) -> (i32, i32) {
    %c0_i32 = arith.constant 0 : i32
    %c0_i32_0 = arith.constant 0 : i32
    return %arg0, %c0_i32 : i32, i32
  }
  func.func @transform_3(%arg0: i32) -> (i32, i32) {
    %c0_i32 = arith.constant 0 : i32
    %c0_i32_0 = arith.constant 0 : i32
    %c0_i32_1 = arith.constant 0 : i32
    return %c0_i32, %c0_i32_0 : i32, i32
  }
  func.func @transform_4(%arg0: i32) -> (i32, i32) {
    %c0_i32 = arith.constant 0 : i32
    %c0_i32_0 = arith.constant 0 : i32
    %c0_i32_1 = arith.constant 0 : i32
    return %c0_i32, %c0_i32_0 : i32, i32
  }
  func.func @transform_5(%arg0: i32) -> (i32, i32) {
    %c0_i32 = arith.constant 0 : i32
    %c0_i32_0 = arith.constant 0 : i32
    %c0_i32_1 = arith.constant 0 : i32
    return %c0_i32, %c0_i32_0 : i32, i32
  }
  func.func @transform_6(%arg0: i32) -> (i32, i32) {
    %c0_i32 = arith.constant 0 : i32
    %c0_i32_0 = arith.constant 0 : i32
    %c0_i32_1 = arith.constant 0 : i32
    return %c0_i32, %c0_i32_0 : i32, i32
  }
  func.func @transform_7(%arg0: i32) -> (i32, i32) {
    %c0_i32 = arith.constant 0 : i32
    %c0_i32_0 = arith.constant 0 : i32
    %c0_i32_1 = arith.constant 0 : i32
    return %c0_i32, %c0_i32_0 : i32, i32
  }
  func.func @transform_8(%arg0: i32) -> (i32, i32) {
    %c0_i32 = arith.constant 0 : i32
    %c0_i32_0 = arith.constant 0 : i32
    %c0_i32_1 = arith.constant 0 : i32
    return %c0_i32, %c0_i32_0 : i32, i32
  }
  func.func @transform_9(%arg0: i32) -> (i32, i32) {
    %c0_i32 = arith.constant 0 : i32
    %c0_i32_0 = arith.constant 0 : i32
    return %arg0, %c0_i32 : i32, i32
  }
}

</mosaic_0001>

<llo_original>
// kernel: ds_forward.4
$region0: #{ds_forward.4}
  #allocation0 [shape = 'u32[]', space=smem, size = 0x4, offset = 0x4, fixed_abs, tag = 'smem constant byte address 0x4 - core index']
  #allocation1 [shape = 'u32[72,128]{1,0:T(1,128)}', space=vmem, size = 0x9000, scoped, tag = 'internal scratch']
  %s0 = inlined_call_operand.vmem [shape: f32[8,8,8,64], index: 0, kind: input, shape index: {}]
  %s1 = inlined_call_operand.vmem [shape: f32[9,64], index: 1, kind: input, shape index: {}]
  %s2 = inlined_call_operand.vmem [shape: f32[1,64], index: 2, kind: input, shape index: {}]
  %s3 = inlined_call_operand.vmem [shape: f32[1,64], index: 3, kind: input, shape index: {}]
  %s4 = inlined_call_operand.vmem [shape: f32[2,7,7,64], index: 4, kind: output, shape index: {}]
  %s5 = sld [smem:[#allocation0]]
  $region49: #{ds_forward.4} parent=0
    _
  %s7 = ssub.s32 1, %s5
  %s8 = scalar_select 0, %s7, %s5
  loop: start=0, step=1, limit=4
  $region2: #{ds_forward.4} parent=0 // loop_pre_header
    _
  $region3: #{ds_forward.4} parent=0 // loop_header
    %s10 = sphi 0, %s14
    %p11 = scmp.ge.s32.totalorder %s10, 4
    %s20 = sphi 0, %s22
    %s23 = sphi 0, %s20
    %s24 = sphi 0, %s23
    %s40 = sphi 0, %s24
    %s44 = sphi 0, %s44
    %s46 = sphi 0, %s44
    %s47 = sphi 0, %s46
    %s61 = sphi 0, %s47
    %s65 = sphi 0, %s65
    %s67 = sphi 0, %s65
    %s68 = sphi 0, %s67
    %s82 = sphi 0, %s68
    %s86 = sphi 0, %s86
    %s88 = sphi 0, %s86
    %s89 = sphi 0, %s88
    %s103 = sphi 0, %s89
    %s109 = sphi 0, %s111
    %s112 = sphi 0, %s109
    %s113 = sphi 0, %s112
    %s129 = sphi 0, %s113
  $region4: #{ds_forward.4} parent=0 // loop_header_branch
    %13 = sbr.rel (%p11) target = $region8
  $region5: #{ds_forward.4} parent=0 // loop_body
    %s15 = ssub.s32 %s10, 1
    %s16 = ssub.s32 %s10, 2
    %s17 = sadd.s32 %s10, 1
    %s18 = ssub.s32 %s10, %s17
    %p19 = scmp.eq.s32.totalorder %s18, 0
    %s21 = sadd.s32 %s20, 1
    %s22 = scalar_select %p19, %s20, %s21
    %p25 = pneg %p19
    %p26 = scmp.eq.s32.totalorder %s10, 1
    %p27 = por %p25, %p26
    %p28 = scmp.ne.s32.totalorder %s20, %s23
    %p29 = scmp.eq.s32.totalorder %s10, 0
    %p30 = por %p28, %p29
    %p31 = scmp.ne.s32.totalorder %s20, %s23
    %p32 = scmp.eq.s32.totalorder %s15, 1
    %p33 = por %p31, %p32
    %p34 = scmp.ne.s32.totalorder %s23, %s24
    %p35 = scmp.eq.s32.totalorder %s15, 0
    %p36 = por %p34, %p35
    %p37 = scmp.ne.s32.totalorder %s23, %s24
    %p38 = scmp.eq.s32.totalorder %s16, 1
    %p39 = por %p37, %p38
    %p41 = scmp.ne.s32.totalorder %s24, %s40
    %p42 = scmp.eq.s32.totalorder %s16, 0
    %p43 = por %p41, %p42
    %s45 = sadd.s32 %s44, 1
    %p48 = scmp.eq.s32.totalorder %s10, 1
    %p49 = scmp.ne.s32.totalorder %s44, %s46
    %p50 = scmp.eq.s32.totalorder %s10, 0
    %p51 = por %p49, %p50
    %p52 = scmp.ne.s32.totalorder %s44, %s46
    %p53 = scmp.eq.s32.totalorder %s15, 1
    %p54 = por %p52, %p53
    %p55 = scmp.ne.s32.totalorder %s46, %s47
    %p56 = scmp.eq.s32.totalorder %s15, 0
    %p57 = por %p55, %p56
    %p58 = scmp.ne.s32.totalorder %s46, %s47
    %p59 = scmp.eq.s32.totalorder %s16, 1
    %p60 = por %p58, %p59
    %p62 = scmp.ne.s32.totalorder %s47, %s61
    %p63 = scmp.eq.s32.totalorder %s16, 0
    %p64 = por %p62, %p63
    %s66 = sadd.s32 %s65, 1
    %p69 = scmp.eq.s32.totalorder %s10, 1
    %p70 = scmp.ne.s32.totalorder %s65, %s67
    %p71 = scmp.eq.s32.totalorder %s10, 0
    %p72 = por %p70, %p71
    %p73 = scmp.ne.s32.totalorder %s65, %s67
    %p74 = scmp.eq.s32.totalorder %s15, 1
    %p75 = por %p73, %p74
    %p76 = scmp.ne.s32.totalorder %s67, %s68
    %p77 = scmp.eq.s32.totalorder %s15, 0
    %p78 = por %p76, %p77
    %p79 = scmp.ne.s32.totalorder %s67, %s68
    %p80 = scmp.eq.s32.totalorder %s16, 1
    %p81 = por %p79, %p80
    %p83 = scmp.ne.s32.totalorder %s68, %s82
    %p84 = scmp.eq.s32.totalorder %s16, 0
    %p85 = por %p83, %p84
    %s87 = sadd.s32 %s86, 1
    %p90 = scmp.eq.s32.totalorder %s10, 1
    %p91 = scmp.ne.s32.totalorder %s86, %s88
    %p92 = scmp.eq.s32.totalorder %s10, 0
    %p93 = por %p91, %p92
    %p94 = scmp.ne.s32.totalorder %s86, %s88
    %p95 = scmp.eq.s32.totalorder %s15, 1
    %p96 = por %p94, %p95
    %p97 = scmp.ne.s32.totalorder %s88, %s89
    %p98 = scmp.eq.s32.totalorder %s15, 0
    %p99 = por %p97, %p98
    %p100 = scmp.ne.s32.totalorder %s88, %s89
    %p101 = scmp.eq.s32.totalorder %s16, 1
    %p102 = por %p100, %p101
    %p104 = scmp.ne.s32.totalorder %s89, %s103
    %p105 = scmp.eq.s32.totalorder %s16, 0
    %p106 = por %p104, %p105
    %s107 = ssub.s32 %s10, %s17
    %p108 = scmp.eq.s32.totalorder %s107, 0
    %s110 = sadd.s32 %s109, 1
    %s111 = scalar_select %p108, %s109, %s110
    %p114 = pneg %p108
    %p115 = scmp.eq.s32.totalorder %s10, 1
    %p116 = por %p114, %p115
    %p117 = scmp.ne.s32.totalorder %s109, %s112
    %p118 = scmp.eq.s32.totalorder %s10, 0
    %p119 = por %p117, %p118
    %p120 = scmp.ne.s32.totalorder %s109, %s112
    %p121 = scmp.eq.s32.totalorder %s15, 1
    %p122 = por %p120, %p121
    %p123 = scmp.ne.s32.totalorder %s112, %s113
    %p124 = scmp.eq.s32.totalorder %s15, 0
    %p125 = por %p123, %p124
    %p126 = scmp.ne.s32.totalorder %s112, %s113
    %p127 = scmp.eq.s32.totalorder %s16, 1
    %p128 = por %p126, %p127
    %p130 = scmp.ne.s32.totalorder %s113, %s129
    %p131 = scmp.eq.s32.totalorder %s16, 0
    %p132 = por %p130, %p131
    %p133 = scmp.le.s32.totalorder 1, %s10
    %p134 = scmp.lt.s32.totalorder %s10, 3
    %p135 = pnand %p133, %p134
    %p136 = pneg %p135
    // Predicated region
    $region9: #{ds_forward.4} parent=5 // pred_check
      _
    $region10: #{ds_forward.4} parent=5 // pred_check_branch
      %138 = sbr.rel (%p135) target = $region12
    $region11: #{ds_forward.4} parent=5 // pred_region
      %s139 = ssub.s32 %s10, 1
      // Predicated region
      $region13: #{ds_forward.4} parent=11 // pred_check
        %p140 = pneg %p57
      $region14: #{ds_forward.4} parent=11 // pred_check_branch
        %142 = sbr.rel (%p140) target = $region16
      $region15: #{ds_forward.4} parent=11 // pred_region
        _
      $region16: #{ds_forward.4} parent=11 // pred_fallthru
        _
      // Predicated region
      $region17: #{ds_forward.4} parent=11 // pred_check
        %p143 = pneg %p78
      $region18: #{ds_forward.4} parent=11 // pred_check_branch
        %145 = sbr.rel (%p143) target = $region20
      $region19: #{ds_forward.4} parent=11 // pred_region
        _
      $region20: #{ds_forward.4} parent=11 // pred_fallthru
        _
      // Predicated region
      $region21: #{ds_forward.4} parent=11 // pred_check
        %p146 = pneg %p99
      $region22: #{ds_forward.4} parent=11 // pred_check_branch
        %148 = sbr.rel (%p146) target = $region24
      $region23: #{ds_forward.4} parent=11 // pred_region
        _
      $region24: #{ds_forward.4} parent=11 // pred_fallthru
        _
    $region12: #{ds_forward.4} parent=5 // pred_fallthru
      _
    %p149 = scmp.lt.s32.totalorder %s10, 2
    // Predicated region
    $region25: #{ds_forward.4} parent=5 // pred_check
      %p150 = pneg %p149
    $region26: #{ds_forward.4} parent=5 // pred_check_branch
      %152 = sbr.rel (%p150) target = $region28
    $region27: #{ds_forward.4} parent=5 // pred_region
      // Predicated region
      $region29: #{ds_forward.4} parent=27 // pred_check
        %p153 = pneg %p30
      $region30: #{ds_forward.4} parent=27 // pred_check_branch
        %155 = sbr.rel (%p153) target = $region32
      $region31: #{ds_forward.4} parent=27 // pred_region
        %s156 = smul.u32 4, %s10
        %p157 = scmp.lt.s32.totalorder %s156, 7
        %s158 = scalar_select %p157, %s156, 7
        %s159 = smul.addr %s158, 8
        %s160 = smul.addr %s159, 8
        %s161 = scalar_lea.vmem %s0, %s160
        %s162 = smul.u32 4, %s10
      $region32: #{ds_forward.4} parent=27 // pred_fallthru
        _
    $region28: #{ds_forward.4} parent=5 // pred_fallthru
      _
    %p163 = scmp.le.s32.totalorder 1, %s10
    %p164 = scmp.lt.s32.totalorder %s10, 3
    %p165 = pnand %p163, %p164
    %p166 = pneg %p165
    // Predicated region
    $region33: #{ds_forward.4} parent=5 // pred_check
      _
    $region34: #{ds_forward.4} parent=5 // pred_check_branch
      %168 = sbr.rel (%p165) target = $region36
    $region35: #{ds_forward.4} parent=5 // pred_region
      %s169 = ssub.s32 %s10, 1
      %s170 = smul.u32 4, %s15
      %p171 = scmp.lt.s32.totalorder %s170, 7
      %s172 = scalar_select %p171, %s170, 7
      %s173 = smul.addr %s172, 8
      %s174 = smul.addr %s173, 8
      %s175 = scalar_lea.vmem %s0, %s174
      %p176 = pneg %p36
      %p177 = pneg %p33
      %p178 = pneg %p57
      %p179 = pneg %p54
      %p180 = pneg %p78
      %p181 = pneg %p75
      %p182 = pneg %p99
      %p183 = pneg %p96
      %p184 = pneg %p125
      %p185 = pneg %p122
      %p186 = scmp.lt.s32.totalorder %s15, 1
      %s187 = scalar_select %p186, %s15, 1
      %s188 = smul.addr %s187, 7
      %s189 = smul.addr %s188, 8
      %s190 = scalar_lea.vmem %s4, %s189
      %s191 = smul.u32 4, %s15
      %p192 = scmp.lt.s32.totalorder %s191, 7
      %s193 = scalar_select %p192, %s191, 7
      %s194 = smul.addr %s193, 8
      %s195 = smul.addr %s194, 8
      %s196 = scalar_lea.vmem %s0, %s195
      %s197 = smul.u32 4, %s15
      %p198 = scmp.lt.s32.totalorder %s15, 1
      %s199 = scalar_select %p198, %s15, 1
      %s200 = smul.addr %s199, 7
      %s201 = smul.addr %s200, 8
      %s202 = scalar_lea.vmem %s4, %s201
      %v203 = vld [vmem:[%s1] sm:$0xff]
      %v204 = vld [vmem:[%s1 + $0x8] sm:$0x1]
      %v205 = vld [vmem:[%s2] sm:$0x1]
      %v206 = vld [vmem:[%s3] sm:$0x1]
      %v207 = vld [vmem:[%s196] sm:$0x7f]
      %v208 = vld [vmem:[%s196 + $0x8] sm:$0x7f]
      %v209 = vld [vmem:[%s196 + $0x10] sm:$0x7f]
      %v210 = vld [vmem:[%s196 + $0x18] sm:$0x7f]
      %v211 = vld [vmem:[%s196 + $0x20] sm:$0x7f]
      %v212 = vld [vmem:[%s196 + $0x28] sm:$0x7f]
      %v213 = vld [vmem:[%s196 + $0x30] sm:$0x7f]
      %v214 = vperm.slane %v203, 0
      %v215 = vmul.f32 %v207, %v214
      %v216 = vmul.f32 %v208, %v214
      %v217 = vmul.f32 %v209, %v214
      %v218 = vmul.f32 %v210, %v214
      %v219 = vmul.f32 %v211, %v214
      %v220 = vmul.f32 %v212, %v214
      %v221 = vmul.f32 %v213, %v214
      %s222 = scalar_lea.vmem %s196, 64
      %v223 = vld [vmem:[%s222] sm:$0x7f]
      %v224 = vld [vmem:[%s222 + $0x8] sm:$0x7f]
      %v225 = vld [vmem:[%s222 + $0x10] sm:$0x7f]
      %v226 = vld [vmem:[%s222 + $0x18] sm:$0x7f]
      %v227 = vld [vmem:[%s222 + $0x20] sm:$0x7f]
      %v228 = vld [vmem:[%s222 + $0x28] sm:$0x7f]
      %v229 = vld [vmem:[%s222 + $0x30] sm:$0x7f]
      %v230 = vperm.slane %v203, 1
      %v231 = vmul.f32 %v223, %v230
      %v232 = vmul.f32 %v224, %v230
      %v233 = vmul.f32 %v225, %v230
      %v234 = vmul.f32 %v226, %v230
      %v235 = vmul.f32 %v227, %v230
      %v236 = vmul.f32 %v228, %v230
      %v237 = vmul.f32 %v229, %v230
      %v238 = vadd.f32 %v215, %v231
      %v239 = vadd.f32 %v216, %v232
      %v240 = vadd.f32 %v217, %v233
      %v241 = vadd.f32 %v218, %v234
      %v242 = vadd.f32 %v219, %v235
      %v243 = vadd.f32 %v220, %v236
      %v244 = vadd.f32 %v221, %v237
      %v245 = vld [vmem:[%s196 + $0x1] sm:$0x7f]
      %v246 = vld [vmem:[%s196 + $0x9] sm:$0x7f]
      %v247 = vld [vmem:[%s196 + $0x11] sm:$0x7f]
      %v248 = vld [vmem:[%s196 + $0x19] sm:$0x7f]
      %v249 = vld [vmem:[%s196 + $0x21] sm:$0x7f]
      %v250 = vld [vmem:[%s196 + $0x29] sm:$0x7f]
      %v251 = vld [vmem:[%s196 + $0x31] sm:$0x7f]
      %v252 = vperm.slane %v203, 2
      %v253 = vmul.f32 %v245, %v252
      %v254 = vmul.f32 %v246, %v252
      %v255 = vmul.f32 %v247, %v252
      %v256 = vmul.f32 %v248, %v252
      %v257 = vmul.f32 %v249, %v252
      %v258 = vmul.f32 %v250, %v252
      %v259 = vmul.f32 %v251, %v252
      %v260 = vadd.f32 %v238, %v253
      %v261 = vadd.f32 %v239, %v254
      %v262 = vadd.f32 %v240, %v255
      %v263 = vadd.f32 %v241, %v256
      %v264 = vadd.f32 %v242, %v257
      %v265 = vadd.f32 %v243, %v258
      %v266 = vadd.f32 %v244, %v259
      %s267 = scalar_lea.vmem %s196, 128
      %v268 = vld [vmem:[%s267] sm:$0x7f]
      %v269 = vld [vmem:[%s267 + $0x8] sm:$0x7f]
      %v270 = vld [vmem:[%s267 + $0x10] sm:$0x7f]
      %v271 = vld [vmem:[%s267 + $0x18] sm:$0x7f]
      %v272 = vld [vmem:[%s267 + $0x20] sm:$0x7f]
      %v273 = vld [vmem:[%s267 + $0x28] sm:$0x7f]
      %v274 = vld [vmem:[%s267 + $0x30] sm:$0x7f]
      %v275 = vperm.slane %v203, 3
      %v276 = vmul.f32 %v268, %v275
      %v277 = vmul.f32 %v269, %v275
      %v278 = vmul.f32 %v270, %v275
      %v279 = vmul.f32 %v271, %v275
      %v280 = vmul.f32 %v272, %v275
      %v281 = vmul.f32 %v273, %v275
      %v282 = vmul.f32 %v274, %v275
      %v283 = vadd.f32 %v260, %v276
      %v284 = vadd.f32 %v261, %v277
      %v285 = vadd.f32 %v262, %v278
      %v286 = vadd.f32 %v263, %v279
      %v287 = vadd.f32 %v264, %v280
      %v288 = vadd.f32 %v265, %v281
      %v289 = vadd.f32 %v266, %v282
      %s290 = scalar_lea.vmem %s196, 192
      %v291 = vld [vmem:[%s290] sm:$0x7f]
      %v292 = vld [vmem:[%s290 + $0x8] sm:$0x7f]
      %v293 = vld [vmem:[%s290 + $0x10] sm:$0x7f]
      %v294 = vld [vmem:[%s290 + $0x18] sm:$0x7f]
      %v295 = vld [vmem:[%s290 + $0x20] sm:$0x7f]
      %v296 = vld [vmem:[%s290 + $0x28] sm:$0x7f]
      %v297 = vld [vmem:[%s290 + $0x30] sm:$0x7f]
      %v298 = vperm.slane %v203, 4
      %v299 = vmul.f32 %v291, %v298
      %v300 = vmul.f32 %v292, %v298
      %v301 = vmul.f32 %v293, %v298
      %v302 = vmul.f32 %v294, %v298
      %v303 = vmul.f32 %v295, %v298
      %v304 = vmul.f32 %v296, %v298
      %v305 = vmul.f32 %v297, %v298
      %v306 = vadd.f32 %v283, %v299
      %v307 = vadd.f32 %v284, %v300
      %v308 = vadd.f32 %v285, %v301
      %v309 = vadd.f32 %v286, %v302
      %v310 = vadd.f32 %v287, %v303
      %v311 = vadd.f32 %v288, %v304
      %v312 = vadd.f32 %v289, %v305
      %v313 = vld [vmem:[%s267 + $0x1] sm:$0x7f]
      %v314 = vld [vmem:[%s267 + $0x9] sm:$0x7f]
      %v315 = vld [vmem:[%s267 + $0x11] sm:$0x7f]
      %v316 = vld [vmem:[%s267 + $0x19] sm:$0x7f]
      %v317 = vld [vmem:[%s267 + $0x21] sm:$0x7f]
      %v318 = vld [vmem:[%s267 + $0x29] sm:$0x7f]
      %v319 = vld [vmem:[%s267 + $0x31] sm:$0x7f]
      %v320 = vperm.slane %v203, 5
      %v321 = vmul.f32 %v313, %v320
      %v322 = vmul.f32 %v314, %v320
      %v323 = vmul.f32 %v315, %v320
      %v324 = vmul.f32 %v316, %v320
      %v325 = vmul.f32 %v317, %v320
      %v326 = vmul.f32 %v318, %v320
      %v327 = vmul.f32 %v319, %v320
      %v328 = vadd.f32 %v306, %v321
      %v329 = vadd.f32 %v307, %v322
      %v330 = vadd.f32 %v308, %v323
      %v331 = vadd.f32 %v309, %v324
      %v332 = vadd.f32 %v310, %v325
      %v333 = vadd.f32 %v311, %v326
      %v334 = vadd.f32 %v312, %v327
      %s335 = scalar_lea.vmem %s196, 8
      %v336 = vld [vmem:[%s335] sm:$0x7f]
      %v337 = vld [vmem:[%s335 + $0x8] sm:$0x7f]
      %v338 = vld [vmem:[%s335 + $0x10] sm:$0x7f]
      %v339 = vld [vmem:[%s335 + $0x18] sm:$0x7f]
      %v340 = vld [vmem:[%s335 + $0x20] sm:$0x7f]
      %v341 = vld [vmem:[%s335 + $0x28] sm:$0x7f]
      %v342 = vld [vmem:[%s335 + $0x30] sm:$0x7f]
      %v343 = vperm.slane %v203, 6
      %v344 = vmul.f32 %v336, %v343
      %v345 = vmul.f32 %v337, %v343
      %v346 = vmul.f32 %v338, %v343
      %v347 = vmul.f32 %v339, %v343
      %v348 = vmul.f32 %v340, %v343
      %v349 = vmul.f32 %v341, %v343
      %v350 = vmul.f32 %v342, %v343
      %v351 = vadd.f32 %v328, %v344
      %v352 = vadd.f32 %v329, %v345
      %v353 = vadd.f32 %v330, %v346
      %v354 = vadd.f32 %v331, %v347
      %v355 = vadd.f32 %v332, %v348
      %v356 = vadd.f32 %v333, %v349
      %v357 = vadd.f32 %v334, %v350
      %s358 = scalar_lea.vmem %s196, 72
      %v359 = vld [vmem:[%s358] sm:$0x7f]
      %v360 = vld [vmem:[%s358 + $0x8] sm:$0x7f]
      %v361 = vld [vmem:[%s358 + $0x10] sm:$0x7f]
      %v362 = vld [vmem:[%s358 + $0x18] sm:$0x7f]
      %v363 = vld [vmem:[%s358 + $0x20] sm:$0x7f]
      %v364 = vld [vmem:[%s358 + $0x28] sm:$0x7f]
      %v365 = vld [vmem:[%s358 + $0x30] sm:$0x7f]
      %v366 = vperm.slane %v203, 7
      %v367 = vmul.f32 %v359, %v366
      %v368 = vmul.f32 %v360, %v366
      %v369 = vmul.f32 %v361, %v366
      %v370 = vmul.f32 %v362, %v366
      %v371 = vmul.f32 %v363, %v366
      %v372 = vmul.f32 %v364, %v366
      %v373 = vmul.f32 %v365, %v366
      %v374 = vadd.f32 %v351, %v367
      %v375 = vadd.f32 %v352, %v368
      %v376 = vadd.f32 %v353, %v369
      %v377 = vadd.f32 %v354, %v370
      %v378 = vadd.f32 %v355, %v371
      %v379 = vadd.f32 %v356, %v372
      %v380 = vadd.f32 %v357, %v373
      %v381 = vld [vmem:[%s335 + $0x1] sm:$0x7f]
      %v382 = vld [vmem:[%s335 + $0x9] sm:$0x7f]
      %v383 = vld [vmem:[%s335 + $0x11] sm:$0x7f]
      %v384 = vld [vmem:[%s335 + $0x19] sm:$0x7f]
      %v385 = vld [vmem:[%s335 + $0x21] sm:$0x7f]
      %v386 = vld [vmem:[%s335 + $0x29] sm:$0x7f]
      %v387 = vld [vmem:[%s335 + $0x31] sm:$0x7f]
      %v388 = vperm.slane %v204, 0
      %v389 = vmul.f32 %v381, %v388
      %v390 = vmul.f32 %v382, %v388
      %v391 = vmul.f32 %v383, %v388
      %v392 = vmul.f32 %v384, %v388
      %v393 = vmul.f32 %v385, %v388
      %v394 = vmul.f32 %v386, %v388
      %v395 = vmul.f32 %v387, %v388
      %v396 = vadd.f32 %v374, %v389
      %v397 = vadd.f32 %v375, %v390
      %v398 = vadd.f32 %v376, %v391
      %v399 = vadd.f32 %v377, %v392
      %v400 = vadd.f32 %v378, %v393
      %v401 = vadd.f32 %v379, %v394
      %v402 = vadd.f32 %v380, %v395
      %v404 = vperm.slane %v205, 0
      %v406 = vmul.f32 %v396, %v404
      %v407 = vmul.f32 %v397, %v404
      %v408 = vmul.f32 %v398, %v404
      %v409 = vmul.f32 %v399, %v404
      %v410 = vmul.f32 %v400, %v404
      %v411 = vmul.f32 %v401, %v404
      %v412 = vmul.f32 %v402, %v404
      %v414 = vperm.slane %v206, 0
      %v416 = vadd.f32 %v406, %v414
      %v417 = vadd.f32 %v407, %v414
      %v418 = vadd.f32 %v408, %v414
      %v419 = vadd.f32 %v409, %v414
      %v420 = vadd.f32 %v410, %v414
      %v421 = vadd.f32 %v411, %v414
      %v422 = vadd.f32 %v412, %v414
      %v423 = vmax.f32 %v416, 0.0
      %v424 = vmax.f32 %v417, 0.0
      %v425 = vmax.f32 %v418, 0.0
      %v426 = vmax.f32 %v419, 0.0
      %v427 = vmax.f32 %v420, 0.0
      %v428 = vmax.f32 %v421, 0.0
      %v429 = vmax.f32 %v422, 0.0
      %vm430 = vcmask 522240
      %431 = vst.msk [vmem:[%s202] sm:$0x7f] %vm430, %v423
      %432 = vst.msk [vmem:[%s202 + $0x8] sm:$0x7f] %vm430, %v424
      %433 = vst.msk [vmem:[%s202 + $0x10] sm:$0x7f] %vm430, %v425
      %434 = vst.msk [vmem:[%s202 + $0x18] sm:$0x7f] %vm430, %v426
      %435 = vst.msk [vmem:[%s202 + $0x20] sm:$0x7f] %vm430, %v427
      %436 = vst.msk [vmem:[%s202 + $0x28] sm:$0x7f] %vm430, %v428
      %437 = vst.msk [vmem:[%s202 + $0x30] sm:$0x7f] %vm430, %v429
      %p438 = scmp.lt.s32.totalorder %s15, 1
      %s439 = scalar_select %p438, %s15, 1
      %s440 = smul.addr %s439, 7
      %s441 = smul.addr %s440, 8
      %s442 = scalar_lea.vmem %s4, %s441
      // Predicated region
      $region37: #{ds_forward.4} parent=35 // pred_check
        %p443 = pneg %p122
      $region38: #{ds_forward.4} parent=35 // pred_check_branch
        %445 = sbr.rel (%p443) target = $region40
      $region39: #{ds_forward.4} parent=35 // pred_region
        _
      $region40: #{ds_forward.4} parent=35 // pred_fallthru
        _
    $region36: #{ds_forward.4} parent=5 // pred_fallthru
      _
    %p446 = scmp.le.s32.totalorder 2, %s10
    // Predicated region
    $region41: #{ds_forward.4} parent=5 // pred_check
      %p447 = pneg %p446
    $region42: #{ds_forward.4} parent=5 // pred_check_branch
      %449 = sbr.rel (%p447) target = $region44
    $region43: #{ds_forward.4} parent=5 // pred_region
      %s450 = ssub.s32 %s10, 2
      // Predicated region
      $region45: #{ds_forward.4} parent=43 // pred_check
        %p451 = pneg %p128
      $region46: #{ds_forward.4} parent=43 // pred_check_branch
        %453 = sbr.rel (%p451) target = $region48
      $region47: #{ds_forward.4} parent=43 // pred_region
        %p454 = scmp.lt.s32.totalorder %s16, 1
        %s455 = scalar_select %p454, %s16, 1
        %s456 = smul.addr %s455, 7
        %s457 = smul.addr %s456, 8
        %s458 = scalar_lea.vmem %s4, %s457
      $region48: #{ds_forward.4} parent=43 // pred_fallthru
        _
    $region44: #{ds_forward.4} parent=5 // pred_fallthru
      _
  $region6: #{ds_forward.4} parent=0 // loop_footer
    %s14 = sadd.s32 1, %s10
  $region7: #{ds_forward.4} parent=0 // loop_footer_branch
    %9 = sbr.rel target = $region3
  $region8: #{ds_forward.4} parent=0 // loop_exit
    _

// kernel: ds_forward.5
$region0: #{ds_forward.5}
  #allocation0 [shape = 'u32[]', space=smem, size = 0x4, offset = 0x4, fixed_abs, tag = 'smem constant byte address 0x4 - core index']
  #allocation1 [shape = 'u32[72,128]{1,0:T(1,128)}', space=vmem, size = 0x9000, scoped, tag = 'internal scratch']
  %s0 = inlined_call_operand.vmem [shape: f32[8,4,4,64], index: 0, kind: input, shape index: {}]
  %s1 = inlined_call_operand.vmem [shape: f32[9,64], index: 1, kind: input, shape index: {}]
  %s2 = inlined_call_operand.vmem [shape: f32[1,64], index: 2, kind: input, shape index: {}]
  %s3 = inlined_call_operand.vmem [shape: f32[1,64], index: 3, kind: input, shape index: {}]
  %s4 = inlined_call_operand.vmem [shape: f32[2,3,3,64], index: 4, kind: output, shape index: {}]
  %s5 = sld [smem:[#allocation0]]
  $region49: #{ds_forward.5} parent=0
    _
  %s7 = ssub.s32 1, %s5
  %s8 = scalar_select 0, %s7, %s5
  loop: start=0, step=1, limit=4
  $region2: #{ds_forward.5} parent=0 // loop_pre_header
    _
  $region3: #{ds_forward.5} parent=0 // loop_header
    %s10 = sphi 0, %s14
    %p11 = scmp.ge.s32.totalorder %s10, 4
    %s20 = sphi 0, %s22
    %s23 = sphi 0, %s20
    %s24 = sphi 0, %s23
    %s40 = sphi 0, %s24
    %s44 = sphi 0, %s44
    %s46 = sphi 0, %s44
    %s47 = sphi 0, %s46
    %s61 = sphi 0, %s47
    %s65 = sphi 0, %s65
    %s67 = sphi 0, %s65
    %s68 = sphi 0, %s67
    %s82 = sphi 0, %s68
    %s86 = sphi 0, %s86
    %s88 = sphi 0, %s86
    %s89 = sphi 0, %s88
    %s103 = sphi 0, %s89
    %s109 = sphi 0, %s111
    %s112 = sphi 0, %s109
    %s113 = sphi 0, %s112
    %s129 = sphi 0, %s113
  $region4: #{ds_forward.5} parent=0 // loop_header_branch
    %13 = sbr.rel (%p11) target = $region8
  $region5: #{ds_forward.5} parent=0 // loop_body
    %s15 = ssub.s32 %s10, 1
    %s16 = ssub.s32 %s10, 2
    %s17 = sadd.s32 %s10, 1
    %s18 = ssub.s32 %s10, %s17
    %p19 = scmp.eq.s32.totalorder %s18, 0
    %s21 = sadd.s32 %s20, 1
    %s22 = scalar_select %p19, %s20, %s21
    %p25 = pneg %p19
    %p26 = scmp.eq.s32.totalorder %s10, 1
    %p27 = por %p25, %p26
    %p28 = scmp.ne.s32.totalorder %s20, %s23
    %p29 = scmp.eq.s32.totalorder %s10, 0
    %p30 = por %p28, %p29
    %p31 = scmp.ne.s32.totalorder %s20, %s23
    %p32 = scmp.eq.s32.totalorder %s15, 1
    %p33 = por %p31, %p32
    %p34 = scmp.ne.s32.totalorder %s23, %s24
    %p35 = scmp.eq.s32.totalorder %s15, 0
    %p36 = por %p34, %p35
    %p37 = scmp.ne.s32.totalorder %s23, %s24
    %p38 = scmp.eq.s32.totalorder %s16, 1
    %p39 = por %p37, %p38
    %p41 = scmp.ne.s32.totalorder %s24, %s40
    %p42 = scmp.eq.s32.totalorder %s16, 0
    %p43 = por %p41, %p42
    %s45 = sadd.s32 %s44, 1
    %p48 = scmp.eq.s32.totalorder %s10, 1
    %p49 = scmp.ne.s32.totalorder %s44, %s46
    %p50 = scmp.eq.s32.totalorder %s10, 0
    %p51 = por %p49, %p50
    %p52 = scmp.ne.s32.totalorder %s44, %s46
    %p53 = scmp.eq.s32.totalorder %s15, 1
    %p54 = por %p52, %p53
    %p55 = scmp.ne.s32.totalorder %s46, %s47
    %p56 = scmp.eq.s32.totalorder %s15, 0
    %p57 = por %p55, %p56
    %p58 = scmp.ne.s32.totalorder %s46, %s47
    %p59 = scmp.eq.s32.totalorder %s16, 1
    %p60 = por %p58, %p59
    %p62 = scmp.ne.s32.totalorder %s47, %s61
    %p63 = scmp.eq.s32.totalorder %s16, 0
    %p64 = por %p62, %p63
    %s66 = sadd.s32 %s65, 1
    %p69 = scmp.eq.s32.totalorder %s10, 1
    %p70 = scmp.ne.s32.totalorder %s65, %s67
    %p71 = scmp.eq.s32.totalorder %s10, 0
    %p72 = por %p70, %p71
    %p73 = scmp.ne.s32.totalorder %s65, %s67
    %p74 = scmp.eq.s32.totalorder %s15, 1
    %p75 = por %p73, %p74
    %p76 = scmp.ne.s32.totalorder %s67, %s68
    %p77 = scmp.eq.s32.totalorder %s15, 0
    %p78 = por %p76, %p77
    %p79 = scmp.ne.s32.totalorder %s67, %s68
    %p80 = scmp.eq.s32.totalorder %s16, 1
    %p81 = por %p79, %p80
    %p83 = scmp.ne.s32.totalorder %s68, %s82
    %p84 = scmp.eq.s32.totalorder %s16, 0
    %p85 = por %p83, %p84
    %s87 = sadd.s32 %s86, 1
    %p90 = scmp.eq.s32.totalorder %s10, 1
    %p91 = scmp.ne.s32.totalorder %s86, %s88
    %p92 = scmp.eq.s32.totalorder %s10, 0
    %p93 = por %p91, %p92
    %p94 = scmp.ne.s32.totalorder %s86, %s88
    %p95 = scmp.eq.s32.totalorder %s15, 1
    %p96 = por %p94, %p95
    %p97 = scmp.ne.s32.totalorder %s88, %s89
    %p98 = scmp.eq.s32.totalorder %s15, 0
    %p99 = por %p97, %p98
    %p100 = scmp.ne.s32.totalorder %s88, %s89
    %p101 = scmp.eq.s32.totalorder %s16, 1
    %p102 = por %p100, %p101
    %p104 = scmp.ne.s32.totalorder %s89, %s103
    %p105 = scmp.eq.s32.totalorder %s16, 0
    %p106 = por %p104, %p105
    %s107 = ssub.s32 %s10, %s17
    %p108 = scmp.eq.s32.totalorder %s107, 0
    %s110 = sadd.s32 %s109, 1
    %s111 = scalar_select %p108, %s109, %s110
    %p114 = pneg %p108
    %p115 = scmp.eq.s32.totalorder %s10, 1
    %p116 = por %p114, %p115
    %p117 = scmp.ne.s32.totalorder %s109, %s112
    %p118 = scmp.eq.s32.totalorder %s10, 0
    %p119 = por %p117, %p118
    %p120 = scmp.ne.s32.totalorder %s109, %s112
    %p121 = scmp.eq.s32.totalorder %s15, 1
    %p122 = por %p120, %p121
    %p123 = scmp.ne.s32.totalorder %s112, %s113
    %p124 = scmp.eq.s32.totalorder %s15, 0
    %p125 = por %p123, %p124
    %p126 = scmp.ne.s32.totalorder %s112, %s113
    %p127 = scmp.eq.s32.totalorder %s16, 1
    %p128 = por %p126, %p127
    %p130 = scmp.ne.s32.totalorder %s113, %s129
    %p131 = scmp.eq.s32.totalorder %s16, 0
    %p132 = por %p130, %p131
    %p133 = scmp.le.s32.totalorder 1, %s10
    %p134 = scmp.lt.s32.totalorder %s10, 3
    %p135 = pnand %p133, %p134
    %p136 = pneg %p135
    // Predicated region
    $region9: #{ds_forward.5} parent=5 // pred_check
      _
    $region10: #{ds_forward.5} parent=5 // pred_check_branch
      %138 = sbr.rel (%p135) target = $region12
    $region11: #{ds_forward.5} parent=5 // pred_region
      %s139 = ssub.s32 %s10, 1
      // Predicated region
      $region13: #{ds_forward.5} parent=11 // pred_check
        %p140 = pneg %p57
      $region14: #{ds_forward.5} parent=11 // pred_check_branch
        %142 = sbr.rel (%p140) target = $region16
      $region15: #{ds_forward.5} parent=11 // pred_region
        _
      $region16: #{ds_forward.5} parent=11 // pred_fallthru
        _
      // Predicated region
      $region17: #{ds_forward.5} parent=11 // pred_check
        %p143 = pneg %p78
      $region18: #{ds_forward.5} parent=11 // pred_check_branch
        %145 = sbr.rel (%p143) target = $region20
      $region19: #{ds_forward.5} parent=11 // pred_region
        _
      $region20: #{ds_forward.5} parent=11 // pred_fallthru
        _
      // Predicated region
      $region21: #{ds_forward.5} parent=11 // pred_check
        %p146 = pneg %p99
      $region22: #{ds_forward.5} parent=11 // pred_check_branch
        %148 = sbr.rel (%p146) target = $region24
      $region23: #{ds_forward.5} parent=11 // pred_region
        _
      $region24: #{ds_forward.5} parent=11 // pred_fallthru
        _
    $region12: #{ds_forward.5} parent=5 // pred_fallthru
      _
    %p149 = scmp.lt.s32.totalorder %s10, 2
    // Predicated region
    $region25: #{ds_forward.5} parent=5 // pred_check
      %p150 = pneg %p149
    $region26: #{ds_forward.5} parent=5 // pred_check_branch
      %152 = sbr.rel (%p150) target = $region28
    $region27: #{ds_forward.5} parent=5 // pred_region
      // Predicated region
      $region29: #{ds_forward.5} parent=27 // pred_check
        %p153 = pneg %p30
      $region30: #{ds_forward.5} parent=27 // pred_check_branch
        %155 = sbr.rel (%p153) target = $region32
      $region31: #{ds_forward.5} parent=27 // pred_region
        %s156 = smul.u32 4, %s10
        %p157 = scmp.lt.s32.totalorder %s156, 7
        %s158 = scalar_select %p157, %s156, 7
        %s159 = smul.addr %s158, 4
        %s160 = smul.addr %s159, 4
        %s161 = scalar_lea.vmem %s0, %s160
        %s162 = smul.u32 4, %s10
      $region32: #{ds_forward.5} parent=27 // pred_fallthru
        _
    $region28: #{ds_forward.5} parent=5 // pred_fallthru
      _
    %p163 = scmp.le.s32.totalorder 1, %s10
    %p164 = scmp.lt.s32.totalorder %s10, 3
    %p165 = pnand %p163, %p164
    %p166 = pneg %p165
    // Predicated region
    $region33: #{ds_forward.5} parent=5 // pred_check
      _
    $region34: #{ds_forward.5} parent=5 // pred_check_branch
      %168 = sbr.rel (%p165) target = $region36
    $region35: #{ds_forward.5} parent=5 // pred_region
      %s169 = ssub.s32 %s10, 1
      %s170 = smul.u32 4, %s15
      %p171 = scmp.lt.s32.totalorder %s170, 7
      %s172 = scalar_select %p171, %s170, 7
      %s173 = smul.addr %s172, 4
      %s174 = smul.addr %s173, 4
      %s175 = scalar_lea.vmem %s0, %s174
      %p176 = pneg %p36
      %p177 = pneg %p33
      %p178 = pneg %p57
      %p179 = pneg %p54
      %p180 = pneg %p78
      %p181 = pneg %p75
      %p182 = pneg %p99
      %p183 = pneg %p96
      %p184 = pneg %p125
      %p185 = pneg %p122
      %p186 = scmp.lt.s32.totalorder %s15, 1
      %s187 = scalar_select %p186, %s15, 1
      %s188 = smul.addr %s187, 3
      %s189 = smul.addr %s188, 4
      %s190 = scalar_lea.vmem %s4, %s189
      %s191 = smul.u32 4, %s15
      %p192 = scmp.lt.s32.totalorder %s191, 7
      %s193 = scalar_select %p192, %s191, 7
      %s194 = smul.addr %s193, 4
      %s195 = smul.addr %s194, 4
      %s196 = scalar_lea.vmem %s0, %s195
      %s197 = smul.u32 4, %s15
      %p198 = scmp.lt.s32.totalorder %s15, 1
      %s199 = scalar_select %p198, %s15, 1
      %s200 = smul.addr %s199, 3
      %s201 = smul.addr %s200, 4
      %s202 = scalar_lea.vmem %s4, %s201
      %v203 = vld [vmem:[%s1] sm:$0xff]
      %v204 = vld [vmem:[%s1 + $0x8] sm:$0x1]
      %v205 = vld [vmem:[%s2] sm:$0x1]
      %v206 = vld [vmem:[%s3] sm:$0x1]
      %v207 = vld [vmem:[%s196] sm:$0x7]
      %v208 = vld [vmem:[%s196 + $0x4] sm:$0x7]
      %v209 = vld [vmem:[%s196 + $0x8] sm:$0x7]
      %v210 = vperm.slane %v203, 0
      %v211 = vmul.f32 %v207, %v210
      %v212 = vmul.f32 %v208, %v210
      %v213 = vmul.f32 %v209, %v210
      %s214 = scalar_lea.vmem %s196, 16
      %v215 = vld [vmem:[%s214] sm:$0x7]
      %v216 = vld [vmem:[%s214 + $0x4] sm:$0x7]
      %v217 = vld [vmem:[%s214 + $0x8] sm:$0x7]
      %v218 = vperm.slane %v203, 1
      %v219 = vmul.f32 %v215, %v218
      %v220 = vmul.f32 %v216, %v218
      %v221 = vmul.f32 %v217, %v218
      %v222 = vadd.f32 %v211, %v219
      %v223 = vadd.f32 %v212, %v220
      %v224 = vadd.f32 %v213, %v221
      %v225 = vld [vmem:[%s196 + $0x1] sm:$0x7]
      %v226 = vld [vmem:[%s196 + $0x5] sm:$0x7]
      %v227 = vld [vmem:[%s196 + $0x9] sm:$0x7]
      %v228 = vperm.slane %v203, 2
      %v229 = vmul.f32 %v225, %v228
      %v230 = vmul.f32 %v226, %v228
      %v231 = vmul.f32 %v227, %v228
      %v232 = vadd.f32 %v222, %v229
      %v233 = vadd.f32 %v223, %v230
      %v234 = vadd.f32 %v224, %v231
      %s235 = scalar_lea.vmem %s196, 32
      %v236 = vld [vmem:[%s235] sm:$0x7]
      %v237 = vld [vmem:[%s235 + $0x4] sm:$0x7]
      %v238 = vld [vmem:[%s235 + $0x8] sm:$0x7]
      %v239 = vperm.slane %v203, 3
      %v240 = vmul.f32 %v236, %v239
      %v241 = vmul.f32 %v237, %v239
      %v242 = vmul.f32 %v238, %v239
      %v243 = vadd.f32 %v232, %v240
      %v244 = vadd.f32 %v233, %v241
      %v245 = vadd.f32 %v234, %v242
      %s246 = scalar_lea.vmem %s196, 48
      %v247 = vld [vmem:[%s246] sm:$0x7]
      %v248 = vld [vmem:[%s246 + $0x4] sm:$0x7]
      %v249 = vld [vmem:[%s246 + $0x8] sm:$0x7]
      %v250 = vperm.slane %v203, 4
      %v251 = vmul.f32 %v247, %v250
      %v252 = vmul.f32 %v248, %v250
      %v253 = vmul.f32 %v249, %v250
      %v254 = vadd.f32 %v243, %v251
      %v255 = vadd.f32 %v244, %v252
      %v256 = vadd.f32 %v245, %v253
      %v257 = vld [vmem:[%s235 + $0x1] sm:$0x7]
      %v258 = vld [vmem:[%s235 + $0x5] sm:$0x7]
      %v259 = vld [vmem:[%s235 + $0x9] sm:$0x7]
      %v260 = vperm.slane %v203, 5
      %v261 = vmul.f32 %v257, %v260
      %v262 = vmul.f32 %v258, %v260
      %v263 = vmul.f32 %v259, %v260
      %v264 = vadd.f32 %v254, %v261
      %v265 = vadd.f32 %v255, %v262
      %v266 = vadd.f32 %v256, %v263
      %s267 = scalar_lea.vmem %s196, 4
      %v268 = vld [vmem:[%s267] sm:$0x7]
      %v269 = vld [vmem:[%s267 + $0x4] sm:$0x7]
      %v270 = vld [vmem:[%s267 + $0x8] sm:$0x7]
      %v271 = vperm.slane %v203, 6
      %v272 = vmul.f32 %v268, %v271
      %v273 = vmul.f32 %v269, %v271
      %v274 = vmul.f32 %v270, %v271
      %v275 = vadd.f32 %v264, %v272
      %v276 = vadd.f32 %v265, %v273
      %v277 = vadd.f32 %v266, %v274
      %s278 = scalar_lea.vmem %s196, 20
      %v279 = vld [vmem:[%s278] sm:$0x7]
      %v280 = vld [vmem:[%s278 + $0x4] sm:$0x7]
      %v281 = vld [vmem:[%s278 + $0x8] sm:$0x7]
      %v282 = vperm.slane %v203, 7
      %v283 = vmul.f32 %v279, %v282
      %v284 = vmul.f32 %v280, %v282
      %v285 = vmul.f32 %v281, %v282
      %v286 = vadd.f32 %v275, %v283
      %v287 = vadd.f32 %v276, %v284
      %v288 = vadd.f32 %v277, %v285
      %v289 = vld [vmem:[%s267 + $0x1] sm:$0x7]
      %v290 = vld [vmem:[%s267 + $0x5] sm:$0x7]
      %v291 = vld [vmem:[%s267 + $0x9] sm:$0x7]
      %v292 = vperm.slane %v204, 0
      %v293 = vmul.f32 %v289, %v292
      %v294 = vmul.f32 %v290, %v292
      %v295 = vmul.f32 %v291, %v292
      %v296 = vadd.f32 %v286, %v293
      %v297 = vadd.f32 %v287, %v294
      %v298 = vadd.f32 %v288, %v295
      %v300 = vperm.slane %v205, 0
      %v302 = vmul.f32 %v296, %v300
      %v303 = vmul.f32 %v297, %v300
      %v304 = vmul.f32 %v298, %v300
      %v306 = vperm.slane %v206, 0
      %v308 = vadd.f32 %v302, %v306
      %v309 = vadd.f32 %v303, %v306
      %v310 = vadd.f32 %v304, %v306
      %v311 = vmax.f32 %v308, 0.0
      %v312 = vmax.f32 %v309, 0.0
      %v313 = vmax.f32 %v310, 0.0
      %vm314 = vcmask 518144
      %315 = vst.msk [vmem:[%s202] sm:$0x7] %vm314, %v311
      %316 = vst.msk [vmem:[%s202 + $0x4] sm:$0x7] %vm314, %v312
      %317 = vst.msk [vmem:[%s202 + $0x8] sm:$0x7] %vm314, %v313
      %p318 = scmp.lt.s32.totalorder %s15, 1
      %s319 = scalar_select %p318, %s15, 1
      %s320 = smul.addr %s319, 3
      %s321 = smul.addr %s320, 4
      %s322 = scalar_lea.vmem %s4, %s321
      // Predicated region
      $region37: #{ds_forward.5} parent=35 // pred_check
        %p323 = pneg %p122
      $region38: #{ds_forward.5} parent=35 // pred_check_branch
        %325 = sbr.rel (%p323) target = $region40
      $region39: #{ds_forward.5} parent=35 // pred_region
        _
      $region40: #{ds_forward.5} parent=35 // pred_fallthru
        _
    $region36: #{ds_forward.5} parent=5 // pred_fallthru
      _
    %p326 = scmp.le.s32.totalorder 2, %s10
    // Predicated region
    $region41: #{ds_forward.5} parent=5 // pred_check
      %p327 = pneg %p326
    $region42: #{ds_forward.5} parent=5 // pred_check_branch
      %329 = sbr.rel (%p327) target = $region44
    $region43: #{ds_forward.5} parent=5 // pred_region
      %s330 = ssub.s32 %s10, 2
      // Predicated region
      $region45: #{ds_forward.5} parent=43 // pred_check
        %p331 = pneg %p128
      $region46: #{ds_forward.5} parent=43 // pred_check_branch
        %333 = sbr.rel (%p331) target = $region48
      $region47: #{ds_forward.5} parent=43 // pred_region
        %p334 = scmp.lt.s32.totalorder %s16, 1
        %s335 = scalar_select %p334, %s16, 1
        %s336 = smul.addr %s335, 3
        %s337 = smul.addr %s336, 4
        %s338 = scalar_lea.vmem %s4, %s337
      $region48: #{ds_forward.5} parent=43 // pred_fallthru
        _
    $region44: #{ds_forward.5} parent=5 // pred_fallthru
      _
  $region6: #{ds_forward.5} parent=0 // loop_footer
    %s14 = sadd.s32 1, %s10
  $region7: #{ds_forward.5} parent=0 // loop_footer_branch
    %9 = sbr.rel target = $region3
  $region8: #{ds_forward.5} parent=0 // loop_exit
    _

// kernel: ds_forward.7
$region0: #{ds_forward.7}
  #allocation0 [shape = 'u32[]', space=smem, size = 0x4, offset = 0x4, fixed_abs, tag = 'smem constant byte address 0x4 - core index']
  #allocation1 [shape = 'u32[72,128]{1,0:T(1,128)}', space=vmem, size = 0x9000, scoped, tag = 'internal scratch']
  %s0 = inlined_call_operand.vmem [shape: f32[512,64], index: 0, kind: input, shape index: {}]
  %s1 = inlined_call_operand.vmem [shape: f32[512,64], index: 1, kind: input, shape index: {}]
  %s2 = inlined_call_operand.vmem [shape: f32[512,64], index: 2, kind: input, shape index: {}]
  %s3 = inlined_call_operand.vmem [shape: f32[64,64], index: 3, kind: input, shape index: {}]
  %s4 = inlined_call_operand.vmem [shape: f32[64,64], index: 4, kind: input, shape index: {}]
  %s5 = inlined_call_operand.vmem [shape: f32[1,64], index: 5, kind: input, shape index: {}, may-alias: {5,8}]
  %s6 = inlined_call_operand.vmem [shape: f32[64,64], index: 6, kind: input, shape index: {}]
  %s7 = inlined_call_operand.vmem [shape: f32[64,64], index: 7, kind: input, shape index: {}]
  %s8 = inlined_call_operand.vmem [shape: f32[1,64], index: 8, kind: input, shape index: {}, may-alias: {5,8}]
  %s9 = inlined_call_operand.hbm [shape: f32[512,64], index: 9, kind: output, shape index: {}]
  %s10 = sld [smem:[#allocation0]]
  $region46: #{ds_forward.7} parent=0
    _
  %s12 = ssub.s32 1, %s10
  %s13 = scalar_select 0, %s12, %s10
  $region1: #{ds_forward.7} parent=0
    #allocation2 [shape = 'u8[262144]{0}', space=vmem, size = 0x40000, scoped, tag = 'output window, operand 0, single buffered']
    #allocation3 [shape = 's32[1]{0}', space=sflag, size = 0x4, scoped, tag = 'scoped memory for ds_forward.7']
    %14 = vsyncpa [#allocation3], 0
    // Predicated region
    $region2: #{ds_forward.7} parent=1 // pred_check
      _
    $region3: #{ds_forward.7} parent=1 // pred_check_branch
      %16 = sbr.rel (0) target = $region5
    $region4: #{ds_forward.7} parent=1 // pred_region
      _
    $region5: #{ds_forward.7} parent=1 // pred_fallthru
      _
    // Predicated region
    $region6: #{ds_forward.7} parent=1 // pred_check
      _
    $region7: #{ds_forward.7} parent=1 // pred_check_branch
      %18 = sbr.rel (0) target = $region9
    $region8: #{ds_forward.7} parent=1 // pred_region
      _
    $region9: #{ds_forward.7} parent=1 // pred_fallthru
      _
    // Predicated region
    $region10: #{ds_forward.7} parent=1 // pred_check
      _
    $region11: #{ds_forward.7} parent=1 // pred_check_branch
      %20 = sbr.rel (0) target = $region13
    $region12: #{ds_forward.7} parent=1 // pred_region
      _
    $region13: #{ds_forward.7} parent=1 // pred_fallthru
      _
    // Predicated region
    $region14: #{ds_forward.7} parent=1 // pred_check
      _
    $region15: #{ds_forward.7} parent=1 // pred_check_branch
      %22 = sbr.rel (0) target = $region17
    $region16: #{ds_forward.7} parent=1 // pred_region
      _
    $region17: #{ds_forward.7} parent=1 // pred_fallthru
      _
    // Predicated region
    $region18: #{ds_forward.7} parent=1 // pred_check
      _
    $region19: #{ds_forward.7} parent=1 // pred_check_branch
      %24 = sbr.rel (0) target = $region21
    $region20: #{ds_forward.7} parent=1 // pred_region
      _
    $region21: #{ds_forward.7} parent=1 // pred_fallthru
      _
    // Predicated region
    $region22: #{ds_forward.7} parent=1 // pred_check
      _
    $region23: #{ds_forward.7} parent=1 // pred_check_branch
      %26 = sbr.rel (0) target = $region25
    $region24: #{ds_forward.7} parent=1 // pred_region
      _
    $region25: #{ds_forward.7} parent=1 // pred_fallthru
      _
    // Predicated region
    $region26: #{ds_forward.7} parent=1 // pred_check
      _
    $region27: #{ds_forward.7} parent=1 // pred_check_branch
      %28 = sbr.rel (0) target = $region29
    $region28: #{ds_forward.7} parent=1 // pred_region
      _
    $region29: #{ds_forward.7} parent=1 // pred_fallthru
      _
    // Predicated region
    $region30: #{ds_forward.7} parent=1 // pred_check
      _
    $region31: #{ds_forward.7} parent=1 // pred_check_branch
      %30 = sbr.rel (0) target = $region33
    $region32: #{ds_forward.7} parent=1 // pred_region
      _
    $region33: #{ds_forward.7} parent=1 // pred_fallthru
      _
    // Predicated region
    $region34: #{ds_forward.7} parent=1 // pred_check
      _
    $region35: #{ds_forward.7} parent=1 // pred_check_branch
      %32 = sbr.rel (0) target = $region37
    $region36: #{ds_forward.7} parent=1 // pred_region
      _
    $region37: #{ds_forward.7} parent=1 // pred_fallthru
      _
    %v33 = vld [vmem:[%s0] sm:$0xff]
    %v34 = vld [vmem:[%s0 + $0x8] sm:$0xff]
    %v35 = vld [vmem:[%s0 + $0x10] sm:$0xff]
    %v36 = vld [vmem:[%s0 + $0x18] sm:$0xff]
    %v37 = vld [vmem:[%s0 + $0x20] sm:$0xff]
    %v38 = vld [vmem:[%s0 + $0x28] sm:$0xff]
    %v39 = vld [vmem:[%s0 + $0x30] sm:$0xff]
    %v40 = vld [vmem:[%s0 + $0x38] sm:$0xff]
    %v41 = vld [vmem:[%s0 + $0x40] sm:$0xff]
    %v42 = vld [vmem:[%s0 + $0x48] sm:$0xff]
    %v43 = vld [vmem:[%s0 + $0x50] sm:$0xff]
    %v44 = vld [vmem:[%s0 + $0x58] sm:$0xff]
    %v45 = vld [vmem:[%s0 + $0x60] sm:$0xff]
    %v46 = vld [vmem:[%s0 + $0x68] sm:$0xff]
    %v47 = vld [vmem:[%s0 + $0x70] sm:$0xff]
    %v48 = vld [vmem:[%s0 + $0x78] sm:$0xff]
    %v49 = vld [vmem:[%s0 + $0x80] sm:$0xff]
    %v50 = vld [vmem:[%s0 + $0x88] sm:$0xff]
    %v51 = vld [vmem:[%s0 + $0x90] sm:$0xff]
    %v52 = vld [vmem:[%s0 + $0x98] sm:$0xff]
    %v53 = vld [vmem:[%s0 + $0xa0] sm:$0xff]
    %v54 = vld [vmem:[%s0 + $0xa8] sm:$0xff]
    %v55 = vld [vmem:[%s0 + $0xb0] sm:$0xff]
    %v56 = vld [vmem:[%s0 + $0xb8] sm:$0xff]
    %v57 = vld [vmem:[%s0 + $0xc0] sm:$0xff]
    %v58 = vld [vmem:[%s0 + $0xc8] sm:$0xff]
    %v59 = vld [vmem:[%s0 + $0xd0] sm:$0xff]
    %v60 = vld [vmem:[%s0 + $0xd8] sm:$0xff]
    %v61 = vld [vmem:[%s0 + $0xe0] sm:$0xff]
    %v62 = vld [vmem:[%s0 + $0xe8] sm:$0xff]
    %v63 = vld [vmem:[%s0 + $0xf0] sm:$0xff]
    %v64 = vld [vmem:[%s0 + $0xf8] sm:$0xff]
    %v65 = vld [vmem:[%s0 + $0x100] sm:$0xff]
    %v66 = vld [vmem:[%s0 + $0x108] sm:$0xff]
    %v67 = vld [vmem:[%s0 + $0x110] sm:$0xff]
    %v68 = vld [vmem:[%s0 + $0x118] sm:$0xff]
    %v69 = vld [vmem:[%s0 + $0x120] sm:$0xff]
    %v70 = vld [vmem:[%s0 + $0x128] sm:$0xff]
    %v71 = vld [vmem:[%s0 + $0x130] sm:$0xff]
    %v72 = vld [vmem:[%s0 + $0x138] sm:$0xff]
    %v73 = vld [vmem:[%s0 + $0x140] sm:$0xff]
    %v74 = vld [vmem:[%s0 + $0x148] sm:$0xff]
    %v75 = vld [vmem:[%s0 + $0x150] sm:$0xff]
    %v76 = vld [vmem:[%s0 + $0x158] sm:$0xff]
    %v77 = vld [vmem:[%s0 + $0x160] sm:$0xff]
    %v78 = vld [vmem:[%s0 + $0x168] sm:$0xff]
    %v79 = vld [vmem:[%s0 + $0x170] sm:$0xff]
    %v80 = vld [vmem:[%s0 + $0x178] sm:$0xff]
    %v81 = vld [vmem:[%s0 + $0x180] sm:$0xff]
    %v82 = vld [vmem:[%s0 + $0x188] sm:$0xff]
    %v83 = vld [vmem:[%s0 + $0x190] sm:$0xff]
    %v84 = vld [vmem:[%s0 + $0x198] sm:$0xff]
    %v85 = vld [vmem:[%s0 + $0x1a0] sm:$0xff]
    %v86 = vld [vmem:[%s0 + $0x1a8] sm:$0xff]
    %v87 = vld [vmem:[%s0 + $0x1b0] sm:$0xff]
    %v88 = vld [vmem:[%s0 + $0x1b8] sm:$0xff]
    %v89 = vld [vmem:[%s0 + $0x1c0] sm:$0xff]
    %v90 = vld [vmem:[%s0 + $0x1c8] sm:$0xff]
    %v91 = vld [vmem:[%s0 + $0x1d0] sm:$0xff]
    %v92 = vld [vmem:[%s0 + $0x1d8] sm:$0xff]
    %v93 = vld [vmem:[%s0 + $0x1e0] sm:$0xff]
    %v94 = vld [vmem:[%s0 + $0x1e8] sm:$0xff]
    %v95 = vld [vmem:[%s0 + $0x1f0] sm:$0xff]
    %v96 = vld [vmem:[%s0 + $0x1f8] sm:$0xff]
    %v97 = vld [vmem:[%s1] sm:$0xff]
    %v98 = vld [vmem:[%s1 + $0x8] sm:$0xff]
    %v99 = vld [vmem:[%s1 + $0x10] sm:$0xff]
    %v100 = vld [vmem:[%s1 + $0x18] sm:$0xff]
    %v101 = vld [vmem:[%s1 + $0x20] sm:$0xff]
    %v102 = vld [vmem:[%s1 + $0x28] sm:$0xff]
    %v103 = vld [vmem:[%s1 + $0x30] sm:$0xff]
    %v104 = vld [vmem:[%s1 + $0x38] sm:$0xff]
    %v105 = vld [vmem:[%s1 + $0x40] sm:$0xff]
    %v106 = vld [vmem:[%s1 + $0x48] sm:$0xff]
    %v107 = vld [vmem:[%s1 + $0x50] sm:$0xff]
    %v108 = vld [vmem:[%s1 + $0x58] sm:$0xff]
    %v109 = vld [vmem:[%s1 + $0x60] sm:$0xff]
    %v110 = vld [vmem:[%s1 + $0x68] sm:$0xff]
    %v111 = vld [vmem:[%s1 + $0x70] sm:$0xff]
    %v112 = vld [vmem:[%s1 + $0x78] sm:$0xff]
    %v113 = vld [vmem:[%s1 + $0x80] sm:$0xff]
    %v114 = vld [vmem:[%s1 + $0x88] sm:$0xff]
    %v115 = vld [vmem:[%s1 + $0x90] sm:$0xff]
    %v116 = vld [vmem:[%s1 + $0x98] sm:$0xff]
    %v117 = vld [vmem:[%s1 + $0xa0] sm:$0xff]
    %v118 = vld [vmem:[%s1 + $0xa8] sm:$0xff]
    %v119 = vld [vmem:[%s1 + $0xb0] sm:$0xff]
    %v120 = vld [vmem:[%s1 + $0xb8] sm:$0xff]
    %v121 = vld [vmem:[%s1 + $0xc0] sm:$0xff]
    %v122 = vld [vmem:[%s1 + $0xc8] sm:$0xff]
    %v123 = vld [vmem:[%s1 + $0xd0] sm:$0xff]
    %v124 = vld [vmem:[%s1 + $0xd8] sm:$0xff]
    %v125 = vld [vmem:[%s1 + $0xe0] sm:$0xff]
    %v126 = vld [vmem:[%s1 + $0xe8] sm:$0xff]
    %v127 = vld [vmem:[%s1 + $0xf0] sm:$0xff]
    %v128 = vld [vmem:[%s1 + $0xf8] sm:$0xff]
    %v129 = vld [vmem:[%s1 + $0x100] sm:$0xff]
    %v130 = vld [vmem:[%s1 + $0x108] sm:$0xff]
    %v131 = vld [vmem:[%s1 + $0x110] sm:$0xff]
    %v132 = vld [vmem:[%s1 + $0x118] sm:$0xff]
    %v133 = vld [vmem:[%s1 + $0x120] sm:$0xff]
    %v134 = vld [vmem:[%s1 + $0x128] sm:$0xff]
    %v135 = vld [vmem:[%s1 + $0x130] sm:$0xff]
    %v136 = vld [vmem:[%s1 + $0x138] sm:$0xff]
    %v137 = vld [vmem:[%s1 + $0x140] sm:$0xff]
    %v138 = vld [vmem:[%s1 + $0x148] sm:$0xff]
    %v139 = vld [vmem:[%s1 + $0x150] sm:$0xff]
    %v140 = vld [vmem:[%s1 + $0x158] sm:$0xff]
    %v141 = vld [vmem:[%s1 + $0x160] sm:$0xff]
    %v142 = vld [vmem:[%s1 + $0x168] sm:$0xff]
    %v143 = vld [vmem:[%s1 + $0x170] sm:$0xff]
    %v144 = vld [vmem:[%s1 + $0x178] sm:$0xff]
    %v145 = vld [vmem:[%s1 + $0x180] sm:$0xff]
    %v146 = vld [vmem:[%s1 + $0x188] sm:$0xff]
    %v147 = vld [vmem:[%s1 + $0x190] sm:$0xff]
    %v148 = vld [vmem:[%s1 + $0x198] sm:$0xff]
    %v149 = vld [vmem:[%s1 + $0x1a0] sm:$0xff]
    %v150 = vld [vmem:[%s1 + $0x1a8] sm:$0xff]
    %v151 = vld [vmem:[%s1 + $0x1b0] sm:$0xff]
    %v152 = vld [vmem:[%s1 + $0x1b8] sm:$0xff]
    %v153 = vld [vmem:[%s1 + $0x1c0] sm:$0xff]
    %v154 = vld [vmem:[%s1 + $0x1c8] sm:$0xff]
    %v155 = vld [vmem:[%s1 + $0x1d0] sm:$0xff]
    %v156 = vld [vmem:[%s1 + $0x1d8] sm:$0xff]
    %v157 = vld [vmem:[%s1 + $0x1e0] sm:$0xff]
    %v158 = vld [vmem:[%s1 + $0x1e8] sm:$0xff]
    %v159 = vld [vmem:[%s1 + $0x1f0] sm:$0xff]
    %v160 = vld [vmem:[%s1 + $0x1f8] sm:$0xff]
    %v161 = vld [vmem:[%s2] sm:$0xff]
    %v162 = vld [vmem:[%s2 + $0x8] sm:$0xff]
    %v163 = vld [vmem:[%s2 + $0x10] sm:$0xff]
    %v164 = vld [vmem:[%s2 + $0x18] sm:$0xff]
    %v165 = vld [vmem:[%s2 + $0x20] sm:$0xff]
    %v166 = vld [vmem:[%s2 + $0x28] sm:$0xff]
    %v167 = vld [vmem:[%s2 + $0x30] sm:$0xff]
    %v168 = vld [vmem:[%s2 + $0x38] sm:$0xff]
    %v169 = vld [vmem:[%s2 + $0x40] sm:$0xff]
    %v170 = vld [vmem:[%s2 + $0x48] sm:$0xff]
    %v171 = vld [vmem:[%s2 + $0x50] sm:$0xff]
    %v172 = vld [vmem:[%s2 + $0x58] sm:$0xff]
    %v173 = vld [vmem:[%s2 + $0x60] sm:$0xff]
    %v174 = vld [vmem:[%s2 + $0x68] sm:$0xff]
    %v175 = vld [vmem:[%s2 + $0x70] sm:$0xff]
    %v176 = vld [vmem:[%s2 + $0x78] sm:$0xff]
    %v177 = vld [vmem:[%s2 + $0x80] sm:$0xff]
    %v178 = vld [vmem:[%s2 + $0x88] sm:$0xff]
    %v179 = vld [vmem:[%s2 + $0x90] sm:$0xff]
    %v180 = vld [vmem:[%s2 + $0x98] sm:$0xff]
    %v181 = vld [vmem:[%s2 + $0xa0] sm:$0xff]
    %v182 = vld [vmem:[%s2 + $0xa8] sm:$0xff]
    %v183 = vld [vmem:[%s2 + $0xb0] sm:$0xff]
    %v184 = vld [vmem:[%s2 + $0xb8] sm:$0xff]
    %v185 = vld [vmem:[%s2 + $0xc0] sm:$0xff]
    %v186 = vld [vmem:[%s2 + $0xc8] sm:$0xff]
    %v187 = vld [vmem:[%s2 + $0xd0] sm:$0xff]
    %v188 = vld [vmem:[%s2 + $0xd8] sm:$0xff]
    %v189 = vld [vmem:[%s2 + $0xe0] sm:$0xff]
    %v190 = vld [vmem:[%s2 + $0xe8] sm:$0xff]
    %v191 = vld [vmem:[%s2 + $0xf0] sm:$0xff]
    %v192 = vld [vmem:[%s2 + $0xf8] sm:$0xff]
    %v193 = vld [vmem:[%s2 + $0x100] sm:$0xff]
    %v194 = vld [vmem:[%s2 + $0x108] sm:$0xff]
    %v195 = vld [vmem:[%s2 + $0x110] sm:$0xff]
    %v196 = vld [vmem:[%s2 + $0x118] sm:$0xff]
    %v197 = vld [vmem:[%s2 + $0x120] sm:$0xff]
    %v198 = vld [vmem:[%s2 + $0x128] sm:$0xff]
    %v199 = vld [vmem:[%s2 + $0x130] sm:$0xff]
    %v200 = vld [vmem:[%s2 + $0x138] sm:$0xff]
    %v201 = vld [vmem:[%s2 + $0x140] sm:$0xff]
    %v202 = vld [vmem:[%s2 + $0x148] sm:$0xff]
    %v203 = vld [vmem:[%s2 + $0x150] sm:$0xff]
    %v204 = vld [vmem:[%s2 + $0x158] sm:$0xff]
    %v205 = vld [vmem:[%s2 + $0x160] sm:$0xff]
    %v206 = vld [vmem:[%s2 + $0x168] sm:$0xff]
    %v207 = vld [vmem:[%s2 + $0x170] sm:$0xff]
    %v208 = vld [vmem:[%s2 + $0x178] sm:$0xff]
    %v209 = vld [vmem:[%s2 + $0x180] sm:$0xff]
    %v210 = vld [vmem:[%s2 + $0x188] sm:$0xff]
    %v211 = vld [vmem:[%s2 + $0x190] sm:$0xff]
    %v212 = vld [vmem:[%s2 + $0x198] sm:$0xff]
    %v213 = vld [vmem:[%s2 + $0x1a0] sm:$0xff]
    %v214 = vld [vmem:[%s2 + $0x1a8] sm:$0xff]
    %v215 = vld [vmem:[%s2 + $0x1b0] sm:$0xff]
    %v216 = vld [vmem:[%s2 + $0x1b8] sm:$0xff]
    %v217 = vld [vmem:[%s2 + $0x1c0] sm:$0xff]
    %v218 = vld [vmem:[%s2 + $0x1c8] sm:$0xff]
    %v219 = vld [vmem:[%s2 + $0x1d0] sm:$0xff]
    %v220 = vld [vmem:[%s2 + $0x1d8] sm:$0xff]
    %v221 = vld [vmem:[%s2 + $0x1e0] sm:$0xff]
    %v222 = vld [vmem:[%s2 + $0x1e8] sm:$0xff]
    %v223 = vld [vmem:[%s2 + $0x1f0] sm:$0xff]
    %v224 = vld [vmem:[%s2 + $0x1f8] sm:$0xff]
    %v225 = vsub.f32 %v33, %v97
    %v226 = vsub.f32 %v34, %v98
    %v227 = vsub.f32 %v35, %v99
    %v228 = vsub.f32 %v36, %v100
    %v229 = vsub.f32 %v37, %v101
    %v230 = vsub.f32 %v38, %v102
    %v231 = vsub.f32 %v39, %v103
    %v232 = vsub.f32 %v40, %v104
    %v233 = vsub.f32 %v41, %v105
    %v234 = vsub.f32 %v42, %v106
    %v235 = vsub.f32 %v43, %v107
    %v236 = vsub.f32 %v44, %v108
    %v237 = vsub.f32 %v45, %v109
    %v238 = vsub.f32 %v46, %v110
    %v239 = vsub.f32 %v47, %v111
    %v240 = vsub.f32 %v48, %v112
    %v241 = vsub.f32 %v49, %v113
    %v242 = vsub.f32 %v50, %v114
    %v243 = vsub.f32 %v51, %v115
    %v244 = vsub.f32 %v52, %v116
    %v245 = vsub.f32 %v53, %v117
    %v246 = vsub.f32 %v54, %v118
    %v247 = vsub.f32 %v55, %v119
    %v248 = vsub.f32 %v56, %v120
    %v249 = vsub.f32 %v57, %v121
    %v250 = vsub.f32 %v58, %v122
    %v251 = vsub.f32 %v59, %v123
    %v252 = vsub.f32 %v60, %v124
    %v253 = vsub.f32 %v61, %v125
    %v254 = vsub.f32 %v62, %v126
    %v255 = vsub.f32 %v63, %v127
    %v256 = vsub.f32 %v64, %v128
    %v257 = vsub.f32 %v65, %v129
    %v258 = vsub.f32 %v66, %v130
    %v259 = vsub.f32 %v67, %v131
    %v260 = vsub.f32 %v68, %v132
    %v261 = vsub.f32 %v69, %v133
    %v262 = vsub.f32 %v70, %v134
    %v263 = vsub.f32 %v71, %v135
    %v264 = vsub.f32 %v72, %v136
    %v265 = vsub.f32 %v73, %v137
    %v266 = vsub.f32 %v74, %v138
    %v267 = vsub.f32 %v75, %v139
    %v268 = vsub.f32 %v76, %v140
    %v269 = vsub.f32 %v77, %v141
    %v270 = vsub.f32 %v78, %v142
    %v271 = vsub.f32 %v79, %v143
    %v272 = vsub.f32 %v80, %v144
    %v273 = vsub.f32 %v81, %v145
    %v274 = vsub.f32 %v82, %v146
    %v275 = vsub.f32 %v83, %v147
    %v276 = vsub.f32 %v84, %v148
    %v277 = vsub.f32 %v85, %v149
    %v278 = vsub.f32 %v86, %v150
    %v279 = vsub.f32 %v87, %v151
    %v280 = vsub.f32 %v88, %v152
    %v281 = vsub.f32 %v89, %v153
    %v282 = vsub.f32 %v90, %v154
    %v283 = vsub.f32 %v91, %v155
    %v284 = vsub.f32 %v92, %v156
    %v285 = vsub.f32 %v93, %v157
    %v286 = vsub.f32 %v94, %v158
    %v287 = vsub.f32 %v95, %v159
    %v288 = vsub.f32 %v96, %v160
    %v289 = vld [vmem:[%s3] sm:$0xff]
    %v290 = vld [vmem:[%s3 + $0x8] sm:$0xff]
    %v291 = vld [vmem:[%s3 + $0x10] sm:$0xff]
    %v292 = vld [vmem:[%s3 + $0x18] sm:$0xff]
    %v293 = vld [vmem:[%s3 + $0x20] sm:$0xff]
    %v294 = vld [vmem:[%s3 + $0x28] sm:$0xff]
    %v295 = vld [vmem:[%s3 + $0x30] sm:$0xff]
    %v296 = vld [vmem:[%s3 + $0x38] sm:$0xff]
    %v297 = vld [vmem:[%s4] sm:$0xff]
    %v298 = vld [vmem:[%s4 + $0x8] sm:$0xff]
    %v299 = vld [vmem:[%s4 + $0x10] sm:$0xff]
    %v300 = vld [vmem:[%s4 + $0x18] sm:$0xff]
    %v301 = vld [vmem:[%s4 + $0x20] sm:$0xff]
    %v302 = vld [vmem:[%s4 + $0x28] sm:$0xff]
    %v303 = vld [vmem:[%s4 + $0x30] sm:$0xff]
    %v304 = vld [vmem:[%s4 + $0x38] sm:$0xff]
    %vm305 = vcmask 523264
    %v307 = vsel %vm305, %v161, 0
    %v310 = vsel %vm305, %v162, 0
    %v313 = vsel %vm305, %v163, 0
    %v316 = vsel %vm305, %v164, 0
    %v319 = vsel %vm305, %v165, 0
    %v322 = vsel %vm305, %v166, 0
    %v325 = vsel %vm305, %v167, 0
    %v328 = vsel %vm305, %v168, 0
    %v331 = vsel %vm305, %v169, 0
    %v334 = vsel %vm305, %v170, 0
    %v337 = vsel %vm305, %v171, 0
    %v340 = vsel %vm305, %v172, 0
    %v343 = vsel %vm305, %v173, 0
    %v346 = vsel %vm305, %v174, 0
    %v349 = vsel %vm305, %v175, 0
    %v352 = vsel %vm305, %v176, 0
    %v355 = vsel %vm305, %v177, 0
    %v358 = vsel %vm305, %v178, 0
    %v361 = vsel %vm305, %v179, 0
    %v364 = vsel %vm305, %v180, 0
    %v367 = vsel %vm305, %v181, 0
    %v370 = vsel %vm305, %v182, 0
    %v373 = vsel %vm305, %v183, 0
    %v376 = vsel %vm305, %v184, 0
    %v379 = vsel %vm305, %v185, 0
    %v382 = vsel %vm305, %v186, 0
    %v385 = vsel %vm305, %v187, 0
    %v388 = vsel %vm305, %v188, 0
    %v391 = vsel %vm305, %v189, 0
    %v394 = vsel %vm305, %v190, 0
    %v397 = vsel %vm305, %v191, 0
    %v400 = vsel %vm305, %v192, 0
    %v403 = vsel %vm305, %v193, 0
    %v406 = vsel %vm305, %v194, 0
    %v409 = vsel %vm305, %v195, 0
    %v412 = vsel %vm305, %v196, 0
    %v415 = vsel %vm305, %v197, 0
    %v418 = vsel %vm305, %v198, 0
    %v421 = vsel %vm305, %v199, 0
    %v424 = vsel %vm305, %v200, 0
    %v427 = vsel %vm305, %v201, 0
    %v430 = vsel %vm305, %v202, 0
    %v433 = vsel %vm305, %v203, 0
    %v436 = vsel %vm305, %v204, 0
    %v439 = vsel %vm305, %v205, 0
    %v442 = vsel %vm305, %v206, 0
    %v445 = vsel %vm305, %v207, 0
    %v448 = vsel %vm305, %v208, 0
    %v451 = vsel %vm305, %v209, 0
    %v454 = vsel %vm305, %v210, 0
    %v457 = vsel %vm305, %v211, 0
    %v460 = vsel %vm305, %v212, 0
    %v463 = vsel %vm305, %v213, 0
    %v466 = vsel %vm305, %v214, 0
    %v469 = vsel %vm305, %v215, 0
    %v472 = vsel %vm305, %v216, 0
    %v475 = vsel %vm305, %v217, 0
    %v478 = vsel %vm305, %v218, 0
    %v481 = vsel %vm305, %v219, 0
    %v484 = vsel %vm305, %v220, 0
    %v487 = vsel %vm305, %v221, 0
    %v490 = vsel %vm305, %v222, 0
    %v493 = vsel %vm305, %v223, 0
    %v496 = vsel %vm305, %v224, 0
    %498 = vmatpush.msra.mxu0 0.0
    %499 = vmatpush.msra.mxu0 0.0
    %500 = vmatpush.msra.mxu0 0.0
    %501 = vmatpush.msra.mxu0 0.0
    %502 = vmatpush.msra.mxu0 0.0
    %503 = vmatpush.msra.mxu0 0.0
    %504 = vmatpush.msra.mxu0 0.0
    %505 = vmatpush.msra.mxu0 0.0
    %506 = vmatpush.msra.mxu0 %v304
    %507 = vmatpush.msra.mxu0 %v303
    %508 = vmatpush.msra.mxu0 %v302
    %509 = vmatpush.msra.mxu0 %v301
    %510 = vmatpush.msra.mxu0 %v300
    %511 = vmatpush.msra.mxu0 %v299
    %512 = vmatpush.msra.mxu0 %v298
    %513 = vmatpush.msra.mxu0 %v297
    %514 = vmatmul.f32.gmra.mxu0 %v307
    %v515 = vpop.f32.mrf.mxu0
    %v516 = vadd.f32 0.0, %v515
    %517 = vmatmul.f32.gmra.mxu0 %v310
    %v518 = vpop.f32.mrf.mxu0
    %v519 = vadd.f32 0.0, %v518
    %520 = vmatmul.f32.gmra.mxu0 %v313
    %v521 = vpop.f32.mrf.mxu0
    %v522 = vadd.f32 0.0, %v521
    %523 = vmatmul.f32.gmra.mxu0 %v316
    %v524 = vpop.f32.mrf.mxu0
    %v525 = vadd.f32 0.0, %v524
    %526 = vmatmul.f32.gmra.mxu0 %v319
    %v527 = vpop.f32.mrf.mxu0
    %v528 = vadd.f32 0.0, %v527
    %529 = vmatmul.f32.gmra.mxu0 %v322
    %v530 = vpop.f32.mrf.mxu0
    %v531 = vadd.f32 0.0, %v530
    %532 = vmatmul.f32.gmra.mxu0 %v325
    %v533 = vpop.f32.mrf.mxu0
    %v534 = vadd.f32 0.0, %v533
    %535 = vmatmul.f32.gmra.mxu0 %v328
    %v536 = vpop.f32.mrf.mxu0
    %v537 = vadd.f32 0.0, %v536
    %538 = vmatmul.f32.gmra.mxu0 %v331
    %v539 = vpop.f32.mrf.mxu0
    %v540 = vadd.f32 0.0, %v539
    %541 = vmatmul.f32.gmra.mxu0 %v334
    %v542 = vpop.f32.mrf.mxu0
    %v543 = vadd.f32 0.0, %v542
    %544 = vmatmul.f32.gmra.mxu0 %v337
    %v545 = vpop.f32.mrf.mxu0
    %v546 = vadd.f32 0.0, %v545
    %547 = vmatmul.f32.gmra.mxu0 %v340
    %v548 = vpop.f32.mrf.mxu0
    %v549 = vadd.f32 0.0, %v548
    %550 = vmatmul.f32.gmra.mxu0 %v343
    %v551 = vpop.f32.mrf.mxu0
    %v552 = vadd.f32 0.0, %v551
    %553 = vmatmul.f32.gmra.mxu0 %v346
    %v554 = vpop.f32.mrf.mxu0
    %v555 = vadd.f32 0.0, %v554
    %556 = vmatmul.f32.gmra.mxu0 %v349
    %v557 = vpop.f32.mrf.mxu0
    %v558 = vadd.f32 0.0, %v557
    %559 = vmatmul.f32.gmra.mxu0 %v352
    %v560 = vpop.f32.mrf.mxu0
    %v561 = vadd.f32 0.0, %v560
    %562 = vmatmul.f32.gmra.mxu0 %v355
    %v563 = vpop.f32.mrf.mxu0
    %v564 = vadd.f32 0.0, %v563
    %565 = vmatmul.f32.gmra.mxu0 %v358
    %v566 = vpop.f32.mrf.mxu0
    %v567 = vadd.f32 0.0, %v566
    %568 = vmatmul.f32.gmra.mxu0 %v361
    %v569 = vpop.f32.mrf.mxu0
    %v570 = vadd.f32 0.0, %v569
    %571 = vmatmul.f32.gmra.mxu0 %v364
    %v572 = vpop.f32.mrf.mxu0
    %v573 = vadd.f32 0.0, %v572
    %574 = vmatmul.f32.gmra.mxu0 %v367
    %v575 = vpop.f32.mrf.mxu0
    %v576 = vadd.f32 0.0, %v575
    %577 = vmatmul.f32.gmra.mxu0 %v370
    %v578 = vpop.f32.mrf.mxu0
    %v579 = vadd.f32 0.0, %v578
    %580 = vmatmul.f32.gmra.mxu0 %v373
    %v581 = vpop.f32.mrf.mxu0
    %v582 = vadd.f32 0.0, %v581
    %583 = vmatmul.f32.gmra.mxu0 %v376
    %v584 = vpop.f32.mrf.mxu0
    %v585 = vadd.f32 0.0, %v584
    %586 = vmatmul.f32.gmra.mxu0 %v379
    %v587 = vpop.f32.mrf.mxu0
    %v588 = vadd.f32 0.0, %v587
    %589 = vmatmul.f32.gmra.mxu0 %v382
    %v590 = vpop.f32.mrf.mxu0
    %v591 = vadd.f32 0.0, %v590
    %592 = vmatmul.f32.gmra.mxu0 %v385
    %v593 = vpop.f32.mrf.mxu0
    %v594 = vadd.f32 0.0, %v593
    %595 = vmatmul.f32.gmra.mxu0 %v388
    %v596 = vpop.f32.mrf.mxu0
    %v597 = vadd.f32 0.0, %v596
    %598 = vmatmul.f32.gmra.mxu0 %v391
    %v599 = vpop.f32.mrf.mxu0
    %v600 = vadd.f32 0.0, %v599
    %601 = vmatmul.f32.gmra.mxu0 %v394
    %v602 = vpop.f32.mrf.mxu0
    %v603 = vadd.f32 0.0, %v602
    %604 = vmatmul.f32.gmra.mxu0 %v397
    %v605 = vpop.f32.mrf.mxu0
    %v606 = vadd.f32 0.0, %v605
    %607 = vmatmul.f32.gmra.mxu0 %v400
    %v608 = vpop.f32.mrf.mxu0
    %v609 = vadd.f32 0.0, %v608
    %610 = vmatmul.f32.gmra.mxu0 %v403
    %v611 = vpop.f32.mrf.mxu0
    %v612 = vadd.f32 0.0, %v611
    %613 = vmatmul.f32.gmra.mxu0 %v406
    %v614 = vpop.f32.mrf.mxu0
    %v615 = vadd.f32 0.0, %v614
    %616 = vmatmul.f32.gmra.mxu0 %v409
    %v617 = vpop.f32.mrf.mxu0
    %v618 = vadd.f32 0.0, %v617
    %619 = vmatmul.f32.gmra.mxu0 %v412
    %v620 = vpop.f32.mrf.mxu0
    %v621 = vadd.f32 0.0, %v620
    %622 = vmatmul.f32.gmra.mxu0 %v415
    %v623 = vpop.f32.mrf.mxu0
    %v624 = vadd.f32 0.0, %v623
    %625 = vmatmul.f32.gmra.mxu0 %v418
    %v626 = vpop.f32.mrf.mxu0
    %v627 = vadd.f32 0.0, %v626
    %628 = vmatmul.f32.gmra.mxu0 %v421
    %v629 = vpop.f32.mrf.mxu0
    %v630 = vadd.f32 0.0, %v629
    %631 = vmatmul.f32.gmra.mxu0 %v424
    %v632 = vpop.f32.mrf.mxu0
    %v633 = vadd.f32 0.0, %v632
    %634 = vmatmul.f32.gmra.mxu0 %v427
    %v635 = vpop.f32.mrf.mxu0
    %v636 = vadd.f32 0.0, %v635
    %637 = vmatmul.f32.gmra.mxu0 %v430
    %v638 = vpop.f32.mrf.mxu0
    %v639 = vadd.f32 0.0, %v638
    %640 = vmatmul.f32.gmra.mxu0 %v433
    %v641 = vpop.f32.mrf.mxu0
    %v642 = vadd.f32 0.0, %v641
    %643 = vmatmul.f32.gmra.mxu0 %v436
    %v644 = vpop.f32.mrf.mxu0
    %v645 = vadd.f32 0.0, %v644
    %646 = vmatmul.f32.gmra.mxu0 %v439
    %v647 = vpop.f32.mrf.mxu0
    %v648 = vadd.f32 0.0, %v647
    %649 = vmatmul.f32.gmra.mxu0 %v442
    %v650 = vpop.f32.mrf.mxu0
    %v651 = vadd.f32 0.0, %v650
    %652 = vmatmul.f32.gmra.mxu0 %v445
    %v653 = vpop.f32.mrf.mxu0
    %v654 = vadd.f32 0.0, %v653
    %655 = vmatmul.f32.gmra.mxu0 %v448
    %v656 = vpop.f32.mrf.mxu0
    %v657 = vadd.f32 0.0, %v656
    %658 = vmatmul.f32.gmra.mxu0 %v451
    %v659 = vpop.f32.mrf.mxu0
    %v660 = vadd.f32 0.0, %v659
    %661 = vmatmul.f32.gmra.mxu0 %v454
    %v662 = vpop.f32.mrf.mxu0
    %v663 = vadd.f32 0.0, %v662
    %664 = vmatmul.f32.gmra.mxu0 %v457
    %v665 = vpop.f32.mrf.mxu0
    %v666 = vadd.f32 0.0, %v665
    %667 = vmatmul.f32.gmra.mxu0 %v460
    %v668 = vpop.f32.mrf.mxu0
    %v669 = vadd.f32 0.0, %v668
    %670 = vmatmul.f32.gmra.mxu0 %v463
    %v671 = vpop.f32.mrf.mxu0
    %v672 = vadd.f32 0.0, %v671
    %673 = vmatmul.f32.gmra.mxu0 %v466
    %v674 = vpop.f32.mrf.mxu0
    %v675 = vadd.f32 0.0, %v674
    %676 = vmatmul.f32.gmra.mxu0 %v469
    %v677 = vpop.f32.mrf.mxu0
    %v678 = vadd.f32 0.0, %v677
    %679 = vmatmul.f32.gmra.mxu0 %v472
    %v680 = vpop.f32.mrf.mxu0
    %v681 = vadd.f32 0.0, %v680
    %682 = vmatmul.f32.gmra.mxu0 %v475
    %v683 = vpop.f32.mrf.mxu0
    %v684 = vadd.f32 0.0, %v683
    %685 = vmatmul.f32.gmra.mxu0 %v478
    %v686 = vpop.f32.mrf.mxu0
    %v687 = vadd.f32 0.0, %v686
    %688 = vmatmul.f32.gmra.mxu0 %v481
    %v689 = vpop.f32.mrf.mxu0
    %v690 = vadd.f32 0.0, %v689
    %691 = vmatmul.f32.gmra.mxu0 %v484
    %v692 = vpop.f32.mrf.mxu0
    %v693 = vadd.f32 0.0, %v692
    %694 = vmatmul.f32.gmra.mxu0 %v487
    %v695 = vpop.f32.mrf.mxu0
    %v696 = vadd.f32 0.0, %v695
    %697 = vmatmul.f32.gmra.mxu0 %v490
    %v698 = vpop.f32.mrf.mxu0
    %v699 = vadd.f32 0.0, %v698
    %700 = vmatmul.f32.gmra.mxu0 %v493
    %v701 = vpop.f32.mrf.mxu0
    %v702 = vadd.f32 0.0, %v701
    %703 = vmatmul.f32.gmra.mxu0 %v496
    %v704 = vpop.f32.mrf.mxu0
    %v705 = vadd.f32 0.0, %v704
    %706 = vdwg.mxu0
    %v708 = vsel %vm305, %v225, 0
    %v711 = vsel %vm305, %v226, 0
    %v714 = vsel %vm305, %v227, 0
    %v717 = vsel %vm305, %v228, 0
    %v720 = vsel %vm305, %v229, 0
    %v723 = vsel %vm305, %v230, 0
    %v726 = vsel %vm305, %v231, 0
    %v729 = vsel %vm305, %v232, 0
    %v732 = vsel %vm305, %v233, 0
    %v735 = vsel %vm305, %v234, 0
    %v738 = vsel %vm305, %v235, 0
    %v741 = vsel %vm305, %v236, 0
    %v744 = vsel %vm305, %v237, 0
    %v747 = vsel %vm305, %v238, 0
    %v750 = vsel %vm305, %v239, 0
    %v753 = vsel %vm305, %v240, 0
    %v756 = vsel %vm305, %v241, 0
    %v759 = vsel %vm305, %v242, 0
    %v762 = vsel %vm305, %v243, 0
    %v765 = vsel %vm305, %v244, 0
    %v768 = vsel %vm305, %v245, 0
    %v771 = vsel %vm305, %v246, 0
    %v774 = vsel %vm305, %v247, 0
    %v777 = vsel %vm305, %v248, 0
    %v780 = vsel %vm305, %v249, 0
    %v783 = vsel %vm305, %v250, 0
    %v786 = vsel %vm305, %v251, 0
    %v789 = vsel %vm305, %v252, 0
    %v792 = vsel %vm305, %v253, 0
    %v795 = vsel %vm305, %v254, 0
    %v798 = vsel %vm305, %v255, 0
    %v801 = vsel %vm305, %v256, 0
    %v804 = vsel %vm305, %v257, 0
    %v807 = vsel %vm305, %v258, 0
    %v810 = vsel %vm305, %v259, 0
    %v813 = vsel %vm305, %v260, 0
    %v816 = vsel %vm305, %v261, 0
    %v819 = vsel %vm305, %v262, 0
    %v822 = vsel %vm305, %v263, 0
    %v825 = vsel %vm305, %v264, 0
    %v828 = vsel %vm305, %v265, 0
    %v831 = vsel %vm305, %v266, 0
    %v834 = vsel %vm305, %v267, 0
    %v837 = vsel %vm305, %v268, 0
    %v840 = vsel %vm305, %v269, 0
    %v843 = vsel %vm305, %v270, 0
    %v846 = vsel %vm305, %v271, 0
    %v849 = vsel %vm305, %v272, 0
    %v852 = vsel %vm305, %v273, 0
    %v855 = vsel %vm305, %v274, 0
    %v858 = vsel %vm305, %v275, 0
    %v861 = vsel %vm305, %v276, 0
    %v864 = vsel %vm305, %v277, 0
    %v867 = vsel %vm305, %v278, 0
    %v870 = vsel %vm305, %v279, 0
    %v873 = vsel %vm305, %v280, 0
    %v876 = vsel %vm305, %v281, 0
    %v879 = vsel %vm305, %v282, 0
    %v882 = vsel %vm305, %v283, 0
    %v885 = vsel %vm305, %v284, 0
    %v888 = vsel %vm305, %v285, 0
    %v891 = vsel %vm305, %v286, 0
    %v894 = vsel %vm305, %v287, 0
    %v897 = vsel %vm305, %v288, 0
    %899 = vmatpush.msra.mxu0 0.0
    %900 = vmatpush.msra.mxu0 0.0
    %901 = vmatpush.msra.mxu0 0.0
    %902 = vmatpush.msra.mxu0 0.0
    %903 = vmatpush.msra.mxu0 0.0
    %904 = vmatpush.msra.mxu0 0.0
    %905 = vmatpush.msra.mxu0 0.0
    %906 = vmatpush.msra.mxu0 0.0
    %907 = vmatpush.msra.mxu0 %v296
    %908 = vmatpush.msra.mxu0 %v295
    %909 = vmatpush.msra.mxu0 %v294
    %910 = vmatpush.msra.mxu0 %v293
    %911 = vmatpush.msra.mxu0 %v292
    %912 = vmatpush.msra.mxu0 %v291
    %913 = vmatpush.msra.mxu0 %v290
    %914 = vmatpush.msra.mxu0 %v289
    %915 = vmatmul.f32.gmra.mxu0 %v708
    %v916 = vpop.f32.mrf.mxu0
    %v917 = vadd.f32 %v516, %v916
    %918 = vmatmul.f32.gmra.mxu0 %v711
    %v919 = vpop.f32.mrf.mxu0
    %v920 = vadd.f32 %v519, %v919
    %921 = vmatmul.f32.gmra.mxu0 %v714
    %v922 = vpop.f32.mrf.mxu0
    %v923 = vadd.f32 %v522, %v922
    %924 = vmatmul.f32.gmra.mxu0 %v717
    %v925 = vpop.f32.mrf.mxu0
    %v926 = vadd.f32 %v525, %v925
    %927 = vmatmul.f32.gmra.mxu0 %v720
    %v928 = vpop.f32.mrf.mxu0
    %v929 = vadd.f32 %v528, %v928
    %930 = vmatmul.f32.gmra.mxu0 %v723
    %v931 = vpop.f32.mrf.mxu0
    %v932 = vadd.f32 %v531, %v931
    %933 = vmatmul.f32.gmra.mxu0 %v726
    %v934 = vpop.f32.mrf.mxu0
    %v935 = vadd.f32 %v534, %v934
    %936 = vmatmul.f32.gmra.mxu0 %v729
    %v937 = vpop.f32.mrf.mxu0
    %v938 = vadd.f32 %v537, %v937
    %939 = vmatmul.f32.gmra.mxu0 %v732
    %v940 = vpop.f32.mrf.mxu0
    %v941 = vadd.f32 %v540, %v940
    %942 = vmatmul.f32.gmra.mxu0 %v735
    %v943 = vpop.f32.mrf.mxu0
    %v944 = vadd.f32 %v543, %v943
    %945 = vmatmul.f32.gmra.mxu0 %v738
    %v946 = vpop.f32.mrf.mxu0
    %v947 = vadd.f32 %v546, %v946
    %948 = vmatmul.f32.gmra.mxu0 %v741
    %v949 = vpop.f32.mrf.mxu0
    %v950 = vadd.f32 %v549, %v949
    %951 = vmatmul.f32.gmra.mxu0 %v744
    %v952 = vpop.f32.mrf.mxu0
    %v953 = vadd.f32 %v552, %v952
    %954 = vmatmul.f32.gmra.mxu0 %v747
    %v955 = vpop.f32.mrf.mxu0
    %v956 = vadd.f32 %v555, %v955
    %957 = vmatmul.f32.gmra.mxu0 %v750
    %v958 = vpop.f32.mrf.mxu0
    %v959 = vadd.f32 %v558, %v958
    %960 = vmatmul.f32.gmra.mxu0 %v753
    %v961 = vpop.f32.mrf.mxu0
    %v962 = vadd.f32 %v561, %v961
    %963 = vmatmul.f32.gmra.mxu0 %v756
    %v964 = vpop.f32.mrf.mxu0
    %v965 = vadd.f32 %v564, %v964
    %966 = vmatmul.f32.gmra.mxu0 %v759
    %v967 = vpop.f32.mrf.mxu0
    %v968 = vadd.f32 %v567, %v967
    %969 = vmatmul.f32.gmra.mxu0 %v762
    %v970 = vpop.f32.mrf.mxu0
    %v971 = vadd.f32 %v570, %v970
    %972 = vmatmul.f32.gmra.mxu0 %v765
    %v973 = vpop.f32.mrf.mxu0
    %v974 = vadd.f32 %v573, %v973
    %975 = vmatmul.f32.gmra.mxu0 %v768
    %v976 = vpop.f32.mrf.mxu0
    %v977 = vadd.f32 %v576, %v976
    %978 = vmatmul.f32.gmra.mxu0 %v771
    %v979 = vpop.f32.mrf.mxu0
    %v980 = vadd.f32 %v579, %v979
    %981 = vmatmul.f32.gmra.mxu0 %v774
    %v982 = vpop.f32.mrf.mxu0
    %v983 = vadd.f32 %v582, %v982
    %984 = vmatmul.f32.gmra.mxu0 %v777
    %v985 = vpop.f32.mrf.mxu0
    %v986 = vadd.f32 %v585, %v985
    %987 = vmatmul.f32.gmra.mxu0 %v780
    %v988 = vpop.f32.mrf.mxu0
    %v989 = vadd.f32 %v588, %v988
    %990 = vmatmul.f32.gmra.mxu0 %v783
    %v991 = vpop.f32.mrf.mxu0
    %v992 = vadd.f32 %v591, %v991
    %993 = vmatmul.f32.gmra.mxu0 %v786
    %v994 = vpop.f32.mrf.mxu0
    %v995 = vadd.f32 %v594, %v994
    %996 = vmatmul.f32.gmra.mxu0 %v789
    %v997 = vpop.f32.mrf.mxu0
    %v998 = vadd.f32 %v597, %v997
    %999 = vmatmul.f32.gmra.mxu0 %v792
    %v1000 = vpop.f32.mrf.mxu0
    %v1001 = vadd.f32 %v600, %v1000
    %1002 = vmatmul.f32.gmra.mxu0 %v795
    %v1003 = vpop.f32.mrf.mxu0
    %v1004 = vadd.f32 %v603, %v1003
    %1005 = vmatmul.f32.gmra.mxu0 %v798
    %v1006 = vpop.f32.mrf.mxu0
    %v1007 = vadd.f32 %v606, %v1006
    %1008 = vmatmul.f32.gmra.mxu0 %v801
    %v1009 = vpop.f32.mrf.mxu0
    %v1010 = vadd.f32 %v609, %v1009
    %1011 = vmatmul.f32.gmra.mxu0 %v804
    %v1012 = vpop.f32.mrf.mxu0
    %v1013 = vadd.f32 %v612, %v1012
    %1014 = vmatmul.f32.gmra.mxu0 %v807
    %v1015 = vpop.f32.mrf.mxu0
    %v1016 = vadd.f32 %v615, %v1015
    %1017 = vmatmul.f32.gmra.mxu0 %v810
    %v1018 = vpop.f32.mrf.mxu0
    %v1019 = vadd.f32 %v618, %v1018
    %1020 = vmatmul.f32.gmra.mxu0 %v813
    %v1021 = vpop.f32.mrf.mxu0
    %v1022 = vadd.f32 %v621, %v1021
    %1023 = vmatmul.f32.gmra.mxu0 %v816
    %v1024 = vpop.f32.mrf.mxu0
    %v1025 = vadd.f32 %v624, %v1024
    %1026 = vmatmul.f32.gmra.mxu0 %v819
    %v1027 = vpop.f32.mrf.mxu0
    %v1028 = vadd.f32 %v627, %v1027
    %1029 = vmatmul.f32.gmra.mxu0 %v822
    %v1030 = vpop.f32.mrf.mxu0
    %v1031 = vadd.f32 %v630, %v1030
    %1032 = vmatmul.f32.gmra.mxu0 %v825
    %v1033 = vpop.f32.mrf.mxu0
    %v1034 = vadd.f32 %v633, %v1033
    %1035 = vmatmul.f32.gmra.mxu0 %v828
    %v1036 = vpop.f32.mrf.mxu0
    %v1037 = vadd.f32 %v636, %v1036
    %1038 = vmatmul.f32.gmra.mxu0 %v831
    %v1039 = vpop.f32.mrf.mxu0
    %v1040 = vadd.f32 %v639, %v1039
    %1041 = vmatmul.f32.gmra.mxu0 %v834
    %v1042 = vpop.f32.mrf.mxu0
    %v1043 = vadd.f32 %v642, %v1042
    %1044 = vmatmul.f32.gmra.mxu0 %v837
    %v1045 = vpop.f32.mrf.mxu0
    %v1046 = vadd.f32 %v645, %v1045
    %1047 = vmatmul.f32.gmra.mxu0 %v840
    %v1048 = vpop.f32.mrf.mxu0
    %v1049 = vadd.f32 %v648, %v1048
    %1050 = vmatmul.f32.gmra.mxu0 %v843
    %v1051 = vpop.f32.mrf.mxu0
    %v1052 = vadd.f32 %v651, %v1051
    %1053 = vmatmul.f32.gmra.mxu0 %v846
    %v1054 = vpop.f32.mrf.mxu0
    %v1055 = vadd.f32 %v654, %v1054
    %1056 = vmatmul.f32.gmra.mxu0 %v849
    %v1057 = vpop.f32.mrf.mxu0
    %v1058 = vadd.f32 %v657, %v1057
    %1059 = vmatmul.f32.gmra.mxu0 %v852
    %v1060 = vpop.f32.mrf.mxu0
    %v1061 = vadd.f32 %v660, %v1060
    %1062 = vmatmul.f32.gmra.mxu0 %v855
    %v1063 = vpop.f32.mrf.mxu0
    %v1064 = vadd.f32 %v663, %v1063
    %1065 = vmatmul.f32.gmra.mxu0 %v858
    %v1066 = vpop.f32.mrf.mxu0
    %v1067 = vadd.f32 %v666, %v1066
    %1068 = vmatmul.f32.gmra.mxu0 %v861
    %v1069 = vpop.f32.mrf.mxu0
    %v1070 = vadd.f32 %v669, %v1069
    %1071 = vmatmul.f32.gmra.mxu0 %v864
    %v1072 = vpop.f32.mrf.mxu0
    %v1073 = vadd.f32 %v672, %v1072
    %1074 = vmatmul.f32.gmra.mxu0 %v867
    %v1075 = vpop.f32.mrf.mxu0
    %v1076 = vadd.f32 %v675, %v1075
    %1077 = vmatmul.f32.gmra.mxu0 %v870
    %v1078 = vpop.f32.mrf.mxu0
    %v1079 = vadd.f32 %v678, %v1078
    %1080 = vmatmul.f32.gmra.mxu0 %v873
    %v1081 = vpop.f32.mrf.mxu0
    %v1082 = vadd.f32 %v681, %v1081
    %1083 = vmatmul.f32.gmra.mxu0 %v876
    %v1084 = vpop.f32.mrf.mxu0
    %v1085 = vadd.f32 %v684, %v1084
    %1086 = vmatmul.f32.gmra.mxu0 %v879
    %v1087 = vpop.f32.mrf.mxu0
    %v1088 = vadd.f32 %v687, %v1087
    %1089 = vmatmul.f32.gmra.mxu0 %v882
    %v1090 = vpop.f32.mrf.mxu0
    %v1091 = vadd.f32 %v690, %v1090
    %1092 = vmatmul.f32.gmra.mxu0 %v885
    %v1093 = vpop.f32.mrf.mxu0
    %v1094 = vadd.f32 %v693, %v1093
    %1095 = vmatmul.f32.gmra.mxu0 %v888
    %v1096 = vpop.f32.mrf.mxu0
    %v1097 = vadd.f32 %v696, %v1096
    %1098 = vmatmul.f32.gmra.mxu0 %v891
    %v1099 = vpop.f32.mrf.mxu0
    %v1100 = vadd.f32 %v699, %v1099
    %1101 = vmatmul.f32.gmra.mxu0 %v894
    %v1102 = vpop.f32.mrf.mxu0
    %v1103 = vadd.f32 %v702, %v1102
    %1104 = vmatmul.f32.gmra.mxu0 %v897
    %v1105 = vpop.f32.mrf.mxu0
    %v1106 = vadd.f32 %v705, %v1105
    %1107 = vdwg.mxu0
    %v1108 = vld [vmem:[%s5] sm:$0x1]
    %v1110 = vperm.slane %v1108, 0
    %v1112 = vadd.f32 %v917, %v1110
    %v1113 = vadd.f32 %v920, %v1110
    %v1114 = vadd.f32 %v923, %v1110
    %v1115 = vadd.f32 %v926, %v1110
    %v1116 = vadd.f32 %v929, %v1110
    %v1117 = vadd.f32 %v932, %v1110
    %v1118 = vadd.f32 %v935, %v1110
    %v1119 = vadd.f32 %v938, %v1110
    %v1120 = vadd.f32 %v941, %v1110
    %v1121 = vadd.f32 %v944, %v1110
    %v1122 = vadd.f32 %v947, %v1110
    %v1123 = vadd.f32 %v950, %v1110
    %v1124 = vadd.f32 %v953, %v1110
    %v1125 = vadd.f32 %v956, %v1110
    %v1126 = vadd.f32 %v959, %v1110
    %v1127 = vadd.f32 %v962, %v1110
    %v1128 = vadd.f32 %v965, %v1110
    %v1129 = vadd.f32 %v968, %v1110
    %v1130 = vadd.f32 %v971, %v1110
    %v1131 = vadd.f32 %v974, %v1110
    %v1132 = vadd.f32 %v977, %v1110
    %v1133 = vadd.f32 %v980, %v1110
    %v1134 = vadd.f32 %v983, %v1110
    %v1135 = vadd.f32 %v986, %v1110
    %v1136 = vadd.f32 %v989, %v1110
    %v1137 = vadd.f32 %v992, %v1110
    %v1138 = vadd.f32 %v995, %v1110
    %v1139 = vadd.f32 %v998, %v1110
    %v1140 = vadd.f32 %v1001, %v1110
    %v1141 = vadd.f32 %v1004, %v1110
    %v1142 = vadd.f32 %v1007, %v1110
    %v1143 = vadd.f32 %v1010, %v1110
    %v1144 = vadd.f32 %v1013, %v1110
    %v1145 = vadd.f32 %v1016, %v1110
    %v1146 = vadd.f32 %v1019, %v1110
    %v1147 = vadd.f32 %v1022, %v1110
    %v1148 = vadd.f32 %v1025, %v1110
    %v1149 = vadd.f32 %v1028, %v1110
    %v1150 = vadd.f32 %v1031, %v1110
    %v1151 = vadd.f32 %v1034, %v1110
    %v1152 = vadd.f32 %v1037, %v1110
    %v1153 = vadd.f32 %v1040, %v1110
    %v1154 = vadd.f32 %v1043, %v1110
    %v1155 = vadd.f32 %v1046, %v1110
    %v1156 = vadd.f32 %v1049, %v1110
    %v1157 = vadd.f32 %v1052, %v1110
    %v1158 = vadd.f32 %v1055, %v1110
    %v1159 = vadd.f32 %v1058, %v1110
    %v1160 = vadd.f32 %v1061, %v1110
    %v1161 = vadd.f32 %v1064, %v1110
    %v1162 = vadd.f32 %v1067, %v1110
    %v1163 = vadd.f32 %v1070, %v1110
    %v1164 = vadd.f32 %v1073, %v1110
    %v1165 = vadd.f32 %v1076, %v1110
    %v1166 = vadd.f32 %v1079, %v1110
    %v1167 = vadd.f32 %v1082, %v1110
    %v1168 = vadd.f32 %v1085, %v1110
    %v1169 = vadd.f32 %v1088, %v1110
    %v1170 = vadd.f32 %v1091, %v1110
    %v1171 = vadd.f32 %v1094, %v1110
    %v1172 = vadd.f32 %v1097, %v1110
    %v1173 = vadd.f32 %v1100, %v1110
    %v1174 = vadd.f32 %v1103, %v1110
    %v1175 = vadd.f32 %v1106, %v1110
    %v1176 = vadd.f32 %v1112, %v97
    %v1177 = vadd.f32 %v1113, %v98
    %v1178 = vadd.f32 %v1114, %v99
    %v1179 = vadd.f32 %v1115, %v100
    %v1180 = vadd.f32 %v1116, %v101
    %v1181 = vadd.f32 %v1117, %v102
    %v1182 = vadd.f32 %v1118, %v103
    %v1183 = vadd.f32 %v1119, %v104
    %v1184 = vadd.f32 %v1120, %v105
    %v1185 = vadd.f32 %v1121, %v106
    %v1186 = vadd.f32 %v1122, %v107
    %v1187 = vadd.f32 %v1123, %v108
    %v1188 = vadd.f32 %v1124, %v109
    %v1189 = vadd.f32 %v1125, %v110
    %v1190 = vadd.f32 %v1126, %v111
    %v1191 = vadd.f32 %v1127, %v112
    %v1192 = vadd.f32 %v1128, %v113
    %v1193 = vadd.f32 %v1129, %v114
    %v1194 = vadd.f32 %v1130, %v115
    %v1195 = vadd.f32 %v1131, %v116
    %v1196 = vadd.f32 %v1132, %v117
    %v1197 = vadd.f32 %v1133, %v118
    %v1198 = vadd.f32 %v1134, %v119
    %v1199 = vadd.f32 %v1135, %v120
    %v1200 = vadd.f32 %v1136, %v121
    %v1201 = vadd.f32 %v1137, %v122
    %v1202 = vadd.f32 %v1138, %v123
    %v1203 = vadd.f32 %v1139, %v124
    %v1204 = vadd.f32 %v1140, %v125
    %v1205 = vadd.f32 %v1141, %v126
    %v1206 = vadd.f32 %v1142, %v127
    %v1207 = vadd.f32 %v1143, %v128
    %v1208 = vadd.f32 %v1144, %v129
    %v1209 = vadd.f32 %v1145, %v130
    %v1210 = vadd.f32 %v1146, %v131
    %v1211 = vadd.f32 %v1147, %v132
    %v1212 = vadd.f32 %v1148, %v133
    %v1213 = vadd.f32 %v1149, %v134
    %v1214 = vadd.f32 %v1150, %v135
    %v1215 = vadd.f32 %v1151, %v136
    %v1216 = vadd.f32 %v1152, %v137
    %v1217 = vadd.f32 %v1153, %v138
    %v1218 = vadd.f32 %v1154, %v139
    %v1219 = vadd.f32 %v1155, %v140
    %v1220 = vadd.f32 %v1156, %v141
    %v1221 = vadd.f32 %v1157, %v142
    %v1222 = vadd.f32 %v1158, %v143
    %v1223 = vadd.f32 %v1159, %v144
    %v1224 = vadd.f32 %v1160, %v145
    %v1225 = vadd.f32 %v1161, %v146
    %v1226 = vadd.f32 %v1162, %v147
    %v1227 = vadd.f32 %v1163, %v148
    %v1228 = vadd.f32 %v1164, %v149
    %v1229 = vadd.f32 %v1165, %v150
    %v1230 = vadd.f32 %v1166, %v151
    %v1231 = vadd.f32 %v1167, %v152
    %v1232 = vadd.f32 %v1168, %v153
    %v1233 = vadd.f32 %v1169, %v154
    %v1234 = vadd.f32 %v1170, %v155
    %v1235 = vadd.f32 %v1171, %v156
    %v1236 = vadd.f32 %v1172, %v157
    %v1237 = vadd.f32 %v1173, %v158
    %v1238 = vadd.f32 %v1174, %v159
    %v1239 = vadd.f32 %v1175, %v160
    %v1240 = vld [vmem:[%s6] sm:$0xff]
    %v1241 = vld [vmem:[%s6 + $0x8] sm:$0xff]
    %v1242 = vld [vmem:[%s6 + $0x10] sm:$0xff]
    %v1243 = vld [vmem:[%s6 + $0x18] sm:$0xff]
    %v1244 = vld [vmem:[%s6 + $0x20] sm:$0xff]
    %v1245 = vld [vmem:[%s6 + $0x28] sm:$0xff]
    %v1246 = vld [vmem:[%s6 + $0x30] sm:$0xff]
    %v1247 = vld [vmem:[%s6 + $0x38] sm:$0xff]
    %v1248 = vld [vmem:[%s7] sm:$0xff]
    %v1249 = vld [vmem:[%s7 + $0x8] sm:$0xff]
    %v1250 = vld [vmem:[%s7 + $0x10] sm:$0xff]
    %v1251 = vld [vmem:[%s7 + $0x18] sm:$0xff]
    %v1252 = vld [vmem:[%s7 + $0x20] sm:$0xff]
    %v1253 = vld [vmem:[%s7 + $0x28] sm:$0xff]
    %v1254 = vld [vmem:[%s7 + $0x30] sm:$0xff]
    %v1255 = vld [vmem:[%s7 + $0x38] sm:$0xff]
    %v1257 = vsel %vm305, %v33, 0
    %v1260 = vsel %vm305, %v34, 0
    %v1263 = vsel %vm305, %v35, 0
    %v1266 = vsel %vm305, %v36, 0
    %v1269 = vsel %vm305, %v37, 0
    %v1272 = vsel %vm305, %v38, 0
    %v1275 = vsel %vm305, %v39, 0
    %v1278 = vsel %vm305, %v40, 0
    %v1281 = vsel %vm305, %v41, 0
    %v1284 = vsel %vm305, %v42, 0
    %v1287 = vsel %vm305, %v43, 0
    %v1290 = vsel %vm305, %v44, 0
    %v1293 = vsel %vm305, %v45, 0
    %v1296 = vsel %vm305, %v46, 0
    %v1299 = vsel %vm305, %v47, 0
    %v1302 = vsel %vm305, %v48, 0
    %v1305 = vsel %vm305, %v49, 0
    %v1308 = vsel %vm305, %v50, 0
    %v1311 = vsel %vm305, %v51, 0
    %v1314 = vsel %vm305, %v52, 0
    %v1317 = vsel %vm305, %v53, 0
    %v1320 = vsel %vm305, %v54, 0
    %v1323 = vsel %vm305, %v55, 0
    %v1326 = vsel %vm305, %v56, 0
    %v1329 = vsel %vm305, %v57, 0
    %v1332 = vsel %vm305, %v58, 0
    %v1335 = vsel %vm305, %v59, 0
    %v1338 = vsel %vm305, %v60, 0
    %v1341 = vsel %vm305, %v61, 0
    %v1344 = vsel %vm305, %v62, 0
    %v1347 = vsel %vm305, %v63, 0
    %v1350 = vsel %vm305, %v64, 0
    %v1353 = vsel %vm305, %v65, 0
    %v1356 = vsel %vm305, %v66, 0
    %v1359 = vsel %vm305, %v67, 0
    %v1362 = vsel %vm305, %v68, 0
    %v1365 = vsel %vm305, %v69, 0
    %v1368 = vsel %vm305, %v70, 0
    %v1371 = vsel %vm305, %v71, 0
    %v1374 = vsel %vm305, %v72, 0
    %v1377 = vsel %vm305, %v73, 0
    %v1380 = vsel %vm305, %v74, 0
    %v1383 = vsel %vm305, %v75, 0
    %v1386 = vsel %vm305, %v76, 0
    %v1389 = vsel %vm305, %v77, 0
    %v1392 = vsel %vm305, %v78, 0
    %v1395 = vsel %vm305, %v79, 0
    %v1398 = vsel %vm305, %v80, 0
    %v1401 = vsel %vm305, %v81, 0
    %v1404 = vsel %vm305, %v82, 0
    %v1407 = vsel %vm305, %v83, 0
    %v1410 = vsel %vm305, %v84, 0
    %v1413 = vsel %vm305, %v85, 0
    %v1416 = vsel %vm305, %v86, 0
    %v1419 = vsel %vm305, %v87, 0
    %v1422 = vsel %vm305, %v88, 0
    %v1425 = vsel %vm305, %v89, 0
    %v1428 = vsel %vm305, %v90, 0
    %v1431 = vsel %vm305, %v91, 0
    %v1434 = vsel %vm305, %v92, 0
    %v1437 = vsel %vm305, %v93, 0
    %v1440 = vsel %vm305, %v94, 0
    %v1443 = vsel %vm305, %v95, 0
    %v1446 = vsel %vm305, %v96, 0
    %1448 = vmatpush.msra.mxu0 0.0
    %1449 = vmatpush.msra.mxu0 0.0
    %1450 = vmatpush.msra.mxu0 0.0
    %1451 = vmatpush.msra.mxu0 0.0
    %1452 = vmatpush.msra.mxu0 0.0
    %1453 = vmatpush.msra.mxu0 0.0
    %1454 = vmatpush.msra.mxu0 0.0
    %1455 = vmatpush.msra.mxu0 0.0
    %1456 = vmatpush.msra.mxu0 %v1255
    %1457 = vmatpush.msra.mxu0 %v1254
    %1458 = vmatpush.msra.mxu0 %v1253
    %1459 = vmatpush.msra.mxu0 %v1252
    %1460 = vmatpush.msra.mxu0 %v1251
    %1461 = vmatpush.msra.mxu0 %v1250
    %1462 = vmatpush.msra.mxu0 %v1249
    %1463 = vmatpush.msra.mxu0 %v1248
    %1464 = vmatmul.f32.gmra.mxu0 %v1257
    %v1465 = vpop.f32.mrf.mxu0
    %v1466 = vadd.f32 0.0, %v1465
    %1467 = vmatmul.f32.gmra.mxu0 %v1260
    %v1468 = vpop.f32.mrf.mxu0
    %v1469 = vadd.f32 0.0, %v1468
    %1470 = vmatmul.f32.gmra.mxu0 %v1263
    %v1471 = vpop.f32.mrf.mxu0
    %v1472 = vadd.f32 0.0, %v1471
    %1473 = vmatmul.f32.gmra.mxu0 %v1266
    %v1474 = vpop.f32.mrf.mxu0
    %v1475 = vadd.f32 0.0, %v1474
    %1476 = vmatmul.f32.gmra.mxu0 %v1269
    %v1477 = vpop.f32.mrf.mxu0
    %v1478 = vadd.f32 0.0, %v1477
    %1479 = vmatmul.f32.gmra.mxu0 %v1272
    %v1480 = vpop.f32.mrf.mxu0
    %v1481 = vadd.f32 0.0, %v1480
    %1482 = vmatmul.f32.gmra.mxu0 %v1275
    %v1483 = vpop.f32.mrf.mxu0
    %v1484 = vadd.f32 0.0, %v1483
    %1485 = vmatmul.f32.gmra.mxu0 %v1278
    %v1486 = vpop.f32.mrf.mxu0
    %v1487 = vadd.f32 0.0, %v1486
    %1488 = vmatmul.f32.gmra.mxu0 %v1281
    %v1489 = vpop.f32.mrf.mxu0
    %v1490 = vadd.f32 0.0, %v1489
    %1491 = vmatmul.f32.gmra.mxu0 %v1284
    %v1492 = vpop.f32.mrf.mxu0
    %v1493 = vadd.f32 0.0, %v1492
    %1494 = vmatmul.f32.gmra.mxu0 %v1287
    %v1495 = vpop.f32.mrf.mxu0
    %v1496 = vadd.f32 0.0, %v1495
    %1497 = vmatmul.f32.gmra.mxu0 %v1290
    %v1498 = vpop.f32.mrf.mxu0
    %v1499 = vadd.f32 0.0, %v1498
    %1500 = vmatmul.f32.gmra.mxu0 %v1293
    %v1501 = vpop.f32.mrf.mxu0
    %v1502 = vadd.f32 0.0, %v1501
    %1503 = vmatmul.f32.gmra.mxu0 %v1296
    %v1504 = vpop.f32.mrf.mxu0
    %v1505 = vadd.f32 0.0, %v1504
    %1506 = vmatmul.f32.gmra.mxu0 %v1299
    %v1507 = vpop.f32.mrf.mxu0
    %v1508 = vadd.f32 0.0, %v1507
    %1509 = vmatmul.f32.gmra.mxu0 %v1302
    %v1510 = vpop.f32.mrf.mxu0
    %v1511 = vadd.f32 0.0, %v1510
    %1512 = vmatmul.f32.gmra.mxu0 %v1305
    %v1513 = vpop.f32.mrf.mxu0
    %v1514 = vadd.f32 0.0, %v1513
    %1515 = vmatmul.f32.gmra.mxu0 %v1308
    %v1516 = vpop.f32.mrf.mxu0
    %v1517 = vadd.f32 0.0, %v1516
    %1518 = vmatmul.f32.gmra.mxu0 %v1311
    %v1519 = vpop.f32.mrf.mxu0
    %v1520 = vadd.f32 0.0, %v1519
    %1521 = vmatmul.f32.gmra.mxu0 %v1314
    %v1522 = vpop.f32.mrf.mxu0
    %v1523 = vadd.f32 0.0, %v1522
    %1524 = vmatmul.f32.gmra.mxu0 %v1317
    %v1525 = vpop.f32.mrf.mxu0
    %v1526 = vadd.f32 0.0, %v1525
    %1527 = vmatmul.f32.gmra.mxu0 %v1320
    %v1528 = vpop.f32.mrf.mxu0
    %v1529 = vadd.f32 0.0, %v1528
    %1530 = vmatmul.f32.gmra.mxu0 %v1323
    %v1531 = vpop.f32.mrf.mxu0
    %v1532 = vadd.f32 0.0, %v1531
    %1533 = vmatmul.f32.gmra.mxu0 %v1326
    %v1534 = vpop.f32.mrf.mxu0
    %v1535 = vadd.f32 0.0, %v1534
    %1536 = vmatmul.f32.gmra.mxu0 %v1329
    %v1537 = vpop.f32.mrf.mxu0
    %v1538 = vadd.f32 0.0, %v1537
    %1539 = vmatmul.f32.gmra.mxu0 %v1332
    %v1540 = vpop.f32.mrf.mxu0
    %v1541 = vadd.f32 0.0, %v1540
    %1542 = vmatmul.f32.gmra.mxu0 %v1335
    %v1543 = vpop.f32.mrf.mxu0
    %v1544 = vadd.f32 0.0, %v1543
    %1545 = vmatmul.f32.gmra.mxu0 %v1338
    %v1546 = vpop.f32.mrf.mxu0
    %v1547 = vadd.f32 0.0, %v1546
    %1548 = vmatmul.f32.gmra.mxu0 %v1341
    %v1549 = vpop.f32.mrf.mxu0
    %v1550 = vadd.f32 0.0, %v1549
    %1551 = vmatmul.f32.gmra.mxu0 %v1344
    %v1552 = vpop.f32.mrf.mxu0
    %v1553 = vadd.f32 0.0, %v1552
    %1554 = vmatmul.f32.gmra.mxu0 %v1347
    %v1555 = vpop.f32.mrf.mxu0
    %v1556 = vadd.f32 0.0, %v1555
    %1557 = vmatmul.f32.gmra.mxu0 %v1350
    %v1558 = vpop.f32.mrf.mxu0
    %v1559 = vadd.f32 0.0, %v1558
    %1560 = vmatmul.f32.gmra.mxu0 %v1353
    %v1561 = vpop.f32.mrf.mxu0
    %v1562 = vadd.f32 0.0, %v1561
    %1563 = vmatmul.f32.gmra.mxu0 %v1356
    %v1564 = vpop.f32.mrf.mxu0
    %v1565 = vadd.f32 0.0, %v1564
    %1566 = vmatmul.f32.gmra.mxu0 %v1359
    %v1567 = vpop.f32.mrf.mxu0
    %v1568 = vadd.f32 0.0, %v1567
    %1569 = vmatmul.f32.gmra.mxu0 %v1362
    %v1570 = vpop.f32.mrf.mxu0
    %v1571 = vadd.f32 0.0, %v1570
    %1572 = vmatmul.f32.gmra.mxu0 %v1365
    %v1573 = vpop.f32.mrf.mxu0
    %v1574 = vadd.f32 0.0, %v1573
    %1575 = vmatmul.f32.gmra.mxu0 %v1368
    %v1576 = vpop.f32.mrf.mxu0
    %v1577 = vadd.f32 0.0, %v1576
    %1578 = vmatmul.f32.gmra.mxu0 %v1371
    %v1579 = vpop.f32.mrf.mxu0
    %v1580 = vadd.f32 0.0, %v1579
    %1581 = vmatmul.f32.gmra.mxu0 %v1374
    %v1582 = vpop.f32.mrf.mxu0
    %v1583 = vadd.f32 0.0, %v1582
    %1584 = vmatmul.f32.gmra.mxu0 %v1377
    %v1585 = vpop.f32.mrf.mxu0
    %v1586 = vadd.f32 0.0, %v1585
    %1587 = vmatmul.f32.gmra.mxu0 %v1380
    %v1588 = vpop.f32.mrf.mxu0
    %v1589 = vadd.f32 0.0, %v1588
    %1590 = vmatmul.f32.gmra.mxu0 %v1383
    %v1591 = vpop.f32.mrf.mxu0
    %v1592 = vadd.f32 0.0, %v1591
    %1593 = vmatmul.f32.gmra.mxu0 %v1386
    %v1594 = vpop.f32.mrf.mxu0
    %v1595 = vadd.f32 0.0, %v1594
    %1596 = vmatmul.f32.gmra.mxu0 %v1389
    %v1597 = vpop.f32.mrf.mxu0
    %v1598 = vadd.f32 0.0, %v1597
    %1599 = vmatmul.f32.gmra.mxu0 %v1392
    %v1600 = vpop.f32.mrf.mxu0
    %v1601 = vadd.f32 0.0, %v1600
    %1602 = vmatmul.f32.gmra.mxu0 %v1395
    %v1603 = vpop.f32.mrf.mxu0
    %v1604 = vadd.f32 0.0, %v1603
    %1605 = vmatmul.f32.gmra.mxu0 %v1398
    %v1606 = vpop.f32.mrf.mxu0
    %v1607 = vadd.f32 0.0, %v1606
    %1608 = vmatmul.f32.gmra.mxu0 %v1401
    %v1609 = vpop.f32.mrf.mxu0
    %v1610 = vadd.f32 0.0, %v1609
    %1611 = vmatmul.f32.gmra.mxu0 %v1404
    %v1612 = vpop.f32.mrf.mxu0
    %v1613 = vadd.f32 0.0, %v1612
    %1614 = vmatmul.f32.gmra.mxu0 %v1407
    %v1615 = vpop.f32.mrf.mxu0
    %v1616 = vadd.f32 0.0, %v1615
    %1617 = vmatmul.f32.gmra.mxu0 %v1410
    %v1618 = vpop.f32.mrf.mxu0
    %v1619 = vadd.f32 0.0, %v1618
    %1620 = vmatmul.f32.gmra.mxu0 %v1413
    %v1621 = vpop.f32.mrf.mxu0
    %v1622 = vadd.f32 0.0, %v1621
    %1623 = vmatmul.f32.gmra.mxu0 %v1416
    %v1624 = vpop.f32.mrf.mxu0
    %v1625 = vadd.f32 0.0, %v1624
    %1626 = vmatmul.f32.gmra.mxu0 %v1419
    %v1627 = vpop.f32.mrf.mxu0
    %v1628 = vadd.f32 0.0, %v1627
    %1629 = vmatmul.f32.gmra.mxu0 %v1422
    %v1630 = vpop.f32.mrf.mxu0
    %v1631 = vadd.f32 0.0, %v1630
    %1632 = vmatmul.f32.gmra.mxu0 %v1425
    %v1633 = vpop.f32.mrf.mxu0
    %v1634 = vadd.f32 0.0, %v1633
    %1635 = vmatmul.f32.gmra.mxu0 %v1428
    %v1636 = vpop.f32.mrf.mxu0
    %v1637 = vadd.f32 0.0, %v1636
    %1638 = vmatmul.f32.gmra.mxu0 %v1431
    %v1639 = vpop.f32.mrf.mxu0
    %v1640 = vadd.f32 0.0, %v1639
    %1641 = vmatmul.f32.gmra.mxu0 %v1434
    %v1642 = vpop.f32.mrf.mxu0
    %v1643 = vadd.f32 0.0, %v1642
    %1644 = vmatmul.f32.gmra.mxu0 %v1437
    %v1645 = vpop.f32.mrf.mxu0
    %v1646 = vadd.f32 0.0, %v1645
    %1647 = vmatmul.f32.gmra.mxu0 %v1440
    %v1648 = vpop.f32.mrf.mxu0
    %v1649 = vadd.f32 0.0, %v1648
    %1650 = vmatmul.f32.gmra.mxu0 %v1443
    %v1651 = vpop.f32.mrf.mxu0
    %v1652 = vadd.f32 0.0, %v1651
    %1653 = vmatmul.f32.gmra.mxu0 %v1446
    %v1654 = vpop.f32.mrf.mxu0
    %v1655 = vadd.f32 0.0, %v1654
    %1656 = vdwg.mxu0
    %v1658 = vsel %vm305, %v1176, 0
    %v1661 = vsel %vm305, %v1177, 0
    %v1664 = vsel %vm305, %v1178, 0
    %v1667 = vsel %vm305, %v1179, 0
    %v1670 = vsel %vm305, %v1180, 0
    %v1673 = vsel %vm305, %v1181, 0
    %v1676 = vsel %vm305, %v1182, 0
    %v1679 = vsel %vm305, %v1183, 0
    %v1682 = vsel %vm305, %v1184, 0
    %v1685 = vsel %vm305, %v1185, 0
    %v1688 = vsel %vm305, %v1186, 0
    %v1691 = vsel %vm305, %v1187, 0
    %v1694 = vsel %vm305, %v1188, 0
    %v1697 = vsel %vm305, %v1189, 0
    %v1700 = vsel %vm305, %v1190, 0
    %v1703 = vsel %vm305, %v1191, 0
    %v1706 = vsel %vm305, %v1192, 0
    %v1709 = vsel %vm305, %v1193, 0
    %v1712 = vsel %vm305, %v1194, 0
    %v1715 = vsel %vm305, %v1195, 0
    %v1718 = vsel %vm305, %v1196, 0
    %v1721 = vsel %vm305, %v1197, 0
    %v1724 = vsel %vm305, %v1198, 0
    %v1727 = vsel %vm305, %v1199, 0
    %v1730 = vsel %vm305, %v1200, 0
    %v1733 = vsel %vm305, %v1201, 0
    %v1736 = vsel %vm305, %v1202, 0
    %v1739 = vsel %vm305, %v1203, 0
    %v1742 = vsel %vm305, %v1204, 0
    %v1745 = vsel %vm305, %v1205, 0
    %v1748 = vsel %vm305, %v1206, 0
    %v1751 = vsel %vm305, %v1207, 0
    %v1754 = vsel %vm305, %v1208, 0
    %v1757 = vsel %vm305, %v1209, 0
    %v1760 = vsel %vm305, %v1210, 0
    %v1763 = vsel %vm305, %v1211, 0
    %v1766 = vsel %vm305, %v1212, 0
    %v1769 = vsel %vm305, %v1213, 0
    %v1772 = vsel %vm305, %v1214, 0
    %v1775 = vsel %vm305, %v1215, 0
    %v1778 = vsel %vm305, %v1216, 0
    %v1781 = vsel %vm305, %v1217, 0
    %v1784 = vsel %vm305, %v1218, 0
    %v1787 = vsel %vm305, %v1219, 0
    %v1790 = vsel %vm305, %v1220, 0
    %v1793 = vsel %vm305, %v1221, 0
    %v1796 = vsel %vm305, %v1222, 0
    %v1799 = vsel %vm305, %v1223, 0
    %v1802 = vsel %vm305, %v1224, 0
    %v1805 = vsel %vm305, %v1225, 0
    %v1808 = vsel %vm305, %v1226, 0
    %v1811 = vsel %vm305, %v1227, 0
    %v1814 = vsel %vm305, %v1228, 0
    %v1817 = vsel %vm305, %v1229, 0
    %v1820 = vsel %vm305, %v1230, 0
    %v1823 = vsel %vm305, %v1231, 0
    %v1826 = vsel %vm305, %v1232, 0
    %v1829 = vsel %vm305, %v1233, 0
    %v1832 = vsel %vm305, %v1234, 0
    %v1835 = vsel %vm305, %v1235, 0
    %v1838 = vsel %vm305, %v1236, 0
    %v1841 = vsel %vm305, %v1237, 0
    %v1844 = vsel %vm305, %v1238, 0
    %v1847 = vsel %vm305, %v1239, 0
    %1849 = vmatpush.msra.mxu0 0.0
    %1850 = vmatpush.msra.mxu0 0.0
    %1851 = vmatpush.msra.mxu0 0.0
    %1852 = vmatpush.msra.mxu0 0.0
    %1853 = vmatpush.msra.mxu0 0.0
    %1854 = vmatpush.msra.mxu0 0.0
    %1855 = vmatpush.msra.mxu0 0.0
    %1856 = vmatpush.msra.mxu0 0.0
    %1857 = vmatpush.msra.mxu0 %v1247
    %1858 = vmatpush.msra.mxu0 %v1246
    %1859 = vmatpush.msra.mxu0 %v1245
    %1860 = vmatpush.msra.mxu0 %v1244
    %1861 = vmatpush.msra.mxu0 %v1243
    %1862 = vmatpush.msra.mxu0 %v1242
    %1863 = vmatpush.msra.mxu0 %v1241
    %1864 = vmatpush.msra.mxu0 %v1240
    %1865 = vmatmul.f32.gmra.mxu0 %v1658
    %v1866 = vpop.f32.mrf.mxu0
    %v1867 = vadd.f32 %v1466, %v1866
    %1868 = vmatmul.f32.gmra.mxu0 %v1661
    %v1869 = vpop.f32.mrf.mxu0
    %v1870 = vadd.f32 %v1469, %v1869
    %1871 = vmatmul.f32.gmra.mxu0 %v1664
    %v1872 = vpop.f32.mrf.mxu0
    %v1873 = vadd.f32 %v1472, %v1872
    %1874 = vmatmul.f32.gmra.mxu0 %v1667
    %v1875 = vpop.f32.mrf.mxu0
    %v1876 = vadd.f32 %v1475, %v1875
    %1877 = vmatmul.f32.gmra.mxu0 %v1670
    %v1878 = vpop.f32.mrf.mxu0
    %v1879 = vadd.f32 %v1478, %v1878
    %1880 = vmatmul.f32.gmra.mxu0 %v1673
    %v1881 = vpop.f32.mrf.mxu0
    %v1882 = vadd.f32 %v1481, %v1881
    %1883 = vmatmul.f32.gmra.mxu0 %v1676
    %v1884 = vpop.f32.mrf.mxu0
    %v1885 = vadd.f32 %v1484, %v1884
    %1886 = vmatmul.f32.gmra.mxu0 %v1679
    %v1887 = vpop.f32.mrf.mxu0
    %v1888 = vadd.f32 %v1487, %v1887
    %1889 = vmatmul.f32.gmra.mxu0 %v1682
    %v1890 = vpop.f32.mrf.mxu0
    %v1891 = vadd.f32 %v1490, %v1890
    %1892 = vmatmul.f32.gmra.mxu0 %v1685
    %v1893 = vpop.f32.mrf.mxu0
    %v1894 = vadd.f32 %v1493, %v1893
    %1895 = vmatmul.f32.gmra.mxu0 %v1688
    %v1896 = vpop.f32.mrf.mxu0
    %v1897 = vadd.f32 %v1496, %v1896
    %1898 = vmatmul.f32.gmra.mxu0 %v1691
    %v1899 = vpop.f32.mrf.mxu0
    %v1900 = vadd.f32 %v1499, %v1899
    %1901 = vmatmul.f32.gmra.mxu0 %v1694
    %v1902 = vpop.f32.mrf.mxu0
    %v1903 = vadd.f32 %v1502, %v1902
    %1904 = vmatmul.f32.gmra.mxu0 %v1697
    %v1905 = vpop.f32.mrf.mxu0
    %v1906 = vadd.f32 %v1505, %v1905
    %1907 = vmatmul.f32.gmra.mxu0 %v1700
    %v1908 = vpop.f32.mrf.mxu0
    %v1909 = vadd.f32 %v1508, %v1908
    %1910 = vmatmul.f32.gmra.mxu0 %v1703
    %v1911 = vpop.f32.mrf.mxu0
    %v1912 = vadd.f32 %v1511, %v1911
    %1913 = vmatmul.f32.gmra.mxu0 %v1706
    %v1914 = vpop.f32.mrf.mxu0
    %v1915 = vadd.f32 %v1514, %v1914
    %1916 = vmatmul.f32.gmra.mxu0 %v1709
    %v1917 = vpop.f32.mrf.mxu0
    %v1918 = vadd.f32 %v1517, %v1917
    %1919 = vmatmul.f32.gmra.mxu0 %v1712
    %v1920 = vpop.f32.mrf.mxu0
    %v1921 = vadd.f32 %v1520, %v1920
    %1922 = vmatmul.f32.gmra.mxu0 %v1715
    %v1923 = vpop.f32.mrf.mxu0
    %v1924 = vadd.f32 %v1523, %v1923
    %1925 = vmatmul.f32.gmra.mxu0 %v1718
    %v1926 = vpop.f32.mrf.mxu0
    %v1927 = vadd.f32 %v1526, %v1926
    %1928 = vmatmul.f32.gmra.mxu0 %v1721
    %v1929 = vpop.f32.mrf.mxu0
    %v1930 = vadd.f32 %v1529, %v1929
    %1931 = vmatmul.f32.gmra.mxu0 %v1724
    %v1932 = vpop.f32.mrf.mxu0
    %v1933 = vadd.f32 %v1532, %v1932
    %1934 = vmatmul.f32.gmra.mxu0 %v1727
    %v1935 = vpop.f32.mrf.mxu0
    %v1936 = vadd.f32 %v1535, %v1935
    %1937 = vmatmul.f32.gmra.mxu0 %v1730
    %v1938 = vpop.f32.mrf.mxu0
    %v1939 = vadd.f32 %v1538, %v1938
    %1940 = vmatmul.f32.gmra.mxu0 %v1733
    %v1941 = vpop.f32.mrf.mxu0
    %v1942 = vadd.f32 %v1541, %v1941
    %1943 = vmatmul.f32.gmra.mxu0 %v1736
    %v1944 = vpop.f32.mrf.mxu0
    %v1945 = vadd.f32 %v1544, %v1944
    %1946 = vmatmul.f32.gmra.mxu0 %v1739
    %v1947 = vpop.f32.mrf.mxu0
    %v1948 = vadd.f32 %v1547, %v1947
    %1949 = vmatmul.f32.gmra.mxu0 %v1742
    %v1950 = vpop.f32.mrf.mxu0
    %v1951 = vadd.f32 %v1550, %v1950
    %1952 = vmatmul.f32.gmra.mxu0 %v1745
    %v1953 = vpop.f32.mrf.mxu0
    %v1954 = vadd.f32 %v1553, %v1953
    %1955 = vmatmul.f32.gmra.mxu0 %v1748
    %v1956 = vpop.f32.mrf.mxu0
    %v1957 = vadd.f32 %v1556, %v1956
    %1958 = vmatmul.f32.gmra.mxu0 %v1751
    %v1959 = vpop.f32.mrf.mxu0
    %v1960 = vadd.f32 %v1559, %v1959
    %1961 = vmatmul.f32.gmra.mxu0 %v1754
    %v1962 = vpop.f32.mrf.mxu0
    %v1963 = vadd.f32 %v1562, %v1962
    %1964 = vmatmul.f32.gmra.mxu0 %v1757
    %v1965 = vpop.f32.mrf.mxu0
    %v1966 = vadd.f32 %v1565, %v1965
    %1967 = vmatmul.f32.gmra.mxu0 %v1760
    %v1968 = vpop.f32.mrf.mxu0
    %v1969 = vadd.f32 %v1568, %v1968
    %1970 = vmatmul.f32.gmra.mxu0 %v1763
    %v1971 = vpop.f32.mrf.mxu0
    %v1972 = vadd.f32 %v1571, %v1971
    %1973 = vmatmul.f32.gmra.mxu0 %v1766
    %v1974 = vpop.f32.mrf.mxu0
    %v1975 = vadd.f32 %v1574, %v1974
    %1976 = vmatmul.f32.gmra.mxu0 %v1769
    %v1977 = vpop.f32.mrf.mxu0
    %v1978 = vadd.f32 %v1577, %v1977
    %1979 = vmatmul.f32.gmra.mxu0 %v1772
    %v1980 = vpop.f32.mrf.mxu0
    %v1981 = vadd.f32 %v1580, %v1980
    %1982 = vmatmul.f32.gmra.mxu0 %v1775
    %v1983 = vpop.f32.mrf.mxu0
    %v1984 = vadd.f32 %v1583, %v1983
    %1985 = vmatmul.f32.gmra.mxu0 %v1778
    %v1986 = vpop.f32.mrf.mxu0
    %v1987 = vadd.f32 %v1586, %v1986
    %1988 = vmatmul.f32.gmra.mxu0 %v1781
    %v1989 = vpop.f32.mrf.mxu0
    %v1990 = vadd.f32 %v1589, %v1989
    %1991 = vmatmul.f32.gmra.mxu0 %v1784
    %v1992 = vpop.f32.mrf.mxu0
    %v1993 = vadd.f32 %v1592, %v1992
    %1994 = vmatmul.f32.gmra.mxu0 %v1787
    %v1995 = vpop.f32.mrf.mxu0
    %v1996 = vadd.f32 %v1595, %v1995
    %1997 = vmatmul.f32.gmra.mxu0 %v1790
    %v1998 = vpop.f32.mrf.mxu0
    %v1999 = vadd.f32 %v1598, %v1998
    %2000 = vmatmul.f32.gmra.mxu0 %v1793
    %v2001 = vpop.f32.mrf.mxu0
    %v2002 = vadd.f32 %v1601, %v2001
    %2003 = vmatmul.f32.gmra.mxu0 %v1796
    %v2004 = vpop.f32.mrf.mxu0
    %v2005 = vadd.f32 %v1604, %v2004
    %2006 = vmatmul.f32.gmra.mxu0 %v1799
    %v2007 = vpop.f32.mrf.mxu0
    %v2008 = vadd.f32 %v1607, %v2007
    %2009 = vmatmul.f32.gmra.mxu0 %v1802
    %v2010 = vpop.f32.mrf.mxu0
    %v2011 = vadd.f32 %v1610, %v2010
    %2012 = vmatmul.f32.gmra.mxu0 %v1805
    %v2013 = vpop.f32.mrf.mxu0
    %v2014 = vadd.f32 %v1613, %v2013
    %2015 = vmatmul.f32.gmra.mxu0 %v1808
    %v2016 = vpop.f32.mrf.mxu0
    %v2017 = vadd.f32 %v1616, %v2016
    %2018 = vmatmul.f32.gmra.mxu0 %v1811
    %v2019 = vpop.f32.mrf.mxu0
    %v2020 = vadd.f32 %v1619, %v2019
    %2021 = vmatmul.f32.gmra.mxu0 %v1814
    %v2022 = vpop.f32.mrf.mxu0
    %v2023 = vadd.f32 %v1622, %v2022
    %2024 = vmatmul.f32.gmra.mxu0 %v1817
    %v2025 = vpop.f32.mrf.mxu0
    %v2026 = vadd.f32 %v1625, %v2025
    %2027 = vmatmul.f32.gmra.mxu0 %v1820
    %v2028 = vpop.f32.mrf.mxu0
    %v2029 = vadd.f32 %v1628, %v2028
    %2030 = vmatmul.f32.gmra.mxu0 %v1823
    %v2031 = vpop.f32.mrf.mxu0
    %v2032 = vadd.f32 %v1631, %v2031
    %2033 = vmatmul.f32.gmra.mxu0 %v1826
    %v2034 = vpop.f32.mrf.mxu0
    %v2035 = vadd.f32 %v1634, %v2034
    %2036 = vmatmul.f32.gmra.mxu0 %v1829
    %v2037 = vpop.f32.mrf.mxu0
    %v2038 = vadd.f32 %v1637, %v2037
    %2039 = vmatmul.f32.gmra.mxu0 %v1832
    %v2040 = vpop.f32.mrf.mxu0
    %v2041 = vadd.f32 %v1640, %v2040
    %2042 = vmatmul.f32.gmra.mxu0 %v1835
    %v2043 = vpop.f32.mrf.mxu0
    %v2044 = vadd.f32 %v1643, %v2043
    %2045 = vmatmul.f32.gmra.mxu0 %v1838
    %v2046 = vpop.f32.mrf.mxu0
    %v2047 = vadd.f32 %v1646, %v2046
    %2048 = vmatmul.f32.gmra.mxu0 %v1841
    %v2049 = vpop.f32.mrf.mxu0
    %v2050 = vadd.f32 %v1649, %v2049
    %2051 = vmatmul.f32.gmra.mxu0 %v1844
    %v2052 = vpop.f32.mrf.mxu0
    %v2053 = vadd.f32 %v1652, %v2052
    %2054 = vmatmul.f32.gmra.mxu0 %v1847
    %v2055 = vpop.f32.mrf.mxu0
    %v2056 = vadd.f32 %v1655, %v2055
    %2057 = vdwg.mxu0
    %v2058 = vld [vmem:[%s8] sm:$0x1]
    %v2060 = vperm.slane %v2058, 0
    %v2062 = vadd.f32 %v1867, %v2060
    %v2063 = vadd.f32 %v1870, %v2060
    %v2064 = vadd.f32 %v1873, %v2060
    %v2065 = vadd.f32 %v1876, %v2060
    %v2066 = vadd.f32 %v1879, %v2060
    %v2067 = vadd.f32 %v1882, %v2060
    %v2068 = vadd.f32 %v1885, %v2060
    %v2069 = vadd.f32 %v1888, %v2060
    %v2070 = vadd.f32 %v1891, %v2060
    %v2071 = vadd.f32 %v1894, %v2060
    %v2072 = vadd.f32 %v1897, %v2060
    %v2073 = vadd.f32 %v1900, %v2060
    %v2074 = vadd.f32 %v1903, %v2060
    %v2075 = vadd.f32 %v1906, %v2060
    %v2076 = vadd.f32 %v1909, %v2060
    %v2077 = vadd.f32 %v1912, %v2060
    %v2078 = vadd.f32 %v1915, %v2060
    %v2079 = vadd.f32 %v1918, %v2060
    %v2080 = vadd.f32 %v1921, %v2060
    %v2081 = vadd.f32 %v1924, %v2060
    %v2082 = vadd.f32 %v1927, %v2060
    %v2083 = vadd.f32 %v1930, %v2060
    %v2084 = vadd.f32 %v1933, %v2060
    %v2085 = vadd.f32 %v1936, %v2060
    %v2086 = vadd.f32 %v1939, %v2060
    %v2087 = vadd.f32 %v1942, %v2060
    %v2088 = vadd.f32 %v1945, %v2060
    %v2089 = vadd.f32 %v1948, %v2060
    %v2090 = vadd.f32 %v1951, %v2060
    %v2091 = vadd.f32 %v1954, %v2060
    %v2092 = vadd.f32 %v1957, %v2060
    %v2093 = vadd.f32 %v1960, %v2060
    %v2094 = vadd.f32 %v1963, %v2060
    %v2095 = vadd.f32 %v1966, %v2060
    %v2096 = vadd.f32 %v1969, %v2060
    %v2097 = vadd.f32 %v1972, %v2060
    %v2098 = vadd.f32 %v1975, %v2060
    %v2099 = vadd.f32 %v1978, %v2060
    %v2100 = vadd.f32 %v1981, %v2060
    %v2101 = vadd.f32 %v1984, %v2060
    %v2102 = vadd.f32 %v1987, %v2060
    %v2103 = vadd.f32 %v1990, %v2060
    %v2104 = vadd.f32 %v1993, %v2060
    %v2105 = vadd.f32 %v1996, %v2060
    %v2106 = vadd.f32 %v1999, %v2060
    %v2107 = vadd.f32 %v2002, %v2060
    %v2108 = vadd.f32 %v2005, %v2060
    %v2109 = vadd.f32 %v2008, %v2060
    %v2110 = vadd.f32 %v2011, %v2060
    %v2111 = vadd.f32 %v2014, %v2060
    %v2112 = vadd.f32 %v2017, %v2060
    %v2113 = vadd.f32 %v2020, %v2060
    %v2114 = vadd.f32 %v2023, %v2060
    %v2115 = vadd.f32 %v2026, %v2060
    %v2116 = vadd.f32 %v2029, %v2060
    %v2117 = vadd.f32 %v2032, %v2060
    %v2118 = vadd.f32 %v2035, %v2060
    %v2119 = vadd.f32 %v2038, %v2060
    %v2120 = vadd.f32 %v2041, %v2060
    %v2121 = vadd.f32 %v2044, %v2060
    %v2122 = vadd.f32 %v2047, %v2060
    %v2123 = vadd.f32 %v2050, %v2060
    %v2124 = vadd.f32 %v2053, %v2060
    %v2125 = vadd.f32 %v2056, %v2060
    %2126 = vst.msk [vmem:[#allocation2] sm:$0xff] %vm305, %v2062
    %2127 = vst.msk [vmem:[#allocation2 + $0x8] sm:$0xff] %vm305, %v2063
    %2128 = vst.msk [vmem:[#allocation2 + $0x10] sm:$0xff] %vm305, %v2064
    %2129 = vst.msk [vmem:[#allocation2 + $0x18] sm:$0xff] %vm305, %v2065
    %2130 = vst.msk [vmem:[#allocation2 + $0x20] sm:$0xff] %vm305, %v2066
    %2131 = vst.msk [vmem:[#allocation2 + $0x28] sm:$0xff] %vm305, %v2067
    %2132 = vst.msk [vmem:[#allocation2 + $0x30] sm:$0xff] %vm305, %v2068
    %2133 = vst.msk [vmem:[#allocation2 + $0x38] sm:$0xff] %vm305, %v2069
    %2134 = vst.msk [vmem:[#allocation2 + $0x40] sm:$0xff] %vm305, %v2070
    %2135 = vst.msk [vmem:[#allocation2 + $0x48] sm:$0xff] %vm305, %v2071
    %2136 = vst.msk [vmem:[#allocation2 + $0x50] sm:$0xff] %vm305, %v2072
    %2137 = vst.msk [vmem:[#allocation2 + $0x58] sm:$0xff] %vm305, %v2073
    %2138 = vst.msk [vmem:[#allocation2 + $0x60] sm:$0xff] %vm305, %v2074
    %2139 = vst.msk [vmem:[#allocation2 + $0x68] sm:$0xff] %vm305, %v2075
    %2140 = vst.msk [vmem:[#allocation2 + $0x70] sm:$0xff] %vm305, %v2076
    %2141 = vst.msk [vmem:[#allocation2 + $0x78] sm:$0xff] %vm305, %v2077
    %2142 = vst.msk [vmem:[#allocation2 + $0x80] sm:$0xff] %vm305, %v2078
    %2143 = vst.msk [vmem:[#allocation2 + $0x88] sm:$0xff] %vm305, %v2079
    %2144 = vst.msk [vmem:[#allocation2 + $0x90] sm:$0xff] %vm305, %v2080
    %2145 = vst.msk [vmem:[#allocation2 + $0x98] sm:$0xff] %vm305, %v2081
    %2146 = vst.msk [vmem:[#allocation2 + $0xa0] sm:$0xff] %vm305, %v2082
    %2147 = vst.msk [vmem:[#allocation2 + $0xa8] sm:$0xff] %vm305, %v2083
    %2148 = vst.msk [vmem:[#allocation2 + $0xb0] sm:$0xff] %vm305, %v2084
    %2149 = vst.msk [vmem:[#allocation2 + $0xb8] sm:$0xff] %vm305, %v2085
    %2150 = vst.msk [vmem:[#allocation2 + $0xc0] sm:$0xff] %vm305, %v2086
    %2151 = vst.msk [vmem:[#allocation2 + $0xc8] sm:$0xff] %vm305, %v2087
    %2152 = vst.msk [vmem:[#allocation2 + $0xd0] sm:$0xff] %vm305, %v2088
    %2153 = vst.msk [vmem:[#allocation2 + $0xd8] sm:$0xff] %vm305, %v2089
    %2154 = vst.msk [vmem:[#allocation2 + $0xe0] sm:$0xff] %vm305, %v2090
    %2155 = vst.msk [vmem:[#allocation2 + $0xe8] sm:$0xff] %vm305, %v2091
    %2156 = vst.msk [vmem:[#allocation2 + $0xf0] sm:$0xff] %vm305, %v2092
    %2157 = vst.msk [vmem:[#allocation2 + $0xf8] sm:$0xff] %vm305, %v2093
    %2158 = vst.msk [vmem:[#allocation2 + $0x100] sm:$0xff] %vm305, %v2094
    %2159 = vst.msk [vmem:[#allocation2 + $0x108] sm:$0xff] %vm305, %v2095
    %2160 = vst.msk [vmem:[#allocation2 + $0x110] sm:$0xff] %vm305, %v2096
    %2161 = vst.msk [vmem:[#allocation2 + $0x118] sm:$0xff] %vm305, %v2097
    %2162 = vst.msk [vmem:[#allocation2 + $0x120] sm:$0xff] %vm305, %v2098
    %2163 = vst.msk [vmem:[#allocation2 + $0x128] sm:$0xff] %vm305, %v2099
    %2164 = vst.msk [vmem:[#allocation2 + $0x130] sm:$0xff] %vm305, %v2100
    %2165 = vst.msk [vmem:[#allocation2 + $0x138] sm:$0xff] %vm305, %v2101
    %2166 = vst.msk [vmem:[#allocation2 + $0x140] sm:$0xff] %vm305, %v2102
    %2167 = vst.msk [vmem:[#allocation2 + $0x148] sm:$0xff] %vm305, %v2103
    %2168 = vst.msk [vmem:[#allocation2 + $0x150] sm:$0xff] %vm305, %v2104
    %2169 = vst.msk [vmem:[#allocation2 + $0x158] sm:$0xff] %vm305, %v2105
    %2170 = vst.msk [vmem:[#allocation2 + $0x160] sm:$0xff] %vm305, %v2106
    %2171 = vst.msk [vmem:[#allocation2 + $0x168] sm:$0xff] %vm305, %v2107
    %2172 = vst.msk [vmem:[#allocation2 + $0x170] sm:$0xff] %vm305, %v2108
    %2173 = vst.msk [vmem:[#allocation2 + $0x178] sm:$0xff] %vm305, %v2109
    %2174 = vst.msk [vmem:[#allocation2 + $0x180] sm:$0xff] %vm305, %v2110
    %2175 = vst.msk [vmem:[#allocation2 + $0x188] sm:$0xff] %vm305, %v2111
    %2176 = vst.msk [vmem:[#allocation2 + $0x190] sm:$0xff] %vm305, %v2112
    %2177 = vst.msk [vmem:[#allocation2 + $0x198] sm:$0xff] %vm305, %v2113
    %2178 = vst.msk [vmem:[#allocation2 + $0x1a0] sm:$0xff] %vm305, %v2114
    %2179 = vst.msk [vmem:[#allocation2 + $0x1a8] sm:$0xff] %vm305, %v2115
    %2180 = vst.msk [vmem:[#allocation2 + $0x1b0] sm:$0xff] %vm305, %v2116
    %2181 = vst.msk [vmem:[#allocation2 + $0x1b8] sm:$0xff] %vm305, %v2117
    %2182 = vst.msk [vmem:[#allocation2 + $0x1c0] sm:$0xff] %vm305, %v2118
    %2183 = vst.msk [vmem:[#allocation2 + $0x1c8] sm:$0xff] %vm305, %v2119
    %2184 = vst.msk [vmem:[#allocation2 + $0x1d0] sm:$0xff] %vm305, %v2120
    %2185 = vst.msk [vmem:[#allocation2 + $0x1d8] sm:$0xff] %vm305, %v2121
    %2186 = vst.msk [vmem:[#allocation2 + $0x1e0] sm:$0xff] %vm305, %v2122
    %2187 = vst.msk [vmem:[#allocation2 + $0x1e8] sm:$0xff] %vm305, %v2123
    %2188 = vst.msk [vmem:[#allocation2 + $0x1f0] sm:$0xff] %vm305, %v2124
    %2189 = vst.msk [vmem:[#allocation2 + $0x1f8] sm:$0xff] %vm305, %v2125
    // Predicated region
    $region38: #{ds_forward.7} parent=1 // pred_check
      _
    $region39: #{ds_forward.7} parent=1 // pred_check_branch
      %2191 = sbr.rel (0) target = $region41
    $region40: #{ds_forward.7} parent=1 // pred_region
      %2193 = vsyncadd [#allocation3], 0
      %s2194 = sshll.u32 [#allocation2], 4
      %s2195 = int_to_ptr.vmem [resolvable:$true] %s2194
      %s2196 = sshll.u32 %s9, 4
      %s2197 = int_to_ptr.hbm [resolvable:$true] %s2196
      %2202 = dma.vmem_to_hbm [thread:$0]  %s2195, 8192, %s2197, [#allocation3], 128, 128, 8
    $region41: #{ds_forward.7} parent=1 // pred_fallthru
      _
    // Predicated region
    $region42: #{ds_forward.7} parent=1 // pred_check
      _
    $region43: #{ds_forward.7} parent=1 // pred_check_branch
      %2204 = sbr.rel (0) target = $region45
    $region44: #{ds_forward.7} parent=1 // pred_region
      %2206 = dma.done [#allocation3], 8192
    $region45: #{ds_forward.7} parent=1 // pred_fallthru
      _
    %2207 = vsyncpa [#allocation3], 1

// kernel: ds_forward.6
$region0: #{ds_forward.6}
  #allocation0 [shape = 'u32[]', space=smem, size = 0x4, offset = 0x4, fixed_abs, tag = 'smem constant byte address 0x4 - core index']
  #allocation1 [shape = 'u32[72,128]{1,0:T(1,128)}', space=vmem, size = 0x9000, scoped, tag = 'internal scratch']
  %s0 = inlined_call_operand.vmem [shape: f32[2,18,18,64], index: 0, kind: input, shape index: {}]
  %s1 = inlined_call_operand.vmem [shape: f32[2,18,18,64], index: 1, kind: input, shape index: {}]
  %s2 = inlined_call_operand.vmem [shape: f32[9,2,64], index: 2, kind: input, shape index: {}]
  %s3 = inlined_call_operand.vmem [shape: f32[9,2,64], index: 3, kind: input, shape index: {}]
  %s4 = inlined_call_operand.vmem [shape: f32[2,2,16,16], index: 4, kind: output, shape index: {}]
  %s5 = sld [smem:[#allocation0]]
  $region49: #{ds_forward.6} parent=0
    _
  %s7 = ssub.s32 1, %s5
  %s8 = scalar_select 0, %s7, %s5
  loop: start=0, step=1, limit=4
  $region2: #{ds_forward.6} parent=0 // loop_pre_header
    _
  $region3: #{ds_forward.6} parent=0 // loop_header
    %s10 = sphi 0, %s14
    %p11 = scmp.ge.s32.totalorder %s10, 4
    %s20 = sphi 0, %s22
    %s23 = sphi 0, %s20
    %s24 = sphi 0, %s23
    %s40 = sphi 0, %s24
    %s46 = sphi 0, %s48
    %s49 = sphi 0, %s46
    %s50 = sphi 0, %s49
    %s66 = sphi 0, %s50
    %s70 = sphi 0, %s70
    %s72 = sphi 0, %s70
    %s73 = sphi 0, %s72
    %s87 = sphi 0, %s73
    %s91 = sphi 0, %s91
    %s93 = sphi 0, %s91
    %s94 = sphi 0, %s93
    %s108 = sphi 0, %s94
    %s114 = sphi 0, %s116
    %s117 = sphi 0, %s114
    %s118 = sphi 0, %s117
    %s134 = sphi 0, %s118
  $region4: #{ds_forward.6} parent=0 // loop_header_branch
    %13 = sbr.rel (%p11) target = $region8
  $region5: #{ds_forward.6} parent=0 // loop_body
    %s15 = ssub.s32 %s10, 1
    %s16 = ssub.s32 %s10, 2
    %s17 = sadd.s32 %s10, 1
    %s18 = ssub.s32 %s10, %s17
    %p19 = scmp.eq.s32.totalorder %s18, 0
    %s21 = sadd.s32 %s20, 1
    %s22 = scalar_select %p19, %s20, %s21
    %p25 = pneg %p19
    %p26 = scmp.eq.s32.totalorder %s10, 1
    %p27 = por %p25, %p26
    %p28 = scmp.ne.s32.totalorder %s20, %s23
    %p29 = scmp.eq.s32.totalorder %s10, 0
    %p30 = por %p28, %p29
    %p31 = scmp.ne.s32.totalorder %s20, %s23
    %p32 = scmp.eq.s32.totalorder %s15, 1
    %p33 = por %p31, %p32
    %p34 = scmp.ne.s32.totalorder %s23, %s24
    %p35 = scmp.eq.s32.totalorder %s15, 0
    %p36 = por %p34, %p35
    %p37 = scmp.ne.s32.totalorder %s23, %s24
    %p38 = scmp.eq.s32.totalorder %s16, 1
    %p39 = por %p37, %p38
    %p41 = scmp.ne.s32.totalorder %s24, %s40
    %p42 = scmp.eq.s32.totalorder %s16, 0
    %p43 = por %p41, %p42
    %s44 = ssub.s32 %s10, %s17
    %p45 = scmp.eq.s32.totalorder %s44, 0
    %s47 = sadd.s32 %s46, 1
    %s48 = scalar_select %p45, %s46, %s47
    %p51 = pneg %p45
    %p52 = scmp.eq.s32.totalorder %s10, 1
    %p53 = por %p51, %p52
    %p54 = scmp.ne.s32.totalorder %s46, %s49
    %p55 = scmp.eq.s32.totalorder %s10, 0
    %p56 = por %p54, %p55
    %p57 = scmp.ne.s32.totalorder %s46, %s49
    %p58 = scmp.eq.s32.totalorder %s15, 1
    %p59 = por %p57, %p58
    %p60 = scmp.ne.s32.totalorder %s49, %s50
    %p61 = scmp.eq.s32.totalorder %s15, 0
    %p62 = por %p60, %p61
    %p63 = scmp.ne.s32.totalorder %s49, %s50
    %p64 = scmp.eq.s32.totalorder %s16, 1
    %p65 = por %p63, %p64
    %p67 = scmp.ne.s32.totalorder %s50, %s66
    %p68 = scmp.eq.s32.totalorder %s16, 0
    %p69 = por %p67, %p68
    %s71 = sadd.s32 %s70, 1
    %p74 = scmp.eq.s32.totalorder %s10, 1
    %p75 = scmp.ne.s32.totalorder %s70, %s72
    %p76 = scmp.eq.s32.totalorder %s10, 0
    %p77 = por %p75, %p76
    %p78 = scmp.ne.s32.totalorder %s70, %s72
    %p79 = scmp.eq.s32.totalorder %s15, 1
    %p80 = por %p78, %p79
    %p81 = scmp.ne.s32.totalorder %s72, %s73
    %p82 = scmp.eq.s32.totalorder %s15, 0
    %p83 = por %p81, %p82
    %p84 = scmp.ne.s32.totalorder %s72, %s73
    %p85 = scmp.eq.s32.totalorder %s16, 1
    %p86 = por %p84, %p85
    %p88 = scmp.ne.s32.totalorder %s73, %s87
    %p89 = scmp.eq.s32.totalorder %s16, 0
    %p90 = por %p88, %p89
    %s92 = sadd.s32 %s91, 1
    %p95 = scmp.eq.s32.totalorder %s10, 1
    %p96 = scmp.ne.s32.totalorder %s91, %s93
    %p97 = scmp.eq.s32.totalorder %s10, 0
    %p98 = por %p96, %p97
    %p99 = scmp.ne.s32.totalorder %s91, %s93
    %p100 = scmp.eq.s32.totalorder %s15, 1
    %p101 = por %p99, %p100
    %p102 = scmp.ne.s32.totalorder %s93, %s94
    %p103 = scmp.eq.s32.totalorder %s15, 0
    %p104 = por %p102, %p103
    %p105 = scmp.ne.s32.totalorder %s93, %s94
    %p106 = scmp.eq.s32.totalorder %s16, 1
    %p107 = por %p105, %p106
    %p109 = scmp.ne.s32.totalorder %s94, %s108
    %p110 = scmp.eq.s32.totalorder %s16, 0
    %p111 = por %p109, %p110
    %s112 = ssub.s32 %s10, %s17
    %p113 = scmp.eq.s32.totalorder %s112, 0
    %s115 = sadd.s32 %s114, 1
    %s116 = scalar_select %p113, %s114, %s115
    %p119 = pneg %p113
    %p120 = scmp.eq.s32.totalorder %s10, 1
    %p121 = por %p119, %p120
    %p122 = scmp.ne.s32.totalorder %s114, %s117
    %p123 = scmp.eq.s32.totalorder %s10, 0
    %p124 = por %p122, %p123
    %p125 = scmp.ne.s32.totalorder %s114, %s117
    %p126 = scmp.eq.s32.totalorder %s15, 1
    %p127 = por %p125, %p126
    %p128 = scmp.ne.s32.totalorder %s117, %s118
    %p129 = scmp.eq.s32.totalorder %s15, 0
    %p130 = por %p128, %p129
    %p131 = scmp.ne.s32.totalorder %s117, %s118
    %p132 = scmp.eq.s32.totalorder %s16, 1
    %p133 = por %p131, %p132
    %p135 = scmp.ne.s32.totalorder %s118, %s134
    %p136 = scmp.eq.s32.totalorder %s16, 0
    %p137 = por %p135, %p136
    %p138 = scmp.le.s32.totalorder 1, %s10
    %p139 = scmp.lt.s32.totalorder %s10, 3
    %p140 = pnand %p138, %p139
    %p141 = pneg %p140
    // Predicated region
    $region9: #{ds_forward.6} parent=5 // pred_check
      _
    $region10: #{ds_forward.6} parent=5 // pred_check_branch
      %143 = sbr.rel (%p140) target = $region12
    $region11: #{ds_forward.6} parent=5 // pred_region
      %s144 = ssub.s32 %s10, 1
      // Predicated region
      $region13: #{ds_forward.6} parent=11 // pred_check
        %p145 = pneg %p83
      $region14: #{ds_forward.6} parent=11 // pred_check_branch
        %147 = sbr.rel (%p145) target = $region16
      $region15: #{ds_forward.6} parent=11 // pred_region
        _
      $region16: #{ds_forward.6} parent=11 // pred_fallthru
        _
      // Predicated region
      $region17: #{ds_forward.6} parent=11 // pred_check
        %p148 = pneg %p104
      $region18: #{ds_forward.6} parent=11 // pred_check_branch
        %150 = sbr.rel (%p148) target = $region20
      $region19: #{ds_forward.6} parent=11 // pred_region
        _
      $region20: #{ds_forward.6} parent=11 // pred_fallthru
        _
    $region12: #{ds_forward.6} parent=5 // pred_fallthru
      _
    %p151 = scmp.lt.s32.totalorder %s10, 2
    // Predicated region
    $region21: #{ds_forward.6} parent=5 // pred_check
      %p152 = pneg %p151
    $region22: #{ds_forward.6} parent=5 // pred_check_branch
      %154 = sbr.rel (%p152) target = $region24
    $region23: #{ds_forward.6} parent=5 // pred_region
      // Predicated region
      $region25: #{ds_forward.6} parent=23 // pred_check
        %p155 = pneg %p30
      $region26: #{ds_forward.6} parent=23 // pred_check_branch
        %157 = sbr.rel (%p155) target = $region28
      $region27: #{ds_forward.6} parent=23 // pred_region
        %p158 = scmp.lt.s32.totalorder %s10, 1
        %s159 = scalar_select %p158, %s10, 1
        %s160 = smul.addr %s159, 54
        %s161 = smul.addr %s160, 8
        %s162 = scalar_lea.vmem %s0, %s161
      $region28: #{ds_forward.6} parent=23 // pred_fallthru
        _
      // Predicated region
      $region29: #{ds_forward.6} parent=23 // pred_check
        %p163 = pneg %p56
      $region30: #{ds_forward.6} parent=23 // pred_check_branch
        %165 = sbr.rel (%p163) target = $region32
      $region31: #{ds_forward.6} parent=23 // pred_region
        %p166 = scmp.lt.s32.totalorder %s10, 1
        %s167 = scalar_select %p166, %s10, 1
        %s168 = smul.addr %s167, 54
        %s169 = smul.addr %s168, 8
        %s170 = scalar_lea.vmem %s1, %s169
      $region32: #{ds_forward.6} parent=23 // pred_fallthru
        _
    $region24: #{ds_forward.6} parent=5 // pred_fallthru
      _
    %p171 = scmp.le.s32.totalorder 1, %s10
    %p172 = scmp.lt.s32.totalorder %s10, 3
    %p173 = pnand %p171, %p172
    %p174 = pneg %p173
    // Predicated region
    $region33: #{ds_forward.6} parent=5 // pred_check
      _
    $region34: #{ds_forward.6} parent=5 // pred_check_branch
      %176 = sbr.rel (%p173) target = $region36
    $region35: #{ds_forward.6} parent=5 // pred_region
      %s177 = ssub.s32 %s10, 1
      %p178 = scmp.lt.s32.totalorder %s15, 1
      %s179 = scalar_select %p178, %s15, 1
      %s180 = smul.addr %s179, 54
      %s181 = smul.addr %s180, 8
      %s182 = scalar_lea.vmem %s0, %s181
      %p183 = pneg %p36
      %p184 = pneg %p33
      %p185 = scmp.lt.s32.totalorder %s15, 1
      %s186 = scalar_select %p185, %s15, 1
      %s187 = smul.addr %s186, 54
      %s188 = smul.addr %s187, 8
      %s189 = scalar_lea.vmem %s1, %s188
      %p190 = pneg %p62
      %p191 = pneg %p59
      %p192 = pneg %p83
      %p193 = pneg %p80
      %p194 = pneg %p104
      %p195 = pneg %p101
      %p196 = pneg %p130
      %p197 = pneg %p127
      %p198 = scmp.lt.s32.totalorder %s15, 1
      %s199 = scalar_select %p198, %s15, 1
      %s200 = smul.addr %s199, 4
      %s201 = smul.addr %s200, 8
      %s202 = scalar_lea.vmem %s4, %s201
      %p203 = scmp.lt.s32.totalorder %s15, 1
      %s204 = scalar_select %p203, %s15, 1
      %s205 = smul.addr %s204, 54
      %s206 = smul.addr %s205, 8
      %s207 = scalar_lea.vmem %s0, %s206
      %p208 = scmp.lt.s32.totalorder %s15, 1
      %s209 = scalar_select %p208, %s15, 1
      %s210 = smul.addr %s209, 54
      %s211 = smul.addr %s210, 8
      %s212 = scalar_lea.vmem %s1, %s211
      %p213 = scmp.lt.s32.totalorder %s15, 1
      %s214 = scalar_select %p213, %s15, 1
      %s215 = smul.addr %s214, 4
      %s216 = smul.addr %s215, 8
      %s217 = scalar_lea.vmem %s4, %s216
      %v218 = vld [vmem:[%s2] sm:$0x3]
      %v219 = vld [vmem:[%s2 + $0x2] sm:$0x3]
      %v220 = vld [vmem:[%s2 + $0x4] sm:$0x3]
      %v221 = vld [vmem:[%s2 + $0x6] sm:$0x3]
      %v222 = vld [vmem:[%s2 + $0x8] sm:$0x3]
      %v223 = vld [vmem:[%s2 + $0xa] sm:$0x3]
      %v224 = vld [vmem:[%s2 + $0xc] sm:$0x3]
      %v225 = vld [vmem:[%s2 + $0xe] sm:$0x3]
      %v226 = vld [vmem:[%s2 + $0x10] sm:$0x3]
      %v227 = vld [vmem:[%s3] sm:$0x3]
      %v228 = vld [vmem:[%s3 + $0x2] sm:$0x3]
      %v229 = vld [vmem:[%s3 + $0x4] sm:$0x3]
      %v230 = vld [vmem:[%s3 + $0x6] sm:$0x3]
      %v231 = vld [vmem:[%s3 + $0x8] sm:$0x3]
      %v232 = vld [vmem:[%s3 + $0xa] sm:$0x3]
      %v233 = vld [vmem:[%s3 + $0xc] sm:$0x3]
      %v234 = vld [vmem:[%s3 + $0xe] sm:$0x3]
      %v235 = vld [vmem:[%s3 + $0x10] sm:$0x3]
      %v236 = vld [vmem:[%s207] sm:$0xff]
      %v237 = vld [vmem:[%s207 + $0x8] sm:$0xff]
      %v238 = vld [vmem:[%s207 + $0x18] sm:$0xff]
      %v239 = vld [vmem:[%s207 + $0x20] sm:$0xff]
      %v240 = vld [vmem:[%s207 + $0x30] sm:$0xff]
      %v241 = vld [vmem:[%s207 + $0x38] sm:$0xff]
      %v242 = vld [vmem:[%s207 + $0x48] sm:$0xff]
      %v243 = vld [vmem:[%s207 + $0x50] sm:$0xff]
      %v244 = vld [vmem:[%s207 + $0x60] sm:$0xff]
      %v245 = vld [vmem:[%s207 + $0x68] sm:$0xff]
      %v246 = vld [vmem:[%s207 + $0x78] sm:$0xff]
      %v247 = vld [vmem:[%s207 + $0x80] sm:$0xff]
      %v248 = vld [vmem:[%s207 + $0x90] sm:$0xff]
      %v249 = vld [vmem:[%s207 + $0x98] sm:$0xff]
      %v250 = vld [vmem:[%s207 + $0xa8] sm:$0xff]
      %v251 = vld [vmem:[%s207 + $0xb0] sm:$0xff]
      %v252 = vld [vmem:[%s207 + $0xc0] sm:$0xff]
      %v253 = vld [vmem:[%s207 + $0xc8] sm:$0xff]
      %v254 = vld [vmem:[%s207 + $0xd8] sm:$0xff]
      %v255 = vld [vmem:[%s207 + $0xe0] sm:$0xff]
      %v256 = vld [vmem:[%s207 + $0xf0] sm:$0xff]
      %v257 = vld [vmem:[%s207 + $0xf8] sm:$0xff]
      %v258 = vld [vmem:[%s207 + $0x108] sm:$0xff]
      %v259 = vld [vmem:[%s207 + $0x110] sm:$0xff]
      %v260 = vld [vmem:[%s207 + $0x120] sm:$0xff]
      %v261 = vld [vmem:[%s207 + $0x128] sm:$0xff]
      %v262 = vld [vmem:[%s207 + $0x138] sm:$0xff]
      %v263 = vld [vmem:[%s207 + $0x140] sm:$0xff]
      %v264 = vld [vmem:[%s207 + $0x150] sm:$0xff]
      %v265 = vld [vmem:[%s207 + $0x158] sm:$0xff]
      %v266 = vld [vmem:[%s207 + $0x168] sm:$0xff]
      %v267 = vld [vmem:[%s207 + $0x170] sm:$0xff]
      %v268 = vld [vmem:[%s212] sm:$0xff]
      %v269 = vld [vmem:[%s212 + $0x8] sm:$0xff]
      %v270 = vld [vmem:[%s212 + $0x18] sm:$0xff]
      %v271 = vld [vmem:[%s212 + $0x20] sm:$0xff]
      %v272 = vld [vmem:[%s212 + $0x30] sm:$0xff]
      %v273 = vld [vmem:[%s212 + $0x38] sm:$0xff]
      %v274 = vld [vmem:[%s212 + $0x48] sm:$0xff]
      %v275 = vld [vmem:[%s212 + $0x50] sm:$0xff]
      %v276 = vld [vmem:[%s212 + $0x60] sm:$0xff]
      %v277 = vld [vmem:[%s212 + $0x68] sm:$0xff]
      %v278 = vld [vmem:[%s212 + $0x78] sm:$0xff]
      %v279 = vld [vmem:[%s212 + $0x80] sm:$0xff]
      %v280 = vld [vmem:[%s212 + $0x90] sm:$0xff]
      %v281 = vld [vmem:[%s212 + $0x98] sm:$0xff]
      %v282 = vld [vmem:[%s212 + $0xa8] sm:$0xff]
      %v283 = vld [vmem:[%s212 + $0xb0] sm:$0xff]
      %v284 = vld [vmem:[%s212 + $0xc0] sm:$0xff]
      %v285 = vld [vmem:[%s212 + $0xc8] sm:$0xff]
      %v286 = vld [vmem:[%s212 + $0xd8] sm:$0xff]
      %v287 = vld [vmem:[%s212 + $0xe0] sm:$0xff]
      %v288 = vld [vmem:[%s212 + $0xf0] sm:$0xff]
      %v289 = vld [vmem:[%s212 + $0xf8] sm:$0xff]
      %v290 = vld [vmem:[%s212 + $0x108] sm:$0xff]
      %v291 = vld [vmem:[%s212 + $0x110] sm:$0xff]
      %v292 = vld [vmem:[%s212 + $0x120] sm:$0xff]
      %v293 = vld [vmem:[%s212 + $0x128] sm:$0xff]
      %v294 = vld [vmem:[%s212 + $0x138] sm:$0xff]
      %v295 = vld [vmem:[%s212 + $0x140] sm:$0xff]
      %v296 = vld [vmem:[%s212 + $0x150] sm:$0xff]
      %v297 = vld [vmem:[%s212 + $0x158] sm:$0xff]
      %v298 = vld [vmem:[%s212 + $0x168] sm:$0xff]
      %v299 = vld [vmem:[%s212 + $0x170] sm:$0xff]
      %v300 = vperm.slane %v218, 0
      %v301 = vmul.f32 %v236, %v300
      %v302 = vmul.f32 %v237, %v300
      %v303 = vmul.f32 %v238, %v300
      %v304 = vmul.f32 %v239, %v300
      %v305 = vmul.f32 %v240, %v300
      %v306 = vmul.f32 %v241, %v300
      %v307 = vmul.f32 %v242, %v300
      %v308 = vmul.f32 %v243, %v300
      %v309 = vmul.f32 %v244, %v300
      %v310 = vmul.f32 %v245, %v300
      %v311 = vmul.f32 %v246, %v300
      %v312 = vmul.f32 %v247, %v300
      %v313 = vmul.f32 %v248, %v300
      %v314 = vmul.f32 %v249, %v300
      %v315 = vmul.f32 %v250, %v300
      %v316 = vmul.f32 %v251, %v300
      %v317 = vmul.f32 %v252, %v300
      %v318 = vmul.f32 %v253, %v300
      %v319 = vmul.f32 %v254, %v300
      %v320 = vmul.f32 %v255, %v300
      %v321 = vmul.f32 %v256, %v300
      %v322 = vmul.f32 %v257, %v300
      %v323 = vmul.f32 %v258, %v300
      %v324 = vmul.f32 %v259, %v300
      %v325 = vmul.f32 %v260, %v300
      %v326 = vmul.f32 %v261, %v300
      %v327 = vmul.f32 %v262, %v300
      %v328 = vmul.f32 %v263, %v300
      %v329 = vmul.f32 %v264, %v300
      %v330 = vmul.f32 %v265, %v300
      %v331 = vmul.f32 %v266, %v300
      %v332 = vmul.f32 %v267, %v300
      %vm333 = vcmask 523264
      %v334 = vsel %vm333, %v301, 0.0
      %335 = vadd.xlane.f32.xlu0 %v334
      %v336 = vpop.xlane.xlu0 %335
      %v337 = vsel %vm333, %v302, 0.0
      %338 = vadd.xlane.f32.xlu0 %v337
      %v339 = vpop.xlane.xlu0 %338
      %v340 = vsel %vm333, %v303, 0.0
      %341 = vadd.xlane.f32.xlu0 %v340
      %v342 = vpop.xlane.xlu0 %341
      %v343 = vsel %vm333, %v304, 0.0
      %344 = vadd.xlane.f32.xlu0 %v343
      %v345 = vpop.xlane.xlu0 %344
      %v346 = vsel %vm333, %v305, 0.0
      %347 = vadd.xlane.f32.xlu0 %v346
      %v348 = vpop.xlane.xlu0 %347
      %v349 = vsel %vm333, %v306, 0.0
      %350 = vadd.xlane.f32.xlu0 %v349
      %v351 = vpop.xlane.xlu0 %350
      %v352 = vsel %vm333, %v307, 0.0
      %353 = vadd.xlane.f32.xlu0 %v352
      %v354 = vpop.xlane.xlu0 %353
      %v355 = vsel %vm333, %v308, 0.0
      %356 = vadd.xlane.f32.xlu0 %v355
      %v357 = vpop.xlane.xlu0 %356
      %v358 = vsel %vm333, %v309, 0.0
      %359 = vadd.xlane.f32.xlu0 %v358
      %v360 = vpop.xlane.xlu0 %359
      %v361 = vsel %vm333, %v310, 0.0
      %362 = vadd.xlane.f32.xlu0 %v361
      %v363 = vpop.xlane.xlu0 %362
      %v364 = vsel %vm333, %v311, 0.0
      %365 = vadd.xlane.f32.xlu0 %v364
      %v366 = vpop.xlane.xlu0 %365
      %v367 = vsel %vm333, %v312, 0.0
      %368 = vadd.xlane.f32.xlu0 %v367
      %v369 = vpop.xlane.xlu0 %368
      %v370 = vsel %vm333, %v313, 0.0
      %371 = vadd.xlane.f32.xlu0 %v370
      %v372 = vpop.xlane.xlu0 %371
      %v373 = vsel %vm333, %v314, 0.0
      %374 = vadd.xlane.f32.xlu0 %v373
      %v375 = vpop.xlane.xlu0 %374
      %v376 = vsel %vm333, %v315, 0.0
      %377 = vadd.xlane.f32.xlu0 %v376
      %v378 = vpop.xlane.xlu0 %377
      %v379 = vsel %vm333, %v316, 0.0
      %380 = vadd.xlane.f32.xlu0 %v379
      %v381 = vpop.xlane.xlu0 %380
      %v382 = vsel %vm333, %v317, 0.0
      %383 = vadd.xlane.f32.xlu0 %v382
      %v384 = vpop.xlane.xlu0 %383
      %v385 = vsel %vm333, %v318, 0.0
      %386 = vadd.xlane.f32.xlu0 %v385
      %v387 = vpop.xlane.xlu0 %386
      %v388 = vsel %vm333, %v319, 0.0
      %389 = vadd.xlane.f32.xlu0 %v388
      %v390 = vpop.xlane.xlu0 %389
      %v391 = vsel %vm333, %v320, 0.0
      %392 = vadd.xlane.f32.xlu0 %v391
      %v393 = vpop.xlane.xlu0 %392
      %v394 = vsel %vm333, %v321, 0.0
      %395 = vadd.xlane.f32.xlu0 %v394
      %v396 = vpop.xlane.xlu0 %395
      %v397 = vsel %vm333, %v322, 0.0
      %398 = vadd.xlane.f32.xlu0 %v397
      %v399 = vpop.xlane.xlu0 %398
      %v400 = vsel %vm333, %v323, 0.0
      %401 = vadd.xlane.f32.xlu0 %v400
      %v402 = vpop.xlane.xlu0 %401
      %v403 = vsel %vm333, %v324, 0.0
      %404 = vadd.xlane.f32.xlu0 %v403
      %v405 = vpop.xlane.xlu0 %404
      %v406 = vsel %vm333, %v325, 0.0
      %407 = vadd.xlane.f32.xlu0 %v406
      %v408 = vpop.xlane.xlu0 %407
      %v409 = vsel %vm333, %v326, 0.0
      %410 = vadd.xlane.f32.xlu0 %v409
      %v411 = vpop.xlane.xlu0 %410
      %v412 = vsel %vm333, %v327, 0.0
      %413 = vadd.xlane.f32.xlu0 %v412
      %v414 = vpop.xlane.xlu0 %413
      %v415 = vsel %vm333, %v328, 0.0
      %416 = vadd.xlane.f32.xlu0 %v415
      %v417 = vpop.xlane.xlu0 %416
      %v418 = vsel %vm333, %v329, 0.0
      %419 = vadd.xlane.f32.xlu0 %v418
      %v420 = vpop.xlane.xlu0 %419
      %v421 = vsel %vm333, %v330, 0.0
      %422 = vadd.xlane.f32.xlu0 %v421
      %v423 = vpop.xlane.xlu0 %422
      %v424 = vsel %vm333, %v331, 0.0
      %425 = vadd.xlane.f32.xlu0 %v424
      %v426 = vpop.xlane.xlu0 %425
      %v427 = vsel %vm333, %v332, 0.0
      %428 = vadd.xlane.f32.xlu0 %v427
      %v429 = vpop.xlane.xlu0 %428
      %v430 = vadd.f32 %v336, 0.0
      %v431 = vadd.f32 %v339, 0.0
      %v432 = vadd.f32 %v342, 0.0
      %v433 = vadd.f32 %v345, 0.0
      %v434 = vadd.f32 %v348, 0.0
      %v435 = vadd.f32 %v351, 0.0
      %v436 = vadd.f32 %v354, 0.0
      %v437 = vadd.f32 %v357, 0.0
      %v438 = vadd.f32 %v360, 0.0
      %v439 = vadd.f32 %v363, 0.0
      %v440 = vadd.f32 %v366, 0.0
      %v441 = vadd.f32 %v369, 0.0
      %v442 = vadd.f32 %v372, 0.0
      %v443 = vadd.f32 %v375, 0.0
      %v444 = vadd.f32 %v378, 0.0
      %v445 = vadd.f32 %v381, 0.0
      %v446 = vadd.f32 %v384, 0.0
      %v447 = vadd.f32 %v387, 0.0
      %v448 = vadd.f32 %v390, 0.0
      %v449 = vadd.f32 %v393, 0.0
      %v450 = vadd.f32 %v396, 0.0
      %v451 = vadd.f32 %v399, 0.0
      %v452 = vadd.f32 %v402, 0.0
      %v453 = vadd.f32 %v405, 0.0
      %v454 = vadd.f32 %v408, 0.0
      %v455 = vadd.f32 %v411, 0.0
      %v456 = vadd.f32 %v414, 0.0
      %v457 = vadd.f32 %v417, 0.0
      %v458 = vadd.f32 %v420, 0.0
      %v459 = vadd.f32 %v423, 0.0
      %v460 = vadd.f32 %v426, 0.0
      %v461 = vadd.f32 %v429, 0.0
      %v462 = vperm.slane %v227, 0
      %v463 = vmul.f32 %v268, %v462
      %v464 = vmul.f32 %v269, %v462
      %v465 = vmul.f32 %v270, %v462
      %v466 = vmul.f32 %v271, %v462
      %v467 = vmul.f32 %v272, %v462
      %v468 = vmul.f32 %v273, %v462
      %v469 = vmul.f32 %v274, %v462
      %v470 = vmul.f32 %v275, %v462
      %v471 = vmul.f32 %v276, %v462
      %v472 = vmul.f32 %v277, %v462
      %v473 = vmul.f32 %v278, %v462
      %v474 = vmul.f32 %v279, %v462
      %v475 = vmul.f32 %v280, %v462
      %v476 = vmul.f32 %v281, %v462
      %v477 = vmul.f32 %v282, %v462
      %v478 = vmul.f32 %v283, %v462
      %v479 = vmul.f32 %v284, %v462
      %v480 = vmul.f32 %v285, %v462
      %v481 = vmul.f32 %v286, %v462
      %v482 = vmul.f32 %v287, %v462
      %v483 = vmul.f32 %v288, %v462
      %v484 = vmul.f32 %v289, %v462
      %v485 = vmul.f32 %v290, %v462
      %v486 = vmul.f32 %v291, %v462
      %v487 = vmul.f32 %v292, %v462
      %v488 = vmul.f32 %v293, %v462
      %v489 = vmul.f32 %v294, %v462
      %v490 = vmul.f32 %v295, %v462
      %v491 = vmul.f32 %v296, %v462
      %v492 = vmul.f32 %v297, %v462
      %v493 = vmul.f32 %v298, %v462
      %v494 = vmul.f32 %v299, %v462
      %v495 = vsel %vm333, %v463, 0.0
      %496 = vadd.xlane.f32.xlu0 %v495
      %v497 = vpop.xlane.xlu0 %496
      %v498 = vsel %vm333, %v464, 0.0
      %499 = vadd.xlane.f32.xlu0 %v498
      %v500 = vpop.xlane.xlu0 %499
      %v501 = vsel %vm333, %v465, 0.0
      %502 = vadd.xlane.f32.xlu0 %v501
      %v503 = vpop.xlane.xlu0 %502
      %v504 = vsel %vm333, %v466, 0.0
      %505 = vadd.xlane.f32.xlu0 %v504
      %v506 = vpop.xlane.xlu0 %505
      %v507 = vsel %vm333, %v467, 0.0
      %508 = vadd.xlane.f32.xlu0 %v507
      %v509 = vpop.xlane.xlu0 %508
      %v510 = vsel %vm333, %v468, 0.0
      %511 = vadd.xlane.f32.xlu0 %v510
      %v512 = vpop.xlane.xlu0 %511
      %v513 = vsel %vm333, %v469, 0.0
      %514 = vadd.xlane.f32.xlu0 %v513
      %v515 = vpop.xlane.xlu0 %514
      %v516 = vsel %vm333, %v470, 0.0
      %517 = vadd.xlane.f32.xlu0 %v516
      %v518 = vpop.xlane.xlu0 %517
      %v519 = vsel %vm333, %v471, 0.0
      %520 = vadd.xlane.f32.xlu0 %v519
      %v521 = vpop.xlane.xlu0 %520
      %v522 = vsel %vm333, %v472, 0.0
      %523 = vadd.xlane.f32.xlu0 %v522
      %v524 = vpop.xlane.xlu0 %523
      %v525 = vsel %vm333, %v473, 0.0
      %526 = vadd.xlane.f32.xlu0 %v525
      %v527 = vpop.xlane.xlu0 %526
      %v528 = vsel %vm333, %v474, 0.0
      %529 = vadd.xlane.f32.xlu0 %v528
      %v530 = vpop.xlane.xlu0 %529
      %v531 = vsel %vm333, %v475, 0.0
      %532 = vadd.xlane.f32.xlu0 %v531
      %v533 = vpop.xlane.xlu0 %532
      %v534 = vsel %vm333, %v476, 0.0
      %535 = vadd.xlane.f32.xlu0 %v534
      %v536 = vpop.xlane.xlu0 %535
      %v537 = vsel %vm333, %v477, 0.0
      %538 = vadd.xlane.f32.xlu0 %v537
      %v539 = vpop.xlane.xlu0 %538
      %v540 = vsel %vm333, %v478, 0.0
      %541 = vadd.xlane.f32.xlu0 %v540
      %v542 = vpop.xlane.xlu0 %541
      %v543 = vsel %vm333, %v479, 0.0
      %544 = vadd.xlane.f32.xlu0 %v543
      %v545 = vpop.xlane.xlu0 %544
      %v546 = vsel %vm333, %v480, 0.0
      %547 = vadd.xlane.f32.xlu0 %v546
      %v548 = vpop.xlane.xlu0 %547
      %v549 = vsel %vm333, %v481, 0.0
      %550 = vadd.xlane.f32.xlu0 %v549
      %v551 = vpop.xlane.xlu0 %550
      %v552 = vsel %vm333, %v482, 0.0
      %553 = vadd.xlane.f32.xlu0 %v552
      %v554 = vpop.xlane.xlu0 %553
      %v555 = vsel %vm333, %v483, 0.0
      %556 = vadd.xlane.f32.xlu0 %v555
      %v557 = vpop.xlane.xlu0 %556
      %v558 = vsel %vm333, %v484, 0.0
      %559 = vadd.xlane.f32.xlu0 %v558
      %v560 = vpop.xlane.xlu0 %559
      %v561 = vsel %vm333, %v485, 0.0
      %562 = vadd.xlane.f32.xlu0 %v561
      %v563 = vpop.xlane.xlu0 %562
      %v564 = vsel %vm333, %v486, 0.0
      %565 = vadd.xlane.f32.xlu0 %v564
      %v566 = vpop.xlane.xlu0 %565
      %v567 = vsel %vm333, %v487, 0.0
      %568 = vadd.xlane.f32.xlu0 %v567
      %v569 = vpop.xlane.xlu0 %568
      %v570 = vsel %vm333, %v488, 0.0
      %571 = vadd.xlane.f32.xlu0 %v570
      %v572 = vpop.xlane.xlu0 %571
      %v573 = vsel %vm333, %v489, 0.0
      %574 = vadd.xlane.f32.xlu0 %v573
      %v575 = vpop.xlane.xlu0 %574
      %v576 = vsel %vm333, %v490, 0.0
      %577 = vadd.xlane.f32.xlu0 %v576
      %v578 = vpop.xlane.xlu0 %577
      %v579 = vsel %vm333, %v491, 0.0
      %580 = vadd.xlane.f32.xlu0 %v579
      %v581 = vpop.xlane.xlu0 %580
      %v582 = vsel %vm333, %v492, 0.0
      %583 = vadd.xlane.f32.xlu0 %v582
      %v584 = vpop.xlane.xlu0 %583
      %v585 = vsel %vm333, %v493, 0.0
      %586 = vadd.xlane.f32.xlu0 %v585
      %v587 = vpop.xlane.xlu0 %586
      %v588 = vsel %vm333, %v494, 0.0
      %589 = vadd.xlane.f32.xlu0 %v588
      %v590 = vpop.xlane.xlu0 %589
      %v591 = vadd.f32 %v430, %v497
      %v592 = vadd.f32 %v431, %v500
      %v593 = vadd.f32 %v432, %v503
      %v594 = vadd.f32 %v433, %v506
      %v595 = vadd.f32 %v434, %v509
      %v596 = vadd.f32 %v435, %v512
      %v597 = vadd.f32 %v436, %v515
      %v598 = vadd.f32 %v437, %v518
      %v599 = vadd.f32 %v438, %v521
      %v600 = vadd.f32 %v439, %v524
      %v601 = vadd.f32 %v440, %v527
      %v602 = vadd.f32 %v441, %v530
      %v603 = vadd.f32 %v442, %v533
      %v604 = vadd.f32 %v443, %v536
      %v605 = vadd.f32 %v444, %v539
      %v606 = vadd.f32 %v445, %v542
      %v607 = vadd.f32 %v446, %v545
      %v608 = vadd.f32 %v447, %v548
      %v609 = vadd.f32 %v448, %v551
      %v610 = vadd.f32 %v449, %v554
      %v611 = vadd.f32 %v450, %v557
      %v612 = vadd.f32 %v451, %v560
      %v613 = vadd.f32 %v452, %v563
      %v614 = vadd.f32 %v453, %v566
      %v615 = vadd.f32 %v454, %v569
      %v616 = vadd.f32 %v455, %v572
      %v617 = vadd.f32 %v456, %v575
      %v618 = vadd.f32 %v457, %v578
      %v619 = vadd.f32 %v458, %v581
      %v620 = vadd.f32 %v459, %v584
      %v621 = vadd.f32 %v460, %v587
      %v622 = vadd.f32 %v461, %v590
      %v623 = vperm.slane %v218, 1
      %v624 = vmul.f32 %v236, %v623
      %v625 = vmul.f32 %v237, %v623
      %v626 = vmul.f32 %v238, %v623
      %v627 = vmul.f32 %v239, %v623
      %v628 = vmul.f32 %v240, %v623
      %v629 = vmul.f32 %v241, %v623
      %v630 = vmul.f32 %v242, %v623
      %v631 = vmul.f32 %v243, %v623
      %v632 = vmul.f32 %v244, %v623
      %v633 = vmul.f32 %v245, %v623
      %v634 = vmul.f32 %v246, %v623
      %v635 = vmul.f32 %v247, %v623
      %v636 = vmul.f32 %v248, %v623
      %v637 = vmul.f32 %v249, %v623
      %v638 = vmul.f32 %v250, %v623
      %v639 = vmul.f32 %v251, %v623
      %v640 = vmul.f32 %v252, %v623
      %v641 = vmul.f32 %v253, %v623
      %v642 = vmul.f32 %v254, %v623
      %v643 = vmul.f32 %v255, %v623
      %v644 = vmul.f32 %v256, %v623
      %v645 = vmul.f32 %v257, %v623
      %v646 = vmul.f32 %v258, %v623
      %v647 = vmul.f32 %v259, %v623
      %v648 = vmul.f32 %v260, %v623
      %v649 = vmul.f32 %v261, %v623
      %v650 = vmul.f32 %v262, %v623
      %v651 = vmul.f32 %v263, %v623
      %v652 = vmul.f32 %v264, %v623
      %v653 = vmul.f32 %v265, %v623
      %v654 = vmul.f32 %v266, %v623
      %v655 = vmul.f32 %v267, %v623
      %v656 = vsel %vm333, %v624, 0.0
      %657 = vadd.xlane.f32.xlu0 %v656
      %v658 = vpop.xlane.xlu0 %657
      %v659 = vsel %vm333, %v625, 0.0
      %660 = vadd.xlane.f32.xlu0 %v659
      %v661 = vpop.xlane.xlu0 %660
      %v662 = vsel %vm333, %v626, 0.0
      %663 = vadd.xlane.f32.xlu0 %v662
      %v664 = vpop.xlane.xlu0 %663
      %v665 = vsel %vm333, %v627, 0.0
      %666 = vadd.xlane.f32.xlu0 %v665
      %v667 = vpop.xlane.xlu0 %666
      %v668 = vsel %vm333, %v628, 0.0
      %669 = vadd.xlane.f32.xlu0 %v668
      %v670 = vpop.xlane.xlu0 %669
      %v671 = vsel %vm333, %v629, 0.0
      %672 = vadd.xlane.f32.xlu0 %v671
      %v673 = vpop.xlane.xlu0 %672
      %v674 = vsel %vm333, %v630, 0.0
      %675 = vadd.xlane.f32.xlu0 %v674
      %v676 = vpop.xlane.xlu0 %675
      %v677 = vsel %vm333, %v631, 0.0
      %678 = vadd.xlane.f32.xlu0 %v677
      %v679 = vpop.xlane.xlu0 %678
      %v680 = vsel %vm333, %v632, 0.0
      %681 = vadd.xlane.f32.xlu0 %v680
      %v682 = vpop.xlane.xlu0 %681
      %v683 = vsel %vm333, %v633, 0.0
      %684 = vadd.xlane.f32.xlu0 %v683
      %v685 = vpop.xlane.xlu0 %684
      %v686 = vsel %vm333, %v634, 0.0
      %687 = vadd.xlane.f32.xlu0 %v686
      %v688 = vpop.xlane.xlu0 %687
      %v689 = vsel %vm333, %v635, 0.0
      %690 = vadd.xlane.f32.xlu0 %v689
      %v691 = vpop.xlane.xlu0 %690
      %v692 = vsel %vm333, %v636, 0.0
      %693 = vadd.xlane.f32.xlu0 %v692
      %v694 = vpop.xlane.xlu0 %693
      %v695 = vsel %vm333, %v637, 0.0
      %696 = vadd.xlane.f32.xlu0 %v695
      %v697 = vpop.xlane.xlu0 %696
      %v698 = vsel %vm333, %v638, 0.0
      %699 = vadd.xlane.f32.xlu0 %v698
      %v700 = vpop.xlane.xlu0 %699
      %v701 = vsel %vm333, %v639, 0.0
      %702 = vadd.xlane.f32.xlu0 %v701
      %v703 = vpop.xlane.xlu0 %702
      %v704 = vsel %vm333, %v640, 0.0
      %705 = vadd.xlane.f32.xlu0 %v704
      %v706 = vpop.xlane.xlu0 %705
      %v707 = vsel %vm333, %v641, 0.0
      %708 = vadd.xlane.f32.xlu0 %v707
      %v709 = vpop.xlane.xlu0 %708
      %v710 = vsel %vm333, %v642, 0.0
      %711 = vadd.xlane.f32.xlu0 %v710
      %v712 = vpop.xlane.xlu0 %711
      %v713 = vsel %vm333, %v643, 0.0
      %714 = vadd.xlane.f32.xlu0 %v713
      %v715 = vpop.xlane.xlu0 %714
      %v716 = vsel %vm333, %v644, 0.0
      %717 = vadd.xlane.f32.xlu0 %v716
      %v718 = vpop.xlane.xlu0 %717
      %v719 = vsel %vm333, %v645, 0.0
      %720 = vadd.xlane.f32.xlu0 %v719
      %v721 = vpop.xlane.xlu0 %720
      %v722 = vsel %vm333, %v646, 0.0
      %723 = vadd.xlane.f32.xlu0 %v722
      %v724 = vpop.xlane.xlu0 %723
      %v725 = vsel %vm333, %v647, 0.0
      %726 = vadd.xlane.f32.xlu0 %v725
      %v727 = vpop.xlane.xlu0 %726
      %v728 = vsel %vm333, %v648, 0.0
      %729 = vadd.xlane.f32.xlu0 %v728
      %v730 = vpop.xlane.xlu0 %729
      %v731 = vsel %vm333, %v649, 0.0
      %732 = vadd.xlane.f32.xlu0 %v731
      %v733 = vpop.xlane.xlu0 %732
      %v734 = vsel %vm333, %v650, 0.0
      %735 = vadd.xlane.f32.xlu0 %v734
      %v736 = vpop.xlane.xlu0 %735
      %v737 = vsel %vm333, %v651, 0.0
      %738 = vadd.xlane.f32.xlu0 %v737
      %v739 = vpop.xlane.xlu0 %738
      %v740 = vsel %vm333, %v652, 0.0
      %741 = vadd.xlane.f32.xlu0 %v740
      %v742 = vpop.xlane.xlu0 %741
      %v743 = vsel %vm333, %v653, 0.0
      %744 = vadd.xlane.f32.xlu0 %v743
      %v745 = vpop.xlane.xlu0 %744
      %v746 = vsel %vm333, %v654, 0.0
      %747 = vadd.xlane.f32.xlu0 %v746
      %v748 = vpop.xlane.xlu0 %747
      %v749 = vsel %vm333, %v655, 0.0
      %750 = vadd.xlane.f32.xlu0 %v749
      %v751 = vpop.xlane.xlu0 %750
      %v752 = vadd.f32 %v658, 0.0
      %v753 = vadd.f32 %v661, 0.0
      %v754 = vadd.f32 %v664, 0.0
      %v755 = vadd.f32 %v667, 0.0
      %v756 = vadd.f32 %v670, 0.0
      %v757 = vadd.f32 %v673, 0.0
      %v758 = vadd.f32 %v676, 0.0
      %v759 = vadd.f32 %v679, 0.0
      %v760 = vadd.f32 %v682, 0.0
      %v761 = vadd.f32 %v685, 0.0
      %v762 = vadd.f32 %v688, 0.0
      %v763 = vadd.f32 %v691, 0.0
      %v764 = vadd.f32 %v694, 0.0
      %v765 = vadd.f32 %v697, 0.0
      %v766 = vadd.f32 %v700, 0.0
      %v767 = vadd.f32 %v703, 0.0
      %v768 = vadd.f32 %v706, 0.0
      %v769 = vadd.f32 %v709, 0.0
      %v770 = vadd.f32 %v712, 0.0
      %v771 = vadd.f32 %v715, 0.0
      %v772 = vadd.f32 %v718, 0.0
      %v773 = vadd.f32 %v721, 0.0
      %v774 = vadd.f32 %v724, 0.0
      %v775 = vadd.f32 %v727, 0.0
      %v776 = vadd.f32 %v730, 0.0
      %v777 = vadd.f32 %v733, 0.0
      %v778 = vadd.f32 %v736, 0.0
      %v779 = vadd.f32 %v739, 0.0
      %v780 = vadd.f32 %v742, 0.0
      %v781 = vadd.f32 %v745, 0.0
      %v782 = vadd.f32 %v748, 0.0
      %v783 = vadd.f32 %v751, 0.0
      %v784 = vperm.slane %v227, 1
      %v785 = vmul.f32 %v268, %v784
      %v786 = vmul.f32 %v269, %v784
      %v787 = vmul.f32 %v270, %v784
      %v788 = vmul.f32 %v271, %v784
      %v789 = vmul.f32 %v272, %v784
      %v790 = vmul.f32 %v273, %v784
      %v791 = vmul.f32 %v274, %v784
      %v792 = vmul.f32 %v275, %v784
      %v793 = vmul.f32 %v276, %v784
      %v794 = vmul.f32 %v277, %v784
      %v795 = vmul.f32 %v278, %v784
      %v796 = vmul.f32 %v279, %v784
      %v797 = vmul.f32 %v280, %v784
      %v798 = vmul.f32 %v281, %v784
      %v799 = vmul.f32 %v282, %v784
      %v800 = vmul.f32 %v283, %v784
      %v801 = vmul.f32 %v284, %v784
      %v802 = vmul.f32 %v285, %v784
      %v803 = vmul.f32 %v286, %v784
      %v804 = vmul.f32 %v287, %v784
      %v805 = vmul.f32 %v288, %v784
      %v806 = vmul.f32 %v289, %v784
      %v807 = vmul.f32 %v290, %v784
      %v808 = vmul.f32 %v291, %v784
      %v809 = vmul.f32 %v292, %v784
      %v810 = vmul.f32 %v293, %v784
      %v811 = vmul.f32 %v294, %v784
      %v812 = vmul.f32 %v295, %v784
      %v813 = vmul.f32 %v296, %v784
      %v814 = vmul.f32 %v297, %v784
      %v815 = vmul.f32 %v298, %v784
      %v816 = vmul.f32 %v299, %v784
      %v817 = vsel %vm333, %v785, 0.0
      %818 = vadd.xlane.f32.xlu0 %v817
      %v819 = vpop.xlane.xlu0 %818
      %v820 = vsel %vm333, %v786, 0.0
      %821 = vadd.xlane.f32.xlu0 %v820
      %v822 = vpop.xlane.xlu0 %821
      %v823 = vsel %vm333, %v787, 0.0
      %824 = vadd.xlane.f32.xlu0 %v823
      %v825 = vpop.xlane.xlu0 %824
      %v826 = vsel %vm333, %v788, 0.0
      %827 = vadd.xlane.f32.xlu0 %v826
      %v828 = vpop.xlane.xlu0 %827
      %v829 = vsel %vm333, %v789, 0.0
      %830 = vadd.xlane.f32.xlu0 %v829
      %v831 = vpop.xlane.xlu0 %830
      %v832 = vsel %vm333, %v790, 0.0
      %833 = vadd.xlane.f32.xlu0 %v832
      %v834 = vpop.xlane.xlu0 %833
      %v835 = vsel %vm333, %v791, 0.0
      %836 = vadd.xlane.f32.xlu0 %v835
      %v837 = vpop.xlane.xlu0 %836
      %v838 = vsel %vm333, %v792, 0.0
      %839 = vadd.xlane.f32.xlu0 %v838
      %v840 = vpop.xlane.xlu0 %839
      %v841 = vsel %vm333, %v793, 0.0
      %842 = vadd.xlane.f32.xlu0 %v841
      %v843 = vpop.xlane.xlu0 %842
      %v844 = vsel %vm333, %v794, 0.0
      %845 = vadd.xlane.f32.xlu0 %v844
      %v846 = vpop.xlane.xlu0 %845
      %v847 = vsel %vm333, %v795, 0.0
      %848 = vadd.xlane.f32.xlu0 %v847
      %v849 = vpop.xlane.xlu0 %848
      %v850 = vsel %vm333, %v796, 0.0
      %851 = vadd.xlane.f32.xlu0 %v850
      %v852 = vpop.xlane.xlu0 %851
      %v853 = vsel %vm333, %v797, 0.0
      %854 = vadd.xlane.f32.xlu0 %v853
      %v855 = vpop.xlane.xlu0 %854
      %v856 = vsel %vm333, %v798, 0.0
      %857 = vadd.xlane.f32.xlu0 %v856
      %v858 = vpop.xlane.xlu0 %857
      %v859 = vsel %vm333, %v799, 0.0
      %860 = vadd.xlane.f32.xlu0 %v859
      %v861 = vpop.xlane.xlu0 %860
      %v862 = vsel %vm333, %v800, 0.0
      %863 = vadd.xlane.f32.xlu0 %v862
      %v864 = vpop.xlane.xlu0 %863
      %v865 = vsel %vm333, %v801, 0.0
      %866 = vadd.xlane.f32.xlu0 %v865
      %v867 = vpop.xlane.xlu0 %866
      %v868 = vsel %vm333, %v802, 0.0
      %869 = vadd.xlane.f32.xlu0 %v868
      %v870 = vpop.xlane.xlu0 %869
      %v871 = vsel %vm333, %v803, 0.0
      %872 = vadd.xlane.f32.xlu0 %v871
      %v873 = vpop.xlane.xlu0 %872
      %v874 = vsel %vm333, %v804, 0.0
      %875 = vadd.xlane.f32.xlu0 %v874
      %v876 = vpop.xlane.xlu0 %875
      %v877 = vsel %vm333, %v805, 0.0
      %878 = vadd.xlane.f32.xlu0 %v877
      %v879 = vpop.xlane.xlu0 %878
      %v880 = vsel %vm333, %v806, 0.0
      %881 = vadd.xlane.f32.xlu0 %v880
      %v882 = vpop.xlane.xlu0 %881
      %v883 = vsel %vm333, %v807, 0.0
      %884 = vadd.xlane.f32.xlu0 %v883
      %v885 = vpop.xlane.xlu0 %884
      %v886 = vsel %vm333, %v808, 0.0
      %887 = vadd.xlane.f32.xlu0 %v886
      %v888 = vpop.xlane.xlu0 %887
      %v889 = vsel %vm333, %v809, 0.0
      %890 = vadd.xlane.f32.xlu0 %v889
      %v891 = vpop.xlane.xlu0 %890
      %v892 = vsel %vm333, %v810, 0.0
      %893 = vadd.xlane.f32.xlu0 %v892
      %v894 = vpop.xlane.xlu0 %893
      %v895 = vsel %vm333, %v811, 0.0
      %896 = vadd.xlane.f32.xlu0 %v895
      %v897 = vpop.xlane.xlu0 %896
      %v898 = vsel %vm333, %v812, 0.0
      %899 = vadd.xlane.f32.xlu0 %v898
      %v900 = vpop.xlane.xlu0 %899
      %v901 = vsel %vm333, %v813, 0.0
      %902 = vadd.xlane.f32.xlu0 %v901
      %v903 = vpop.xlane.xlu0 %902
      %v904 = vsel %vm333, %v814, 0.0
      %905 = vadd.xlane.f32.xlu0 %v904
      %v906 = vpop.xlane.xlu0 %905
      %v907 = vsel %vm333, %v815, 0.0
      %908 = vadd.xlane.f32.xlu0 %v907
      %v909 = vpop.xlane.xlu0 %908
      %v910 = vsel %vm333, %v816, 0.0
      %911 = vadd.xlane.f32.xlu0 %v910
      %v912 = vpop.xlane.xlu0 %911
      %v913 = vadd.f32 %v752, %v819
      %v914 = vadd.f32 %v753, %v822
      %v915 = vadd.f32 %v754, %v825
      %v916 = vadd.f32 %v755, %v828
      %v917 = vadd.f32 %v756, %v831
      %v918 = vadd.f32 %v757, %v834
      %v919 = vadd.f32 %v758, %v837
      %v920 = vadd.f32 %v759, %v840
      %v921 = vadd.f32 %v760, %v843
      %v922 = vadd.f32 %v761, %v846
      %v923 = vadd.f32 %v762, %v849
      %v924 = vadd.f32 %v763, %v852
      %v925 = vadd.f32 %v764, %v855
      %v926 = vadd.f32 %v765, %v858
      %v927 = vadd.f32 %v766, %v861
      %v928 = vadd.f32 %v767, %v864
      %v929 = vadd.f32 %v768, %v867
      %v930 = vadd.f32 %v769, %v870
      %v931 = vadd.f32 %v770, %v873
      %v932 = vadd.f32 %v771, %v876
      %v933 = vadd.f32 %v772, %v879
      %v934 = vadd.f32 %v773, %v882
      %v935 = vadd.f32 %v774, %v885
      %v936 = vadd.f32 %v775, %v888
      %v937 = vadd.f32 %v776, %v891
      %v938 = vadd.f32 %v777, %v894
      %v939 = vadd.f32 %v778, %v897
      %v940 = vadd.f32 %v779, %v900
      %v941 = vadd.f32 %v780, %v903
      %v942 = vadd.f32 %v781, %v906
      %v943 = vadd.f32 %v782, %v909
      %v944 = vadd.f32 %v783, %v912
      %v945 = vld [vmem:[%s207 + $0x1] sm:$0xff]
      %v946 = vld [vmem:[%s207 + $0x9] sm:$0xff]
      %v947 = vld [vmem:[%s207 + $0x19] sm:$0xff]
      %v948 = vld [vmem:[%s207 + $0x21] sm:$0xff]
      %v949 = vld [vmem:[%s207 + $0x31] sm:$0xff]
      %v950 = vld [vmem:[%s207 + $0x39] sm:$0xff]
      %v951 = vld [vmem:[%s207 + $0x49] sm:$0xff]
      %v952 = vld [vmem:[%s207 + $0x51] sm:$0xff]
      %v953 = vld [vmem:[%s207 + $0x61] sm:$0xff]
      %v954 = vld [vmem:[%s207 + $0x69] sm:$0xff]
      %v955 = vld [vmem:[%s207 + $0x79] sm:$0xff]
      %v956 = vld [vmem:[%s207 + $0x81] sm:$0xff]
      %v957 = vld [vmem:[%s207 + $0x91] sm:$0xff]
      %v958 = vld [vmem:[%s207 + $0x99] sm:$0xff]
      %v959 = vld [vmem:[%s207 + $0xa9] sm:$0xff]
      %v960 = vld [vmem:[%s207 + $0xb1] sm:$0xff]
      %v961 = vld [vmem:[%s207 + $0xc1] sm:$0xff]
      %v962 = vld [vmem:[%s207 + $0xc9] sm:$0xff]
      %v963 = vld [vmem:[%s207 + $0xd9] sm:$0xff]
      %v964 = vld [vmem:[%s207 + $0xe1] sm:$0xff]
      %v965 = vld [vmem:[%s207 + $0xf1] sm:$0xff]
      %v966 = vld [vmem:[%s207 + $0xf9] sm:$0xff]
      %v967 = vld [vmem:[%s207 + $0x109] sm:$0xff]
      %v968 = vld [vmem:[%s207 + $0x111] sm:$0xff]
      %v969 = vld [vmem:[%s207 + $0x121] sm:$0xff]
      %v970 = vld [vmem:[%s207 + $0x129] sm:$0xff]
      %v971 = vld [vmem:[%s207 + $0x139] sm:$0xff]
      %v972 = vld [vmem:[%s207 + $0x141] sm:$0xff]
      %v973 = vld [vmem:[%s207 + $0x151] sm:$0xff]
      %v974 = vld [vmem:[%s207 + $0x159] sm:$0xff]
      %v975 = vld [vmem:[%s207 + $0x169] sm:$0xff]
      %v976 = vld [vmem:[%s207 + $0x171] sm:$0xff]
      %v977 = vld [vmem:[%s212 + $0x1] sm:$0xff]
      %v978 = vld [vmem:[%s212 + $0x9] sm:$0xff]
      %v979 = vld [vmem:[%s212 + $0x19] sm:$0xff]
      %v980 = vld [vmem:[%s212 + $0x21] sm:$0xff]
      %v981 = vld [vmem:[%s212 + $0x31] sm:$0xff]
      %v982 = vld [vmem:[%s212 + $0x39] sm:$0xff]
      %v983 = vld [vmem:[%s212 + $0x49] sm:$0xff]
      %v984 = vld [vmem:[%s212 + $0x51] sm:$0xff]
      %v985 = vld [vmem:[%s212 + $0x61] sm:$0xff]
      %v986 = vld [vmem:[%s212 + $0x69] sm:$0xff]
      %v987 = vld [vmem:[%s212 + $0x79] sm:$0xff]
      %v988 = vld [vmem:[%s212 + $0x81] sm:$0xff]
      %v989 = vld [vmem:[%s212 + $0x91] sm:$0xff]
      %v990 = vld [vmem:[%s212 + $0x99] sm:$0xff]
      %v991 = vld [vmem:[%s212 + $0xa9] sm:$0xff]
      %v992 = vld [vmem:[%s212 + $0xb1] sm:$0xff]
      %v993 = vld [vmem:[%s212 + $0xc1] sm:$0xff]
      %v994 = vld [vmem:[%s212 + $0xc9] sm:$0xff]
      %v995 = vld [vmem:[%s212 + $0xd9] sm:$0xff]
      %v996 = vld [vmem:[%s212 + $0xe1] sm:$0xff]
      %v997 = vld [vmem:[%s212 + $0xf1] sm:$0xff]
      %v998 = vld [vmem:[%s212 + $0xf9] sm:$0xff]
      %v999 = vld [vmem:[%s212 + $0x109] sm:$0xff]
      %v1000 = vld [vmem:[%s212 + $0x111] sm:$0xff]
      %v1001 = vld [vmem:[%s212 + $0x121] sm:$0xff]
      %v1002 = vld [vmem:[%s212 + $0x129] sm:$0xff]
      %v1003 = vld [vmem:[%s212 + $0x139] sm:$0xff]
      %v1004 = vld [vmem:[%s212 + $0x141] sm:$0xff]
      %v1005 = vld [vmem:[%s212 + $0x151] sm:$0xff]
      %v1006 = vld [vmem:[%s212 + $0x159] sm:$0xff]
      %v1007 = vld [vmem:[%s212 + $0x169] sm:$0xff]
      %v1008 = vld [vmem:[%s212 + $0x171] sm:$0xff]
      %v1009 = vperm.slane %v219, 0
      %v1010 = vmul.f32 %v945, %v1009
      %v1011 = vmul.f32 %v946, %v1009
      %v1012 = vmul.f32 %v947, %v1009
      %v1013 = vmul.f32 %v948, %v1009
      %v1014 = vmul.f32 %v949, %v1009
      %v1015 = vmul.f32 %v950, %v1009
      %v1016 = vmul.f32 %v951, %v1009
      %v1017 = vmul.f32 %v952, %v1009
      %v1018 = vmul.f32 %v953, %v1009
      %v1019 = vmul.f32 %v954, %v1009
      %v1020 = vmul.f32 %v955, %v1009
      %v1021 = vmul.f32 %v956, %v1009
      %v1022 = vmul.f32 %v957, %v1009
      %v1023 = vmul.f32 %v958, %v1009
      %v1024 = vmul.f32 %v959, %v1009
      %v1025 = vmul.f32 %v960, %v1009
      %v1026 = vmul.f32 %v961, %v1009
      %v1027 = vmul.f32 %v962, %v1009
      %v1028 = vmul.f32 %v963, %v1009
      %v1029 = vmul.f32 %v964, %v1009
      %v1030 = vmul.f32 %v965, %v1009
      %v1031 = vmul.f32 %v966, %v1009
      %v1032 = vmul.f32 %v967, %v1009
      %v1033 = vmul.f32 %v968, %v1009
      %v1034 = vmul.f32 %v969, %v1009
      %v1035 = vmul.f32 %v970, %v1009
      %v1036 = vmul.f32 %v971, %v1009
      %v1037 = vmul.f32 %v972, %v1009
      %v1038 = vmul.f32 %v973, %v1009
      %v1039 = vmul.f32 %v974, %v1009
      %v1040 = vmul.f32 %v975, %v1009
      %v1041 = vmul.f32 %v976, %v1009
      %v1042 = vsel %vm333, %v1010, 0.0
      %1043 = vadd.xlane.f32.xlu0 %v1042
      %v1044 = vpop.xlane.xlu0 %1043
      %v1045 = vsel %vm333, %v1011, 0.0
      %1046 = vadd.xlane.f32.xlu0 %v1045
      %v1047 = vpop.xlane.xlu0 %1046
      %v1048 = vsel %vm333, %v1012, 0.0
      %1049 = vadd.xlane.f32.xlu0 %v1048
      %v1050 = vpop.xlane.xlu0 %1049
      %v1051 = vsel %vm333, %v1013, 0.0
      %1052 = vadd.xlane.f32.xlu0 %v1051
      %v1053 = vpop.xlane.xlu0 %1052
      %v1054 = vsel %vm333, %v1014, 0.0
      %1055 = vadd.xlane.f32.xlu0 %v1054
      %v1056 = vpop.xlane.xlu0 %1055
      %v1057 = vsel %vm333, %v1015, 0.0
      %1058 = vadd.xlane.f32.xlu0 %v1057
      %v1059 = vpop.xlane.xlu0 %1058
      %v1060 = vsel %vm333, %v1016, 0.0
      %1061 = vadd.xlane.f32.xlu0 %v1060
      %v1062 = vpop.xlane.xlu0 %1061
      %v1063 = vsel %vm333, %v1017, 0.0
      %1064 = vadd.xlane.f32.xlu0 %v1063
      %v1065 = vpop.xlane.xlu0 %1064
      %v1066 = vsel %vm333, %v1018, 0.0
      %1067 = vadd.xlane.f32.xlu0 %v1066
      %v1068 = vpop.xlane.xlu0 %1067
      %v1069 = vsel %vm333, %v1019, 0.0
      %1070 = vadd.xlane.f32.xlu0 %v1069
      %v1071 = vpop.xlane.xlu0 %1070
      %v1072 = vsel %vm333, %v1020, 0.0
      %1073 = vadd.xlane.f32.xlu0 %v1072
      %v1074 = vpop.xlane.xlu0 %1073
      %v1075 = vsel %vm333, %v1021, 0.0
      %1076 = vadd.xlane.f32.xlu0 %v1075
      %v1077 = vpop.xlane.xlu0 %1076
      %v1078 = vsel %vm333, %v1022, 0.0
      %1079 = vadd.xlane.f32.xlu0 %v1078
      %v1080 = vpop.xlane.xlu0 %1079
      %v1081 = vsel %vm333, %v1023, 0.0
      %1082 = vadd.xlane.f32.xlu0 %v1081
      %v1083 = vpop.xlane.xlu0 %1082
      %v1084 = vsel %vm333, %v1024, 0.0
      %1085 = vadd.xlane.f32.xlu0 %v1084
      %v1086 = vpop.xlane.xlu0 %1085
      %v1087 = vsel %vm333, %v1025, 0.0
      %1088 = vadd.xlane.f32.xlu0 %v1087
      %v1089 = vpop.xlane.xlu0 %1088
      %v1090 = vsel %vm333, %v1026, 0.0
      %1091 = vadd.xlane.f32.xlu0 %v1090
      %v1092 = vpop.xlane.xlu0 %1091
      %v1093 = vsel %vm333, %v1027, 0.0
      %1094 = vadd.xlane.f32.xlu0 %v1093
      %v1095 = vpop.xlane.xlu0 %1094
      %v1096 = vsel %vm333, %v1028, 0.0
      %1097 = vadd.xlane.f32.xlu0 %v1096
      %v1098 = vpop.xlane.xlu0 %1097
      %v1099 = vsel %vm333, %v1029, 0.0
      %1100 = vadd.xlane.f32.xlu0 %v1099
      %v1101 = vpop.xlane.xlu0 %1100
      %v1102 = vsel %vm333, %v1030, 0.0
      %1103 = vadd.xlane.f32.xlu0 %v1102
      %v1104 = vpop.xlane.xlu0 %1103
      %v1105 = vsel %vm333, %v1031, 0.0
      %1106 = vadd.xlane.f32.xlu0 %v1105
      %v1107 = vpop.xlane.xlu0 %1106
      %v1108 = vsel %vm333, %v1032, 0.0
      %1109 = vadd.xlane.f32.xlu0 %v1108
      %v1110 = vpop.xlane.xlu0 %1109
      %v1111 = vsel %vm333, %v1033, 0.0
      %1112 = vadd.xlane.f32.xlu0 %v1111
      %v1113 = vpop.xlane.xlu0 %1112
      %v1114 = vsel %vm333, %v1034, 0.0
      %1115 = vadd.xlane.f32.xlu0 %v1114
      %v1116 = vpop.xlane.xlu0 %1115
      %v1117 = vsel %vm333, %v1035, 0.0
      %1118 = vadd.xlane.f32.xlu0 %v1117
      %v1119 = vpop.xlane.xlu0 %1118
      %v1120 = vsel %vm333, %v1036, 0.0
      %1121 = vadd.xlane.f32.xlu0 %v1120
      %v1122 = vpop.xlane.xlu0 %1121
      %v1123 = vsel %vm333, %v1037, 0.0
      %1124 = vadd.xlane.f32.xlu0 %v1123
      %v1125 = vpop.xlane.xlu0 %1124
      %v1126 = vsel %vm333, %v1038, 0.0
      %1127 = vadd.xlane.f32.xlu0 %v1126
      %v1128 = vpop.xlane.xlu0 %1127
      %v1129 = vsel %vm333, %v1039, 0.0
      %1130 = vadd.xlane.f32.xlu0 %v1129
      %v1131 = vpop.xlane.xlu0 %1130
      %v1132 = vsel %vm333, %v1040, 0.0
      %1133 = vadd.xlane.f32.xlu0 %v1132
      %v1134 = vpop.xlane.xlu0 %1133
      %v1135 = vsel %vm333, %v1041, 0.0
      %1136 = vadd.xlane.f32.xlu0 %v1135
      %v1137 = vpop.xlane.xlu0 %1136
      %v1138 = vadd.f32 %v591, %v1044
      %v1139 = vadd.f32 %v592, %v1047
      %v1140 = vadd.f32 %v593, %v1050
      %v1141 = vadd.f32 %v594, %v1053
      %v1142 = vadd.f32 %v595, %v1056
      %v1143 = vadd.f32 %v596, %v1059
      %v1144 = vadd.f32 %v597, %v1062
      %v1145 = vadd.f32 %v598, %v1065
      %v1146 = vadd.f32 %v599, %v1068
      %v1147 = vadd.f32 %v600, %v1071
      %v1148 = vadd.f32 %v601, %v1074
      %v1149 = vadd.f32 %v602, %v1077
      %v1150 = vadd.f32 %v603, %v1080
      %v1151 = vadd.f32 %v604, %v1083
      %v1152 = vadd.f32 %v605, %v1086
      %v1153 = vadd.f32 %v606, %v1089
      %v1154 = vadd.f32 %v607, %v1092
      %v1155 = vadd.f32 %v608, %v1095
      %v1156 = vadd.f32 %v609, %v1098
      %v1157 = vadd.f32 %v610, %v1101
      %v1158 = vadd.f32 %v611, %v1104
      %v1159 = vadd.f32 %v612, %v1107
      %v1160 = vadd.f32 %v613, %v1110
      %v1161 = vadd.f32 %v614, %v1113
      %v1162 = vadd.f32 %v615, %v1116
      %v1163 = vadd.f32 %v616, %v1119
      %v1164 = vadd.f32 %v617, %v1122
      %v1165 = vadd.f32 %v618, %v1125
      %v1166 = vadd.f32 %v619, %v1128
      %v1167 = vadd.f32 %v620, %v1131
      %v1168 = vadd.f32 %v621, %v1134
      %v1169 = vadd.f32 %v622, %v1137
      %v1170 = vperm.slane %v228, 0
      %v1171 = vmul.f32 %v977, %v1170
      %v1172 = vmul.f32 %v978, %v1170
      %v1173 = vmul.f32 %v979, %v1170
      %v1174 = vmul.f32 %v980, %v1170
      %v1175 = vmul.f32 %v981, %v1170
      %v1176 = vmul.f32 %v982, %v1170
      %v1177 = vmul.f32 %v983, %v1170
      %v1178 = vmul.f32 %v984, %v1170
      %v1179 = vmul.f32 %v985, %v1170
      %v1180 = vmul.f32 %v986, %v1170
      %v1181 = vmul.f32 %v987, %v1170
      %v1182 = vmul.f32 %v988, %v1170
      %v1183 = vmul.f32 %v989, %v1170
      %v1184 = vmul.f32 %v990, %v1170
      %v1185 = vmul.f32 %v991, %v1170
      %v1186 = vmul.f32 %v992, %v1170
      %v1187 = vmul.f32 %v993, %v1170
      %v1188 = vmul.f32 %v994, %v1170
      %v1189 = vmul.f32 %v995, %v1170
      %v1190 = vmul.f32 %v996, %v1170
      %v1191 = vmul.f32 %v997, %v1170
      %v1192 = vmul.f32 %v998, %v1170
      %v1193 = vmul.f32 %v999, %v1170
      %v1194 = vmul.f32 %v1000, %v1170
      %v1195 = vmul.f32 %v1001, %v1170
      %v1196 = vmul.f32 %v1002, %v1170
      %v1197 = vmul.f32 %v1003, %v1170
      %v1198 = vmul.f32 %v1004, %v1170
      %v1199 = vmul.f32 %v1005, %v1170
      %v1200 = vmul.f32 %v1006, %v1170
      %v1201 = vmul.f32 %v1007, %v1170
      %v1202 = vmul.f32 %v1008, %v1170
      %v1203 = vsel %vm333, %v1171, 0.0
      %1204 = vadd.xlane.f32.xlu0 %v1203
      %v1205 = vpop.xlane.xlu0 %1204
      %v1206 = vsel %vm333, %v1172, 0.0
      %1207 = vadd.xlane.f32.xlu0 %v1206
      %v1208 = vpop.xlane.xlu0 %1207
      %v1209 = vsel %vm333, %v1173, 0.0
      %1210 = vadd.xlane.f32.xlu0 %v1209
      %v1211 = vpop.xlane.xlu0 %1210
      %v1212 = vsel %vm333, %v1174, 0.0
      %1213 = vadd.xlane.f32.xlu0 %v1212
      %v1214 = vpop.xlane.xlu0 %1213
      %v1215 = vsel %vm333, %v1175, 0.0
      %1216 = vadd.xlane.f32.xlu0 %v1215
      %v1217 = vpop.xlane.xlu0 %1216
      %v1218 = vsel %vm333, %v1176, 0.0
      %1219 = vadd.xlane.f32.xlu0 %v1218
      %v1220 = vpop.xlane.xlu0 %1219
      %v1221 = vsel %vm333, %v1177, 0.0
      %1222 = vadd.xlane.f32.xlu0 %v1221
      %v1223 = vpop.xlane.xlu0 %1222
      %v1224 = vsel %vm333, %v1178, 0.0
      %1225 = vadd.xlane.f32.xlu0 %v1224
      %v1226 = vpop.xlane.xlu0 %1225
      %v1227 = vsel %vm333, %v1179, 0.0
      %1228 = vadd.xlane.f32.xlu0 %v1227
      %v1229 = vpop.xlane.xlu0 %1228
      %v1230 = vsel %vm333, %v1180, 0.0
      %1231 = vadd.xlane.f32.xlu0 %v1230
      %v1232 = vpop.xlane.xlu0 %1231
      %v1233 = vsel %vm333, %v1181, 0.0
      %1234 = vadd.xlane.f32.xlu0 %v1233
      %v1235 = vpop.xlane.xlu0 %1234
      %v1236 = vsel %vm333, %v1182, 0.0
      %1237 = vadd.xlane.f32.xlu0 %v1236
      %v1238 = vpop.xlane.xlu0 %1237
      %v1239 = vsel %vm333, %v1183, 0.0
      %1240 = vadd.xlane.f32.xlu0 %v1239
      %v1241 = vpop.xlane.xlu0 %1240
      %v1242 = vsel %vm333, %v1184, 0.0
      %1243 = vadd.xlane.f32.xlu0 %v1242
      %v1244 = vpop.xlane.xlu0 %1243
      %v1245 = vsel %vm333, %v1185, 0.0
      %1246 = vadd.xlane.f32.xlu0 %v1245
      %v1247 = vpop.xlane.xlu0 %1246
      %v1248 = vsel %vm333, %v1186, 0.0
      %1249 = vadd.xlane.f32.xlu0 %v1248
      %v1250 = vpop.xlane.xlu0 %1249
      %v1251 = vsel %vm333, %v1187, 0.0
      %1252 = vadd.xlane.f32.xlu0 %v1251
      %v1253 = vpop.xlane.xlu0 %1252
      %v1254 = vsel %vm333, %v1188, 0.0
      %1255 = vadd.xlane.f32.xlu0 %v1254
      %v1256 = vpop.xlane.xlu0 %1255
      %v1257 = vsel %vm333, %v1189, 0.0
      %1258 = vadd.xlane.f32.xlu0 %v1257
      %v1259 = vpop.xlane.xlu0 %1258
      %v1260 = vsel %vm333, %v1190, 0.0
      %1261 = vadd.xlane.f32.xlu0 %v1260
      %v1262 = vpop.xlane.xlu0 %1261
      %v1263 = vsel %vm333, %v1191, 0.0
      %1264 = vadd.xlane.f32.xlu0 %v1263
      %v1265 = vpop.xlane.xlu0 %1264
      %v1266 = vsel %vm333, %v1192, 0.0
      %1267 = vadd.xlane.f32.xlu0 %v1266
      %v1268 = vpop.xlane.xlu0 %1267
      %v1269 = vsel %vm333, %v1193, 0.0
      %1270 = vadd.xlane.f32.xlu0 %v1269
      %v1271 = vpop.xlane.xlu0 %1270
      %v1272 = vsel %vm333, %v1194, 0.0
      %1273 = vadd.xlane.f32.xlu0 %v1272
      %v1274 = vpop.xlane.xlu0 %1273
      %v1275 = vsel %vm333, %v1195, 0.0
      %1276 = vadd.xlane.f32.xlu0 %v1275
      %v1277 = vpop.xlane.xlu0 %1276
      %v1278 = vsel %vm333, %v1196, 0.0
      %1279 = vadd.xlane.f32.xlu0 %v1278
      %v1280 = vpop.xlane.xlu0 %1279
      %v1281 = vsel %vm333, %v1197, 0.0
      %1282 = vadd.xlane.f32.xlu0 %v1281
      %v1283 = vpop.xlane.xlu0 %1282
      %v1284 = vsel %vm333, %v1198, 0.0
      %1285 = vadd.xlane.f32.xlu0 %v1284
      %v1286 = vpop.xlane.xlu0 %1285
      %v1287 = vsel %vm333, %v1199, 0.0
      %1288 = vadd.xlane.f32.xlu0 %v1287
      %v1289 = vpop.xlane.xlu0 %1288
      %v1290 = vsel %vm333, %v1200, 0.0
      %1291 = vadd.xlane.f32.xlu0 %v1290
      %v1292 = vpop.xlane.xlu0 %1291
      %v1293 = vsel %vm333, %v1201, 0.0
      %1294 = vadd.xlane.f32.xlu0 %v1293
      %v1295 = vpop.xlane.xlu0 %1294
      %v1296 = vsel %vm333, %v1202, 0.0
      %1297 = vadd.xlane.f32.xlu0 %v1296
      %v1298 = vpop.xlane.xlu0 %1297
      %v1299 = vadd.f32 %v1138, %v1205
      %v1300 = vadd.f32 %v1139, %v1208
      %v1301 = vadd.f32 %v1140, %v1211
      %v1302 = vadd.f32 %v1141, %v1214
      %v1303 = vadd.f32 %v1142, %v1217
      %v1304 = vadd.f32 %v1143, %v1220
      %v1305 = vadd.f32 %v1144, %v1223
      %v1306 = vadd.f32 %v1145, %v1226
      %v1307 = vadd.f32 %v1146, %v1229
      %v1308 = vadd.f32 %v1147, %v1232
      %v1309 = vadd.f32 %v1148, %v1235
      %v1310 = vadd.f32 %v1149, %v1238
      %v1311 = vadd.f32 %v1150, %v1241
      %v1312 = vadd.f32 %v1151, %v1244
      %v1313 = vadd.f32 %v1152, %v1247
      %v1314 = vadd.f32 %v1153, %v1250
      %v1315 = vadd.f32 %v1154, %v1253
      %v1316 = vadd.f32 %v1155, %v1256
      %v1317 = vadd.f32 %v1156, %v1259
      %v1318 = vadd.f32 %v1157, %v1262
      %v1319 = vadd.f32 %v1158, %v1265
      %v1320 = vadd.f32 %v1159, %v1268
      %v1321 = vadd.f32 %v1160, %v1271
      %v1322 = vadd.f32 %v1161, %v1274
      %v1323 = vadd.f32 %v1162, %v1277
      %v1324 = vadd.f32 %v1163, %v1280
      %v1325 = vadd.f32 %v1164, %v1283
      %v1326 = vadd.f32 %v1165, %v1286
      %v1327 = vadd.f32 %v1166, %v1289
      %v1328 = vadd.f32 %v1167, %v1292
      %v1329 = vadd.f32 %v1168, %v1295
      %v1330 = vadd.f32 %v1169, %v1298
      %v1331 = vperm.slane %v219, 1
      %v1332 = vmul.f32 %v945, %v1331
      %v1333 = vmul.f32 %v946, %v1331
      %v1334 = vmul.f32 %v947, %v1331
      %v1335 = vmul.f32 %v948, %v1331
      %v1336 = vmul.f32 %v949, %v1331
      %v1337 = vmul.f32 %v950, %v1331
      %v1338 = vmul.f32 %v951, %v1331
      %v1339 = vmul.f32 %v952, %v1331
      %v1340 = vmul.f32 %v953, %v1331
      %v1341 = vmul.f32 %v954, %v1331
      %v1342 = vmul.f32 %v955, %v1331
      %v1343 = vmul.f32 %v956, %v1331
      %v1344 = vmul.f32 %v957, %v1331
      %v1345 = vmul.f32 %v958, %v1331
      %v1346 = vmul.f32 %v959, %v1331
      %v1347 = vmul.f32 %v960, %v1331
      %v1348 = vmul.f32 %v961, %v1331
      %v1349 = vmul.f32 %v962, %v1331
      %v1350 = vmul.f32 %v963, %v1331
      %v1351 = vmul.f32 %v964, %v1331
      %v1352 = vmul.f32 %v965, %v1331
      %v1353 = vmul.f32 %v966, %v1331
      %v1354 = vmul.f32 %v967, %v1331
      %v1355 = vmul.f32 %v968, %v1331
      %v1356 = vmul.f32 %v969, %v1331
      %v1357 = vmul.f32 %v970, %v1331
      %v1358 = vmul.f32 %v971, %v1331
      %v1359 = vmul.f32 %v972, %v1331
      %v1360 = vmul.f32 %v973, %v1331
      %v1361 = vmul.f32 %v974, %v1331
      %v1362 = vmul.f32 %v975, %v1331
      %v1363 = vmul.f32 %v976, %v1331
      %v1364 = vsel %vm333, %v1332, 0.0
      %1365 = vadd.xlane.f32.xlu0 %v1364
      %v1366 = vpop.xlane.xlu0 %1365
      %v1367 = vsel %vm333, %v1333, 0.0
      %1368 = vadd.xlane.f32.xlu0 %v1367
      %v1369 = vpop.xlane.xlu0 %1368
      %v1370 = vsel %vm333, %v1334, 0.0
      %1371 = vadd.xlane.f32.xlu0 %v1370
      %v1372 = vpop.xlane.xlu0 %1371
      %v1373 = vsel %vm333, %v1335, 0.0
      %1374 = vadd.xlane.f32.xlu0 %v1373
      %v1375 = vpop.xlane.xlu0 %1374
      %v1376 = vsel %vm333, %v1336, 0.0
      %1377 = vadd.xlane.f32.xlu0 %v1376
      %v1378 = vpop.xlane.xlu0 %1377
      %v1379 = vsel %vm333, %v1337, 0.0
      %1380 = vadd.xlane.f32.xlu0 %v1379
      %v1381 = vpop.xlane.xlu0 %1380
      %v1382 = vsel %vm333, %v1338, 0.0
      %1383 = vadd.xlane.f32.xlu0 %v1382
      %v1384 = vpop.xlane.xlu0 %1383
      %v1385 = vsel %vm333, %v1339, 0.0
      %1386 = vadd.xlane.f32.xlu0 %v1385
      %v1387 = vpop.xlane.xlu0 %1386
      %v1388 = vsel %vm333, %v1340, 0.0
      %1389 = vadd.xlane.f32.xlu0 %v1388
      %v1390 = vpop.xlane.xlu0 %1389
      %v1391 = vsel %vm333, %v1341, 0.0
      %1392 = vadd.xlane.f32.xlu0 %v1391
      %v1393 = vpop.xlane.xlu0 %1392
      %v1394 = vsel %vm333, %v1342, 0.0
      %1395 = vadd.xlane.f32.xlu0 %v1394
      %v1396 = vpop.xlane.xlu0 %1395
      %v1397 = vsel %vm333, %v1343, 0.0
      %1398 = vadd.xlane.f32.xlu0 %v1397
      %v1399 = vpop.xlane.xlu0 %1398
      %v1400 = vsel %vm333, %v1344, 0.0
      %1401 = vadd.xlane.f32.xlu0 %v1400
      %v1402 = vpop.xlane.xlu0 %1401
      %v1403 = vsel %vm333, %v1345, 0.0
      %1404 = vadd.xlane.f32.xlu0 %v1403
      %v1405 = vpop.xlane.xlu0 %1404
      %v1406 = vsel %vm333, %v1346, 0.0
      %1407 = vadd.xlane.f32.xlu0 %v1406
      %v1408 = vpop.xlane.xlu0 %1407
      %v1409 = vsel %vm333, %v1347, 0.0
      %1410 = vadd.xlane.f32.xlu0 %v1409
      %v1411 = vpop.xlane.xlu0 %1410
      %v1412 = vsel %vm333, %v1348, 0.0
      %1413 = vadd.xlane.f32.xlu0 %v1412
      %v1414 = vpop.xlane.xlu0 %1413
      %v1415 = vsel %vm333, %v1349, 0.0
      %1416 = vadd.xlane.f32.xlu0 %v1415
      %v1417 = vpop.xlane.xlu0 %1416
      %v1418 = vsel %vm333, %v1350, 0.0
      %1419 = vadd.xlane.f32.xlu0 %v1418
      %v1420 = vpop.xlane.xlu0 %1419
      %v1421 = vsel %vm333, %v1351, 0.0
      %1422 = vadd.xlane.f32.xlu0 %v1421
      %v1423 = vpop.xlane.xlu0 %1422
      %v1424 = vsel %vm333, %v1352, 0.0
      %1425 = vadd.xlane.f32.xlu0 %v1424
      %v1426 = vpop.xlane.xlu0 %1425
      %v1427 = vsel %vm333, %v1353, 0.0
      %1428 = vadd.xlane.f32.xlu0 %v1427
      %v1429 = vpop.xlane.xlu0 %1428
      %v1430 = vsel %vm333, %v1354, 0.0
      %1431 = vadd.xlane.f32.xlu0 %v1430
      %v1432 = vpop.xlane.xlu0 %1431
      %v1433 = vsel %vm333, %v1355, 0.0
      %1434 = vadd.xlane.f32.xlu0 %v1433
      %v1435 = vpop.xlane.xlu0 %1434
      %v1436 = vsel %vm333, %v1356, 0.0
      %1437 = vadd.xlane.f32.xlu0 %v1436
      %v1438 = vpop.xlane.xlu0 %1437
      %v1439 = vsel %vm333, %v1357, 0.0
      %1440 = vadd.xlane.f32.xlu0 %v1439
      %v1441 = vpop.xlane.xlu0 %1440
      %v1442 = vsel %vm333, %v1358, 0.0
      %1443 = vadd.xlane.f32.xlu0 %v1442
      %v1444 = vpop.xlane.xlu0 %1443
      %v1445 = vsel %vm333, %v1359, 0.0
      %1446 = vadd.xlane.f32.xlu0 %v1445
      %v1447 = vpop.xlane.xlu0 %1446
      %v1448 = vsel %vm333, %v1360, 0.0
      %1449 = vadd.xlane.f32.xlu0 %v1448
      %v1450 = vpop.xlane.xlu0 %1449
      %v1451 = vsel %vm333, %v1361, 0.0
      %1452 = vadd.xlane.f32.xlu0 %v1451
      %v1453 = vpop.xlane.xlu0 %1452
      %v1454 = vsel %vm333, %v1362, 0.0
      %1455 = vadd.xlane.f32.xlu0 %v1454
      %v1456 = vpop.xlane.xlu0 %1455
      %v1457 = vsel %vm333, %v1363, 0.0
      %1458 = vadd.xlane.f32.xlu0 %v1457
      %v1459 = vpop.xlane.xlu0 %1458
      %v1460 = vadd.f32 %v913, %v1366
      %v1461 = vadd.f32 %v914, %v1369
      %v1462 = vadd.f32 %v915, %v1372
      %v1463 = vadd.f32 %v916, %v1375
      %v1464 = vadd.f32 %v917, %v1378
      %v1465 = vadd.f32 %v918, %v1381
      %v1466 = vadd.f32 %v919, %v1384
      %v1467 = vadd.f32 %v920, %v1387
      %v1468 = vadd.f32 %v921, %v1390
      %v1469 = vadd.f32 %v922, %v1393
      %v1470 = vadd.f32 %v923, %v1396
      %v1471 = vadd.f32 %v924, %v1399
      %v1472 = vadd.f32 %v925, %v1402
      %v1473 = vadd.f32 %v926, %v1405
      %v1474 = vadd.f32 %v927, %v1408
      %v1475 = vadd.f32 %v928, %v1411
      %v1476 = vadd.f32 %v929, %v1414
      %v1477 = vadd.f32 %v930, %v1417
      %v1478 = vadd.f32 %v931, %v1420
      %v1479 = vadd.f32 %v932, %v1423
      %v1480 = vadd.f32 %v933, %v1426
      %v1481 = vadd.f32 %v934, %v1429
      %v1482 = vadd.f32 %v935, %v1432
      %v1483 = vadd.f32 %v936, %v1435
      %v1484 = vadd.f32 %v937, %v1438
      %v1485 = vadd.f32 %v938, %v1441
      %v1486 = vadd.f32 %v939, %v1444
      %v1487 = vadd.f32 %v940, %v1447
      %v1488 = vadd.f32 %v941, %v1450
      %v1489 = vadd.f32 %v942, %v1453
      %v1490 = vadd.f32 %v943, %v1456
      %v1491 = vadd.f32 %v944, %v1459
      %v1492 = vperm.slane %v228, 1
      %v1493 = vmul.f32 %v977, %v1492
      %v1494 = vmul.f32 %v978, %v1492
      %v1495 = vmul.f32 %v979, %v1492
      %v1496 = vmul.f32 %v980, %v1492
      %v1497 = vmul.f32 %v981, %v1492
      %v1498 = vmul.f32 %v982, %v1492
      %v1499 = vmul.f32 %v983, %v1492
      %v1500 = vmul.f32 %v984, %v1492
      %v1501 = vmul.f32 %v985, %v1492
      %v1502 = vmul.f32 %v986, %v1492
      %v1503 = vmul.f32 %v987, %v1492
      %v1504 = vmul.f32 %v988, %v1492
      %v1505 = vmul.f32 %v989, %v1492
      %v1506 = vmul.f32 %v990, %v1492
      %v1507 = vmul.f32 %v991, %v1492
      %v1508 = vmul.f32 %v992, %v1492
      %v1509 = vmul.f32 %v993, %v1492
      %v1510 = vmul.f32 %v994, %v1492
      %v1511 = vmul.f32 %v995, %v1492
      %v1512 = vmul.f32 %v996, %v1492
      %v1513 = vmul.f32 %v997, %v1492
      %v1514 = vmul.f32 %v998, %v1492
      %v1515 = vmul.f32 %v999, %v1492
      %v1516 = vmul.f32 %v1000, %v1492
      %v1517 = vmul.f32 %v1001, %v1492
      %v1518 = vmul.f32 %v1002, %v1492
      %v1519 = vmul.f32 %v1003, %v1492
      %v1520 = vmul.f32 %v1004, %v1492
      %v1521 = vmul.f32 %v1005, %v1492
      %v1522 = vmul.f32 %v1006, %v1492
      %v1523 = vmul.f32 %v1007, %v1492
      %v1524 = vmul.f32 %v1008, %v1492
      %v1525 = vsel %vm333, %v1493, 0.0
      %1526 = vadd.xlane.f32.xlu0 %v1525
      %v1527 = vpop.xlane.xlu0 %1526
      %v1528 = vsel %vm333, %v1494, 0.0
      %1529 = vadd.xlane.f32.xlu0 %v1528
      %v1530 = vpop.xlane.xlu0 %1529
      %v1531 = vsel %vm333, %v1495, 0.0
      %1532 = vadd.xlane.f32.xlu0 %v1531
      %v1533 = vpop.xlane.xlu0 %1532
      %v1534 = vsel %vm333, %v1496, 0.0
      %1535 = vadd.xlane.f32.xlu0 %v1534
      %v1536 = vpop.xlane.xlu0 %1535
      %v1537 = vsel %vm333, %v1497, 0.0
      %1538 = vadd.xlane.f32.xlu0 %v1537
      %v1539 = vpop.xlane.xlu0 %1538
      %v1540 = vsel %vm333, %v1498, 0.0
      %1541 = vadd.xlane.f32.xlu0 %v1540
      %v1542 = vpop.xlane.xlu0 %1541
      %v1543 = vsel %vm333, %v1499, 0.0
      %1544 = vadd.xlane.f32.xlu0 %v1543
      %v1545 = vpop.xlane.xlu0 %1544
      %v1546 = vsel %vm333, %v1500, 0.0
      %1547 = vadd.xlane.f32.xlu0 %v1546
      %v1548 = vpop.xlane.xlu0 %1547
      %v1549 = vsel %vm333, %v1501, 0.0
      %1550 = vadd.xlane.f32.xlu0 %v1549
      %v1551 = vpop.xlane.xlu0 %1550
      %v1552 = vsel %vm333, %v1502, 0.0
      %1553 = vadd.xlane.f32.xlu0 %v1552
      %v1554 = vpop.xlane.xlu0 %1553
      %v1555 = vsel %vm333, %v1503, 0.0
      %1556 = vadd.xlane.f32.xlu0 %v1555
      %v1557 = vpop.xlane.xlu0 %1556
      %v1558 = vsel %vm333, %v1504, 0.0
      %1559 = vadd.xlane.f32.xlu0 %v1558
      %v1560 = vpop.xlane.xlu0 %1559
      %v1561 = vsel %vm333, %v1505, 0.0
      %1562 = vadd.xlane.f32.xlu0 %v1561
      %v1563 = vpop.xlane.xlu0 %1562
      %v1564 = vsel %vm333, %v1506, 0.0
      %1565 = vadd.xlane.f32.xlu0 %v1564
      %v1566 = vpop.xlane.xlu0 %1565
      %v1567 = vsel %vm333, %v1507, 0.0
      %1568 = vadd.xlane.f32.xlu0 %v1567
      %v1569 = vpop.xlane.xlu0 %1568
      %v1570 = vsel %vm333, %v1508, 0.0
      %1571 = vadd.xlane.f32.xlu0 %v1570
      %v1572 = vpop.xlane.xlu0 %1571
      %v1573 = vsel %vm333, %v1509, 0.0
      %1574 = vadd.xlane.f32.xlu0 %v1573
      %v1575 = vpop.xlane.xlu0 %1574
      %v1576 = vsel %vm333, %v1510, 0.0
      %1577 = vadd.xlane.f32.xlu0 %v1576
      %v1578 = vpop.xlane.xlu0 %1577
      %v1579 = vsel %vm333, %v1511, 0.0
      %1580 = vadd.xlane.f32.xlu0 %v1579
      %v1581 = vpop.xlane.xlu0 %1580
      %v1582 = vsel %vm333, %v1512, 0.0
      %1583 = vadd.xlane.f32.xlu0 %v1582
      %v1584 = vpop.xlane.xlu0 %1583
      %v1585 = vsel %vm333, %v1513, 0.0
      %1586 = vadd.xlane.f32.xlu0 %v1585
      %v1587 = vpop.xlane.xlu0 %1586
      %v1588 = vsel %vm333, %v1514, 0.0
      %1589 = vadd.xlane.f32.xlu0 %v1588
      %v1590 = vpop.xlane.xlu0 %1589
      %v1591 = vsel %vm333, %v1515, 0.0
      %1592 = vadd.xlane.f32.xlu0 %v1591
      %v1593 = vpop.xlane.xlu0 %1592
      %v1594 = vsel %vm333, %v1516, 0.0
      %1595 = vadd.xlane.f32.xlu0 %v1594
      %v1596 = vpop.xlane.xlu0 %1595
      %v1597 = vsel %vm333, %v1517, 0.0
      %1598 = vadd.xlane.f32.xlu0 %v1597
      %v1599 = vpop.xlane.xlu0 %1598
      %v1600 = vsel %vm333, %v1518, 0.0
      %1601 = vadd.xlane.f32.xlu0 %v1600
      %v1602 = vpop.xlane.xlu0 %1601
      %v1603 = vsel %vm333, %v1519, 0.0
      %1604 = vadd.xlane.f32.xlu0 %v1603
      %v1605 = vpop.xlane.xlu0 %1604
      %v1606 = vsel %vm333, %v1520, 0.0
      %1607 = vadd.xlane.f32.xlu0 %v1606
      %v1608 = vpop.xlane.xlu0 %1607
      %v1609 = vsel %vm333, %v1521, 0.0
      %1610 = vadd.xlane.f32.xlu0 %v1609
      %v1611 = vpop.xlane.xlu0 %1610
      %v1612 = vsel %vm333, %v1522, 0.0
      %1613 = vadd.xlane.f32.xlu0 %v1612
      %v1614 = vpop.xlane.xlu0 %1613
      %v1615 = vsel %vm333, %v1523, 0.0
      %1616 = vadd.xlane.f32.xlu0 %v1615
      %v1617 = vpop.xlane.xlu0 %1616
      %v1618 = vsel %vm333, %v1524, 0.0
      %1619 = vadd.xlane.f32.xlu0 %v1618
      %v1620 = vpop.xlane.xlu0 %1619
      %v1621 = vadd.f32 %v1460, %v1527
      %v1622 = vadd.f32 %v1461, %v1530
      %v1623 = vadd.f32 %v1462, %v1533
      %v1624 = vadd.f32 %v1463, %v1536
      %v1625 = vadd.f32 %v1464, %v1539
      %v1626 = vadd.f32 %v1465, %v1542
      %v1627 = vadd.f32 %v1466, %v1545
      %v1628 = vadd.f32 %v1467, %v1548
      %v1629 = vadd.f32 %v1468, %v1551
      %v1630 = vadd.f32 %v1469, %v1554
      %v1631 = vadd.f32 %v1470, %v1557
      %v1632 = vadd.f32 %v1471, %v1560
      %v1633 = vadd.f32 %v1472, %v1563
      %v1634 = vadd.f32 %v1473, %v1566
      %v1635 = vadd.f32 %v1474, %v1569
      %v1636 = vadd.f32 %v1475, %v1572
      %v1637 = vadd.f32 %v1476, %v1575
      %v1638 = vadd.f32 %v1477, %v1578
      %v1639 = vadd.f32 %v1478, %v1581
      %v1640 = vadd.f32 %v1479, %v1584
      %v1641 = vadd.f32 %v1480, %v1587
      %v1642 = vadd.f32 %v1481, %v1590
      %v1643 = vadd.f32 %v1482, %v1593
      %v1644 = vadd.f32 %v1483, %v1596
      %v1645 = vadd.f32 %v1484, %v1599
      %v1646 = vadd.f32 %v1485, %v1602
      %v1647 = vadd.f32 %v1486, %v1605
      %v1648 = vadd.f32 %v1487, %v1608
      %v1649 = vadd.f32 %v1488, %v1611
      %v1650 = vadd.f32 %v1489, %v1614
      %v1651 = vadd.f32 %v1490, %v1617
      %v1652 = vadd.f32 %v1491, %v1620
      %v1653 = vld [vmem:[%s207 + $0x2] sm:$0xff]
      %v1654 = vld [vmem:[%s207 + $0xa] sm:$0xff]
      %v1655 = vld [vmem:[%s207 + $0x1a] sm:$0xff]
      %v1656 = vld [vmem:[%s207 + $0x22] sm:$0xff]
      %v1657 = vld [vmem:[%s207 + $0x32] sm:$0xff]
      %v1658 = vld [vmem:[%s207 + $0x3a] sm:$0xff]
      %v1659 = vld [vmem:[%s207 + $0x4a] sm:$0xff]
      %v1660 = vld [vmem:[%s207 + $0x52] sm:$0xff]
      %v1661 = vld [vmem:[%s207 + $0x62] sm:$0xff]
      %v1662 = vld [vmem:[%s207 + $0x6a] sm:$0xff]
      %v1663 = vld [vmem:[%s207 + $0x7a] sm:$0xff]
      %v1664 = vld [vmem:[%s207 + $0x82] sm:$0xff]
      %v1665 = vld [vmem:[%s207 + $0x92] sm:$0xff]
      %v1666 = vld [vmem:[%s207 + $0x9a] sm:$0xff]
      %v1667 = vld [vmem:[%s207 + $0xaa] sm:$0xff]
      %v1668 = vld [vmem:[%s207 + $0xb2] sm:$0xff]
      %v1669 = vld [vmem:[%s207 + $0xc2] sm:$0xff]
      %v1670 = vld [vmem:[%s207 + $0xca] sm:$0xff]
      %v1671 = vld [vmem:[%s207 + $0xda] sm:$0xff]
      %v1672 = vld [vmem:[%s207 + $0xe2] sm:$0xff]
      %v1673 = vld [vmem:[%s207 + $0xf2] sm:$0xff]
      %v1674 = vld [vmem:[%s207 + $0xfa] sm:$0xff]
      %v1675 = vld [vmem:[%s207 + $0x10a] sm:$0xff]
      %v1676 = vld [vmem:[%s207 + $0x112] sm:$0xff]
      %v1677 = vld [vmem:[%s207 + $0x122] sm:$0xff]
      %v1678 = vld [vmem:[%s207 + $0x12a] sm:$0xff]
      %v1679 = vld [vmem:[%s207 + $0x13a] sm:$0xff]
      %v1680 = vld [vmem:[%s207 + $0x142] sm:$0xff]
      %v1681 = vld [vmem:[%s207 + $0x152] sm:$0xff]
      %v1682 = vld [vmem:[%s207 + $0x15a] sm:$0xff]
      %v1683 = vld [vmem:[%s207 + $0x16a] sm:$0xff]
      %v1684 = vld [vmem:[%s207 + $0x172] sm:$0xff]
      %v1685 = vld [vmem:[%s212 + $0x2] sm:$0xff]
      %v1686 = vld [vmem:[%s212 + $0xa] sm:$0xff]
      %v1687 = vld [vmem:[%s212 + $0x1a] sm:$0xff]
      %v1688 = vld [vmem:[%s212 + $0x22] sm:$0xff]
      %v1689 = vld [vmem:[%s212 + $0x32] sm:$0xff]
      %v1690 = vld [vmem:[%s212 + $0x3a] sm:$0xff]
      %v1691 = vld [vmem:[%s212 + $0x4a] sm:$0xff]
      %v1692 = vld [vmem:[%s212 + $0x52] sm:$0xff]
      %v1693 = vld [vmem:[%s212 + $0x62] sm:$0xff]
      %v1694 = vld [vmem:[%s212 + $0x6a] sm:$0xff]
      %v1695 = vld [vmem:[%s212 + $0x7a] sm:$0xff]
      %v1696 = vld [vmem:[%s212 + $0x82] sm:$0xff]
      %v1697 = vld [vmem:[%s212 + $0x92] sm:$0xff]
      %v1698 = vld [vmem:[%s212 + $0x9a] sm:$0xff]
      %v1699 = vld [vmem:[%s212 + $0xaa] sm:$0xff]
      %v1700 = vld [vmem:[%s212 + $0xb2] sm:$0xff]
      %v1701 = vld [vmem:[%s212 + $0xc2] sm:$0xff]
      %v1702 = vld [vmem:[%s212 + $0xca] sm:$0xff]
      %v1703 = vld [vmem:[%s212 + $0xda] sm:$0xff]
      %v1704 = vld [vmem:[%s212 + $0xe2] sm:$0xff]
      %v1705 = vld [vmem:[%s212 + $0xf2] sm:$0xff]
      %v1706 = vld [vmem:[%s212 + $0xfa] sm:$0xff]
      %v1707 = vld [vmem:[%s212 + $0x10a] sm:$0xff]
      %v1708 = vld [vmem:[%s212 + $0x112] sm:$0xff]
      %v1709 = vld [vmem:[%s212 + $0x122] sm:$0xff]
      %v1710 = vld [vmem:[%s212 + $0x12a] sm:$0xff]
      %v1711 = vld [vmem:[%s212 + $0x13a] sm:$0xff]
      %v1712 = vld [vmem:[%s212 + $0x142] sm:$0xff]
      %v1713 = vld [vmem:[%s212 + $0x152] sm:$0xff]
      %v1714 = vld [vmem:[%s212 + $0x15a] sm:$0xff]
      %v1715 = vld [vmem:[%s212 + $0x16a] sm:$0xff]
      %v1716 = vld [vmem:[%s212 + $0x172] sm:$0xff]
      %v1717 = vperm.slane %v220, 0
      %v1718 = vmul.f32 %v1653, %v1717
      %v1719 = vmul.f32 %v1654, %v1717
      %v1720 = vmul.f32 %v1655, %v1717
      %v1721 = vmul.f32 %v1656, %v1717
      %v1722 = vmul.f32 %v1657, %v1717
      %v1723 = vmul.f32 %v1658, %v1717
      %v1724 = vmul.f32 %v1659, %v1717
      %v1725 = vmul.f32 %v1660, %v1717
      %v1726 = vmul.f32 %v1661, %v1717
      %v1727 = vmul.f32 %v1662, %v1717
      %v1728 = vmul.f32 %v1663, %v1717
      %v1729 = vmul.f32 %v1664, %v1717
      %v1730 = vmul.f32 %v1665, %v1717
      %v1731 = vmul.f32 %v1666, %v1717
      %v1732 = vmul.f32 %v1667, %v1717
      %v1733 = vmul.f32 %v1668, %v1717
      %v1734 = vmul.f32 %v1669, %v1717
      %v1735 = vmul.f32 %v1670, %v1717
      %v1736 = vmul.f32 %v1671, %v1717
      %v1737 = vmul.f32 %v1672, %v1717
      %v1738 = vmul.f32 %v1673, %v1717
      %v1739 = vmul.f32 %v1674, %v1717
      %v1740 = vmul.f32 %v1675, %v1717
      %v1741 = vmul.f32 %v1676, %v1717
      %v1742 = vmul.f32 %v1677, %v1717
      %v1743 = vmul.f32 %v1678, %v1717
      %v1744 = vmul.f32 %v1679, %v1717
      %v1745 = vmul.f32 %v1680, %v1717
      %v1746 = vmul.f32 %v1681, %v1717
      %v1747 = vmul.f32 %v1682, %v1717
      %v1748 = vmul.f32 %v1683, %v1717
      %v1749 = vmul.f32 %v1684, %v1717
      %v1750 = vsel %vm333, %v1718, 0.0
      %1751 = vadd.xlane.f32.xlu0 %v1750
      %v1752 = vpop.xlane.xlu0 %1751
      %v1753 = vsel %vm333, %v1719, 0.0
      %1754 = vadd.xlane.f32.xlu0 %v1753
      %v1755 = vpop.xlane.xlu0 %1754
      %v1756 = vsel %vm333, %v1720, 0.0
      %1757 = vadd.xlane.f32.xlu0 %v1756
      %v1758 = vpop.xlane.xlu0 %1757
      %v1759 = vsel %vm333, %v1721, 0.0
      %1760 = vadd.xlane.f32.xlu0 %v1759
      %v1761 = vpop.xlane.xlu0 %1760
      %v1762 = vsel %vm333, %v1722, 0.0
      %1763 = vadd.xlane.f32.xlu0 %v1762
      %v1764 = vpop.xlane.xlu0 %1763
      %v1765 = vsel %vm333, %v1723, 0.0
      %1766 = vadd.xlane.f32.xlu0 %v1765
      %v1767 = vpop.xlane.xlu0 %1766
      %v1768 = vsel %vm333, %v1724, 0.0
      %1769 = vadd.xlane.f32.xlu0 %v1768
      %v1770 = vpop.xlane.xlu0 %1769
      %v1771 = vsel %vm333, %v1725, 0.0
      %1772 = vadd.xlane.f32.xlu0 %v1771
      %v1773 = vpop.xlane.xlu0 %1772
      %v1774 = vsel %vm333, %v1726, 0.0
      %1775 = vadd.xlane.f32.xlu0 %v1774
      %v1776 = vpop.xlane.xlu0 %1775
      %v1777 = vsel %vm333, %v1727, 0.0
      %1778 = vadd.xlane.f32.xlu0 %v1777
      %v1779 = vpop.xlane.xlu0 %1778
      %v1780 = vsel %vm333, %v1728, 0.0
      %1781 = vadd.xlane.f32.xlu0 %v1780
      %v1782 = vpop.xlane.xlu0 %1781
      %v1783 = vsel %vm333, %v1729, 0.0
      %1784 = vadd.xlane.f32.xlu0 %v1783
      %v1785 = vpop.xlane.xlu0 %1784
      %v1786 = vsel %vm333, %v1730, 0.0
      %1787 = vadd.xlane.f32.xlu0 %v1786
      %v1788 = vpop.xlane.xlu0 %1787
      %v1789 = vsel %vm333, %v1731, 0.0
      %1790 = vadd.xlane.f32.xlu0 %v1789
      %v1791 = vpop.xlane.xlu0 %1790
      %v1792 = vsel %vm333, %v1732, 0.0
      %1793 = vadd.xlane.f32.xlu0 %v1792
      %v1794 = vpop.xlane.xlu0 %1793
      %v1795 = vsel %vm333, %v1733, 0.0
      %1796 = vadd.xlane.f32.xlu0 %v1795
      %v1797 = vpop.xlane.xlu0 %1796
      %v1798 = vsel %vm333, %v1734, 0.0
      %1799 = vadd.xlane.f32.xlu0 %v1798
      %v1800 = vpop.xlane.xlu0 %1799
      %v1801 = vsel %vm333, %v1735, 0.0
      %1802 = vadd.xlane.f32.xlu0 %v1801
      %v1803 = vpop.xlane.xlu0 %1802
      %v1804 = vsel %vm333, %v1736, 0.0
      %1805 = vadd.xlane.f32.xlu0 %v1804
      %v1806 = vpop.xlane.xlu0 %1805
      %v1807 = vsel %vm333, %v1737, 0.0
      %1808 = vadd.xlane.f32.xlu0 %v1807
      %v1809 = vpop.xlane.xlu0 %1808
      %v1810 = vsel %vm333, %v1738, 0.0
      %1811 = vadd.xlane.f32.xlu0 %v1810
      %v1812 = vpop.xlane.xlu0 %1811
      %v1813 = vsel %vm333, %v1739, 0.0
      %1814 = vadd.xlane.f32.xlu0 %v1813
      %v1815 = vpop.xlane.xlu0 %1814
      %v1816 = vsel %vm333, %v1740, 0.0
      %1817 = vadd.xlane.f32.xlu0 %v1816
      %v1818 = vpop.xlane.xlu0 %1817
      %v1819 = vsel %vm333, %v1741, 0.0
      %1820 = vadd.xlane.f32.xlu0 %v1819
      %v1821 = vpop.xlane.xlu0 %1820
      %v1822 = vsel %vm333, %v1742, 0.0
      %1823 = vadd.xlane.f32.xlu0 %v1822
      %v1824 = vpop.xlane.xlu0 %1823
      %v1825 = vsel %vm333, %v1743, 0.0
      %1826 = vadd.xlane.f32.xlu0 %v1825
      %v1827 = vpop.xlane.xlu0 %1826
      %v1828 = vsel %vm333, %v1744, 0.0
      %1829 = vadd.xlane.f32.xlu0 %v1828
      %v1830 = vpop.xlane.xlu0 %1829
      %v1831 = vsel %vm333, %v1745, 0.0
      %1832 = vadd.xlane.f32.xlu0 %v1831
      %v1833 = vpop.xlane.xlu0 %1832
      %v1834 = vsel %vm333, %v1746, 0.0
      %1835 = vadd.xlane.f32.xlu0 %v1834
      %v1836 = vpop.xlane.xlu0 %1835
      %v1837 = vsel %vm333, %v1747, 0.0
      %1838 = vadd.xlane.f32.xlu0 %v1837
      %v1839 = vpop.xlane.xlu0 %1838
      %v1840 = vsel %vm333, %v1748, 0.0
      %1841 = vadd.xlane.f32.xlu0 %v1840
      %v1842 = vpop.xlane.xlu0 %1841
      %v1843 = vsel %vm333, %v1749, 0.0
      %1844 = vadd.xlane.f32.xlu0 %v1843
      %v1845 = vpop.xlane.xlu0 %1844
      %v1846 = vadd.f32 %v1299, %v1752
      %v1847 = vadd.f32 %v1300, %v1755
      %v1848 = vadd.f32 %v1301, %v1758
      %v1849 = vadd.f32 %v1302, %v1761
      %v1850 = vadd.f32 %v1303, %v1764
      %v1851 = vadd.f32 %v1304, %v1767
      %v1852 = vadd.f32 %v1305, %v1770
      %v1853 = vadd.f32 %v1306, %v1773
      %v1854 = vadd.f32 %v1307, %v1776
      %v1855 = vadd.f32 %v1308, %v1779
      %v1856 = vadd.f32 %v1309, %v1782
      %v1857 = vadd.f32 %v1310, %v1785
      %v1858 = vadd.f32 %v1311, %v1788
      %v1859 = vadd.f32 %v1312, %v1791
      %v1860 = vadd.f32 %v1313, %v1794
      %v1861 = vadd.f32 %v1314, %v1797
      %v1862 = vadd.f32 %v1315, %v1800
      %v1863 = vadd.f32 %v1316, %v1803
      %v1864 = vadd.f32 %v1317, %v1806
      %v1865 = vadd.f32 %v1318, %v1809
      %v1866 = vadd.f32 %v1319, %v1812
      %v1867 = vadd.f32 %v1320, %v1815
      %v1868 = vadd.f32 %v1321, %v1818
      %v1869 = vadd.f32 %v1322, %v1821
      %v1870 = vadd.f32 %v1323, %v1824
      %v1871 = vadd.f32 %v1324, %v1827
      %v1872 = vadd.f32 %v1325, %v1830
      %v1873 = vadd.f32 %v1326, %v1833
      %v1874 = vadd.f32 %v1327, %v1836
      %v1875 = vadd.f32 %v1328, %v1839
      %v1876 = vadd.f32 %v1329, %v1842
      %v1877 = vadd.f32 %v1330, %v1845
      %v1878 = vperm.slane %v229, 0
      %v1879 = vmul.f32 %v1685, %v1878
      %v1880 = vmul.f32 %v1686, %v1878
      %v1881 = vmul.f32 %v1687, %v1878
      %v1882 = vmul.f32 %v1688, %v1878
      %v1883 = vmul.f32 %v1689, %v1878
      %v1884 = vmul.f32 %v1690, %v1878
      %v1885 = vmul.f32 %v1691, %v1878
      %v1886 = vmul.f32 %v1692, %v1878
      %v1887 = vmul.f32 %v1693, %v1878
      %v1888 = vmul.f32 %v1694, %v1878
      %v1889 = vmul.f32 %v1695, %v1878
      %v1890 = vmul.f32 %v1696, %v1878
      %v1891 = vmul.f32 %v1697, %v1878
      %v1892 = vmul.f32 %v1698, %v1878
      %v1893 = vmul.f32 %v1699, %v1878
      %v1894 = vmul.f32 %v1700, %v1878
      %v1895 = vmul.f32 %v1701, %v1878
      %v1896 = vmul.f32 %v1702, %v1878
      %v1897 = vmul.f32 %v1703, %v1878
      %v1898 = vmul.f32 %v1704, %v1878
      %v1899 = vmul.f32 %v1705, %v1878
      %v1900 = vmul.f32 %v1706, %v1878
      %v1901 = vmul.f32 %v1707, %v1878
      %v1902 = vmul.f32 %v1708, %v1878
      %v1903 = vmul.f32 %v1709, %v1878
      %v1904 = vmul.f32 %v1710, %v1878
      %v1905 = vmul.f32 %v1711, %v1878
      %v1906 = vmul.f32 %v1712, %v1878
      %v1907 = vmul.f32 %v1713, %v1878
      %v1908 = vmul.f32 %v1714, %v1878
      %v1909 = vmul.f32 %v1715, %v1878
      %v1910 = vmul.f32 %v1716, %v1878
      %v1911 = vsel %vm333, %v1879, 0.0
      %1912 = vadd.xlane.f32.xlu0 %v1911
      %v1913 = vpop.xlane.xlu0 %1912
      %v1914 = vsel %vm333, %v1880, 0.0
      %1915 = vadd.xlane.f32.xlu0 %v1914
      %v1916 = vpop.xlane.xlu0 %1915
      %v1917 = vsel %vm333, %v1881, 0.0
      %1918 = vadd.xlane.f32.xlu0 %v1917
      %v1919 = vpop.xlane.xlu0 %1918
      %v1920 = vsel %vm333, %v1882, 0.0
      %1921 = vadd.xlane.f32.xlu0 %v1920
      %v1922 = vpop.xlane.xlu0 %1921
      %v1923 = vsel %vm333, %v1883, 0.0
      %1924 = vadd.xlane.f32.xlu0 %v1923
      %v1925 = vpop.xlane.xlu0 %1924
      %v1926 = vsel %vm333, %v1884, 0.0
      %1927 = vadd.xlane.f32.xlu0 %v1926
      %v1928 = vpop.xlane.xlu0 %1927
      %v1929 = vsel %vm333, %v1885, 0.0
      %1930 = vadd.xlane.f32.xlu0 %v1929
      %v1931 = vpop.xlane.xlu0 %1930
      %v1932 = vsel %vm333, %v1886, 0.0
      %1933 = vadd.xlane.f32.xlu0 %v1932
      %v1934 = vpop.xlane.xlu0 %1933
      %v1935 = vsel %vm333, %v1887, 0.0
      %1936 = vadd.xlane.f32.xlu0 %v1935
      %v1937 = vpop.xlane.xlu0 %1936
      %v1938 = vsel %vm333, %v1888, 0.0
      %1939 = vadd.xlane.f32.xlu0 %v1938
      %v1940 = vpop.xlane.xlu0 %1939
      %v1941 = vsel %vm333, %v1889, 0.0
      %1942 = vadd.xlane.f32.xlu0 %v1941
      %v1943 = vpop.xlane.xlu0 %1942
      %v1944 = vsel %vm333, %v1890, 0.0
      %1945 = vadd.xlane.f32.xlu0 %v1944
      %v1946 = vpop.xlane.xlu0 %1945
      %v1947 = vsel %vm333, %v1891, 0.0
      %1948 = vadd.xlane.f32.xlu0 %v1947
      %v1949 = vpop.xlane.xlu0 %1948
      %v1950 = vsel %vm333, %v1892, 0.0
      %1951 = vadd.xlane.f32.xlu0 %v1950
      %v1952 = vpop.xlane.xlu0 %1951
      %v1953 = vsel %vm333, %v1893, 0.0
      %1954 = vadd.xlane.f32.xlu0 %v1953
      %v1955 = vpop.xlane.xlu0 %1954
      %v1956 = vsel %vm333, %v1894, 0.0
      %1957 = vadd.xlane.f32.xlu0 %v1956
      %v1958 = vpop.xlane.xlu0 %1957
      %v1959 = vsel %vm333, %v1895, 0.0
      %1960 = vadd.xlane.f32.xlu0 %v1959
      %v1961 = vpop.xlane.xlu0 %1960
      %v1962 = vsel %vm333, %v1896, 0.0
      %1963 = vadd.xlane.f32.xlu0 %v1962
      %v1964 = vpop.xlane.xlu0 %1963
      %v1965 = vsel %vm333, %v1897, 0.0
      %1966 = vadd.xlane.f32.xlu0 %v1965
      %v1967 = vpop.xlane.xlu0 %1966
      %v1968 = vsel %vm333, %v1898, 0.0
      %1969 = vadd.xlane.f32.xlu0 %v1968
      %v1970 = vpop.xlane.xlu0 %1969
      %v1971 = vsel %vm333, %v1899, 0.0
      %1972 = vadd.xlane.f32.xlu0 %v1971
      %v1973 = vpop.xlane.xlu0 %1972
      %v1974 = vsel %vm333, %v1900, 0.0
      %1975 = vadd.xlane.f32.xlu0 %v1974
      %v1976 = vpop.xlane.xlu0 %1975
      %v1977 = vsel %vm333, %v1901, 0.0
      %1978 = vadd.xlane.f32.xlu0 %v1977
      %v1979 = vpop.xlane.xlu0 %1978
      %v1980 = vsel %vm333, %v1902, 0.0
      %1981 = vadd.xlane.f32.xlu0 %v1980
      %v1982 = vpop.xlane.xlu0 %1981
      %v1983 = vsel %vm333, %v1903, 0.0
      %1984 = vadd.xlane.f32.xlu0 %v1983
      %v1985 = vpop.xlane.xlu0 %1984
      %v1986 = vsel %vm333, %v1904, 0.0
      %1987 = vadd.xlane.f32.xlu0 %v1986
      %v1988 = vpop.xlane.xlu0 %1987
      %v1989 = vsel %vm333, %v1905, 0.0
      %1990 = vadd.xlane.f32.xlu0 %v1989
      %v1991 = vpop.xlane.xlu0 %1990
      %v1992 = vsel %vm333, %v1906, 0.0
      %1993 = vadd.xlane.f32.xlu0 %v1992
      %v1994 = vpop.xlane.xlu0 %1993
      %v1995 = vsel %vm333, %v1907, 0.0
      %1996 = vadd.xlane.f32.xlu0 %v1995
      %v1997 = vpop.xlane.xlu0 %1996
      %v1998 = vsel %vm333, %v1908, 0.0
      %1999 = vadd.xlane.f32.xlu0 %v1998
      %v2000 = vpop.xlane.xlu0 %1999
      %v2001 = vsel %vm333, %v1909, 0.0
      %2002 = vadd.xlane.f32.xlu0 %v2001
      %v2003 = vpop.xlane.xlu0 %2002
      %v2004 = vsel %vm333, %v1910, 0.0
      %2005 = vadd.xlane.f32.xlu0 %v2004
      %v2006 = vpop.xlane.xlu0 %2005
      %v2007 = vadd.f32 %v1846, %v1913
      %v2008 = vadd.f32 %v1847, %v1916
      %v2009 = vadd.f32 %v1848, %v1919
      %v2010 = vadd.f32 %v1849, %v1922
      %v2011 = vadd.f32 %v1850, %v1925
      %v2012 = vadd.f32 %v1851, %v1928
      %v2013 = vadd.f32 %v1852, %v1931
      %v2014 = vadd.f32 %v1853, %v1934
      %v2015 = vadd.f32 %v1854, %v1937
      %v2016 = vadd.f32 %v1855, %v1940
      %v2017 = vadd.f32 %v1856, %v1943
      %v2018 = vadd.f32 %v1857, %v1946
      %v2019 = vadd.f32 %v1858, %v1949
      %v2020 = vadd.f32 %v1859, %v1952
      %v2021 = vadd.f32 %v1860, %v1955
      %v2022 = vadd.f32 %v1861, %v1958
      %v2023 = vadd.f32 %v1862, %v1961
      %v2024 = vadd.f32 %v1863, %v1964
      %v2025 = vadd.f32 %v1864, %v1967
      %v2026 = vadd.f32 %v1865, %v1970
      %v2027 = vadd.f32 %v1866, %v1973
      %v2028 = vadd.f32 %v1867, %v1976
      %v2029 = vadd.f32 %v1868, %v1979
      %v2030 = vadd.f32 %v1869, %v1982
      %v2031 = vadd.f32 %v1870, %v1985
      %v2032 = vadd.f32 %v1871, %v1988
      %v2033 = vadd.f32 %v1872, %v1991
      %v2034 = vadd.f32 %v1873, %v1994
      %v2035 = vadd.f32 %v1874, %v1997
      %v2036 = vadd.f32 %v1875, %v2000
      %v2037 = vadd.f32 %v1876, %v2003
      %v2038 = vadd.f32 %v1877, %v2006
      %v2039 = vperm.slane %v220, 1
      %v2040 = vmul.f32 %v1653, %v2039
      %v2041 = vmul.f32 %v1654, %v2039
      %v2042 = vmul.f32 %v1655, %v2039
      %v2043 = vmul.f32 %v1656, %v2039
      %v2044 = vmul.f32 %v1657, %v2039
      %v2045 = vmul.f32 %v1658, %v2039
      %v2046 = vmul.f32 %v1659, %v2039
      %v2047 = vmul.f32 %v1660, %v2039
      %v2048 = vmul.f32 %v1661, %v2039
      %v2049 = vmul.f32 %v1662, %v2039
      %v2050 = vmul.f32 %v1663, %v2039
      %v2051 = vmul.f32 %v1664, %v2039
      %v2052 = vmul.f32 %v1665, %v2039
      %v2053 = vmul.f32 %v1666, %v2039
      %v2054 = vmul.f32 %v1667, %v2039
      %v2055 = vmul.f32 %v1668, %v2039
      %v2056 = vmul.f32 %v1669, %v2039
      %v2057 = vmul.f32 %v1670, %v2039
      %v2058 = vmul.f32 %v1671, %v2039
      %v2059 = vmul.f32 %v1672, %v2039
      %v2060 = vmul.f32 %v1673, %v2039
      %v2061 = vmul.f32 %v1674, %v2039
      %v2062 = vmul.f32 %v1675, %v2039
      %v2063 = vmul.f32 %v1676, %v2039
      %v2064 = vmul.f32 %v1677, %v2039
      %v2065 = vmul.f32 %v1678, %v2039
      %v2066 = vmul.f32 %v1679, %v2039
      %v2067 = vmul.f32 %v1680, %v2039
      %v2068 = vmul.f32 %v1681, %v2039
      %v2069 = vmul.f32 %v1682, %v2039
      %v2070 = vmul.f32 %v1683, %v2039
      %v2071 = vmul.f32 %v1684, %v2039
      %v2072 = vsel %vm333, %v2040, 0.0
      %2073 = vadd.xlane.f32.xlu0 %v2072
      %v2074 = vpop.xlane.xlu0 %2073
      %v2075 = vsel %vm333, %v2041, 0.0
      %2076 = vadd.xlane.f32.xlu0 %v2075
      %v2077 = vpop.xlane.xlu0 %2076
      %v2078 = vsel %vm333, %v2042, 0.0
      %2079 = vadd.xlane.f32.xlu0 %v2078
      %v2080 = vpop.xlane.xlu0 %2079
      %v2081 = vsel %vm333, %v2043, 0.0
      %2082 = vadd.xlane.f32.xlu0 %v2081
      %v2083 = vpop.xlane.xlu0 %2082
      %v2084 = vsel %vm333, %v2044, 0.0
      %2085 = vadd.xlane.f32.xlu0 %v2084
      %v2086 = vpop.xlane.xlu0 %2085
      %v2087 = vsel %vm333, %v2045, 0.0
      %2088 = vadd.xlane.f32.xlu0 %v2087
      %v2089 = vpop.xlane.xlu0 %2088
      %v2090 = vsel %vm333, %v2046, 0.0
      %2091 = vadd.xlane.f32.xlu0 %v2090
      %v2092 = vpop.xlane.xlu0 %2091
      %v2093 = vsel %vm333, %v2047, 0.0
      %2094 = vadd.xlane.f32.xlu0 %v2093
      %v2095 = vpop.xlane.xlu0 %2094
      %v2096 = vsel %vm333, %v2048, 0.0
      %2097 = vadd.xlane.f32.xlu0 %v2096
      %v2098 = vpop.xlane.xlu0 %2097
      %v2099 = vsel %vm333, %v2049, 0.0
      %2100 = vadd.xlane.f32.xlu0 %v2099
      %v2101 = vpop.xlane.xlu0 %2100
      %v2102 = vsel %vm333, %v2050, 0.0
      %2103 = vadd.xlane.f32.xlu0 %v2102
      %v2104 = vpop.xlane.xlu0 %2103
      %v2105 = vsel %vm333, %v2051, 0.0
      %2106 = vadd.xlane.f32.xlu0 %v2105
      %v2107 = vpop.xlane.xlu0 %2106
      %v2108 = vsel %vm333, %v2052, 0.0
      %2109 = vadd.xlane.f32.xlu0 %v2108
      %v2110 = vpop.xlane.xlu0 %2109
      %v2111 = vsel %vm333, %v2053, 0.0
      %2112 = vadd.xlane.f32.xlu0 %v2111
      %v2113 = vpop.xlane.xlu0 %2112
      %v2114 = vsel %vm333, %v2054, 0.0
      %2115 = vadd.xlane.f32.xlu0 %v2114
      %v2116 = vpop.xlane.xlu0 %2115
      %v2117 = vsel %vm333, %v2055, 0.0
      %2118 = vadd.xlane.f32.xlu0 %v2117
      %v2119 = vpop.xlane.xlu0 %2118
      %v2120 = vsel %vm333, %v2056, 0.0
      %2121 = vadd.xlane.f32.xlu0 %v2120
      %v2122 = vpop.xlane.xlu0 %2121
      %v2123 = vsel %vm333, %v2057, 0.0
      %2124 = vadd.xlane.f32.xlu0 %v2123
      %v2125 = vpop.xlane.xlu0 %2124
      %v2126 = vsel %vm333, %v2058, 0.0
      %2127 = vadd.xlane.f32.xlu0 %v2126
      %v2128 = vpop.xlane.xlu0 %2127
      %v2129 = vsel %vm333, %v2059, 0.0
      %2130 = vadd.xlane.f32.xlu0 %v2129
      %v2131 = vpop.xlane.xlu0 %2130
      %v2132 = vsel %vm333, %v2060, 0.0
      %2133 = vadd.xlane.f32.xlu0 %v2132
      %v2134 = vpop.xlane.xlu0 %2133
      %v2135 = vsel %vm333, %v2061, 0.0
      %2136 = vadd.xlane.f32.xlu0 %v2135
      %v2137 = vpop.xlane.xlu0 %2136
      %v2138 = vsel %vm333, %v2062, 0.0
      %2139 = vadd.xlane.f32.xlu0 %v2138
      %v2140 = vpop.xlane.xlu0 %2139
      %v2141 = vsel %vm333, %v2063, 0.0
      %2142 = vadd.xlane.f32.xlu0 %v2141
      %v2143 = vpop.xlane.xlu0 %2142
      %v2144 = vsel %vm333, %v2064, 0.0
      %2145 = vadd.xlane.f32.xlu0 %v2144
      %v2146 = vpop.xlane.xlu0 %2145
      %v2147 = vsel %vm333, %v2065, 0.0
      %2148 = vadd.xlane.f32.xlu0 %v2147
      %v2149 = vpop.xlane.xlu0 %2148
      %v2150 = vsel %vm333, %v2066, 0.0
      %2151 = vadd.xlane.f32.xlu0 %v2150
      %v2152 = vpop.xlane.xlu0 %2151
      %v2153 = vsel %vm333, %v2067, 0.0
      %2154 = vadd.xlane.f32.xlu0 %v2153
      %v2155 = vpop.xlane.xlu0 %2154
      %v2156 = vsel %vm333, %v2068, 0.0
      %2157 = vadd.xlane.f32.xlu0 %v2156
      %v2158 = vpop.xlane.xlu0 %2157
      %v2159 = vsel %vm333, %v2069, 0.0
      %2160 = vadd.xlane.f32.xlu0 %v2159
      %v2161 = vpop.xlane.xlu0 %2160
      %v2162 = vsel %vm333, %v2070, 0.0
      %2163 = vadd.xlane.f32.xlu0 %v2162
      %v2164 = vpop.xlane.xlu0 %2163
      %v2165 = vsel %vm333, %v2071, 0.0
      %2166 = vadd.xlane.f32.xlu0 %v2165
      %v2167 = vpop.xlane.xlu0 %2166
      %v2168 = vadd.f32 %v1621, %v2074
      %v2169 = vadd.f32 %v1622, %v2077
      %v2170 = vadd.f32 %v1623, %v2080
      %v2171 = vadd.f32 %v1624, %v2083
      %v2172 = vadd.f32 %v1625, %v2086
      %v2173 = vadd.f32 %v1626, %v2089
      %v2174 = vadd.f32 %v1627, %v2092
      %v2175 = vadd.f32 %v1628, %v2095
      %v2176 = vadd.f32 %v1629, %v2098
      %v2177 = vadd.f32 %v1630, %v2101
      %v2178 = vadd.f32 %v1631, %v2104
      %v2179 = vadd.f32 %v1632, %v2107
      %v2180 = vadd.f32 %v1633, %v2110
      %v2181 = vadd.f32 %v1634, %v2113
      %v2182 = vadd.f32 %v1635, %v2116
      %v2183 = vadd.f32 %v1636, %v2119
      %v2184 = vadd.f32 %v1637, %v2122
      %v2185 = vadd.f32 %v1638, %v2125
      %v2186 = vadd.f32 %v1639, %v2128
      %v2187 = vadd.f32 %v1640, %v2131
      %v2188 = vadd.f32 %v1641, %v2134
      %v2189 = vadd.f32 %v1642, %v2137
      %v2190 = vadd.f32 %v1643, %v2140
      %v2191 = vadd.f32 %v1644, %v2143
      %v2192 = vadd.f32 %v1645, %v2146
      %v2193 = vadd.f32 %v1646, %v2149
      %v2194 = vadd.f32 %v1647, %v2152
      %v2195 = vadd.f32 %v1648, %v2155
      %v2196 = vadd.f32 %v1649, %v2158
      %v2197 = vadd.f32 %v1650, %v2161
      %v2198 = vadd.f32 %v1651, %v2164
      %v2199 = vadd.f32 %v1652, %v2167
      %v2200 = vperm.slane %v229, 1
      %v2201 = vmul.f32 %v1685, %v2200
      %v2202 = vmul.f32 %v1686, %v2200
      %v2203 = vmul.f32 %v1687, %v2200
      %v2204 = vmul.f32 %v1688, %v2200
      %v2205 = vmul.f32 %v1689, %v2200
      %v2206 = vmul.f32 %v1690, %v2200
      %v2207 = vmul.f32 %v1691, %v2200
      %v2208 = vmul.f32 %v1692, %v2200
      %v2209 = vmul.f32 %v1693, %v2200
      %v2210 = vmul.f32 %v1694, %v2200
      %v2211 = vmul.f32 %v1695, %v2200
      %v2212 = vmul.f32 %v1696, %v2200
      %v2213 = vmul.f32 %v1697, %v2200
      %v2214 = vmul.f32 %v1698, %v2200
      %v2215 = vmul.f32 %v1699, %v2200
      %v2216 = vmul.f32 %v1700, %v2200
      %v2217 = vmul.f32 %v1701, %v2200
      %v2218 = vmul.f32 %v1702, %v2200
      %v2219 = vmul.f32 %v1703, %v2200
      %v2220 = vmul.f32 %v1704, %v2200
      %v2221 = vmul.f32 %v1705, %v2200
      %v2222 = vmul.f32 %v1706, %v2200
      %v2223 = vmul.f32 %v1707, %v2200
      %v2224 = vmul.f32 %v1708, %v2200
      %v2225 = vmul.f32 %v1709, %v2200
      %v2226 = vmul.f32 %v1710, %v2200
      %v2227 = vmul.f32 %v1711, %v2200
      %v2228 = vmul.f32 %v1712, %v2200
      %v2229 = vmul.f32 %v1713, %v2200
      %v2230 = vmul.f32 %v1714, %v2200
      %v2231 = vmul.f32 %v1715, %v2200
      %v2232 = vmul.f32 %v1716, %v2200
      %v2233 = vsel %vm333, %v2201, 0.0
      %2234 = vadd.xlane.f32.xlu0 %v2233
      %v2235 = vpop.xlane.xlu0 %2234
      %v2236 = vsel %vm333, %v2202, 0.0
      %2237 = vadd.xlane.f32.xlu0 %v2236
      %v2238 = vpop.xlane.xlu0 %2237
      %v2239 = vsel %vm333, %v2203, 0.0
      %2240 = vadd.xlane.f32.xlu0 %v2239
      %v2241 = vpop.xlane.xlu0 %2240
      %v2242 = vsel %vm333, %v2204, 0.0
      %2243 = vadd.xlane.f32.xlu0 %v2242
      %v2244 = vpop.xlane.xlu0 %2243
      %v2245 = vsel %vm333, %v2205, 0.0
      %2246 = vadd.xlane.f32.xlu0 %v2245
      %v2247 = vpop.xlane.xlu0 %2246
      %v2248 = vsel %vm333, %v2206, 0.0
      %2249 = vadd.xlane.f32.xlu0 %v2248
      %v2250 = vpop.xlane.xlu0 %2249
      %v2251 = vsel %vm333, %v2207, 0.0
      %2252 = vadd.xlane.f32.xlu0 %v2251
      %v2253 = vpop.xlane.xlu0 %2252
      %v2254 = vsel %vm333, %v2208, 0.0
      %2255 = vadd.xlane.f32.xlu0 %v2254
      %v2256 = vpop.xlane.xlu0 %2255
      %v2257 = vsel %vm333, %v2209, 0.0
      %2258 = vadd.xlane.f32.xlu0 %v2257
      %v2259 = vpop.xlane.xlu0 %2258
      %v2260 = vsel %vm333, %v2210, 0.0
      %2261 = vadd.xlane.f32.xlu0 %v2260
      %v2262 = vpop.xlane.xlu0 %2261
      %v2263 = vsel %vm333, %v2211, 0.0
      %2264 = vadd.xlane.f32.xlu0 %v2263
      %v2265 = vpop.xlane.xlu0 %2264
      %v2266 = vsel %vm333, %v2212, 0.0
      %2267 = vadd.xlane.f32.xlu0 %v2266
      %v2268 = vpop.xlane.xlu0 %2267
      %v2269 = vsel %vm333, %v2213, 0.0
      %2270 = vadd.xlane.f32.xlu0 %v2269
      %v2271 = vpop.xlane.xlu0 %2270
      %v2272 = vsel %vm333, %v2214, 0.0
      %2273 = vadd.xlane.f32.xlu0 %v2272
      %v2274 = vpop.xlane.xlu0 %2273
      %v2275 = vsel %vm333, %v2215, 0.0
      %2276 = vadd.xlane.f32.xlu0 %v2275
      %v2277 = vpop.xlane.xlu0 %2276
      %v2278 = vsel %vm333, %v2216, 0.0
      %2279 = vadd.xlane.f32.xlu0 %v2278
      %v2280 = vpop.xlane.xlu0 %2279
      %v2281 = vsel %vm333, %v2217, 0.0
      %2282 = vadd.xlane.f32.xlu0 %v2281
      %v2283 = vpop.xlane.xlu0 %2282
      %v2284 = vsel %vm333, %v2218, 0.0
      %2285 = vadd.xlane.f32.xlu0 %v2284
      %v2286 = vpop.xlane.xlu0 %2285
      %v2287 = vsel %vm333, %v2219, 0.0
      %2288 = vadd.xlane.f32.xlu0 %v2287
      %v2289 = vpop.xlane.xlu0 %2288
      %v2290 = vsel %vm333, %v2220, 0.0
      %2291 = vadd.xlane.f32.xlu0 %v2290
      %v2292 = vpop.xlane.xlu0 %2291
      %v2293 = vsel %vm333, %v2221, 0.0
      %2294 = vadd.xlane.f32.xlu0 %v2293
      %v2295 = vpop.xlane.xlu0 %2294
      %v2296 = vsel %vm333, %v2222, 0.0
      %2297 = vadd.xlane.f32.xlu0 %v2296
      %v2298 = vpop.xlane.xlu0 %2297
      %v2299 = vsel %vm333, %v2223, 0.0
      %2300 = vadd.xlane.f32.xlu0 %v2299
      %v2301 = vpop.xlane.xlu0 %2300
      %v2302 = vsel %vm333, %v2224, 0.0
      %2303 = vadd.xlane.f32.xlu0 %v2302
      %v2304 = vpop.xlane.xlu0 %2303
      %v2305 = vsel %vm333, %v2225, 0.0
      %2306 = vadd.xlane.f32.xlu0 %v2305
      %v2307 = vpop.xlane.xlu0 %2306
      %v2308 = vsel %vm333, %v2226, 0.0
      %2309 = vadd.xlane.f32.xlu0 %v2308
      %v2310 = vpop.xlane.xlu0 %2309
      %v2311 = vsel %vm333, %v2227, 0.0
      %2312 = vadd.xlane.f32.xlu0 %v2311
      %v2313 = vpop.xlane.xlu0 %2312
      %v2314 = vsel %vm333, %v2228, 0.0
      %2315 = vadd.xlane.f32.xlu0 %v2314
      %v2316 = vpop.xlane.xlu0 %2315
      %v2317 = vsel %vm333, %v2229, 0.0
      %2318 = vadd.xlane.f32.xlu0 %v2317
      %v2319 = vpop.xlane.xlu0 %2318
      %v2320 = vsel %vm333, %v2230, 0.0
      %2321 = vadd.xlane.f32.xlu0 %v2320
      %v2322 = vpop.xlane.xlu0 %2321
      %v2323 = vsel %vm333, %v2231, 0.0
      %2324 = vadd.xlane.f32.xlu0 %v2323
      %v2325 = vpop.xlane.xlu0 %2324
      %v2326 = vsel %vm333, %v2232, 0.0
      %2327 = vadd.xlane.f32.xlu0 %v2326
      %v2328 = vpop.xlane.xlu0 %2327
      %v2329 = vadd.f32 %v2168, %v2235
      %v2330 = vadd.f32 %v2169, %v2238
      %v2331 = vadd.f32 %v2170, %v2241
      %v2332 = vadd.f32 %v2171, %v2244
      %v2333 = vadd.f32 %v2172, %v2247
      %v2334 = vadd.f32 %v2173, %v2250
      %v2335 = vadd.f32 %v2174, %v2253
      %v2336 = vadd.f32 %v2175, %v2256
      %v2337 = vadd.f32 %v2176, %v2259
      %v2338 = vadd.f32 %v2177, %v2262
      %v2339 = vadd.f32 %v2178, %v2265
      %v2340 = vadd.f32 %v2179, %v2268
      %v2341 = vadd.f32 %v2180, %v2271
      %v2342 = vadd.f32 %v2181, %v2274
      %v2343 = vadd.f32 %v2182, %v2277
      %v2344 = vadd.f32 %v2183, %v2280
      %v2345 = vadd.f32 %v2184, %v2283
      %v2346 = vadd.f32 %v2185, %v2286
      %v2347 = vadd.f32 %v2186, %v2289
      %v2348 = vadd.f32 %v2187, %v2292
      %v2349 = vadd.f32 %v2188, %v2295
      %v2350 = vadd.f32 %v2189, %v2298
      %v2351 = vadd.f32 %v2190, %v2301
      %v2352 = vadd.f32 %v2191, %v2304
      %v2353 = vadd.f32 %v2192, %v2307
      %v2354 = vadd.f32 %v2193, %v2310
      %v2355 = vadd.f32 %v2194, %v2313
      %v2356 = vadd.f32 %v2195, %v2316
      %v2357 = vadd.f32 %v2196, %v2319
      %v2358 = vadd.f32 %v2197, %v2322
      %v2359 = vadd.f32 %v2198, %v2325
      %v2360 = vadd.f32 %v2199, %v2328
      %s2361 = scalar_lea.vmem %s207, 24
      %v2362 = vld [vmem:[%s2361] sm:$0xff]
      %v2363 = vld [vmem:[%s2361 + $0x8] sm:$0xff]
      %v2364 = vld [vmem:[%s2361 + $0x18] sm:$0xff]
      %v2365 = vld [vmem:[%s2361 + $0x20] sm:$0xff]
      %v2366 = vld [vmem:[%s2361 + $0x30] sm:$0xff]
      %v2367 = vld [vmem:[%s2361 + $0x38] sm:$0xff]
      %v2368 = vld [vmem:[%s2361 + $0x48] sm:$0xff]
      %v2369 = vld [vmem:[%s2361 + $0x50] sm:$0xff]
      %v2370 = vld [vmem:[%s2361 + $0x60] sm:$0xff]
      %v2371 = vld [vmem:[%s2361 + $0x68] sm:$0xff]
      %v2372 = vld [vmem:[%s2361 + $0x78] sm:$0xff]
      %v2373 = vld [vmem:[%s2361 + $0x80] sm:$0xff]
      %v2374 = vld [vmem:[%s2361 + $0x90] sm:$0xff]
      %v2375 = vld [vmem:[%s2361 + $0x98] sm:$0xff]
      %v2376 = vld [vmem:[%s2361 + $0xa8] sm:$0xff]
      %v2377 = vld [vmem:[%s2361 + $0xb0] sm:$0xff]
      %v2378 = vld [vmem:[%s2361 + $0xc0] sm:$0xff]
      %v2379 = vld [vmem:[%s2361 + $0xc8] sm:$0xff]
      %v2380 = vld [vmem:[%s2361 + $0xd8] sm:$0xff]
      %v2381 = vld [vmem:[%s2361 + $0xe0] sm:$0xff]
      %v2382 = vld [vmem:[%s2361 + $0xf0] sm:$0xff]
      %v2383 = vld [vmem:[%s2361 + $0xf8] sm:$0xff]
      %v2384 = vld [vmem:[%s2361 + $0x108] sm:$0xff]
      %v2385 = vld [vmem:[%s2361 + $0x110] sm:$0xff]
      %v2386 = vld [vmem:[%s2361 + $0x120] sm:$0xff]
      %v2387 = vld [vmem:[%s2361 + $0x128] sm:$0xff]
      %v2388 = vld [vmem:[%s2361 + $0x138] sm:$0xff]
      %v2389 = vld [vmem:[%s2361 + $0x140] sm:$0xff]
      %v2390 = vld [vmem:[%s2361 + $0x150] sm:$0xff]
      %v2391 = vld [vmem:[%s2361 + $0x158] sm:$0xff]
      %v2392 = vld [vmem:[%s2361 + $0x168] sm:$0xff]
      %v2393 = vld [vmem:[%s2361 + $0x170] sm:$0xff]
      %s2394 = scalar_lea.vmem %s212, 24
      %v2395 = vld [vmem:[%s2394] sm:$0xff]
      %v2396 = vld [vmem:[%s2394 + $0x8] sm:$0xff]
      %v2397 = vld [vmem:[%s2394 + $0x18] sm:$0xff]
      %v2398 = vld [vmem:[%s2394 + $0x20] sm:$0xff]
      %v2399 = vld [vmem:[%s2394 + $0x30] sm:$0xff]
      %v2400 = vld [vmem:[%s2394 + $0x38] sm:$0xff]
      %v2401 = vld [vmem:[%s2394 + $0x48] sm:$0xff]
      %v2402 = vld [vmem:[%s2394 + $0x50] sm:$0xff]
      %v2403 = vld [vmem:[%s2394 + $0x60] sm:$0xff]
      %v2404 = vld [vmem:[%s2394 + $0x68] sm:$0xff]
      %v2405 = vld [vmem:[%s2394 + $0x78] sm:$0xff]
      %v2406 = vld [vmem:[%s2394 + $0x80] sm:$0xff]
      %v2407 = vld [vmem:[%s2394 + $0x90] sm:$0xff]
      %v2408 = vld [vmem:[%s2394 + $0x98] sm:$0xff]
      %v2409 = vld [vmem:[%s2394 + $0xa8] sm:$0xff]
      %v2410 = vld [vmem:[%s2394 + $0xb0] sm:$0xff]
      %v2411 = vld [vmem:[%s2394 + $0xc0] sm:$0xff]
      %v2412 = vld [vmem:[%s2394 + $0xc8] sm:$0xff]
      %v2413 = vld [vmem:[%s2394 + $0xd8] sm:$0xff]
      %v2414 = vld [vmem:[%s2394 + $0xe0] sm:$0xff]
      %v2415 = vld [vmem:[%s2394 + $0xf0] sm:$0xff]
      %v2416 = vld [vmem:[%s2394 + $0xf8] sm:$0xff]
      %v2417 = vld [vmem:[%s2394 + $0x108] sm:$0xff]
      %v2418 = vld [vmem:[%s2394 + $0x110] sm:$0xff]
      %v2419 = vld [vmem:[%s2394 + $0x120] sm:$0xff]
      %v2420 = vld [vmem:[%s2394 + $0x128] sm:$0xff]
      %v2421 = vld [vmem:[%s2394 + $0x138] sm:$0xff]
      %v2422 = vld [vmem:[%s2394 + $0x140] sm:$0xff]
      %v2423 = vld [vmem:[%s2394 + $0x150] sm:$0xff]
      %v2424 = vld [vmem:[%s2394 + $0x158] sm:$0xff]
      %v2425 = vld [vmem:[%s2394 + $0x168] sm:$0xff]
      %v2426 = vld [vmem:[%s2394 + $0x170] sm:$0xff]
      %v2427 = vperm.slane %v221, 0
      %v2428 = vmul.f32 %v2362, %v2427
      %v2429 = vmul.f32 %v2363, %v2427
      %v2430 = vmul.f32 %v2364, %v2427
      %v2431 = vmul.f32 %v2365, %v2427
      %v2432 = vmul.f32 %v2366, %v2427
      %v2433 = vmul.f32 %v2367, %v2427
      %v2434 = vmul.f32 %v2368, %v2427
      %v2435 = vmul.f32 %v2369, %v2427
      %v2436 = vmul.f32 %v2370, %v2427
      %v2437 = vmul.f32 %v2371, %v2427
      %v2438 = vmul.f32 %v2372, %v2427
      %v2439 = vmul.f32 %v2373, %v2427
      %v2440 = vmul.f32 %v2374, %v2427
      %v2441 = vmul.f32 %v2375, %v2427
      %v2442 = vmul.f32 %v2376, %v2427
      %v2443 = vmul.f32 %v2377, %v2427
      %v2444 = vmul.f32 %v2378, %v2427
      %v2445 = vmul.f32 %v2379, %v2427
      %v2446 = vmul.f32 %v2380, %v2427
      %v2447 = vmul.f32 %v2381, %v2427
      %v2448 = vmul.f32 %v2382, %v2427
      %v2449 = vmul.f32 %v2383, %v2427
      %v2450 = vmul.f32 %v2384, %v2427
      %v2451 = vmul.f32 %v2385, %v2427
      %v2452 = vmul.f32 %v2386, %v2427
      %v2453 = vmul.f32 %v2387, %v2427
      %v2454 = vmul.f32 %v2388, %v2427
      %v2455 = vmul.f32 %v2389, %v2427
      %v2456 = vmul.f32 %v2390, %v2427
      %v2457 = vmul.f32 %v2391, %v2427
      %v2458 = vmul.f32 %v2392, %v2427
      %v2459 = vmul.f32 %v2393, %v2427
      %v2460 = vsel %vm333, %v2428, 0.0
      %2461 = vadd.xlane.f32.xlu0 %v2460
      %v2462 = vpop.xlane.xlu0 %2461
      %v2463 = vsel %vm333, %v2429, 0.0
      %2464 = vadd.xlane.f32.xlu0 %v2463
      %v2465 = vpop.xlane.xlu0 %2464
      %v2466 = vsel %vm333, %v2430, 0.0
      %2467 = vadd.xlane.f32.xlu0 %v2466
      %v2468 = vpop.xlane.xlu0 %2467
      %v2469 = vsel %vm333, %v2431, 0.0
      %2470 = vadd.xlane.f32.xlu0 %v2469
      %v2471 = vpop.xlane.xlu0 %2470
      %v2472 = vsel %vm333, %v2432, 0.0
      %2473 = vadd.xlane.f32.xlu0 %v2472
      %v2474 = vpop.xlane.xlu0 %2473
      %v2475 = vsel %vm333, %v2433, 0.0
      %2476 = vadd.xlane.f32.xlu0 %v2475
      %v2477 = vpop.xlane.xlu0 %2476
      %v2478 = vsel %vm333, %v2434, 0.0
      %2479 = vadd.xlane.f32.xlu0 %v2478
      %v2480 = vpop.xlane.xlu0 %2479
      %v2481 = vsel %vm333, %v2435, 0.0
      %2482 = vadd.xlane.f32.xlu0 %v2481
      %v2483 = vpop.xlane.xlu0 %2482
      %v2484 = vsel %vm333, %v2436, 0.0
      %2485 = vadd.xlane.f32.xlu0 %v2484
      %v2486 = vpop.xlane.xlu0 %2485
      %v2487 = vsel %vm333, %v2437, 0.0
      %2488 = vadd.xlane.f32.xlu0 %v2487
      %v2489 = vpop.xlane.xlu0 %2488
      %v2490 = vsel %vm333, %v2438, 0.0
      %2491 = vadd.xlane.f32.xlu0 %v2490
      %v2492 = vpop.xlane.xlu0 %2491
      %v2493 = vsel %vm333, %v2439, 0.0
      %2494 = vadd.xlane.f32.xlu0 %v2493
      %v2495 = vpop.xlane.xlu0 %2494
      %v2496 = vsel %vm333, %v2440, 0.0
      %2497 = vadd.xlane.f32.xlu0 %v2496
      %v2498 = vpop.xlane.xlu0 %2497
      %v2499 = vsel %vm333, %v2441, 0.0
      %2500 = vadd.xlane.f32.xlu0 %v2499
      %v2501 = vpop.xlane.xlu0 %2500
      %v2502 = vsel %vm333, %v2442, 0.0
      %2503 = vadd.xlane.f32.xlu0 %v2502
      %v2504 = vpop.xlane.xlu0 %2503
      %v2505 = vsel %vm333, %v2443, 0.0
      %2506 = vadd.xlane.f32.xlu0 %v2505
      %v2507 = vpop.xlane.xlu0 %2506
      %v2508 = vsel %vm333, %v2444, 0.0
      %2509 = vadd.xlane.f32.xlu0 %v2508
      %v2510 = vpop.xlane.xlu0 %2509
      %v2511 = vsel %vm333, %v2445, 0.0
      %2512 = vadd.xlane.f32.xlu0 %v2511
      %v2513 = vpop.xlane.xlu0 %2512
      %v2514 = vsel %vm333, %v2446, 0.0
      %2515 = vadd.xlane.f32.xlu0 %v2514
      %v2516 = vpop.xlane.xlu0 %2515
      %v2517 = vsel %vm333, %v2447, 0.0
      %2518 = vadd.xlane.f32.xlu0 %v2517
      %v2519 = vpop.xlane.xlu0 %2518
      %v2520 = vsel %vm333, %v2448, 0.0
      %2521 = vadd.xlane.f32.xlu0 %v2520
      %v2522 = vpop.xlane.xlu0 %2521
      %v2523 = vsel %vm333, %v2449, 0.0
      %2524 = vadd.xlane.f32.xlu0 %v2523
      %v2525 = vpop.xlane.xlu0 %2524
      %v2526 = vsel %vm333, %v2450, 0.0
      %2527 = vadd.xlane.f32.xlu0 %v2526
      %v2528 = vpop.xlane.xlu0 %2527
      %v2529 = vsel %vm333, %v2451, 0.0
      %2530 = vadd.xlane.f32.xlu0 %v2529
      %v2531 = vpop.xlane.xlu0 %2530
      %v2532 = vsel %vm333, %v2452, 0.0
      %2533 = vadd.xlane.f32.xlu0 %v2532
      %v2534 = vpop.xlane.xlu0 %2533
      %v2535 = vsel %vm333, %v2453, 0.0
      %2536 = vadd.xlane.f32.xlu0 %v2535
      %v2537 = vpop.xlane.xlu0 %2536
      %v2538 = vsel %vm333, %v2454, 0.0
      %2539 = vadd.xlane.f32.xlu0 %v2538
      %v2540 = vpop.xlane.xlu0 %2539
      %v2541 = vsel %vm333, %v2455, 0.0
      %2542 = vadd.xlane.f32.xlu0 %v2541
      %v2543 = vpop.xlane.xlu0 %2542
      %v2544 = vsel %vm333, %v2456, 0.0
      %2545 = vadd.xlane.f32.xlu0 %v2544
      %v2546 = vpop.xlane.xlu0 %2545
      %v2547 = vsel %vm333, %v2457, 0.0
      %2548 = vadd.xlane.f32.xlu0 %v2547
      %v2549 = vpop.xlane.xlu0 %2548
      %v2550 = vsel %vm333, %v2458, 0.0
      %2551 = vadd.xlane.f32.xlu0 %v2550
      %v2552 = vpop.xlane.xlu0 %2551
      %v2553 = vsel %vm333, %v2459, 0.0
      %2554 = vadd.xlane.f32.xlu0 %v2553
      %v2555 = vpop.xlane.xlu0 %2554
      %v2556 = vadd.f32 %v2007, %v2462
      %v2557 = vadd.f32 %v2008, %v2465
      %v2558 = vadd.f32 %v2009, %v2468
      %v2559 = vadd.f32 %v2010, %v2471
      %v2560 = vadd.f32 %v2011, %v2474
      %v2561 = vadd.f32 %v2012, %v2477
      %v2562 = vadd.f32 %v2013, %v2480
      %v2563 = vadd.f32 %v2014, %v2483
      %v2564 = vadd.f32 %v2015, %v2486
      %v2565 = vadd.f32 %v2016, %v2489
      %v2566 = vadd.f32 %v2017, %v2492
      %v2567 = vadd.f32 %v2018, %v2495
      %v2568 = vadd.f32 %v2019, %v2498
      %v2569 = vadd.f32 %v2020, %v2501
      %v2570 = vadd.f32 %v2021, %v2504
      %v2571 = vadd.f32 %v2022, %v2507
      %v2572 = vadd.f32 %v2023, %v2510
      %v2573 = vadd.f32 %v2024, %v2513
      %v2574 = vadd.f32 %v2025, %v2516
      %v2575 = vadd.f32 %v2026, %v2519
      %v2576 = vadd.f32 %v2027, %v2522
      %v2577 = vadd.f32 %v2028, %v2525
      %v2578 = vadd.f32 %v2029, %v2528
      %v2579 = vadd.f32 %v2030, %v2531
      %v2580 = vadd.f32 %v2031, %v2534
      %v2581 = vadd.f32 %v2032, %v2537
      %v2582 = vadd.f32 %v2033, %v2540
      %v2583 = vadd.f32 %v2034, %v2543
      %v2584 = vadd.f32 %v2035, %v2546
      %v2585 = vadd.f32 %v2036, %v2549
      %v2586 = vadd.f32 %v2037, %v2552
      %v2587 = vadd.f32 %v2038, %v2555
      %v2588 = vperm.slane %v230, 0
      %v2589 = vmul.f32 %v2395, %v2588
      %v2590 = vmul.f32 %v2396, %v2588
      %v2591 = vmul.f32 %v2397, %v2588
      %v2592 = vmul.f32 %v2398, %v2588
      %v2593 = vmul.f32 %v2399, %v2588
      %v2594 = vmul.f32 %v2400, %v2588
      %v2595 = vmul.f32 %v2401, %v2588
      %v2596 = vmul.f32 %v2402, %v2588
      %v2597 = vmul.f32 %v2403, %v2588
      %v2598 = vmul.f32 %v2404, %v2588
      %v2599 = vmul.f32 %v2405, %v2588
      %v2600 = vmul.f32 %v2406, %v2588
      %v2601 = vmul.f32 %v2407, %v2588
      %v2602 = vmul.f32 %v2408, %v2588
      %v2603 = vmul.f32 %v2409, %v2588
      %v2604 = vmul.f32 %v2410, %v2588
      %v2605 = vmul.f32 %v2411, %v2588
      %v2606 = vmul.f32 %v2412, %v2588
      %v2607 = vmul.f32 %v2413, %v2588
      %v2608 = vmul.f32 %v2414, %v2588
      %v2609 = vmul.f32 %v2415, %v2588
      %v2610 = vmul.f32 %v2416, %v2588
      %v2611 = vmul.f32 %v2417, %v2588
      %v2612 = vmul.f32 %v2418, %v2588
      %v2613 = vmul.f32 %v2419, %v2588
      %v2614 = vmul.f32 %v2420, %v2588
      %v2615 = vmul.f32 %v2421, %v2588
      %v2616 = vmul.f32 %v2422, %v2588
      %v2617 = vmul.f32 %v2423, %v2588
      %v2618 = vmul.f32 %v2424, %v2588
      %v2619 = vmul.f32 %v2425, %v2588
      %v2620 = vmul.f32 %v2426, %v2588
      %v2621 = vsel %vm333, %v2589, 0.0
      %2622 = vadd.xlane.f32.xlu0 %v2621
      %v2623 = vpop.xlane.xlu0 %2622
      %v2624 = vsel %vm333, %v2590, 0.0
      %2625 = vadd.xlane.f32.xlu0 %v2624
      %v2626 = vpop.xlane.xlu0 %2625
      %v2627 = vsel %vm333, %v2591, 0.0
      %2628 = vadd.xlane.f32.xlu0 %v2627
      %v2629 = vpop.xlane.xlu0 %2628
      %v2630 = vsel %vm333, %v2592, 0.0
      %2631 = vadd.xlane.f32.xlu0 %v2630
      %v2632 = vpop.xlane.xlu0 %2631
      %v2633 = vsel %vm333, %v2593, 0.0
      %2634 = vadd.xlane.f32.xlu0 %v2633
      %v2635 = vpop.xlane.xlu0 %2634
      %v2636 = vsel %vm333, %v2594, 0.0
      %2637 = vadd.xlane.f32.xlu0 %v2636
      %v2638 = vpop.xlane.xlu0 %2637
      %v2639 = vsel %vm333, %v2595, 0.0
      %2640 = vadd.xlane.f32.xlu0 %v2639
      %v2641 = vpop.xlane.xlu0 %2640
      %v2642 = vsel %vm333, %v2596, 0.0
      %2643 = vadd.xlane.f32.xlu0 %v2642
      %v2644 = vpop.xlane.xlu0 %2643
      %v2645 = vsel %vm333, %v2597, 0.0
      %2646 = vadd.xlane.f32.xlu0 %v2645
      %v2647 = vpop.xlane.xlu0 %2646
      %v2648 = vsel %vm333, %v2598, 0.0
      %2649 = vadd.xlane.f32.xlu0 %v2648
      %v2650 = vpop.xlane.xlu0 %2649
      %v2651 = vsel %vm333, %v2599, 0.0
      %2652 = vadd.xlane.f32.xlu0 %v2651
      %v2653 = vpop.xlane.xlu0 %2652
      %v2654 = vsel %vm333, %v2600, 0.0
      %2655 = vadd.xlane.f32.xlu0 %v2654
      %v2656 = vpop.xlane.xlu0 %2655
      %v2657 = vsel %vm333, %v2601, 0.0
      %2658 = vadd.xlane.f32.xlu0 %v2657
      %v2659 = vpop.xlane.xlu0 %2658
      %v2660 = vsel %vm333, %v2602, 0.0
      %2661 = vadd.xlane.f32.xlu0 %v2660
      %v2662 = vpop.xlane.xlu0 %2661
      %v2663 = vsel %vm333, %v2603, 0.0
      %2664 = vadd.xlane.f32.xlu0 %v2663
      %v2665 = vpop.xlane.xlu0 %2664
      %v2666 = vsel %vm333, %v2604, 0.0
      %2667 = vadd.xlane.f32.xlu0 %v2666
      %v2668 = vpop.xlane.xlu0 %2667
      %v2669 = vsel %vm333, %v2605, 0.0
      %2670 = vadd.xlane.f32.xlu0 %v2669
      %v2671 = vpop.xlane.xlu0 %2670
      %v2672 = vsel %vm333, %v2606, 0.0
      %2673 = vadd.xlane.f32.xlu0 %v2672
      %v2674 = vpop.xlane.xlu0 %2673
      %v2675 = vsel %vm333, %v2607, 0.0
      %2676 = vadd.xlane.f32.xlu0 %v2675
      %v2677 = vpop.xlane.xlu0 %2676
      %v2678 = vsel %vm333, %v2608, 0.0
      %2679 = vadd.xlane.f32.xlu0 %v2678
      %v2680 = vpop.xlane.xlu0 %2679
      %v2681 = vsel %vm333, %v2609, 0.0
      %2682 = vadd.xlane.f32.xlu0 %v2681
      %v2683 = vpop.xlane.xlu0 %2682
      %v2684 = vsel %vm333, %v2610, 0.0
      %2685 = vadd.xlane.f32.xlu0 %v2684
      %v2686 = vpop.xlane.xlu0 %2685
      %v2687 = vsel %vm333, %v2611, 0.0
      %2688 = vadd.xlane.f32.xlu0 %v2687
      %v2689 = vpop.xlane.xlu0 %2688
      %v2690 = vsel %vm333, %v2612, 0.0
      %2691 = vadd.xlane.f32.xlu0 %v2690
      %v2692 = vpop.xlane.xlu0 %2691
      %v2693 = vsel %vm333, %v2613, 0.0
      %2694 = vadd.xlane.f32.xlu0 %v2693
      %v2695 = vpop.xlane.xlu0 %2694
      %v2696 = vsel %vm333, %v2614, 0.0
      %2697 = vadd.xlane.f32.xlu0 %v2696
      %v2698 = vpop.xlane.xlu0 %2697
      %v2699 = vsel %vm333, %v2615, 0.0
      %2700 = vadd.xlane.f32.xlu0 %v2699
      %v2701 = vpop.xlane.xlu0 %2700
      %v2702 = vsel %vm333, %v2616, 0.0
      %2703 = vadd.xlane.f32.xlu0 %v2702
      %v2704 = vpop.xlane.xlu0 %2703
      %v2705 = vsel %vm333, %v2617, 0.0
      %2706 = vadd.xlane.f32.xlu0 %v2705
      %v2707 = vpop.xlane.xlu0 %2706
      %v2708 = vsel %vm333, %v2618, 0.0
      %2709 = vadd.xlane.f32.xlu0 %v2708
      %v2710 = vpop.xlane.xlu0 %2709
      %v2711 = vsel %vm333, %v2619, 0.0
      %2712 = vadd.xlane.f32.xlu0 %v2711
      %v2713 = vpop.xlane.xlu0 %2712
      %v2714 = vsel %vm333, %v2620, 0.0
      %2715 = vadd.xlane.f32.xlu0 %v2714
      %v2716 = vpop.xlane.xlu0 %2715
      %v2717 = vadd.f32 %v2556, %v2623
      %v2718 = vadd.f32 %v2557, %v2626
      %v2719 = vadd.f32 %v2558, %v2629
      %v2720 = vadd.f32 %v2559, %v2632
      %v2721 = vadd.f32 %v2560, %v2635
      %v2722 = vadd.f32 %v2561, %v2638
      %v2723 = vadd.f32 %v2562, %v2641
      %v2724 = vadd.f32 %v2563, %v2644
      %v2725 = vadd.f32 %v2564, %v2647
      %v2726 = vadd.f32 %v2565, %v2650
      %v2727 = vadd.f32 %v2566, %v2653
      %v2728 = vadd.f32 %v2567, %v2656
      %v2729 = vadd.f32 %v2568, %v2659
      %v2730 = vadd.f32 %v2569, %v2662
      %v2731 = vadd.f32 %v2570, %v2665
      %v2732 = vadd.f32 %v2571, %v2668
      %v2733 = vadd.f32 %v2572, %v2671
      %v2734 = vadd.f32 %v2573, %v2674
      %v2735 = vadd.f32 %v2574, %v2677
      %v2736 = vadd.f32 %v2575, %v2680
      %v2737 = vadd.f32 %v2576, %v2683
      %v2738 = vadd.f32 %v2577, %v2686
      %v2739 = vadd.f32 %v2578, %v2689
      %v2740 = vadd.f32 %v2579, %v2692
      %v2741 = vadd.f32 %v2580, %v2695
      %v2742 = vadd.f32 %v2581, %v2698
      %v2743 = vadd.f32 %v2582, %v2701
      %v2744 = vadd.f32 %v2583, %v2704
      %v2745 = vadd.f32 %v2584, %v2707
      %v2746 = vadd.f32 %v2585, %v2710
      %v2747 = vadd.f32 %v2586, %v2713
      %v2748 = vadd.f32 %v2587, %v2716
      %v2749 = vperm.slane %v221, 1
      %v2750 = vmul.f32 %v2362, %v2749
      %v2751 = vmul.f32 %v2363, %v2749
      %v2752 = vmul.f32 %v2364, %v2749
      %v2753 = vmul.f32 %v2365, %v2749
      %v2754 = vmul.f32 %v2366, %v2749
      %v2755 = vmul.f32 %v2367, %v2749
      %v2756 = vmul.f32 %v2368, %v2749
      %v2757 = vmul.f32 %v2369, %v2749
      %v2758 = vmul.f32 %v2370, %v2749
      %v2759 = vmul.f32 %v2371, %v2749
      %v2760 = vmul.f32 %v2372, %v2749
      %v2761 = vmul.f32 %v2373, %v2749
      %v2762 = vmul.f32 %v2374, %v2749
      %v2763 = vmul.f32 %v2375, %v2749
      %v2764 = vmul.f32 %v2376, %v2749
      %v2765 = vmul.f32 %v2377, %v2749
      %v2766 = vmul.f32 %v2378, %v2749
      %v2767 = vmul.f32 %v2379, %v2749
      %v2768 = vmul.f32 %v2380, %v2749
      %v2769 = vmul.f32 %v2381, %v2749
      %v2770 = vmul.f32 %v2382, %v2749
      %v2771 = vmul.f32 %v2383, %v2749
      %v2772 = vmul.f32 %v2384, %v2749
      %v2773 = vmul.f32 %v2385, %v2749
      %v2774 = vmul.f32 %v2386, %v2749
      %v2775 = vmul.f32 %v2387, %v2749
      %v2776 = vmul.f32 %v2388, %v2749
      %v2777 = vmul.f32 %v2389, %v2749
      %v2778 = vmul.f32 %v2390, %v2749
      %v2779 = vmul.f32 %v2391, %v2749
      %v2780 = vmul.f32 %v2392, %v2749
      %v2781 = vmul.f32 %v2393, %v2749
      %v2782 = vsel %vm333, %v2750, 0.0
      %2783 = vadd.xlane.f32.xlu0 %v2782
      %v2784 = vpop.xlane.xlu0 %2783
      %v2785 = vsel %vm333, %v2751, 0.0
      %2786 = vadd.xlane.f32.xlu0 %v2785
      %v2787 = vpop.xlane.xlu0 %2786
      %v2788 = vsel %vm333, %v2752, 0.0
      %2789 = vadd.xlane.f32.xlu0 %v2788
      %v2790 = vpop.xlane.xlu0 %2789
      %v2791 = vsel %vm333, %v2753, 0.0
      %2792 = vadd.xlane.f32.xlu0 %v2791
      %v2793 = vpop.xlane.xlu0 %2792
      %v2794 = vsel %vm333, %v2754, 0.0
      %2795 = vadd.xlane.f32.xlu0 %v2794
      %v2796 = vpop.xlane.xlu0 %2795
      %v2797 = vsel %vm333, %v2755, 0.0
      %2798 = vadd.xlane.f32.xlu0 %v2797
      %v2799 = vpop.xlane.xlu0 %2798
      %v2800 = vsel %vm333, %v2756, 0.0
      %2801 = vadd.xlane.f32.xlu0 %v2800
      %v2802 = vpop.xlane.xlu0 %2801
      %v2803 = vsel %vm333, %v2757, 0.0
      %2804 = vadd.xlane.f32.xlu0 %v2803
      %v2805 = vpop.xlane.xlu0 %2804
      %v2806 = vsel %vm333, %v2758, 0.0
      %2807 = vadd.xlane.f32.xlu0 %v2806
      %v2808 = vpop.xlane.xlu0 %2807
      %v2809 = vsel %vm333, %v2759, 0.0
      %2810 = vadd.xlane.f32.xlu0 %v2809
      %v2811 = vpop.xlane.xlu0 %2810
      %v2812 = vsel %vm333, %v2760, 0.0
      %2813 = vadd.xlane.f32.xlu0 %v2812
      %v2814 = vpop.xlane.xlu0 %2813
      %v2815 = vsel %vm333, %v2761, 0.0
      %2816 = vadd.xlane.f32.xlu0 %v2815
      %v2817 = vpop.xlane.xlu0 %2816
      %v2818 = vsel %vm333, %v2762, 0.0
      %2819 = vadd.xlane.f32.xlu0 %v2818
      %v2820 = vpop.xlane.xlu0 %2819
      %v2821 = vsel %vm333, %v2763, 0.0
      %2822 = vadd.xlane.f32.xlu0 %v2821
      %v2823 = vpop.xlane.xlu0 %2822
      %v2824 = vsel %vm333, %v2764, 0.0
      %2825 = vadd.xlane.f32.xlu0 %v2824
      %v2826 = vpop.xlane.xlu0 %2825
      %v2827 = vsel %vm333, %v2765, 0.0
      %2828 = vadd.xlane.f32.xlu0 %v2827
      %v2829 = vpop.xlane.xlu0 %2828
      %v2830 = vsel %vm333, %v2766, 0.0
      %2831 = vadd.xlane.f32.xlu0 %v2830
      %v2832 = vpop.xlane.xlu0 %2831
      %v2833 = vsel %vm333, %v2767, 0.0
      %2834 = vadd.xlane.f32.xlu0 %v2833
      %v2835 = vpop.xlane.xlu0 %2834
      %v2836 = vsel %vm333, %v2768, 0.0
      %2837 = vadd.xlane.f32.xlu0 %v2836
      %v2838 = vpop.xlane.xlu0 %2837
      %v2839 = vsel %vm333, %v2769, 0.0
      %2840 = vadd.xlane.f32.xlu0 %v2839
      %v2841 = vpop.xlane.xlu0 %2840
      %v2842 = vsel %vm333, %v2770, 0.0
      %2843 = vadd.xlane.f32.xlu0 %v2842
      %v2844 = vpop.xlane.xlu0 %2843
      %v2845 = vsel %vm333, %v2771, 0.0
      %2846 = vadd.xlane.f32.xlu0 %v2845
      %v2847 = vpop.xlane.xlu0 %2846
      %v2848 = vsel %vm333, %v2772, 0.0
      %2849 = vadd.xlane.f32.xlu0 %v2848
      %v2850 = vpop.xlane.xlu0 %2849
      %v2851 = vsel %vm333, %v2773, 0.0
      %2852 = vadd.xlane.f32.xlu0 %v2851
      %v2853 = vpop.xlane.xlu0 %2852
      %v2854 = vsel %vm333, %v2774, 0.0
      %2855 = vadd.xlane.f32.xlu0 %v2854
      %v2856 = vpop.xlane.xlu0 %2855
      %v2857 = vsel %vm333, %v2775, 0.0
      %2858 = vadd.xlane.f32.xlu0 %v2857
      %v2859 = vpop.xlane.xlu0 %2858
      %v2860 = vsel %vm333, %v2776, 0.0
      %2861 = vadd.xlane.f32.xlu0 %v2860
      %v2862 = vpop.xlane.xlu0 %2861
      %v2863 = vsel %vm333, %v2777, 0.0
      %2864 = vadd.xlane.f32.xlu0 %v2863
      %v2865 = vpop.xlane.xlu0 %2864
      %v2866 = vsel %vm333, %v2778, 0.0
      %2867 = vadd.xlane.f32.xlu0 %v2866
      %v2868 = vpop.xlane.xlu0 %2867
      %v2869 = vsel %vm333, %v2779, 0.0
      %2870 = vadd.xlane.f32.xlu0 %v2869
      %v2871 = vpop.xlane.xlu0 %2870
      %v2872 = vsel %vm333, %v2780, 0.0
      %2873 = vadd.xlane.f32.xlu0 %v2872
      %v2874 = vpop.xlane.xlu0 %2873
      %v2875 = vsel %vm333, %v2781, 0.0
      %2876 = vadd.xlane.f32.xlu0 %v2875
      %v2877 = vpop.xlane.xlu0 %2876
      %v2878 = vadd.f32 %v2329, %v2784
      %v2879 = vadd.f32 %v2330, %v2787
      %v2880 = vadd.f32 %v2331, %v2790
      %v2881 = vadd.f32 %v2332, %v2793
      %v2882 = vadd.f32 %v2333, %v2796
      %v2883 = vadd.f32 %v2334, %v2799
      %v2884 = vadd.f32 %v2335, %v2802
      %v2885 = vadd.f32 %v2336, %v2805
      %v2886 = vadd.f32 %v2337, %v2808
      %v2887 = vadd.f32 %v2338, %v2811
      %v2888 = vadd.f32 %v2339, %v2814
      %v2889 = vadd.f32 %v2340, %v2817
      %v2890 = vadd.f32 %v2341, %v2820
      %v2891 = vadd.f32 %v2342, %v2823
      %v2892 = vadd.f32 %v2343, %v2826
      %v2893 = vadd.f32 %v2344, %v2829
      %v2894 = vadd.f32 %v2345, %v2832
      %v2895 = vadd.f32 %v2346, %v2835
      %v2896 = vadd.f32 %v2347, %v2838
      %v2897 = vadd.f32 %v2348, %v2841
      %v2898 = vadd.f32 %v2349, %v2844
      %v2899 = vadd.f32 %v2350, %v2847
      %v2900 = vadd.f32 %v2351, %v2850
      %v2901 = vadd.f32 %v2352, %v2853
      %v2902 = vadd.f32 %v2353, %v2856
      %v2903 = vadd.f32 %v2354, %v2859
      %v2904 = vadd.f32 %v2355, %v2862
      %v2905 = vadd.f32 %v2356, %v2865
      %v2906 = vadd.f32 %v2357, %v2868
      %v2907 = vadd.f32 %v2358, %v2871
      %v2908 = vadd.f32 %v2359, %v2874
      %v2909 = vadd.f32 %v2360, %v2877
      %v2910 = vperm.slane %v230, 1
      %v2911 = vmul.f32 %v2395, %v2910
      %v2912 = vmul.f32 %v2396, %v2910
      %v2913 = vmul.f32 %v2397, %v2910
      %v2914 = vmul.f32 %v2398, %v2910
      %v2915 = vmul.f32 %v2399, %v2910
      %v2916 = vmul.f32 %v2400, %v2910
      %v2917 = vmul.f32 %v2401, %v2910
      %v2918 = vmul.f32 %v2402, %v2910
      %v2919 = vmul.f32 %v2403, %v2910
      %v2920 = vmul.f32 %v2404, %v2910
      %v2921 = vmul.f32 %v2405, %v2910
      %v2922 = vmul.f32 %v2406, %v2910
      %v2923 = vmul.f32 %v2407, %v2910
      %v2924 = vmul.f32 %v2408, %v2910
      %v2925 = vmul.f32 %v2409, %v2910
      %v2926 = vmul.f32 %v2410, %v2910
      %v2927 = vmul.f32 %v2411, %v2910
      %v2928 = vmul.f32 %v2412, %v2910
      %v2929 = vmul.f32 %v2413, %v2910
      %v2930 = vmul.f32 %v2414, %v2910
      %v2931 = vmul.f32 %v2415, %v2910
      %v2932 = vmul.f32 %v2416, %v2910
      %v2933 = vmul.f32 %v2417, %v2910
      %v2934 = vmul.f32 %v2418, %v2910
      %v2935 = vmul.f32 %v2419, %v2910
      %v2936 = vmul.f32 %v2420, %v2910
      %v2937 = vmul.f32 %v2421, %v2910
      %v2938 = vmul.f32 %v2422, %v2910
      %v2939 = vmul.f32 %v2423, %v2910
      %v2940 = vmul.f32 %v2424, %v2910
      %v2941 = vmul.f32 %v2425, %v2910
      %v2942 = vmul.f32 %v2426, %v2910
      %v2943 = vsel %vm333, %v2911, 0.0
      %2944 = vadd.xlane.f32.xlu0 %v2943
      %v2945 = vpop.xlane.xlu0 %2944
      %v2946 = vsel %vm333, %v2912, 0.0
      %2947 = vadd.xlane.f32.xlu0 %v2946
      %v2948 = vpop.xlane.xlu0 %2947
      %v2949 = vsel %vm333, %v2913, 0.0
      %2950 = vadd.xlane.f32.xlu0 %v2949
      %v2951 = vpop.xlane.xlu0 %2950
      %v2952 = vsel %vm333, %v2914, 0.0
      %2953 = vadd.xlane.f32.xlu0 %v2952
      %v2954 = vpop.xlane.xlu0 %2953
      %v2955 = vsel %vm333, %v2915, 0.0
      %2956 = vadd.xlane.f32.xlu0 %v2955
      %v2957 = vpop.xlane.xlu0 %2956
      %v2958 = vsel %vm333, %v2916, 0.0
      %2959 = vadd.xlane.f32.xlu0 %v2958
      %v2960 = vpop.xlane.xlu0 %2959
      %v2961 = vsel %vm333, %v2917, 0.0
      %2962 = vadd.xlane.f32.xlu0 %v2961
      %v2963 = vpop.xlane.xlu0 %2962
      %v2964 = vsel %vm333, %v2918, 0.0
      %2965 = vadd.xlane.f32.xlu0 %v2964
      %v2966 = vpop.xlane.xlu0 %2965
      %v2967 = vsel %vm333, %v2919, 0.0
      %2968 = vadd.xlane.f32.xlu0 %v2967
      %v2969 = vpop.xlane.xlu0 %2968
      %v2970 = vsel %vm333, %v2920, 0.0
      %2971 = vadd.xlane.f32.xlu0 %v2970
      %v2972 = vpop.xlane.xlu0 %2971
      %v2973 = vsel %vm333, %v2921, 0.0
      %2974 = vadd.xlane.f32.xlu0 %v2973
      %v2975 = vpop.xlane.xlu0 %2974
      %v2976 = vsel %vm333, %v2922, 0.0
      %2977 = vadd.xlane.f32.xlu0 %v2976
      %v2978 = vpop.xlane.xlu0 %2977
      %v2979 = vsel %vm333, %v2923, 0.0
      %2980 = vadd.xlane.f32.xlu0 %v2979
      %v2981 = vpop.xlane.xlu0 %2980
      %v2982 = vsel %vm333, %v2924, 0.0
      %2983 = vadd.xlane.f32.xlu0 %v2982
      %v2984 = vpop.xlane.xlu0 %2983
      %v2985 = vsel %vm333, %v2925, 0.0
      %2986 = vadd.xlane.f32.xlu0 %v2985
      %v2987 = vpop.xlane.xlu0 %2986
      %v2988 = vsel %vm333, %v2926, 0.0
      %2989 = vadd.xlane.f32.xlu0 %v2988
      %v2990 = vpop.xlane.xlu0 %2989
      %v2991 = vsel %vm333, %v2927, 0.0
      %2992 = vadd.xlane.f32.xlu0 %v2991
      %v2993 = vpop.xlane.xlu0 %2992
      %v2994 = vsel %vm333, %v2928, 0.0
      %2995 = vadd.xlane.f32.xlu0 %v2994
      %v2996 = vpop.xlane.xlu0 %2995
      %v2997 = vsel %vm333, %v2929, 0.0
      %2998 = vadd.xlane.f32.xlu0 %v2997
      %v2999 = vpop.xlane.xlu0 %2998
      %v3000 = vsel %vm333, %v2930, 0.0
      %3001 = vadd.xlane.f32.xlu0 %v3000
      %v3002 = vpop.xlane.xlu0 %3001
      %v3003 = vsel %vm333, %v2931, 0.0
      %3004 = vadd.xlane.f32.xlu0 %v3003
      %v3005 = vpop.xlane.xlu0 %3004
      %v3006 = vsel %vm333, %v2932, 0.0
      %3007 = vadd.xlane.f32.xlu0 %v3006
      %v3008 = vpop.xlane.xlu0 %3007
      %v3009 = vsel %vm333, %v2933, 0.0
      %3010 = vadd.xlane.f32.xlu0 %v3009
      %v3011 = vpop.xlane.xlu0 %3010
      %v3012 = vsel %vm333, %v2934, 0.0
      %3013 = vadd.xlane.f32.xlu0 %v3012
      %v3014 = vpop.xlane.xlu0 %3013
      %v3015 = vsel %vm333, %v2935, 0.0
      %3016 = vadd.xlane.f32.xlu0 %v3015
      %v3017 = vpop.xlane.xlu0 %3016
      %v3018 = vsel %vm333, %v2936, 0.0
      %3019 = vadd.xlane.f32.xlu0 %v3018
      %v3020 = vpop.xlane.xlu0 %3019
      %v3021 = vsel %vm333, %v2937, 0.0
      %3022 = vadd.xlane.f32.xlu0 %v3021
      %v3023 = vpop.xlane.xlu0 %3022
      %v3024 = vsel %vm333, %v2938, 0.0
      %3025 = vadd.xlane.f32.xlu0 %v3024
      %v3026 = vpop.xlane.xlu0 %3025
      %v3027 = vsel %vm333, %v2939, 0.0
      %3028 = vadd.xlane.f32.xlu0 %v3027
      %v3029 = vpop.xlane.xlu0 %3028
      %v3030 = vsel %vm333, %v2940, 0.0
      %3031 = vadd.xlane.f32.xlu0 %v3030
      %v3032 = vpop.xlane.xlu0 %3031
      %v3033 = vsel %vm333, %v2941, 0.0
      %3034 = vadd.xlane.f32.xlu0 %v3033
      %v3035 = vpop.xlane.xlu0 %3034
      %v3036 = vsel %vm333, %v2942, 0.0
      %3037 = vadd.xlane.f32.xlu0 %v3036
      %v3038 = vpop.xlane.xlu0 %3037
      %v3039 = vadd.f32 %v2878, %v2945
      %v3040 = vadd.f32 %v2879, %v2948
      %v3041 = vadd.f32 %v2880, %v2951
      %v3042 = vadd.f32 %v2881, %v2954
      %v3043 = vadd.f32 %v2882, %v2957
      %v3044 = vadd.f32 %v2883, %v2960
      %v3045 = vadd.f32 %v2884, %v2963
      %v3046 = vadd.f32 %v2885, %v2966
      %v3047 = vadd.f32 %v2886, %v2969
      %v3048 = vadd.f32 %v2887, %v2972
      %v3049 = vadd.f32 %v2888, %v2975
      %v3050 = vadd.f32 %v2889, %v2978
      %v3051 = vadd.f32 %v2890, %v2981
      %v3052 = vadd.f32 %v2891, %v2984
      %v3053 = vadd.f32 %v2892, %v2987
      %v3054 = vadd.f32 %v2893, %v2990
      %v3055 = vadd.f32 %v2894, %v2993
      %v3056 = vadd.f32 %v2895, %v2996
      %v3057 = vadd.f32 %v2896, %v2999
      %v3058 = vadd.f32 %v2897, %v3002
      %v3059 = vadd.f32 %v2898, %v3005
      %v3060 = vadd.f32 %v2899, %v3008
      %v3061 = vadd.f32 %v2900, %v3011
      %v3062 = vadd.f32 %v2901, %v3014
      %v3063 = vadd.f32 %v2902, %v3017
      %v3064 = vadd.f32 %v2903, %v3020
      %v3065 = vadd.f32 %v2904, %v3023
      %v3066 = vadd.f32 %v2905, %v3026
      %v3067 = vadd.f32 %v2906, %v3029
      %v3068 = vadd.f32 %v2907, %v3032
      %v3069 = vadd.f32 %v2908, %v3035
      %v3070 = vadd.f32 %v2909, %v3038
      %v3071 = vld [vmem:[%s2361 + $0x1] sm:$0xff]
      %v3072 = vld [vmem:[%s2361 + $0x9] sm:$0xff]
      %v3073 = vld [vmem:[%s2361 + $0x19] sm:$0xff]
      %v3074 = vld [vmem:[%s2361 + $0x21] sm:$0xff]
      %v3075 = vld [vmem:[%s2361 + $0x31] sm:$0xff]
      %v3076 = vld [vmem:[%s2361 + $0x39] sm:$0xff]
      %v3077 = vld [vmem:[%s2361 + $0x49] sm:$0xff]
      %v3078 = vld [vmem:[%s2361 + $0x51] sm:$0xff]
      %v3079 = vld [vmem:[%s2361 + $0x61] sm:$0xff]
      %v3080 = vld [vmem:[%s2361 + $0x69] sm:$0xff]
      %v3081 = vld [vmem:[%s2361 + $0x79] sm:$0xff]
      %v3082 = vld [vmem:[%s2361 + $0x81] sm:$0xff]
      %v3083 = vld [vmem:[%s2361 + $0x91] sm:$0xff]
      %v3084 = vld [vmem:[%s2361 + $0x99] sm:$0xff]
      %v3085 = vld [vmem:[%s2361 + $0xa9] sm:$0xff]
      %v3086 = vld [vmem:[%s2361 + $0xb1] sm:$0xff]
      %v3087 = vld [vmem:[%s2361 + $0xc1] sm:$0xff]
      %v3088 = vld [vmem:[%s2361 + $0xc9] sm:$0xff]
      %v3089 = vld [vmem:[%s2361 + $0xd9] sm:$0xff]
      %v3090 = vld [vmem:[%s2361 + $0xe1] sm:$0xff]
      %v3091 = vld [vmem:[%s2361 + $0xf1] sm:$0xff]
      %v3092 = vld [vmem:[%s2361 + $0xf9] sm:$0xff]
      %v3093 = vld [vmem:[%s2361 + $0x109] sm:$0xff]
      %v3094 = vld [vmem:[%s2361 + $0x111] sm:$0xff]
      %v3095 = vld [vmem:[%s2361 + $0x121] sm:$0xff]
      %v3096 = vld [vmem:[%s2361 + $0x129] sm:$0xff]
      %v3097 = vld [vmem:[%s2361 + $0x139] sm:$0xff]
      %v3098 = vld [vmem:[%s2361 + $0x141] sm:$0xff]
      %v3099 = vld [vmem:[%s2361 + $0x151] sm:$0xff]
      %v3100 = vld [vmem:[%s2361 + $0x159] sm:$0xff]
      %v3101 = vld [vmem:[%s2361 + $0x169] sm:$0xff]
      %v3102 = vld [vmem:[%s2361 + $0x171] sm:$0xff]
      %v3103 = vld [vmem:[%s2394 + $0x1] sm:$0xff]
      %v3104 = vld [vmem:[%s2394 + $0x9] sm:$0xff]
      %v3105 = vld [vmem:[%s2394 + $0x19] sm:$0xff]
      %v3106 = vld [vmem:[%s2394 + $0x21] sm:$0xff]
      %v3107 = vld [vmem:[%s2394 + $0x31] sm:$0xff]
      %v3108 = vld [vmem:[%s2394 + $0x39] sm:$0xff]
      %v3109 = vld [vmem:[%s2394 + $0x49] sm:$0xff]
      %v3110 = vld [vmem:[%s2394 + $0x51] sm:$0xff]
      %v3111 = vld [vmem:[%s2394 + $0x61] sm:$0xff]
      %v3112 = vld [vmem:[%s2394 + $0x69] sm:$0xff]
      %v3113 = vld [vmem:[%s2394 + $0x79] sm:$0xff]
      %v3114 = vld [vmem:[%s2394 + $0x81] sm:$0xff]
      %v3115 = vld [vmem:[%s2394 + $0x91] sm:$0xff]
      %v3116 = vld [vmem:[%s2394 + $0x99] sm:$0xff]
      %v3117 = vld [vmem:[%s2394 + $0xa9] sm:$0xff]
      %v3118 = vld [vmem:[%s2394 + $0xb1] sm:$0xff]
      %v3119 = vld [vmem:[%s2394 + $0xc1] sm:$0xff]
      %v3120 = vld [vmem:[%s2394 + $0xc9] sm:$0xff]
      %v3121 = vld [vmem:[%s2394 + $0xd9] sm:$0xff]
      %v3122 = vld [vmem:[%s2394 + $0xe1] sm:$0xff]
      %v3123 = vld [vmem:[%s2394 + $0xf1] sm:$0xff]
      %v3124 = vld [vmem:[%s2394 + $0xf9] sm:$0xff]
      %v3125 = vld [vmem:[%s2394 + $0x109] sm:$0xff]
      %v3126 = vld [vmem:[%s2394 + $0x111] sm:$0xff]
      %v3127 = vld [vmem:[%s2394 + $0x121] sm:$0xff]
      %v3128 = vld [vmem:[%s2394 + $0x129] sm:$0xff]
      %v3129 = vld [vmem:[%s2394 + $0x139] sm:$0xff]
      %v3130 = vld [vmem:[%s2394 + $0x141] sm:$0xff]
      %v3131 = vld [vmem:[%s2394 + $0x151] sm:$0xff]
      %v3132 = vld [vmem:[%s2394 + $0x159] sm:$0xff]
      %v3133 = vld [vmem:[%s2394 + $0x169] sm:$0xff]
      %v3134 = vld [vmem:[%s2394 + $0x171] sm:$0xff]
      %v3135 = vperm.slane %v222, 0
      %v3136 = vmul.f32 %v3071, %v3135
      %v3137 = vmul.f32 %v3072, %v3135
      %v3138 = vmul.f32 %v3073, %v3135
      %v3139 = vmul.f32 %v3074, %v3135
      %v3140 = vmul.f32 %v3075, %v3135
      %v3141 = vmul.f32 %v3076, %v3135
      %v3142 = vmul.f32 %v3077, %v3135
      %v3143 = vmul.f32 %v3078, %v3135
      %v3144 = vmul.f32 %v3079, %v3135
      %v3145 = vmul.f32 %v3080, %v3135
      %v3146 = vmul.f32 %v3081, %v3135
      %v3147 = vmul.f32 %v3082, %v3135
      %v3148 = vmul.f32 %v3083, %v3135
      %v3149 = vmul.f32 %v3084, %v3135
      %v3150 = vmul.f32 %v3085, %v3135
      %v3151 = vmul.f32 %v3086, %v3135
      %v3152 = vmul.f32 %v3087, %v3135
      %v3153 = vmul.f32 %v3088, %v3135
      %v3154 = vmul.f32 %v3089, %v3135
      %v3155 = vmul.f32 %v3090, %v3135
      %v3156 = vmul.f32 %v3091, %v3135
      %v3157 = vmul.f32 %v3092, %v3135
      %v3158 = vmul.f32 %v3093, %v3135
      %v3159 = vmul.f32 %v3094, %v3135
      %v3160 = vmul.f32 %v3095, %v3135
      %v3161 = vmul.f32 %v3096, %v3135
      %v3162 = vmul.f32 %v3097, %v3135
      %v3163 = vmul.f32 %v3098, %v3135
      %v3164 = vmul.f32 %v3099, %v3135
      %v3165 = vmul.f32 %v3100, %v3135
      %v3166 = vmul.f32 %v3101, %v3135
      %v3167 = vmul.f32 %v3102, %v3135
      %v3168 = vsel %vm333, %v3136, 0.0
      %3169 = vadd.xlane.f32.xlu0 %v3168
      %v3170 = vpop.xlane.xlu0 %3169
      %v3171 = vsel %vm333, %v3137, 0.0
      %3172 = vadd.xlane.f32.xlu0 %v3171
      %v3173 = vpop.xlane.xlu0 %3172
      %v3174 = vsel %vm333, %v3138, 0.0
      %3175 = vadd.xlane.f32.xlu0 %v3174
      %v3176 = vpop.xlane.xlu0 %3175
      %v3177 = vsel %vm333, %v3139, 0.0
      %3178 = vadd.xlane.f32.xlu0 %v3177
      %v3179 = vpop.xlane.xlu0 %3178
      %v3180 = vsel %vm333, %v3140, 0.0
      %3181 = vadd.xlane.f32.xlu0 %v3180
      %v3182 = vpop.xlane.xlu0 %3181
      %v3183 = vsel %vm333, %v3141, 0.0
      %3184 = vadd.xlane.f32.xlu0 %v3183
      %v3185 = vpop.xlane.xlu0 %3184
      %v3186 = vsel %vm333, %v3142, 0.0
      %3187 = vadd.xlane.f32.xlu0 %v3186
      %v3188 = vpop.xlane.xlu0 %3187
      %v3189 = vsel %vm333, %v3143, 0.0
      %3190 = vadd.xlane.f32.xlu0 %v3189
      %v3191 = vpop.xlane.xlu0 %3190
      %v3192 = vsel %vm333, %v3144, 0.0
      %3193 = vadd.xlane.f32.xlu0 %v3192
      %v3194 = vpop.xlane.xlu0 %3193
      %v3195 = vsel %vm333, %v3145, 0.0
      %3196 = vadd.xlane.f32.xlu0 %v3195
      %v3197 = vpop.xlane.xlu0 %3196
      %v3198 = vsel %vm333, %v3146, 0.0
      %3199 = vadd.xlane.f32.xlu0 %v3198
      %v3200 = vpop.xlane.xlu0 %3199
      %v3201 = vsel %vm333, %v3147, 0.0
      %3202 = vadd.xlane.f32.xlu0 %v3201
      %v3203 = vpop.xlane.xlu0 %3202
      %v3204 = vsel %vm333, %v3148, 0.0
      %3205 = vadd.xlane.f32.xlu0 %v3204
      %v3206 = vpop.xlane.xlu0 %3205
      %v3207 = vsel %vm333, %v3149, 0.0
      %3208 = vadd.xlane.f32.xlu0 %v3207
      %v3209 = vpop.xlane.xlu0 %3208
      %v3210 = vsel %vm333, %v3150, 0.0
      %3211 = vadd.xlane.f32.xlu0 %v3210
      %v3212 = vpop.xlane.xlu0 %3211
      %v3213 = vsel %vm333, %v3151, 0.0
      %3214 = vadd.xlane.f32.xlu0 %v3213
      %v3215 = vpop.xlane.xlu0 %3214
      %v3216 = vsel %vm333, %v3152, 0.0
      %3217 = vadd.xlane.f32.xlu0 %v3216
      %v3218 = vpop.xlane.xlu0 %3217
      %v3219 = vsel %vm333, %v3153, 0.0
      %3220 = vadd.xlane.f32.xlu0 %v3219
      %v3221 = vpop.xlane.xlu0 %3220
      %v3222 = vsel %vm333, %v3154, 0.0
      %3223 = vadd.xlane.f32.xlu0 %v3222
      %v3224 = vpop.xlane.xlu0 %3223
      %v3225 = vsel %vm333, %v3155, 0.0
      %3226 = vadd.xlane.f32.xlu0 %v3225
      %v3227 = vpop.xlane.xlu0 %3226
      %v3228 = vsel %vm333, %v3156, 0.0
      %3229 = vadd.xlane.f32.xlu0 %v3228
      %v3230 = vpop.xlane.xlu0 %3229
      %v3231 = vsel %vm333, %v3157, 0.0
      %3232 = vadd.xlane.f32.xlu0 %v3231
      %v3233 = vpop.xlane.xlu0 %3232
      %v3234 = vsel %vm333, %v3158, 0.0
      %3235 = vadd.xlane.f32.xlu0 %v3234
      %v3236 = vpop.xlane.xlu0 %3235
      %v3237 = vsel %vm333, %v3159, 0.0
      %3238 = vadd.xlane.f32.xlu0 %v3237
      %v3239 = vpop.xlane.xlu0 %3238
      %v3240 = vsel %vm333, %v3160, 0.0
      %3241 = vadd.xlane.f32.xlu0 %v3240
      %v3242 = vpop.xlane.xlu0 %3241
      %v3243 = vsel %vm333, %v3161, 0.0
      %3244 = vadd.xlane.f32.xlu0 %v3243
      %v3245 = vpop.xlane.xlu0 %3244
      %v3246 = vsel %vm333, %v3162, 0.0
      %3247 = vadd.xlane.f32.xlu0 %v3246
      %v3248 = vpop.xlane.xlu0 %3247
      %v3249 = vsel %vm333, %v3163, 0.0
      %3250 = vadd.xlane.f32.xlu0 %v3249
      %v3251 = vpop.xlane.xlu0 %3250
      %v3252 = vsel %vm333, %v3164, 0.0
      %3253 = vadd.xlane.f32.xlu0 %v3252
      %v3254 = vpop.xlane.xlu0 %3253
      %v3255 = vsel %vm333, %v3165, 0.0
      %3256 = vadd.xlane.f32.xlu0 %v3255
      %v3257 = vpop.xlane.xlu0 %3256
      %v3258 = vsel %vm333, %v3166, 0.0
      %3259 = vadd.xlane.f32.xlu0 %v3258
      %v3260 = vpop.xlane.xlu0 %3259
      %v3261 = vsel %vm333, %v3167, 0.0
      %3262 = vadd.xlane.f32.xlu0 %v3261
      %v3263 = vpop.xlane.xlu0 %3262
      %v3264 = vadd.f32 %v2717, %v3170
      %v3265 = vadd.f32 %v2718, %v3173
      %v3266 = vadd.f32 %v2719, %v3176
      %v3267 = vadd.f32 %v2720, %v3179
      %v3268 = vadd.f32 %v2721, %v3182
      %v3269 = vadd.f32 %v2722, %v3185
      %v3270 = vadd.f32 %v2723, %v3188
      %v3271 = vadd.f32 %v2724, %v3191
      %v3272 = vadd.f32 %v2725, %v3194
      %v3273 = vadd.f32 %v2726, %v3197
      %v3274 = vadd.f32 %v2727, %v3200
      %v3275 = vadd.f32 %v2728, %v3203
      %v3276 = vadd.f32 %v2729, %v3206
      %v3277 = vadd.f32 %v2730, %v3209
      %v3278 = vadd.f32 %v2731, %v3212
      %v3279 = vadd.f32 %v2732, %v3215
      %v3280 = vadd.f32 %v2733, %v3218
      %v3281 = vadd.f32 %v2734, %v3221
      %v3282 = vadd.f32 %v2735, %v3224
      %v3283 = vadd.f32 %v2736, %v3227
      %v3284 = vadd.f32 %v2737, %v3230
      %v3285 = vadd.f32 %v2738, %v3233
      %v3286 = vadd.f32 %v2739, %v3236
      %v3287 = vadd.f32 %v2740, %v3239
      %v3288 = vadd.f32 %v2741, %v3242
      %v3289 = vadd.f32 %v2742, %v3245
      %v3290 = vadd.f32 %v2743, %v3248
      %v3291 = vadd.f32 %v2744, %v3251
      %v3292 = vadd.f32 %v2745, %v3254
      %v3293 = vadd.f32 %v2746, %v3257
      %v3294 = vadd.f32 %v2747, %v3260
      %v3295 = vadd.f32 %v2748, %v3263
      %v3296 = vperm.slane %v231, 0
      %v3297 = vmul.f32 %v3103, %v3296
      %v3298 = vmul.f32 %v3104, %v3296
      %v3299 = vmul.f32 %v3105, %v3296
      %v3300 = vmul.f32 %v3106, %v3296
      %v3301 = vmul.f32 %v3107, %v3296
      %v3302 = vmul.f32 %v3108, %v3296
      %v3303 = vmul.f32 %v3109, %v3296
      %v3304 = vmul.f32 %v3110, %v3296
      %v3305 = vmul.f32 %v3111, %v3296
      %v3306 = vmul.f32 %v3112, %v3296
      %v3307 = vmul.f32 %v3113, %v3296
      %v3308 = vmul.f32 %v3114, %v3296
      %v3309 = vmul.f32 %v3115, %v3296
      %v3310 = vmul.f32 %v3116, %v3296
      %v3311 = vmul.f32 %v3117, %v3296
      %v3312 = vmul.f32 %v3118, %v3296
      %v3313 = vmul.f32 %v3119, %v3296
      %v3314 = vmul.f32 %v3120, %v3296
      %v3315 = vmul.f32 %v3121, %v3296
      %v3316 = vmul.f32 %v3122, %v3296
      %v3317 = vmul.f32 %v3123, %v3296
      %v3318 = vmul.f32 %v3124, %v3296
      %v3319 = vmul.f32 %v3125, %v3296
      %v3320 = vmul.f32 %v3126, %v3296
      %v3321 = vmul.f32 %v3127, %v3296
      %v3322 = vmul.f32 %v3128, %v3296
      %v3323 = vmul.f32 %v3129, %v3296
      %v3324 = vmul.f32 %v3130, %v3296
      %v3325 = vmul.f32 %v3131, %v3296
      %v3326 = vmul.f32 %v3132, %v3296
      %v3327 = vmul.f32 %v3133, %v3296
      %v3328 = vmul.f32 %v3134, %v3296
      %v3329 = vsel %vm333, %v3297, 0.0
      %3330 = vadd.xlane.f32.xlu0 %v3329
      %v3331 = vpop.xlane.xlu0 %3330
      %v3332 = vsel %vm333, %v3298, 0.0
      %3333 = vadd.xlane.f32.xlu0 %v3332
      %v3334 = vpop.xlane.xlu0 %3333
      %v3335 = vsel %vm333, %v3299, 0.0
      %3336 = vadd.xlane.f32.xlu0 %v3335
      %v3337 = vpop.xlane.xlu0 %3336
      %v3338 = vsel %vm333, %v3300, 0.0
      %3339 = vadd.xlane.f32.xlu0 %v3338
      %v3340 = vpop.xlane.xlu0 %3339
      %v3341 = vsel %vm333, %v3301, 0.0
      %3342 = vadd.xlane.f32.xlu0 %v3341
      %v3343 = vpop.xlane.xlu0 %3342
      %v3344 = vsel %vm333, %v3302, 0.0
      %3345 = vadd.xlane.f32.xlu0 %v3344
      %v3346 = vpop.xlane.xlu0 %3345
      %v3347 = vsel %vm333, %v3303, 0.0
      %3348 = vadd.xlane.f32.xlu0 %v3347
      %v3349 = vpop.xlane.xlu0 %3348
      %v3350 = vsel %vm333, %v3304, 0.0
      %3351 = vadd.xlane.f32.xlu0 %v3350
      %v3352 = vpop.xlane.xlu0 %3351
      %v3353 = vsel %vm333, %v3305, 0.0
      %3354 = vadd.xlane.f32.xlu0 %v3353
      %v3355 = vpop.xlane.xlu0 %3354
      %v3356 = vsel %vm333, %v3306, 0.0
      %3357 = vadd.xlane.f32.xlu0 %v3356
      %v3358 = vpop.xlane.xlu0 %3357
      %v3359 = vsel %vm333, %v3307, 0.0
      %3360 = vadd.xlane.f32.xlu0 %v3359
      %v3361 = vpop.xlane.xlu0 %3360
      %v3362 = vsel %vm333, %v3308, 0.0
      %3363 = vadd.xlane.f32.xlu0 %v3362
      %v3364 = vpop.xlane.xlu0 %3363
      %v3365 = vsel %vm333, %v3309, 0.0
      %3366 = vadd.xlane.f32.xlu0 %v3365
      %v3367 = vpop.xlane.xlu0 %3366
      %v3368 = vsel %vm333, %v3310, 0.0
      %3369 = vadd.xlane.f32.xlu0 %v3368
      %v3370 = vpop.xlane.xlu0 %3369
      %v3371 = vsel %vm333, %v3311, 0.0
      %3372 = vadd.xlane.f32.xlu0 %v3371
      %v3373 = vpop.xlane.xlu0 %3372
      %v3374 = vsel %vm333, %v3312, 0.0
      %3375 = vadd.xlane.f32.xlu0 %v3374
      %v3376 = vpop.xlane.xlu0 %3375
      %v3377 = vsel %vm333, %v3313, 0.0
      %3378 = vadd.xlane.f32.xlu0 %v3377
      %v3379 = vpop.xlane.xlu0 %3378
      %v3380 = vsel %vm333, %v3314, 0.0
      %3381 = vadd.xlane.f32.xlu0 %v3380
      %v3382 = vpop.xlane.xlu0 %3381
      %v3383 = vsel %vm333, %v3315, 0.0
      %3384 = vadd.xlane.f32.xlu0 %v3383
      %v3385 = vpop.xlane.xlu0 %3384
      %v3386 = vsel %vm333, %v3316, 0.0
      %3387 = vadd.xlane.f32.xlu0 %v3386
      %v3388 = vpop.xlane.xlu0 %3387
      %v3389 = vsel %vm333, %v3317, 0.0
      %3390 = vadd.xlane.f32.xlu0 %v3389
      %v3391 = vpop.xlane.xlu0 %3390
      %v3392 = vsel %vm333, %v3318, 0.0
      %3393 = vadd.xlane.f32.xlu0 %v3392
      %v3394 = vpop.xlane.xlu0 %3393
      %v3395 = vsel %vm333, %v3319, 0.0
      %3396 = vadd.xlane.f32.xlu0 %v3395
      %v3397 = vpop.xlane.xlu0 %3396
      %v3398 = vsel %vm333, %v3320, 0.0
      %3399 = vadd.xlane.f32.xlu0 %v3398
      %v3400 = vpop.xlane.xlu0 %3399
      %v3401 = vsel %vm333, %v3321, 0.0
      %3402 = vadd.xlane.f32.xlu0 %v3401
      %v3403 = vpop.xlane.xlu0 %3402
      %v3404 = vsel %vm333, %v3322, 0.0
      %3405 = vadd.xlane.f32.xlu0 %v3404
      %v3406 = vpop.xlane.xlu0 %3405
      %v3407 = vsel %vm333, %v3323, 0.0
      %3408 = vadd.xlane.f32.xlu0 %v3407
      %v3409 = vpop.xlane.xlu0 %3408
      %v3410 = vsel %vm333, %v3324, 0.0
      %3411 = vadd.xlane.f32.xlu0 %v3410
      %v3412 = vpop.xlane.xlu0 %3411
      %v3413 = vsel %vm333, %v3325, 0.0
      %3414 = vadd.xlane.f32.xlu0 %v3413
      %v3415 = vpop.xlane.xlu0 %3414
      %v3416 = vsel %vm333, %v3326, 0.0
      %3417 = vadd.xlane.f32.xlu0 %v3416
      %v3418 = vpop.xlane.xlu0 %3417
      %v3419 = vsel %vm333, %v3327, 0.0
      %3420 = vadd.xlane.f32.xlu0 %v3419
      %v3421 = vpop.xlane.xlu0 %3420
      %v3422 = vsel %vm333, %v3328, 0.0
      %3423 = vadd.xlane.f32.xlu0 %v3422
      %v3424 = vpop.xlane.xlu0 %3423
      %v3425 = vadd.f32 %v3264, %v3331
      %v3426 = vadd.f32 %v3265, %v3334
      %v3427 = vadd.f32 %v3266, %v3337
      %v3428 = vadd.f32 %v3267, %v3340
      %v3429 = vadd.f32 %v3268, %v3343
      %v3430 = vadd.f32 %v3269, %v3346
      %v3431 = vadd.f32 %v3270, %v3349
      %v3432 = vadd.f32 %v3271, %v3352
      %v3433 = vadd.f32 %v3272, %v3355
      %v3434 = vadd.f32 %v3273, %v3358
      %v3435 = vadd.f32 %v3274, %v3361
      %v3436 = vadd.f32 %v3275, %v3364
      %v3437 = vadd.f32 %v3276, %v3367
      %v3438 = vadd.f32 %v3277, %v3370
      %v3439 = vadd.f32 %v3278, %v3373
      %v3440 = vadd.f32 %v3279, %v3376
      %v3441 = vadd.f32 %v3280, %v3379
      %v3442 = vadd.f32 %v3281, %v3382
      %v3443 = vadd.f32 %v3282, %v3385
      %v3444 = vadd.f32 %v3283, %v3388
      %v3445 = vadd.f32 %v3284, %v3391
      %v3446 = vadd.f32 %v3285, %v3394
      %v3447 = vadd.f32 %v3286, %v3397
      %v3448 = vadd.f32 %v3287, %v3400
      %v3449 = vadd.f32 %v3288, %v3403
      %v3450 = vadd.f32 %v3289, %v3406
      %v3451 = vadd.f32 %v3290, %v3409
      %v3452 = vadd.f32 %v3291, %v3412
      %v3453 = vadd.f32 %v3292, %v3415
      %v3454 = vadd.f32 %v3293, %v3418
      %v3455 = vadd.f32 %v3294, %v3421
      %v3456 = vadd.f32 %v3295, %v3424
      %v3457 = vperm.slane %v222, 1
      %v3458 = vmul.f32 %v3071, %v3457
      %v3459 = vmul.f32 %v3072, %v3457
      %v3460 = vmul.f32 %v3073, %v3457
      %v3461 = vmul.f32 %v3074, %v3457
      %v3462 = vmul.f32 %v3075, %v3457
      %v3463 = vmul.f32 %v3076, %v3457
      %v3464 = vmul.f32 %v3077, %v3457
      %v3465 = vmul.f32 %v3078, %v3457
      %v3466 = vmul.f32 %v3079, %v3457
      %v3467 = vmul.f32 %v3080, %v3457
      %v3468 = vmul.f32 %v3081, %v3457
      %v3469 = vmul.f32 %v3082, %v3457
      %v3470 = vmul.f32 %v3083, %v3457
      %v3471 = vmul.f32 %v3084, %v3457
      %v3472 = vmul.f32 %v3085, %v3457
      %v3473 = vmul.f32 %v3086, %v3457
      %v3474 = vmul.f32 %v3087, %v3457
      %v3475 = vmul.f32 %v3088, %v3457
      %v3476 = vmul.f32 %v3089, %v3457
      %v3477 = vmul.f32 %v3090, %v3457
      %v3478 = vmul.f32 %v3091, %v3457
      %v3479 = vmul.f32 %v3092, %v3457
      %v3480 = vmul.f32 %v3093, %v3457
      %v3481 = vmul.f32 %v3094, %v3457
      %v3482 = vmul.f32 %v3095, %v3457
      %v3483 = vmul.f32 %v3096, %v3457
      %v3484 = vmul.f32 %v3097, %v3457
      %v3485 = vmul.f32 %v3098, %v3457
      %v3486 = vmul.f32 %v3099, %v3457
      %v3487 = vmul.f32 %v3100, %v3457
      %v3488 = vmul.f32 %v3101, %v3457
      %v3489 = vmul.f32 %v3102, %v3457
      %v3490 = vsel %vm333, %v3458, 0.0
      %3491 = vadd.xlane.f32.xlu0 %v3490
      %v3492 = vpop.xlane.xlu0 %3491
      %v3493 = vsel %vm333, %v3459, 0.0
      %3494 = vadd.xlane.f32.xlu0 %v3493
      %v3495 = vpop.xlane.xlu0 %3494
      %v3496 = vsel %vm333, %v3460, 0.0
      %3497 = vadd.xlane.f32.xlu0 %v3496
      %v3498 = vpop.xlane.xlu0 %3497
      %v3499 = vsel %vm333, %v3461, 0.0
      %3500 = vadd.xlane.f32.xlu0 %v3499
      %v3501 = vpop.xlane.xlu0 %3500
      %v3502 = vsel %vm333, %v3462, 0.0
      %3503 = vadd.xlane.f32.xlu0 %v3502
      %v3504 = vpop.xlane.xlu0 %3503
      %v3505 = vsel %vm333, %v3463, 0.0
      %3506 = vadd.xlane.f32.xlu0 %v3505
      %v3507 = vpop.xlane.xlu0 %3506
      %v3508 = vsel %vm333, %v3464, 0.0
      %3509 = vadd.xlane.f32.xlu0 %v3508
      %v3510 = vpop.xlane.xlu0 %3509
      %v3511 = vsel %vm333, %v3465, 0.0
      %3512 = vadd.xlane.f32.xlu0 %v3511
      %v3513 = vpop.xlane.xlu0 %3512
      %v3514 = vsel %vm333, %v3466, 0.0
      %3515 = vadd.xlane.f32.xlu0 %v3514
      %v3516 = vpop.xlane.xlu0 %3515
      %v3517 = vsel %vm333, %v3467, 0.0
      %3518 = vadd.xlane.f32.xlu0 %v3517
      %v3519 = vpop.xlane.xlu0 %3518
      %v3520 = vsel %vm333, %v3468, 0.0
      %3521 = vadd.xlane.f32.xlu0 %v3520
      %v3522 = vpop.xlane.xlu0 %3521
      %v3523 = vsel %vm333, %v3469, 0.0
      %3524 = vadd.xlane.f32.xlu0 %v3523
      %v3525 = vpop.xlane.xlu0 %3524
      %v3526 = vsel %vm333, %v3470, 0.0
      %3527 = vadd.xlane.f32.xlu0 %v3526
      %v3528 = vpop.xlane.xlu0 %3527
      %v3529 = vsel %vm333, %v3471, 0.0
      %3530 = vadd.xlane.f32.xlu0 %v3529
      %v3531 = vpop.xlane.xlu0 %3530
      %v3532 = vsel %vm333, %v3472, 0.0
      %3533 = vadd.xlane.f32.xlu0 %v3532
      %v3534 = vpop.xlane.xlu0 %3533
      %v3535 = vsel %vm333, %v3473, 0.0
      %3536 = vadd.xlane.f32.xlu0 %v3535
      %v3537 = vpop.xlane.xlu0 %3536
      %v3538 = vsel %vm333, %v3474, 0.0
      %3539 = vadd.xlane.f32.xlu0 %v3538
      %v3540 = vpop.xlane.xlu0 %3539
      %v3541 = vsel %vm333, %v3475, 0.0
      %3542 = vadd.xlane.f32.xlu0 %v3541
      %v3543 = vpop.xlane.xlu0 %3542
      %v3544 = vsel %vm333, %v3476, 0.0
      %3545 = vadd.xlane.f32.xlu0 %v3544
      %v3546 = vpop.xlane.xlu0 %3545
      %v3547 = vsel %vm333, %v3477, 0.0
      %3548 = vadd.xlane.f32.xlu0 %v3547
      %v3549 = vpop.xlane.xlu0 %3548
      %v3550 = vsel %vm333, %v3478, 0.0
      %3551 = vadd.xlane.f32.xlu0 %v3550
      %v3552 = vpop.xlane.xlu0 %3551
      %v3553 = vsel %vm333, %v3479, 0.0
      %3554 = vadd.xlane.f32.xlu0 %v3553
      %v3555 = vpop.xlane.xlu0 %3554
      %v3556 = vsel %vm333, %v3480, 0.0
      %3557 = vadd.xlane.f32.xlu0 %v3556
      %v3558 = vpop.xlane.xlu0 %3557
      %v3559 = vsel %vm333, %v3481, 0.0
      %3560 = vadd.xlane.f32.xlu0 %v3559
      %v3561 = vpop.xlane.xlu0 %3560
      %v3562 = vsel %vm333, %v3482, 0.0
      %3563 = vadd.xlane.f32.xlu0 %v3562
      %v3564 = vpop.xlane.xlu0 %3563
      %v3565 = vsel %vm333, %v3483, 0.0
      %3566 = vadd.xlane.f32.xlu0 %v3565
      %v3567 = vpop.xlane.xlu0 %3566
      %v3568 = vsel %vm333, %v3484, 0.0
      %3569 = vadd.xlane.f32.xlu0 %v3568
      %v3570 = vpop.xlane.xlu0 %3569
      %v3571 = vsel %vm333, %v3485, 0.0
      %3572 = vadd.xlane.f32.xlu0 %v3571
      %v3573 = vpop.xlane.xlu0 %3572
      %v3574 = vsel %vm333, %v3486, 0.0
      %3575 = vadd.xlane.f32.xlu0 %v3574
      %v3576 = vpop.xlane.xlu0 %3575
      %v3577 = vsel %vm333, %v3487, 0.0
      %3578 = vadd.xlane.f32.xlu0 %v3577
      %v3579 = vpop.xlane.xlu0 %3578
      %v3580 = vsel %vm333, %v3488, 0.0
      %3581 = vadd.xlane.f32.xlu0 %v3580
      %v3582 = vpop.xlane.xlu0 %3581
      %v3583 = vsel %vm333, %v3489, 0.0
      %3584 = vadd.xlane.f32.xlu0 %v3583
      %v3585 = vpop.xlane.xlu0 %3584
      %v3586 = vadd.f32 %v3039, %v3492
      %v3587 = vadd.f32 %v3040, %v3495
      %v3588 = vadd.f32 %v3041, %v3498
      %v3589 = vadd.f32 %v3042, %v3501
      %v3590 = vadd.f32 %v3043, %v3504
      %v3591 = vadd.f32 %v3044, %v3507
      %v3592 = vadd.f32 %v3045, %v3510
      %v3593 = vadd.f32 %v3046, %v3513
      %v3594 = vadd.f32 %v3047, %v3516
      %v3595 = vadd.f32 %v3048, %v3519
      %v3596 = vadd.f32 %v3049, %v3522
      %v3597 = vadd.f32 %v3050, %v3525
      %v3598 = vadd.f32 %v3051, %v3528
      %v3599 = vadd.f32 %v3052, %v3531
      %v3600 = vadd.f32 %v3053, %v3534
      %v3601 = vadd.f32 %v3054, %v3537
      %v3602 = vadd.f32 %v3055, %v3540
      %v3603 = vadd.f32 %v3056, %v3543
      %v3604 = vadd.f32 %v3057, %v3546
      %v3605 = vadd.f32 %v3058, %v3549
      %v3606 = vadd.f32 %v3059, %v3552
      %v3607 = vadd.f32 %v3060, %v3555
      %v3608 = vadd.f32 %v3061, %v3558
      %v3609 = vadd.f32 %v3062, %v3561
      %v3610 = vadd.f32 %v3063, %v3564
      %v3611 = vadd.f32 %v3064, %v3567
      %v3612 = vadd.f32 %v3065, %v3570
      %v3613 = vadd.f32 %v3066, %v3573
      %v3614 = vadd.f32 %v3067, %v3576
      %v3615 = vadd.f32 %v3068, %v3579
      %v3616 = vadd.f32 %v3069, %v3582
      %v3617 = vadd.f32 %v3070, %v3585
      %v3618 = vperm.slane %v231, 1
      %v3619 = vmul.f32 %v3103, %v3618
      %v3620 = vmul.f32 %v3104, %v3618
      %v3621 = vmul.f32 %v3105, %v3618
      %v3622 = vmul.f32 %v3106, %v3618
      %v3623 = vmul.f32 %v3107, %v3618
      %v3624 = vmul.f32 %v3108, %v3618
      %v3625 = vmul.f32 %v3109, %v3618
      %v3626 = vmul.f32 %v3110, %v3618
      %v3627 = vmul.f32 %v3111, %v3618
      %v3628 = vmul.f32 %v3112, %v3618
      %v3629 = vmul.f32 %v3113, %v3618
      %v3630 = vmul.f32 %v3114, %v3618
      %v3631 = vmul.f32 %v3115, %v3618
      %v3632 = vmul.f32 %v3116, %v3618
      %v3633 = vmul.f32 %v3117, %v3618
      %v3634 = vmul.f32 %v3118, %v3618
      %v3635 = vmul.f32 %v3119, %v3618
      %v3636 = vmul.f32 %v3120, %v3618
      %v3637 = vmul.f32 %v3121, %v3618
      %v3638 = vmul.f32 %v3122, %v3618
      %v3639 = vmul.f32 %v3123, %v3618
      %v3640 = vmul.f32 %v3124, %v3618
      %v3641 = vmul.f32 %v3125, %v3618
      %v3642 = vmul.f32 %v3126, %v3618
      %v3643 = vmul.f32 %v3127, %v3618
      %v3644 = vmul.f32 %v3128, %v3618
      %v3645 = vmul.f32 %v3129, %v3618
      %v3646 = vmul.f32 %v3130, %v3618
      %v3647 = vmul.f32 %v3131, %v3618
      %v3648 = vmul.f32 %v3132, %v3618
      %v3649 = vmul.f32 %v3133, %v3618
      %v3650 = vmul.f32 %v3134, %v3618
      %v3651 = vsel %vm333, %v3619, 0.0
      %3652 = vadd.xlane.f32.xlu0 %v3651
      %v3653 = vpop.xlane.xlu0 %3652
      %v3654 = vsel %vm333, %v3620, 0.0
      %3655 = vadd.xlane.f32.xlu0 %v3654
      %v3656 = vpop.xlane.xlu0 %3655
      %v3657 = vsel %vm333, %v3621, 0.0
      %3658 = vadd.xlane.f32.xlu0 %v3657
      %v3659 = vpop.xlane.xlu0 %3658
      %v3660 = vsel %vm333, %v3622, 0.0
      %3661 = vadd.xlane.f32.xlu0 %v3660
      %v3662 = vpop.xlane.xlu0 %3661
      %v3663 = vsel %vm333, %v3623, 0.0
      %3664 = vadd.xlane.f32.xlu0 %v3663
      %v3665 = vpop.xlane.xlu0 %3664
      %v3666 = vsel %vm333, %v3624, 0.0
      %3667 = vadd.xlane.f32.xlu0 %v3666
      %v3668 = vpop.xlane.xlu0 %3667
      %v3669 = vsel %vm333, %v3625, 0.0
      %3670 = vadd.xlane.f32.xlu0 %v3669
      %v3671 = vpop.xlane.xlu0 %3670
      %v3672 = vsel %vm333, %v3626, 0.0
      %3673 = vadd.xlane.f32.xlu0 %v3672
      %v3674 = vpop.xlane.xlu0 %3673
      %v3675 = vsel %vm333, %v3627, 0.0
      %3676 = vadd.xlane.f32.xlu0 %v3675
      %v3677 = vpop.xlane.xlu0 %3676
      %v3678 = vsel %vm333, %v3628, 0.0
      %3679 = vadd.xlane.f32.xlu0 %v3678
      %v3680 = vpop.xlane.xlu0 %3679
      %v3681 = vsel %vm333, %v3629, 0.0
      %3682 = vadd.xlane.f32.xlu0 %v3681
      %v3683 = vpop.xlane.xlu0 %3682
      %v3684 = vsel %vm333, %v3630, 0.0
      %3685 = vadd.xlane.f32.xlu0 %v3684
      %v3686 = vpop.xlane.xlu0 %3685
      %v3687 = vsel %vm333, %v3631, 0.0
      %3688 = vadd.xlane.f32.xlu0 %v3687
      %v3689 = vpop.xlane.xlu0 %3688
      %v3690 = vsel %vm333, %v3632, 0.0
      %3691 = vadd.xlane.f32.xlu0 %v3690
      %v3692 = vpop.xlane.xlu0 %3691
      %v3693 = vsel %vm333, %v3633, 0.0
      %3694 = vadd.xlane.f32.xlu0 %v3693
      %v3695 = vpop.xlane.xlu0 %3694
      %v3696 = vsel %vm333, %v3634, 0.0
      %3697 = vadd.xlane.f32.xlu0 %v3696
      %v3698 = vpop.xlane.xlu0 %3697
      %v3699 = vsel %vm333, %v3635, 0.0
      %3700 = vadd.xlane.f32.xlu0 %v3699
      %v3701 = vpop.xlane.xlu0 %3700
      %v3702 = vsel %vm333, %v3636, 0.0
      %3703 = vadd.xlane.f32.xlu0 %v3702
      %v3704 = vpop.xlane.xlu0 %3703
      %v3705 = vsel %vm333, %v3637, 0.0
      %3706 = vadd.xlane.f32.xlu0 %v3705
      %v3707 = vpop.xlane.xlu0 %3706
      %v3708 = vsel %vm333, %v3638, 0.0
      %3709 = vadd.xlane.f32.xlu0 %v3708
      %v3710 = vpop.xlane.xlu0 %3709
      %v3711 = vsel %vm333, %v3639, 0.0
      %3712 = vadd.xlane.f32.xlu0 %v3711
      %v3713 = vpop.xlane.xlu0 %3712
      %v3714 = vsel %vm333, %v3640, 0.0
      %3715 = vadd.xlane.f32.xlu0 %v3714
      %v3716 = vpop.xlane.xlu0 %3715
      %v3717 = vsel %vm333, %v3641, 0.0
      %3718 = vadd.xlane.f32.xlu0 %v3717
      %v3719 = vpop.xlane.xlu0 %3718
      %v3720 = vsel %vm333, %v3642, 0.0
      %3721 = vadd.xlane.f32.xlu0 %v3720
      %v3722 = vpop.xlane.xlu0 %3721
      %v3723 = vsel %vm333, %v3643, 0.0
      %3724 = vadd.xlane.f32.xlu0 %v3723
      %v3725 = vpop.xlane.xlu0 %3724
      %v3726 = vsel %vm333, %v3644, 0.0
      %3727 = vadd.xlane.f32.xlu0 %v3726
      %v3728 = vpop.xlane.xlu0 %3727
      %v3729 = vsel %vm333, %v3645, 0.0
      %3730 = vadd.xlane.f32.xlu0 %v3729
      %v3731 = vpop.xlane.xlu0 %3730
      %v3732 = vsel %vm333, %v3646, 0.0
      %3733 = vadd.xlane.f32.xlu0 %v3732
      %v3734 = vpop.xlane.xlu0 %3733
      %v3735 = vsel %vm333, %v3647, 0.0
      %3736 = vadd.xlane.f32.xlu0 %v3735
      %v3737 = vpop.xlane.xlu0 %3736
      %v3738 = vsel %vm333, %v3648, 0.0
      %3739 = vadd.xlane.f32.xlu0 %v3738
      %v3740 = vpop.xlane.xlu0 %3739
      %v3741 = vsel %vm333, %v3649, 0.0
      %3742 = vadd.xlane.f32.xlu0 %v3741
      %v3743 = vpop.xlane.xlu0 %3742
      %v3744 = vsel %vm333, %v3650, 0.0
      %3745 = vadd.xlane.f32.xlu0 %v3744
      %v3746 = vpop.xlane.xlu0 %3745
      %v3747 = vadd.f32 %v3586, %v3653
      %v3748 = vadd.f32 %v3587, %v3656
      %v3749 = vadd.f32 %v3588, %v3659
      %v3750 = vadd.f32 %v3589, %v3662
      %v3751 = vadd.f32 %v3590, %v3665
      %v3752 = vadd.f32 %v3591, %v3668
      %v3753 = vadd.f32 %v3592, %v3671
      %v3754 = vadd.f32 %v3593, %v3674
      %v3755 = vadd.f32 %v3594, %v3677
      %v3756 = vadd.f32 %v3595, %v3680
      %v3757 = vadd.f32 %v3596, %v3683
      %v3758 = vadd.f32 %v3597, %v3686
      %v3759 = vadd.f32 %v3598, %v3689
      %v3760 = vadd.f32 %v3599, %v3692
      %v3761 = vadd.f32 %v3600, %v3695
      %v3762 = vadd.f32 %v3601, %v3698
      %v3763 = vadd.f32 %v3602, %v3701
      %v3764 = vadd.f32 %v3603, %v3704
      %v3765 = vadd.f32 %v3604, %v3707
      %v3766 = vadd.f32 %v3605, %v3710
      %v3767 = vadd.f32 %v3606, %v3713
      %v3768 = vadd.f32 %v3607, %v3716
      %v3769 = vadd.f32 %v3608, %v3719
      %v3770 = vadd.f32 %v3609, %v3722
      %v3771 = vadd.f32 %v3610, %v3725
      %v3772 = vadd.f32 %v3611, %v3728
      %v3773 = vadd.f32 %v3612, %v3731
      %v3774 = vadd.f32 %v3613, %v3734
      %v3775 = vadd.f32 %v3614, %v3737
      %v3776 = vadd.f32 %v3615, %v3740
      %v3777 = vadd.f32 %v3616, %v3743
      %v3778 = vadd.f32 %v3617, %v3746
      %v3779 = vld [vmem:[%s2361 + $0x2] sm:$0xff]
      %v3780 = vld [vmem:[%s2361 + $0xa] sm:$0xff]
      %v3781 = vld [vmem:[%s2361 + $0x1a] sm:$0xff]
      %v3782 = vld [vmem:[%s2361 + $0x22] sm:$0xff]
      %v3783 = vld [vmem:[%s2361 + $0x32] sm:$0xff]
      %v3784 = vld [vmem:[%s2361 + $0x3a] sm:$0xff]
      %v3785 = vld [vmem:[%s2361 + $0x4a] sm:$0xff]
      %v3786 = vld [vmem:[%s2361 + $0x52] sm:$0xff]
      %v3787 = vld [vmem:[%s2361 + $0x62] sm:$0xff]
      %v3788 = vld [vmem:[%s2361 + $0x6a] sm:$0xff]
      %v3789 = vld [vmem:[%s2361 + $0x7a] sm:$0xff]
      %v3790 = vld [vmem:[%s2361 + $0x82] sm:$0xff]
      %v3791 = vld [vmem:[%s2361 + $0x92] sm:$0xff]
      %v3792 = vld [vmem:[%s2361 + $0x9a] sm:$0xff]
      %v3793 = vld [vmem:[%s2361 + $0xaa] sm:$0xff]
      %v3794 = vld [vmem:[%s2361 + $0xb2] sm:$0xff]
      %v3795 = vld [vmem:[%s2361 + $0xc2] sm:$0xff]
      %v3796 = vld [vmem:[%s2361 + $0xca] sm:$0xff]
      %v3797 = vld [vmem:[%s2361 + $0xda] sm:$0xff]
      %v3798 = vld [vmem:[%s2361 + $0xe2] sm:$0xff]
      %v3799 = vld [vmem:[%s2361 + $0xf2] sm:$0xff]
      %v3800 = vld [vmem:[%s2361 + $0xfa] sm:$0xff]
      %v3801 = vld [vmem:[%s2361 + $0x10a] sm:$0xff]
      %v3802 = vld [vmem:[%s2361 + $0x112] sm:$0xff]
      %v3803 = vld [vmem:[%s2361 + $0x122] sm:$0xff]
      %v3804 = vld [vmem:[%s2361 + $0x12a] sm:$0xff]
      %v3805 = vld [vmem:[%s2361 + $0x13a] sm:$0xff]
      %v3806 = vld [vmem:[%s2361 + $0x142] sm:$0xff]
      %v3807 = vld [vmem:[%s2361 + $0x152] sm:$0xff]
      %v3808 = vld [vmem:[%s2361 + $0x15a] sm:$0xff]
      %v3809 = vld [vmem:[%s2361 + $0x16a] sm:$0xff]
      %v3810 = vld [vmem:[%s2361 + $0x172] sm:$0xff]
      %v3811 = vld [vmem:[%s2394 + $0x2] sm:$0xff]
      %v3812 = vld [vmem:[%s2394 + $0xa] sm:$0xff]
      %v3813 = vld [vmem:[%s2394 + $0x1a] sm:$0xff]
      %v3814 = vld [vmem:[%s2394 + $0x22] sm:$0xff]
      %v3815 = vld [vmem:[%s2394 + $0x32] sm:$0xff]
      %v3816 = vld [vmem:[%s2394 + $0x3a] sm:$0xff]
      %v3817 = vld [vmem:[%s2394 + $0x4a] sm:$0xff]
      %v3818 = vld [vmem:[%s2394 + $0x52] sm:$0xff]
      %v3819 = vld [vmem:[%s2394 + $0x62] sm:$0xff]
      %v3820 = vld [vmem:[%s2394 + $0x6a] sm:$0xff]
      %v3821 = vld [vmem:[%s2394 + $0x7a] sm:$0xff]
      %v3822 = vld [vmem:[%s2394 + $0x82] sm:$0xff]
      %v3823 = vld [vmem:[%s2394 + $0x92] sm:$0xff]
      %v3824 = vld [vmem:[%s2394 + $0x9a] sm:$0xff]
      %v3825 = vld [vmem:[%s2394 + $0xaa] sm:$0xff]
      %v3826 = vld [vmem:[%s2394 + $0xb2] sm:$0xff]
      %v3827 = vld [vmem:[%s2394 + $0xc2] sm:$0xff]
      %v3828 = vld [vmem:[%s2394 + $0xca] sm:$0xff]
      %v3829 = vld [vmem:[%s2394 + $0xda] sm:$0xff]
      %v3830 = vld [vmem:[%s2394 + $0xe2] sm:$0xff]
      %v3831 = vld [vmem:[%s2394 + $0xf2] sm:$0xff]
      %v3832 = vld [vmem:[%s2394 + $0xfa] sm:$0xff]
      %v3833 = vld [vmem:[%s2394 + $0x10a] sm:$0xff]
      %v3834 = vld [vmem:[%s2394 + $0x112] sm:$0xff]
      %v3835 = vld [vmem:[%s2394 + $0x122] sm:$0xff]
      %v3836 = vld [vmem:[%s2394 + $0x12a] sm:$0xff]
      %v3837 = vld [vmem:[%s2394 + $0x13a] sm:$0xff]
      %v3838 = vld [vmem:[%s2394 + $0x142] sm:$0xff]
      %v3839 = vld [vmem:[%s2394 + $0x152] sm:$0xff]
      %v3840 = vld [vmem:[%s2394 + $0x15a] sm:$0xff]
      %v3841 = vld [vmem:[%s2394 + $0x16a] sm:$0xff]
      %v3842 = vld [vmem:[%s2394 + $0x172] sm:$0xff]
      %v3843 = vperm.slane %v223, 0
      %v3844 = vmul.f32 %v3779, %v3843
      %v3845 = vmul.f32 %v3780, %v3843
      %v3846 = vmul.f32 %v3781, %v3843
      %v3847 = vmul.f32 %v3782, %v3843
      %v3848 = vmul.f32 %v3783, %v3843
      %v3849 = vmul.f32 %v3784, %v3843
      %v3850 = vmul.f32 %v3785, %v3843
      %v3851 = vmul.f32 %v3786, %v3843
      %v3852 = vmul.f32 %v3787, %v3843
      %v3853 = vmul.f32 %v3788, %v3843
      %v3854 = vmul.f32 %v3789, %v3843
      %v3855 = vmul.f32 %v3790, %v3843
      %v3856 = vmul.f32 %v3791, %v3843
      %v3857 = vmul.f32 %v3792, %v3843
      %v3858 = vmul.f32 %v3793, %v3843
      %v3859 = vmul.f32 %v3794, %v3843
      %v3860 = vmul.f32 %v3795, %v3843
      %v3861 = vmul.f32 %v3796, %v3843
      %v3862 = vmul.f32 %v3797, %v3843
      %v3863 = vmul.f32 %v3798, %v3843
      %v3864 = vmul.f32 %v3799, %v3843
      %v3865 = vmul.f32 %v3800, %v3843
      %v3866 = vmul.f32 %v3801, %v3843
      %v3867 = vmul.f32 %v3802, %v3843
      %v3868 = vmul.f32 %v3803, %v3843
      %v3869 = vmul.f32 %v3804, %v3843
      %v3870 = vmul.f32 %v3805, %v3843
      %v3871 = vmul.f32 %v3806, %v3843
      %v3872 = vmul.f32 %v3807, %v3843
      %v3873 = vmul.f32 %v3808, %v3843
      %v3874 = vmul.f32 %v3809, %v3843
      %v3875 = vmul.f32 %v3810, %v3843
      %v3876 = vsel %vm333, %v3844, 0.0
      %3877 = vadd.xlane.f32.xlu0 %v3876
      %v3878 = vpop.xlane.xlu0 %3877
      %v3879 = vsel %vm333, %v3845, 0.0
      %3880 = vadd.xlane.f32.xlu0 %v3879
      %v3881 = vpop.xlane.xlu0 %3880
      %v3882 = vsel %vm333, %v3846, 0.0
      %3883 = vadd.xlane.f32.xlu0 %v3882
      %v3884 = vpop.xlane.xlu0 %3883
      %v3885 = vsel %vm333, %v3847, 0.0
      %3886 = vadd.xlane.f32.xlu0 %v3885
      %v3887 = vpop.xlane.xlu0 %3886
      %v3888 = vsel %vm333, %v3848, 0.0
      %3889 = vadd.xlane.f32.xlu0 %v3888
      %v3890 = vpop.xlane.xlu0 %3889
      %v3891 = vsel %vm333, %v3849, 0.0
      %3892 = vadd.xlane.f32.xlu0 %v3891
      %v3893 = vpop.xlane.xlu0 %3892
      %v3894 = vsel %vm333, %v3850, 0.0
      %3895 = vadd.xlane.f32.xlu0 %v3894
      %v3896 = vpop.xlane.xlu0 %3895
      %v3897 = vsel %vm333, %v3851, 0.0
      %3898 = vadd.xlane.f32.xlu0 %v3897
      %v3899 = vpop.xlane.xlu0 %3898
      %v3900 = vsel %vm333, %v3852, 0.0
      %3901 = vadd.xlane.f32.xlu0 %v3900
      %v3902 = vpop.xlane.xlu0 %3901
      %v3903 = vsel %vm333, %v3853, 0.0
      %3904 = vadd.xlane.f32.xlu0 %v3903
      %v3905 = vpop.xlane.xlu0 %3904
      %v3906 = vsel %vm333, %v3854, 0.0
      %3907 = vadd.xlane.f32.xlu0 %v3906
      %v3908 = vpop.xlane.xlu0 %3907
      %v3909 = vsel %vm333, %v3855, 0.0
      %3910 = vadd.xlane.f32.xlu0 %v3909
      %v3911 = vpop.xlane.xlu0 %3910
      %v3912 = vsel %vm333, %v3856, 0.0
      %3913 = vadd.xlane.f32.xlu0 %v3912
      %v3914 = vpop.xlane.xlu0 %3913
      %v3915 = vsel %vm333, %v3857, 0.0
      %3916 = vadd.xlane.f32.xlu0 %v3915
      %v3917 = vpop.xlane.xlu0 %3916
      %v3918 = vsel %vm333, %v3858, 0.0
      %3919 = vadd.xlane.f32.xlu0 %v3918
      %v3920 = vpop.xlane.xlu0 %3919
      %v3921 = vsel %vm333, %v3859, 0.0
      %3922 = vadd.xlane.f32.xlu0 %v3921
      %v3923 = vpop.xlane.xlu0 %3922
      %v3924 = vsel %vm333, %v3860, 0.0
      %3925 = vadd.xlane.f32.xlu0 %v3924
      %v3926 = vpop.xlane.xlu0 %3925
      %v3927 = vsel %vm333, %v3861, 0.0
      %3928 = vadd.xlane.f32.xlu0 %v3927
      %v3929 = vpop.xlane.xlu0 %3928
      %v3930 = vsel %vm333, %v3862, 0.0
      %3931 = vadd.xlane.f32.xlu0 %v3930
      %v3932 = vpop.xlane.xlu0 %3931
      %v3933 = vsel %vm333, %v3863, 0.0
      %3934 = vadd.xlane.f32.xlu0 %v3933
      %v3935 = vpop.xlane.xlu0 %3934
      %v3936 = vsel %vm333, %v3864, 0.0
      %3937 = vadd.xlane.f32.xlu0 %v3936
      %v3938 = vpop.xlane.xlu0 %3937
      %v3939 = vsel %vm333, %v3865, 0.0
      %3940 = vadd.xlane.f32.xlu0 %v3939
      %v3941 = vpop.xlane.xlu0 %3940
      %v3942 = vsel %vm333, %v3866, 0.0
      %3943 = vadd.xlane.f32.xlu0 %v3942
      %v3944 = vpop.xlane.xlu0 %3943
      %v3945 = vsel %vm333, %v3867, 0.0
      %3946 = vadd.xlane.f32.xlu0 %v3945
      %v3947 = vpop.xlane.xlu0 %3946
      %v3948 = vsel %vm333, %v3868, 0.0
      %3949 = vadd.xlane.f32.xlu0 %v3948
      %v3950 = vpop.xlane.xlu0 %3949
      %v3951 = vsel %vm333, %v3869, 0.0
      %3952 = vadd.xlane.f32.xlu0 %v3951
      %v3953 = vpop.xlane.xlu0 %3952
      %v3954 = vsel %vm333, %v3870, 0.0
      %3955 = vadd.xlane.f32.xlu0 %v3954
      %v3956 = vpop.xlane.xlu0 %3955
      %v3957 = vsel %vm333, %v3871, 0.0
      %3958 = vadd.xlane.f32.xlu0 %v3957
      %v3959 = vpop.xlane.xlu0 %3958
      %v3960 = vsel %vm333, %v3872, 0.0
      %3961 = vadd.xlane.f32.xlu0 %v3960
      %v3962 = vpop.xlane.xlu0 %3961
      %v3963 = vsel %vm333, %v3873, 0.0
      %3964 = vadd.xlane.f32.xlu0 %v3963
      %v3965 = vpop.xlane.xlu0 %3964
      %v3966 = vsel %vm333, %v3874, 0.0
      %3967 = vadd.xlane.f32.xlu0 %v3966
      %v3968 = vpop.xlane.xlu0 %3967
      %v3969 = vsel %vm333, %v3875, 0.0
      %3970 = vadd.xlane.f32.xlu0 %v3969
      %v3971 = vpop.xlane.xlu0 %3970
      %v3972 = vadd.f32 %v3425, %v3878
      %v3973 = vadd.f32 %v3426, %v3881
      %v3974 = vadd.f32 %v3427, %v3884
      %v3975 = vadd.f32 %v3428, %v3887
      %v3976 = vadd.f32 %v3429, %v3890
      %v3977 = vadd.f32 %v3430, %v3893
      %v3978 = vadd.f32 %v3431, %v3896
      %v3979 = vadd.f32 %v3432, %v3899
      %v3980 = vadd.f32 %v3433, %v3902
      %v3981 = vadd.f32 %v3434, %v3905
      %v3982 = vadd.f32 %v3435, %v3908
      %v3983 = vadd.f32 %v3436, %v3911
      %v3984 = vadd.f32 %v3437, %v3914
      %v3985 = vadd.f32 %v3438, %v3917
      %v3986 = vadd.f32 %v3439, %v3920
      %v3987 = vadd.f32 %v3440, %v3923
      %v3988 = vadd.f32 %v3441, %v3926
      %v3989 = vadd.f32 %v3442, %v3929
      %v3990 = vadd.f32 %v3443, %v3932
      %v3991 = vadd.f32 %v3444, %v3935
      %v3992 = vadd.f32 %v3445, %v3938
      %v3993 = vadd.f32 %v3446, %v3941
      %v3994 = vadd.f32 %v3447, %v3944
      %v3995 = vadd.f32 %v3448, %v3947
      %v3996 = vadd.f32 %v3449, %v3950
      %v3997 = vadd.f32 %v3450, %v3953
      %v3998 = vadd.f32 %v3451, %v3956
      %v3999 = vadd.f32 %v3452, %v3959
      %v4000 = vadd.f32 %v3453, %v3962
      %v4001 = vadd.f32 %v3454, %v3965
      %v4002 = vadd.f32 %v3455, %v3968
      %v4003 = vadd.f32 %v3456, %v3971
      %v4004 = vperm.slane %v232, 0
      %v4005 = vmul.f32 %v3811, %v4004
      %v4006 = vmul.f32 %v3812, %v4004
      %v4007 = vmul.f32 %v3813, %v4004
      %v4008 = vmul.f32 %v3814, %v4004
      %v4009 = vmul.f32 %v3815, %v4004
      %v4010 = vmul.f32 %v3816, %v4004
      %v4011 = vmul.f32 %v3817, %v4004
      %v4012 = vmul.f32 %v3818, %v4004
      %v4013 = vmul.f32 %v3819, %v4004
      %v4014 = vmul.f32 %v3820, %v4004
      %v4015 = vmul.f32 %v3821, %v4004
      %v4016 = vmul.f32 %v3822, %v4004
      %v4017 = vmul.f32 %v3823, %v4004
      %v4018 = vmul.f32 %v3824, %v4004
      %v4019 = vmul.f32 %v3825, %v4004
      %v4020 = vmul.f32 %v3826, %v4004
      %v4021 = vmul.f32 %v3827, %v4004
      %v4022 = vmul.f32 %v3828, %v4004
      %v4023 = vmul.f32 %v3829, %v4004
      %v4024 = vmul.f32 %v3830, %v4004
      %v4025 = vmul.f32 %v3831, %v4004
      %v4026 = vmul.f32 %v3832, %v4004
      %v4027 = vmul.f32 %v3833, %v4004
      %v4028 = vmul.f32 %v3834, %v4004
      %v4029 = vmul.f32 %v3835, %v4004
      %v4030 = vmul.f32 %v3836, %v4004
      %v4031 = vmul.f32 %v3837, %v4004
      %v4032 = vmul.f32 %v3838, %v4004
      %v4033 = vmul.f32 %v3839, %v4004
      %v4034 = vmul.f32 %v3840, %v4004
      %v4035 = vmul.f32 %v3841, %v4004
      %v4036 = vmul.f32 %v3842, %v4004
      %v4037 = vsel %vm333, %v4005, 0.0
      %4038 = vadd.xlane.f32.xlu0 %v4037
      %v4039 = vpop.xlane.xlu0 %4038
      %v4040 = vsel %vm333, %v4006, 0.0
      %4041 = vadd.xlane.f32.xlu0 %v4040
      %v4042 = vpop.xlane.xlu0 %4041
      %v4043 = vsel %vm333, %v4007, 0.0
      %4044 = vadd.xlane.f32.xlu0 %v4043
      %v4045 = vpop.xlane.xlu0 %4044
      %v4046 = vsel %vm333, %v4008, 0.0
      %4047 = vadd.xlane.f32.xlu0 %v4046
      %v4048 = vpop.xlane.xlu0 %4047
      %v4049 = vsel %vm333, %v4009, 0.0
      %4050 = vadd.xlane.f32.xlu0 %v4049
      %v4051 = vpop.xlane.xlu0 %4050
      %v4052 = vsel %vm333, %v4010, 0.0
      %4053 = vadd.xlane.f32.xlu0 %v4052
      %v4054 = vpop.xlane.xlu0 %4053
      %v4055 = vsel %vm333, %v4011, 0.0
      %4056 = vadd.xlane.f32.xlu0 %v4055
      %v4057 = vpop.xlane.xlu0 %4056
      %v4058 = vsel %vm333, %v4012, 0.0
      %4059 = vadd.xlane.f32.xlu0 %v4058
      %v4060 = vpop.xlane.xlu0 %4059
      %v4061 = vsel %vm333, %v4013, 0.0
      %4062 = vadd.xlane.f32.xlu0 %v4061
      %v4063 = vpop.xlane.xlu0 %4062
      %v4064 = vsel %vm333, %v4014, 0.0
      %4065 = vadd.xlane.f32.xlu0 %v4064
      %v4066 = vpop.xlane.xlu0 %4065
      %v4067 = vsel %vm333, %v4015, 0.0
      %4068 = vadd.xlane.f32.xlu0 %v4067
      %v4069 = vpop.xlane.xlu0 %4068
      %v4070 = vsel %vm333, %v4016, 0.0
      %4071 = vadd.xlane.f32.xlu0 %v4070
      %v4072 = vpop.xlane.xlu0 %4071
      %v4073 = vsel %vm333, %v4017, 0.0
      %4074 = vadd.xlane.f32.xlu0 %v4073
      %v4075 = vpop.xlane.xlu0 %4074
      %v4076 = vsel %vm333, %v4018, 0.0
      %4077 = vadd.xlane.f32.xlu0 %v4076
      %v4078 = vpop.xlane.xlu0 %4077
      %v4079 = vsel %vm333, %v4019, 0.0
      %4080 = vadd.xlane.f32.xlu0 %v4079
      %v4081 = vpop.xlane.xlu0 %4080
      %v4082 = vsel %vm333, %v4020, 0.0
      %4083 = vadd.xlane.f32.xlu0 %v4082
      %v4084 = vpop.xlane.xlu0 %4083
      %v4085 = vsel %vm333, %v4021, 0.0
      %4086 = vadd.xlane.f32.xlu0 %v4085
      %v4087 = vpop.xlane.xlu0 %4086
      %v4088 = vsel %vm333, %v4022, 0.0
      %4089 = vadd.xlane.f32.xlu0 %v4088
      %v4090 = vpop.xlane.xlu0 %4089
      %v4091 = vsel %vm333, %v4023, 0.0
      %4092 = vadd.xlane.f32.xlu0 %v4091
      %v4093 = vpop.xlane.xlu0 %4092
      %v4094 = vsel %vm333, %v4024, 0.0
      %4095 = vadd.xlane.f32.xlu0 %v4094
      %v4096 = vpop.xlane.xlu0 %4095
      %v4097 = vsel %vm333, %v4025, 0.0
      %4098 = vadd.xlane.f32.xlu0 %v4097
      %v4099 = vpop.xlane.xlu0 %4098
      %v4100 = vsel %vm333, %v4026, 0.0
      %4101 = vadd.xlane.f32.xlu0 %v4100
      %v4102 = vpop.xlane.xlu0 %4101
      %v4103 = vsel %vm333, %v4027, 0.0
      %4104 = vadd.xlane.f32.xlu0 %v4103
      %v4105 = vpop.xlane.xlu0 %4104
      %v4106 = vsel %vm333, %v4028, 0.0
      %4107 = vadd.xlane.f32.xlu0 %v4106
      %v4108 = vpop.xlane.xlu0 %4107
      %v4109 = vsel %vm333, %v4029, 0.0
      %4110 = vadd.xlane.f32.xlu0 %v4109
      %v4111 = vpop.xlane.xlu0 %4110
      %v4112 = vsel %vm333, %v4030, 0.0
      %4113 = vadd.xlane.f32.xlu0 %v4112
      %v4114 = vpop.xlane.xlu0 %4113
      %v4115 = vsel %vm333, %v4031, 0.0
      %4116 = vadd.xlane.f32.xlu0 %v4115
      %v4117 = vpop.xlane.xlu0 %4116
      %v4118 = vsel %vm333, %v4032, 0.0
      %4119 = vadd.xlane.f32.xlu0 %v4118
      %v4120 = vpop.xlane.xlu0 %4119
      %v4121 = vsel %vm333, %v4033, 0.0
      %4122 = vadd.xlane.f32.xlu0 %v4121
      %v4123 = vpop.xlane.xlu0 %4122
      %v4124 = vsel %vm333, %v4034, 0.0
      %4125 = vadd.xlane.f32.xlu0 %v4124
      %v4126 = vpop.xlane.xlu0 %4125
      %v4127 = vsel %vm333, %v4035, 0.0
      %4128 = vadd.xlane.f32.xlu0 %v4127
      %v4129 = vpop.xlane.xlu0 %4128
      %v4130 = vsel %vm333, %v4036, 0.0
      %4131 = vadd.xlane.f32.xlu0 %v4130
      %v4132 = vpop.xlane.xlu0 %4131
      %v4133 = vadd.f32 %v3972, %v4039
      %v4134 = vadd.f32 %v3973, %v4042
      %v4135 = vadd.f32 %v3974, %v4045
      %v4136 = vadd.f32 %v3975, %v4048
      %v4137 = vadd.f32 %v3976, %v4051
      %v4138 = vadd.f32 %v3977, %v4054
      %v4139 = vadd.f32 %v3978, %v4057
      %v4140 = vadd.f32 %v3979, %v4060
      %v4141 = vadd.f32 %v3980, %v4063
      %v4142 = vadd.f32 %v3981, %v4066
      %v4143 = vadd.f32 %v3982, %v4069
      %v4144 = vadd.f32 %v3983, %v4072
      %v4145 = vadd.f32 %v3984, %v4075
      %v4146 = vadd.f32 %v3985, %v4078
      %v4147 = vadd.f32 %v3986, %v4081
      %v4148 = vadd.f32 %v3987, %v4084
      %v4149 = vadd.f32 %v3988, %v4087
      %v4150 = vadd.f32 %v3989, %v4090
      %v4151 = vadd.f32 %v3990, %v4093
      %v4152 = vadd.f32 %v3991, %v4096
      %v4153 = vadd.f32 %v3992, %v4099
      %v4154 = vadd.f32 %v3993, %v4102
      %v4155 = vadd.f32 %v3994, %v4105
      %v4156 = vadd.f32 %v3995, %v4108
      %v4157 = vadd.f32 %v3996, %v4111
      %v4158 = vadd.f32 %v3997, %v4114
      %v4159 = vadd.f32 %v3998, %v4117
      %v4160 = vadd.f32 %v3999, %v4120
      %v4161 = vadd.f32 %v4000, %v4123
      %v4162 = vadd.f32 %v4001, %v4126
      %v4163 = vadd.f32 %v4002, %v4129
      %v4164 = vadd.f32 %v4003, %v4132
      %v4165 = vperm.slane %v223, 1
      %v4166 = vmul.f32 %v3779, %v4165
      %v4167 = vmul.f32 %v3780, %v4165
      %v4168 = vmul.f32 %v3781, %v4165
      %v4169 = vmul.f32 %v3782, %v4165
      %v4170 = vmul.f32 %v3783, %v4165
      %v4171 = vmul.f32 %v3784, %v4165
      %v4172 = vmul.f32 %v3785, %v4165
      %v4173 = vmul.f32 %v3786, %v4165
      %v4174 = vmul.f32 %v3787, %v4165
      %v4175 = vmul.f32 %v3788, %v4165
      %v4176 = vmul.f32 %v3789, %v4165
      %v4177 = vmul.f32 %v3790, %v4165
      %v4178 = vmul.f32 %v3791, %v4165
      %v4179 = vmul.f32 %v3792, %v4165
      %v4180 = vmul.f32 %v3793, %v4165
      %v4181 = vmul.f32 %v3794, %v4165
      %v4182 = vmul.f32 %v3795, %v4165
      %v4183 = vmul.f32 %v3796, %v4165
      %v4184 = vmul.f32 %v3797, %v4165
      %v4185 = vmul.f32 %v3798, %v4165
      %v4186 = vmul.f32 %v3799, %v4165
      %v4187 = vmul.f32 %v3800, %v4165
      %v4188 = vmul.f32 %v3801, %v4165
      %v4189 = vmul.f32 %v3802, %v4165
      %v4190 = vmul.f32 %v3803, %v4165
      %v4191 = vmul.f32 %v3804, %v4165
      %v4192 = vmul.f32 %v3805, %v4165
      %v4193 = vmul.f32 %v3806, %v4165
      %v4194 = vmul.f32 %v3807, %v4165
      %v4195 = vmul.f32 %v3808, %v4165
      %v4196 = vmul.f32 %v3809, %v4165
      %v4197 = vmul.f32 %v3810, %v4165
      %v4198 = vsel %vm333, %v4166, 0.0
      %4199 = vadd.xlane.f32.xlu0 %v4198
      %v4200 = vpop.xlane.xlu0 %4199
      %v4201 = vsel %vm333, %v4167, 0.0
      %4202 = vadd.xlane.f32.xlu0 %v4201
      %v4203 = vpop.xlane.xlu0 %4202
      %v4204 = vsel %vm333, %v4168, 0.0
      %4205 = vadd.xlane.f32.xlu0 %v4204
      %v4206 = vpop.xlane.xlu0 %4205
      %v4207 = vsel %vm333, %v4169, 0.0
      %4208 = vadd.xlane.f32.xlu0 %v4207
      %v4209 = vpop.xlane.xlu0 %4208
      %v4210 = vsel %vm333, %v4170, 0.0
      %4211 = vadd.xlane.f32.xlu0 %v4210
      %v4212 = vpop.xlane.xlu0 %4211
      %v4213 = vsel %vm333, %v4171, 0.0
      %4214 = vadd.xlane.f32.xlu0 %v4213
      %v4215 = vpop.xlane.xlu0 %4214
      %v4216 = vsel %vm333, %v4172, 0.0
      %4217 = vadd.xlane.f32.xlu0 %v4216
      %v4218 = vpop.xlane.xlu0 %4217
      %v4219 = vsel %vm333, %v4173, 0.0
      %4220 = vadd.xlane.f32.xlu0 %v4219
      %v4221 = vpop.xlane.xlu0 %4220
      %v4222 = vsel %vm333, %v4174, 0.0
      %4223 = vadd.xlane.f32.xlu0 %v4222
      %v4224 = vpop.xlane.xlu0 %4223
      %v4225 = vsel %vm333, %v4175, 0.0
      %4226 = vadd.xlane.f32.xlu0 %v4225
      %v4227 = vpop.xlane.xlu0 %4226
      %v4228 = vsel %vm333, %v4176, 0.0
      %4229 = vadd.xlane.f32.xlu0 %v4228
      %v4230 = vpop.xlane.xlu0 %4229
      %v4231 = vsel %vm333, %v4177, 0.0
      %4232 = vadd.xlane.f32.xlu0 %v4231
      %v4233 = vpop.xlane.xlu0 %4232
      %v4234 = vsel %vm333, %v4178, 0.0
      %4235 = vadd.xlane.f32.xlu0 %v4234
      %v4236 = vpop.xlane.xlu0 %4235
      %v4237 = vsel %vm333, %v4179, 0.0
      %4238 = vadd.xlane.f32.xlu0 %v4237
      %v4239 = vpop.xlane.xlu0 %4238
      %v4240 = vsel %vm333, %v4180, 0.0
      %4241 = vadd.xlane.f32.xlu0 %v4240
      %v4242 = vpop.xlane.xlu0 %4241
      %v4243 = vsel %vm333, %v4181, 0.0
      %4244 = vadd.xlane.f32.xlu0 %v4243
      %v4245 = vpop.xlane.xlu0 %4244
      %v4246 = vsel %vm333, %v4182, 0.0
      %4247 = vadd.xlane.f32.xlu0 %v4246
      %v4248 = vpop.xlane.xlu0 %4247
      %v4249 = vsel %vm333, %v4183, 0.0
      %4250 = vadd.xlane.f32.xlu0 %v4249
      %v4251 = vpop.xlane.xlu0 %4250
      %v4252 = vsel %vm333, %v4184, 0.0
      %4253 = vadd.xlane.f32.xlu0 %v4252
      %v4254 = vpop.xlane.xlu0 %4253
      %v4255 = vsel %vm333, %v4185, 0.0
      %4256 = vadd.xlane.f32.xlu0 %v4255
      %v4257 = vpop.xlane.xlu0 %4256
      %v4258 = vsel %vm333, %v4186, 0.0
      %4259 = vadd.xlane.f32.xlu0 %v4258
      %v4260 = vpop.xlane.xlu0 %4259
      %v4261 = vsel %vm333, %v4187, 0.0
      %4262 = vadd.xlane.f32.xlu0 %v4261
      %v4263 = vpop.xlane.xlu0 %4262
      %v4264 = vsel %vm333, %v4188, 0.0
      %4265 = vadd.xlane.f32.xlu0 %v4264
      %v4266 = vpop.xlane.xlu0 %4265
      %v4267 = vsel %vm333, %v4189, 0.0
      %4268 = vadd.xlane.f32.xlu0 %v4267
      %v4269 = vpop.xlane.xlu0 %4268
      %v4270 = vsel %vm333, %v4190, 0.0
      %4271 = vadd.xlane.f32.xlu0 %v4270
      %v4272 = vpop.xlane.xlu0 %4271
      %v4273 = vsel %vm333, %v4191, 0.0
      %4274 = vadd.xlane.f32.xlu0 %v4273
      %v4275 = vpop.xlane.xlu0 %4274
      %v4276 = vsel %vm333, %v4192, 0.0
      %4277 = vadd.xlane.f32.xlu0 %v4276
      %v4278 = vpop.xlane.xlu0 %4277
      %v4279 = vsel %vm333, %v4193, 0.0
      %4280 = vadd.xlane.f32.xlu0 %v4279
      %v4281 = vpop.xlane.xlu0 %4280
      %v4282 = vsel %vm333, %v4194, 0.0
      %4283 = vadd.xlane.f32.xlu0 %v4282
      %v4284 = vpop.xlane.xlu0 %4283
      %v4285 = vsel %vm333, %v4195, 0.0
      %4286 = vadd.xlane.f32.xlu0 %v4285
      %v4287 = vpop.xlane.xlu0 %4286
      %v4288 = vsel %vm333, %v4196, 0.0
      %4289 = vadd.xlane.f32.xlu0 %v4288
      %v4290 = vpop.xlane.xlu0 %4289
      %v4291 = vsel %vm333, %v4197, 0.0
      %4292 = vadd.xlane.f32.xlu0 %v4291
      %v4293 = vpop.xlane.xlu0 %4292
      %v4294 = vadd.f32 %v3747, %v4200
      %v4295 = vadd.f32 %v3748, %v4203
      %v4296 = vadd.f32 %v3749, %v4206
      %v4297 = vadd.f32 %v3750, %v4209
      %v4298 = vadd.f32 %v3751, %v4212
      %v4299 = vadd.f32 %v3752, %v4215
      %v4300 = vadd.f32 %v3753, %v4218
      %v4301 = vadd.f32 %v3754, %v4221
      %v4302 = vadd.f32 %v3755, %v4224
      %v4303 = vadd.f32 %v3756, %v4227
      %v4304 = vadd.f32 %v3757, %v4230
      %v4305 = vadd.f32 %v3758, %v4233
      %v4306 = vadd.f32 %v3759, %v4236
      %v4307 = vadd.f32 %v3760, %v4239
      %v4308 = vadd.f32 %v3761, %v4242
      %v4309 = vadd.f32 %v3762, %v4245
      %v4310 = vadd.f32 %v3763, %v4248
      %v4311 = vadd.f32 %v3764, %v4251
      %v4312 = vadd.f32 %v3765, %v4254
      %v4313 = vadd.f32 %v3766, %v4257
      %v4314 = vadd.f32 %v3767, %v4260
      %v4315 = vadd.f32 %v3768, %v4263
      %v4316 = vadd.f32 %v3769, %v4266
      %v4317 = vadd.f32 %v3770, %v4269
      %v4318 = vadd.f32 %v3771, %v4272
      %v4319 = vadd.f32 %v3772, %v4275
      %v4320 = vadd.f32 %v3773, %v4278
      %v4321 = vadd.f32 %v3774, %v4281
      %v4322 = vadd.f32 %v3775, %v4284
      %v4323 = vadd.f32 %v3776, %v4287
      %v4324 = vadd.f32 %v3777, %v4290
      %v4325 = vadd.f32 %v3778, %v4293
      %v4326 = vperm.slane %v232, 1
      %v4327 = vmul.f32 %v3811, %v4326
      %v4328 = vmul.f32 %v3812, %v4326
      %v4329 = vmul.f32 %v3813, %v4326
      %v4330 = vmul.f32 %v3814, %v4326
      %v4331 = vmul.f32 %v3815, %v4326
      %v4332 = vmul.f32 %v3816, %v4326
      %v4333 = vmul.f32 %v3817, %v4326
      %v4334 = vmul.f32 %v3818, %v4326
      %v4335 = vmul.f32 %v3819, %v4326
      %v4336 = vmul.f32 %v3820, %v4326
      %v4337 = vmul.f32 %v3821, %v4326
      %v4338 = vmul.f32 %v3822, %v4326
      %v4339 = vmul.f32 %v3823, %v4326
      %v4340 = vmul.f32 %v3824, %v4326
      %v4341 = vmul.f32 %v3825, %v4326
      %v4342 = vmul.f32 %v3826, %v4326
      %v4343 = vmul.f32 %v3827, %v4326
      %v4344 = vmul.f32 %v3828, %v4326
      %v4345 = vmul.f32 %v3829, %v4326
      %v4346 = vmul.f32 %v3830, %v4326
      %v4347 = vmul.f32 %v3831, %v4326
      %v4348 = vmul.f32 %v3832, %v4326
      %v4349 = vmul.f32 %v3833, %v4326
      %v4350 = vmul.f32 %v3834, %v4326
      %v4351 = vmul.f32 %v3835, %v4326
      %v4352 = vmul.f32 %v3836, %v4326
      %v4353 = vmul.f32 %v3837, %v4326
      %v4354 = vmul.f32 %v3838, %v4326
      %v4355 = vmul.f32 %v3839, %v4326
      %v4356 = vmul.f32 %v3840, %v4326
      %v4357 = vmul.f32 %v3841, %v4326
      %v4358 = vmul.f32 %v3842, %v4326
      %v4359 = vsel %vm333, %v4327, 0.0
      %4360 = vadd.xlane.f32.xlu0 %v4359
      %v4361 = vpop.xlane.xlu0 %4360
      %v4362 = vsel %vm333, %v4328, 0.0
      %4363 = vadd.xlane.f32.xlu0 %v4362
      %v4364 = vpop.xlane.xlu0 %4363
      %v4365 = vsel %vm333, %v4329, 0.0
      %4366 = vadd.xlane.f32.xlu0 %v4365
      %v4367 = vpop.xlane.xlu0 %4366
      %v4368 = vsel %vm333, %v4330, 0.0
      %4369 = vadd.xlane.f32.xlu0 %v4368
      %v4370 = vpop.xlane.xlu0 %4369
      %v4371 = vsel %vm333, %v4331, 0.0
      %4372 = vadd.xlane.f32.xlu0 %v4371
      %v4373 = vpop.xlane.xlu0 %4372
      %v4374 = vsel %vm333, %v4332, 0.0
      %4375 = vadd.xlane.f32.xlu0 %v4374
      %v4376 = vpop.xlane.xlu0 %4375
      %v4377 = vsel %vm333, %v4333, 0.0
      %4378 = vadd.xlane.f32.xlu0 %v4377
      %v4379 = vpop.xlane.xlu0 %4378
      %v4380 = vsel %vm333, %v4334, 0.0
      %4381 = vadd.xlane.f32.xlu0 %v4380
      %v4382 = vpop.xlane.xlu0 %4381
      %v4383 = vsel %vm333, %v4335, 0.0
      %4384 = vadd.xlane.f32.xlu0 %v4383
      %v4385 = vpop.xlane.xlu0 %4384
      %v4386 = vsel %vm333, %v4336, 0.0
      %4387 = vadd.xlane.f32.xlu0 %v4386
      %v4388 = vpop.xlane.xlu0 %4387
      %v4389 = vsel %vm333, %v4337, 0.0
      %4390 = vadd.xlane.f32.xlu0 %v4389
      %v4391 = vpop.xlane.xlu0 %4390
      %v4392 = vsel %vm333, %v4338, 0.0
      %4393 = vadd.xlane.f32.xlu0 %v4392
      %v4394 = vpop.xlane.xlu0 %4393
      %v4395 = vsel %vm333, %v4339, 0.0
      %4396 = vadd.xlane.f32.xlu0 %v4395
      %v4397 = vpop.xlane.xlu0 %4396
      %v4398 = vsel %vm333, %v4340, 0.0
      %4399 = vadd.xlane.f32.xlu0 %v4398
      %v4400 = vpop.xlane.xlu0 %4399
      %v4401 = vsel %vm333, %v4341, 0.0
      %4402 = vadd.xlane.f32.xlu0 %v4401
      %v4403 = vpop.xlane.xlu0 %4402
      %v4404 = vsel %vm333, %v4342, 0.0
      %4405 = vadd.xlane.f32.xlu0 %v4404
      %v4406 = vpop.xlane.xlu0 %4405
      %v4407 = vsel %vm333, %v4343, 0.0
      %4408 = vadd.xlane.f32.xlu0 %v4407
      %v4409 = vpop.xlane.xlu0 %4408
      %v4410 = vsel %vm333, %v4344, 0.0
      %4411 = vadd.xlane.f32.xlu0 %v4410
      %v4412 = vpop.xlane.xlu0 %4411
      %v4413 = vsel %vm333, %v4345, 0.0
      %4414 = vadd.xlane.f32.xlu0 %v4413
      %v4415 = vpop.xlane.xlu0 %4414
      %v4416 = vsel %vm333, %v4346, 0.0
      %4417 = vadd.xlane.f32.xlu0 %v4416
      %v4418 = vpop.xlane.xlu0 %4417
      %v4419 = vsel %vm333, %v4347, 0.0
      %4420 = vadd.xlane.f32.xlu0 %v4419
      %v4421 = vpop.xlane.xlu0 %4420
      %v4422 = vsel %vm333, %v4348, 0.0
      %4423 = vadd.xlane.f32.xlu0 %v4422
      %v4424 = vpop.xlane.xlu0 %4423
      %v4425 = vsel %vm333, %v4349, 0.0
      %4426 = vadd.xlane.f32.xlu0 %v4425
      %v4427 = vpop.xlane.xlu0 %4426
      %v4428 = vsel %vm333, %v4350, 0.0
      %4429 = vadd.xlane.f32.xlu0 %v4428
      %v4430 = vpop.xlane.xlu0 %4429
      %v4431 = vsel %vm333, %v4351, 0.0
      %4432 = vadd.xlane.f32.xlu0 %v4431
      %v4433 = vpop.xlane.xlu0 %4432
      %v4434 = vsel %vm333, %v4352, 0.0
      %4435 = vadd.xlane.f32.xlu0 %v4434
      %v4436 = vpop.xlane.xlu0 %4435
      %v4437 = vsel %vm333, %v4353, 0.0
      %4438 = vadd.xlane.f32.xlu0 %v4437
      %v4439 = vpop.xlane.xlu0 %4438
      %v4440 = vsel %vm333, %v4354, 0.0
      %4441 = vadd.xlane.f32.xlu0 %v4440
      %v4442 = vpop.xlane.xlu0 %4441
      %v4443 = vsel %vm333, %v4355, 0.0
      %4444 = vadd.xlane.f32.xlu0 %v4443
      %v4445 = vpop.xlane.xlu0 %4444
      %v4446 = vsel %vm333, %v4356, 0.0
      %4447 = vadd.xlane.f32.xlu0 %v4446
      %v4448 = vpop.xlane.xlu0 %4447
      %v4449 = vsel %vm333, %v4357, 0.0
      %4450 = vadd.xlane.f32.xlu0 %v4449
      %v4451 = vpop.xlane.xlu0 %4450
      %v4452 = vsel %vm333, %v4358, 0.0
      %4453 = vadd.xlane.f32.xlu0 %v4452
      %v4454 = vpop.xlane.xlu0 %4453
      %v4455 = vadd.f32 %v4294, %v4361
      %v4456 = vadd.f32 %v4295, %v4364
      %v4457 = vadd.f32 %v4296, %v4367
      %v4458 = vadd.f32 %v4297, %v4370
      %v4459 = vadd.f32 %v4298, %v4373
      %v4460 = vadd.f32 %v4299, %v4376
      %v4461 = vadd.f32 %v4300, %v4379
      %v4462 = vadd.f32 %v4301, %v4382
      %v4463 = vadd.f32 %v4302, %v4385
      %v4464 = vadd.f32 %v4303, %v4388
      %v4465 = vadd.f32 %v4304, %v4391
      %v4466 = vadd.f32 %v4305, %v4394
      %v4467 = vadd.f32 %v4306, %v4397
      %v4468 = vadd.f32 %v4307, %v4400
      %v4469 = vadd.f32 %v4308, %v4403
      %v4470 = vadd.f32 %v4309, %v4406
      %v4471 = vadd.f32 %v4310, %v4409
      %v4472 = vadd.f32 %v4311, %v4412
      %v4473 = vadd.f32 %v4312, %v4415
      %v4474 = vadd.f32 %v4313, %v4418
      %v4475 = vadd.f32 %v4314, %v4421
      %v4476 = vadd.f32 %v4315, %v4424
      %v4477 = vadd.f32 %v4316, %v4427
      %v4478 = vadd.f32 %v4317, %v4430
      %v4479 = vadd.f32 %v4318, %v4433
      %v4480 = vadd.f32 %v4319, %v4436
      %v4481 = vadd.f32 %v4320, %v4439
      %v4482 = vadd.f32 %v4321, %v4442
      %v4483 = vadd.f32 %v4322, %v4445
      %v4484 = vadd.f32 %v4323, %v4448
      %v4485 = vadd.f32 %v4324, %v4451
      %v4486 = vadd.f32 %v4325, %v4454
      %s4487 = scalar_lea.vmem %s207, 48
      %v4488 = vld [vmem:[%s4487] sm:$0xff]
      %v4489 = vld [vmem:[%s4487 + $0x8] sm:$0xff]
      %v4490 = vld [vmem:[%s4487 + $0x18] sm:$0xff]
      %v4491 = vld [vmem:[%s4487 + $0x20] sm:$0xff]
      %v4492 = vld [vmem:[%s4487 + $0x30] sm:$0xff]
      %v4493 = vld [vmem:[%s4487 + $0x38] sm:$0xff]
      %v4494 = vld [vmem:[%s4487 + $0x48] sm:$0xff]
      %v4495 = vld [vmem:[%s4487 + $0x50] sm:$0xff]
      %v4496 = vld [vmem:[%s4487 + $0x60] sm:$0xff]
      %v4497 = vld [vmem:[%s4487 + $0x68] sm:$0xff]
      %v4498 = vld [vmem:[%s4487 + $0x78] sm:$0xff]
      %v4499 = vld [vmem:[%s4487 + $0x80] sm:$0xff]
      %v4500 = vld [vmem:[%s4487 + $0x90] sm:$0xff]
      %v4501 = vld [vmem:[%s4487 + $0x98] sm:$0xff]
      %v4502 = vld [vmem:[%s4487 + $0xa8] sm:$0xff]
      %v4503 = vld [vmem:[%s4487 + $0xb0] sm:$0xff]
      %v4504 = vld [vmem:[%s4487 + $0xc0] sm:$0xff]
      %v4505 = vld [vmem:[%s4487 + $0xc8] sm:$0xff]
      %v4506 = vld [vmem:[%s4487 + $0xd8] sm:$0xff]
      %v4507 = vld [vmem:[%s4487 + $0xe0] sm:$0xff]
      %v4508 = vld [vmem:[%s4487 + $0xf0] sm:$0xff]
      %v4509 = vld [vmem:[%s4487 + $0xf8] sm:$0xff]
      %v4510 = vld [vmem:[%s4487 + $0x108] sm:$0xff]
      %v4511 = vld [vmem:[%s4487 + $0x110] sm:$0xff]
      %v4512 = vld [vmem:[%s4487 + $0x120] sm:$0xff]
      %v4513 = vld [vmem:[%s4487 + $0x128] sm:$0xff]
      %v4514 = vld [vmem:[%s4487 + $0x138] sm:$0xff]
      %v4515 = vld [vmem:[%s4487 + $0x140] sm:$0xff]
      %v4516 = vld [vmem:[%s4487 + $0x150] sm:$0xff]
      %v4517 = vld [vmem:[%s4487 + $0x158] sm:$0xff]
      %v4518 = vld [vmem:[%s4487 + $0x168] sm:$0xff]
      %v4519 = vld [vmem:[%s4487 + $0x170] sm:$0xff]
      %s4520 = scalar_lea.vmem %s212, 48
      %v4521 = vld [vmem:[%s4520] sm:$0xff]
      %v4522 = vld [vmem:[%s4520 + $0x8] sm:$0xff]
      %v4523 = vld [vmem:[%s4520 + $0x18] sm:$0xff]
      %v4524 = vld [vmem:[%s4520 + $0x20] sm:$0xff]
      %v4525 = vld [vmem:[%s4520 + $0x30] sm:$0xff]
      %v4526 = vld [vmem:[%s4520 + $0x38] sm:$0xff]
      %v4527 = vld [vmem:[%s4520 + $0x48] sm:$0xff]
      %v4528 = vld [vmem:[%s4520 + $0x50] sm:$0xff]
      %v4529 = vld [vmem:[%s4520 + $0x60] sm:$0xff]
      %v4530 = vld [vmem:[%s4520 + $0x68] sm:$0xff]
      %v4531 = vld [vmem:[%s4520 + $0x78] sm:$0xff]
      %v4532 = vld [vmem:[%s4520 + $0x80] sm:$0xff]
      %v4533 = vld [vmem:[%s4520 + $0x90] sm:$0xff]
      %v4534 = vld [vmem:[%s4520 + $0x98] sm:$0xff]
      %v4535 = vld [vmem:[%s4520 + $0xa8] sm:$0xff]
      %v4536 = vld [vmem:[%s4520 + $0xb0] sm:$0xff]
      %v4537 = vld [vmem:[%s4520 + $0xc0] sm:$0xff]
      %v4538 = vld [vmem:[%s4520 + $0xc8] sm:$0xff]
      %v4539 = vld [vmem:[%s4520 + $0xd8] sm:$0xff]
      %v4540 = vld [vmem:[%s4520 + $0xe0] sm:$0xff]
      %v4541 = vld [vmem:[%s4520 + $0xf0] sm:$0xff]
      %v4542 = vld [vmem:[%s4520 + $0xf8] sm:$0xff]
      %v4543 = vld [vmem:[%s4520 + $0x108] sm:$0xff]
      %v4544 = vld [vmem:[%s4520 + $0x110] sm:$0xff]
      %v4545 = vld [vmem:[%s4520 + $0x120] sm:$0xff]
      %v4546 = vld [vmem:[%s4520 + $0x128] sm:$0xff]
      %v4547 = vld [vmem:[%s4520 + $0x138] sm:$0xff]
      %v4548 = vld [vmem:[%s4520 + $0x140] sm:$0xff]
      %v4549 = vld [vmem:[%s4520 + $0x150] sm:$0xff]
      %v4550 = vld [vmem:[%s4520 + $0x158] sm:$0xff]
      %v4551 = vld [vmem:[%s4520 + $0x168] sm:$0xff]
      %v4552 = vld [vmem:[%s4520 + $0x170] sm:$0xff]
      %v4553 = vperm.slane %v224, 0
      %v4554 = vmul.f32 %v4488, %v4553
      %v4555 = vmul.f32 %v4489, %v4553
      %v4556 = vmul.f32 %v4490, %v4553
      %v4557 = vmul.f32 %v4491, %v4553
      %v4558 = vmul.f32 %v4492, %v4553
      %v4559 = vmul.f32 %v4493, %v4553
      %v4560 = vmul.f32 %v4494, %v4553
      %v4561 = vmul.f32 %v4495, %v4553
      %v4562 = vmul.f32 %v4496, %v4553
      %v4563 = vmul.f32 %v4497, %v4553
      %v4564 = vmul.f32 %v4498, %v4553
      %v4565 = vmul.f32 %v4499, %v4553
      %v4566 = vmul.f32 %v4500, %v4553
      %v4567 = vmul.f32 %v4501, %v4553
      %v4568 = vmul.f32 %v4502, %v4553
      %v4569 = vmul.f32 %v4503, %v4553
      %v4570 = vmul.f32 %v4504, %v4553
      %v4571 = vmul.f32 %v4505, %v4553
      %v4572 = vmul.f32 %v4506, %v4553
      %v4573 = vmul.f32 %v4507, %v4553
      %v4574 = vmul.f32 %v4508, %v4553
      %v4575 = vmul.f32 %v4509, %v4553
      %v4576 = vmul.f32 %v4510, %v4553
      %v4577 = vmul.f32 %v4511, %v4553
      %v4578 = vmul.f32 %v4512, %v4553
      %v4579 = vmul.f32 %v4513, %v4553
      %v4580 = vmul.f32 %v4514, %v4553
      %v4581 = vmul.f32 %v4515, %v4553
      %v4582 = vmul.f32 %v4516, %v4553
      %v4583 = vmul.f32 %v4517, %v4553
      %v4584 = vmul.f32 %v4518, %v4553
      %v4585 = vmul.f32 %v4519, %v4553
      %v4586 = vsel %vm333, %v4554, 0.0
      %4587 = vadd.xlane.f32.xlu0 %v4586
      %v4588 = vpop.xlane.xlu0 %4587
      %v4589 = vsel %vm333, %v4555, 0.0
      %4590 = vadd.xlane.f32.xlu0 %v4589
      %v4591 = vpop.xlane.xlu0 %4590
      %v4592 = vsel %vm333, %v4556, 0.0
      %4593 = vadd.xlane.f32.xlu0 %v4592
      %v4594 = vpop.xlane.xlu0 %4593
      %v4595 = vsel %vm333, %v4557, 0.0
      %4596 = vadd.xlane.f32.xlu0 %v4595
      %v4597 = vpop.xlane.xlu0 %4596
      %v4598 = vsel %vm333, %v4558, 0.0
      %4599 = vadd.xlane.f32.xlu0 %v4598
      %v4600 = vpop.xlane.xlu0 %4599
      %v4601 = vsel %vm333, %v4559, 0.0
      %4602 = vadd.xlane.f32.xlu0 %v4601
      %v4603 = vpop.xlane.xlu0 %4602
      %v4604 = vsel %vm333, %v4560, 0.0
      %4605 = vadd.xlane.f32.xlu0 %v4604
      %v4606 = vpop.xlane.xlu0 %4605
      %v4607 = vsel %vm333, %v4561, 0.0
      %4608 = vadd.xlane.f32.xlu0 %v4607
      %v4609 = vpop.xlane.xlu0 %4608
      %v4610 = vsel %vm333, %v4562, 0.0
      %4611 = vadd.xlane.f32.xlu0 %v4610
      %v4612 = vpop.xlane.xlu0 %4611
      %v4613 = vsel %vm333, %v4563, 0.0
      %4614 = vadd.xlane.f32.xlu0 %v4613
      %v4615 = vpop.xlane.xlu0 %4614
      %v4616 = vsel %vm333, %v4564, 0.0
      %4617 = vadd.xlane.f32.xlu0 %v4616
      %v4618 = vpop.xlane.xlu0 %4617
      %v4619 = vsel %vm333, %v4565, 0.0
      %4620 = vadd.xlane.f32.xlu0 %v4619
      %v4621 = vpop.xlane.xlu0 %4620
      %v4622 = vsel %vm333, %v4566, 0.0
      %4623 = vadd.xlane.f32.xlu0 %v4622
      %v4624 = vpop.xlane.xlu0 %4623
      %v4625 = vsel %vm333, %v4567, 0.0
      %4626 = vadd.xlane.f32.xlu0 %v4625
      %v4627 = vpop.xlane.xlu0 %4626
      %v4628 = vsel %vm333, %v4568, 0.0
      %4629 = vadd.xlane.f32.xlu0 %v4628
      %v4630 = vpop.xlane.xlu0 %4629
      %v4631 = vsel %vm333, %v4569, 0.0
      %4632 = vadd.xlane.f32.xlu0 %v4631
      %v4633 = vpop.xlane.xlu0 %4632
      %v4634 = vsel %vm333, %v4570, 0.0
      %4635 = vadd.xlane.f32.xlu0 %v4634
      %v4636 = vpop.xlane.xlu0 %4635
      %v4637 = vsel %vm333, %v4571, 0.0
      %4638 = vadd.xlane.f32.xlu0 %v4637
      %v4639 = vpop.xlane.xlu0 %4638
      %v4640 = vsel %vm333, %v4572, 0.0
      %4641 = vadd.xlane.f32.xlu0 %v4640
      %v4642 = vpop.xlane.xlu0 %4641
      %v4643 = vsel %vm333, %v4573, 0.0
      %4644 = vadd.xlane.f32.xlu0 %v4643
      %v4645 = vpop.xlane.xlu0 %4644
      %v4646 = vsel %vm333, %v4574, 0.0
      %4647 = vadd.xlane.f32.xlu0 %v4646
      %v4648 = vpop.xlane.xlu0 %4647
      %v4649 = vsel %vm333, %v4575, 0.0
      %4650 = vadd.xlane.f32.xlu0 %v4649
      %v4651 = vpop.xlane.xlu0 %4650
      %v4652 = vsel %vm333, %v4576, 0.0
      %4653 = vadd.xlane.f32.xlu0 %v4652
      %v4654 = vpop.xlane.xlu0 %4653
      %v4655 = vsel %vm333, %v4577, 0.0
      %4656 = vadd.xlane.f32.xlu0 %v4655
      %v4657 = vpop.xlane.xlu0 %4656
      %v4658 = vsel %vm333, %v4578, 0.0
      %4659 = vadd.xlane.f32.xlu0 %v4658
      %v4660 = vpop.xlane.xlu0 %4659
      %v4661 = vsel %vm333, %v4579, 0.0
      %4662 = vadd.xlane.f32.xlu0 %v4661
      %v4663 = vpop.xlane.xlu0 %4662
      %v4664 = vsel %vm333, %v4580, 0.0
      %4665 = vadd.xlane.f32.xlu0 %v4664
      %v4666 = vpop.xlane.xlu0 %4665
      %v4667 = vsel %vm333, %v4581, 0.0
      %4668 = vadd.xlane.f32.xlu0 %v4667
      %v4669 = vpop.xlane.xlu0 %4668
      %v4670 = vsel %vm333, %v4582, 0.0
      %4671 = vadd.xlane.f32.xlu0 %v4670
      %v4672 = vpop.xlane.xlu0 %4671
      %v4673 = vsel %vm333, %v4583, 0.0
      %4674 = vadd.xlane.f32.xlu0 %v4673
      %v4675 = vpop.xlane.xlu0 %4674
      %v4676 = vsel %vm333, %v4584, 0.0
      %4677 = vadd.xlane.f32.xlu0 %v4676
      %v4678 = vpop.xlane.xlu0 %4677
      %v4679 = vsel %vm333, %v4585, 0.0
      %4680 = vadd.xlane.f32.xlu0 %v4679
      %v4681 = vpop.xlane.xlu0 %4680
      %v4682 = vadd.f32 %v4133, %v4588
      %v4683 = vadd.f32 %v4134, %v4591
      %v4684 = vadd.f32 %v4135, %v4594
      %v4685 = vadd.f32 %v4136, %v4597
      %v4686 = vadd.f32 %v4137, %v4600
      %v4687 = vadd.f32 %v4138, %v4603
      %v4688 = vadd.f32 %v4139, %v4606
      %v4689 = vadd.f32 %v4140, %v4609
      %v4690 = vadd.f32 %v4141, %v4612
      %v4691 = vadd.f32 %v4142, %v4615
      %v4692 = vadd.f32 %v4143, %v4618
      %v4693 = vadd.f32 %v4144, %v4621
      %v4694 = vadd.f32 %v4145, %v4624
      %v4695 = vadd.f32 %v4146, %v4627
      %v4696 = vadd.f32 %v4147, %v4630
      %v4697 = vadd.f32 %v4148, %v4633
      %v4698 = vadd.f32 %v4149, %v4636
      %v4699 = vadd.f32 %v4150, %v4639
      %v4700 = vadd.f32 %v4151, %v4642
      %v4701 = vadd.f32 %v4152, %v4645
      %v4702 = vadd.f32 %v4153, %v4648
      %v4703 = vadd.f32 %v4154, %v4651
      %v4704 = vadd.f32 %v4155, %v4654
      %v4705 = vadd.f32 %v4156, %v4657
      %v4706 = vadd.f32 %v4157, %v4660
      %v4707 = vadd.f32 %v4158, %v4663
      %v4708 = vadd.f32 %v4159, %v4666
      %v4709 = vadd.f32 %v4160, %v4669
      %v4710 = vadd.f32 %v4161, %v4672
      %v4711 = vadd.f32 %v4162, %v4675
      %v4712 = vadd.f32 %v4163, %v4678
      %v4713 = vadd.f32 %v4164, %v4681
      %v4714 = vperm.slane %v233, 0
      %v4715 = vmul.f32 %v4521, %v4714
      %v4716 = vmul.f32 %v4522, %v4714
      %v4717 = vmul.f32 %v4523, %v4714
      %v4718 = vmul.f32 %v4524, %v4714
      %v4719 = vmul.f32 %v4525, %v4714
      %v4720 = vmul.f32 %v4526, %v4714
      %v4721 = vmul.f32 %v4527, %v4714
      %v4722 = vmul.f32 %v4528, %v4714
      %v4723 = vmul.f32 %v4529, %v4714
      %v4724 = vmul.f32 %v4530, %v4714
      %v4725 = vmul.f32 %v4531, %v4714
      %v4726 = vmul.f32 %v4532, %v4714
      %v4727 = vmul.f32 %v4533, %v4714
      %v4728 = vmul.f32 %v4534, %v4714
      %v4729 = vmul.f32 %v4535, %v4714
      %v4730 = vmul.f32 %v4536, %v4714
      %v4731 = vmul.f32 %v4537, %v4714
      %v4732 = vmul.f32 %v4538, %v4714
      %v4733 = vmul.f32 %v4539, %v4714
      %v4734 = vmul.f32 %v4540, %v4714
      %v4735 = vmul.f32 %v4541, %v4714
      %v4736 = vmul.f32 %v4542, %v4714
      %v4737 = vmul.f32 %v4543, %v4714
      %v4738 = vmul.f32 %v4544, %v4714
      %v4739 = vmul.f32 %v4545, %v4714
      %v4740 = vmul.f32 %v4546, %v4714
      %v4741 = vmul.f32 %v4547, %v4714
      %v4742 = vmul.f32 %v4548, %v4714
      %v4743 = vmul.f32 %v4549, %v4714
      %v4744 = vmul.f32 %v4550, %v4714
      %v4745 = vmul.f32 %v4551, %v4714
      %v4746 = vmul.f32 %v4552, %v4714
      %v4747 = vsel %vm333, %v4715, 0.0
      %4748 = vadd.xlane.f32.xlu0 %v4747
      %v4749 = vpop.xlane.xlu0 %4748
      %v4750 = vsel %vm333, %v4716, 0.0
      %4751 = vadd.xlane.f32.xlu0 %v4750
      %v4752 = vpop.xlane.xlu0 %4751
      %v4753 = vsel %vm333, %v4717, 0.0
      %4754 = vadd.xlane.f32.xlu0 %v4753
      %v4755 = vpop.xlane.xlu0 %4754
      %v4756 = vsel %vm333, %v4718, 0.0
      %4757 = vadd.xlane.f32.xlu0 %v4756
      %v4758 = vpop.xlane.xlu0 %4757
      %v4759 = vsel %vm333, %v4719, 0.0
      %4760 = vadd.xlane.f32.xlu0 %v4759
      %v4761 = vpop.xlane.xlu0 %4760
      %v4762 = vsel %vm333, %v4720, 0.0
      %4763 = vadd.xlane.f32.xlu0 %v4762
      %v4764 = vpop.xlane.xlu0 %4763
      %v4765 = vsel %vm333, %v4721, 0.0
      %4766 = vadd.xlane.f32.xlu0 %v4765
      %v4767 = vpop.xlane.xlu0 %4766
      %v4768 = vsel %vm333, %v4722, 0.0
      %4769 = vadd.xlane.f32.xlu0 %v4768
      %v4770 = vpop.xlane.xlu0 %4769
      %v4771 = vsel %vm333, %v4723, 0.0
      %4772 = vadd.xlane.f32.xlu0 %v4771
      %v4773 = vpop.xlane.xlu0 %4772
      %v4774 = vsel %vm333, %v4724, 0.0
      %4775 = vadd.xlane.f32.xlu0 %v4774
      %v4776 = vpop.xlane.xlu0 %4775
      %v4777 = vsel %vm333, %v4725, 0.0
      %4778 = vadd.xlane.f32.xlu0 %v4777
      %v4779 = vpop.xlane.xlu0 %4778
      %v4780 = vsel %vm333, %v4726, 0.0
      %4781 = vadd.xlane.f32.xlu0 %v4780
      %v4782 = vpop.xlane.xlu0 %4781
      %v4783 = vsel %vm333, %v4727, 0.0
      %4784 = vadd.xlane.f32.xlu0 %v4783
      %v4785 = vpop.xlane.xlu0 %4784
      %v4786 = vsel %vm333, %v4728, 0.0
      %4787 = vadd.xlane.f32.xlu0 %v4786
      %v4788 = vpop.xlane.xlu0 %4787
      %v4789 = vsel %vm333, %v4729, 0.0
      %4790 = vadd.xlane.f32.xlu0 %v4789
      %v4791 = vpop.xlane.xlu0 %4790
      %v4792 = vsel %vm333, %v4730, 0.0
      %4793 = vadd.xlane.f32.xlu0 %v4792
      %v4794 = vpop.xlane.xlu0 %4793
      %v4795 = vsel %vm333, %v4731, 0.0
      %4796 = vadd.xlane.f32.xlu0 %v4795
      %v4797 = vpop.xlane.xlu0 %4796
      %v4798 = vsel %vm333, %v4732, 0.0
      %4799 = vadd.xlane.f32.xlu0 %v4798
      %v4800 = vpop.xlane.xlu0 %4799
      %v4801 = vsel %vm333, %v4733, 0.0
      %4802 = vadd.xlane.f32.xlu0 %v4801
      %v4803 = vpop.xlane.xlu0 %4802
      %v4804 = vsel %vm333, %v4734, 0.0
      %4805 = vadd.xlane.f32.xlu0 %v4804
      %v4806 = vpop.xlane.xlu0 %4805
      %v4807 = vsel %vm333, %v4735, 0.0
      %4808 = vadd.xlane.f32.xlu0 %v4807
      %v4809 = vpop.xlane.xlu0 %4808
      %v4810 = vsel %vm333, %v4736, 0.0
      %4811 = vadd.xlane.f32.xlu0 %v4810
      %v4812 = vpop.xlane.xlu0 %4811
      %v4813 = vsel %vm333, %v4737, 0.0
      %4814 = vadd.xlane.f32.xlu0 %v4813
      %v4815 = vpop.xlane.xlu0 %4814
      %v4816 = vsel %vm333, %v4738, 0.0
      %4817 = vadd.xlane.f32.xlu0 %v4816
      %v4818 = vpop.xlane.xlu0 %4817
      %v4819 = vsel %vm333, %v4739, 0.0
      %4820 = vadd.xlane.f32.xlu0 %v4819
      %v4821 = vpop.xlane.xlu0 %4820
      %v4822 = vsel %vm333, %v4740, 0.0
      %4823 = vadd.xlane.f32.xlu0 %v4822
      %v4824 = vpop.xlane.xlu0 %4823
      %v4825 = vsel %vm333, %v4741, 0.0
      %4826 = vadd.xlane.f32.xlu0 %v4825
      %v4827 = vpop.xlane.xlu0 %4826
      %v4828 = vsel %vm333, %v4742, 0.0
      %4829 = vadd.xlane.f32.xlu0 %v4828
      %v4830 = vpop.xlane.xlu0 %4829
      %v4831 = vsel %vm333, %v4743, 0.0
      %4832 = vadd.xlane.f32.xlu0 %v4831
      %v4833 = vpop.xlane.xlu0 %4832
      %v4834 = vsel %vm333, %v4744, 0.0
      %4835 = vadd.xlane.f32.xlu0 %v4834
      %v4836 = vpop.xlane.xlu0 %4835
      %v4837 = vsel %vm333, %v4745, 0.0
      %4838 = vadd.xlane.f32.xlu0 %v4837
      %v4839 = vpop.xlane.xlu0 %4838
      %v4840 = vsel %vm333, %v4746, 0.0
      %4841 = vadd.xlane.f32.xlu0 %v4840
      %v4842 = vpop.xlane.xlu0 %4841
      %v4843 = vadd.f32 %v4682, %v4749
      %v4844 = vadd.f32 %v4683, %v4752
      %v4845 = vadd.f32 %v4684, %v4755
      %v4846 = vadd.f32 %v4685, %v4758
      %v4847 = vadd.f32 %v4686, %v4761
      %v4848 = vadd.f32 %v4687, %v4764
      %v4849 = vadd.f32 %v4688, %v4767
      %v4850 = vadd.f32 %v4689, %v4770
      %v4851 = vadd.f32 %v4690, %v4773
      %v4852 = vadd.f32 %v4691, %v4776
      %v4853 = vadd.f32 %v4692, %v4779
      %v4854 = vadd.f32 %v4693, %v4782
      %v4855 = vadd.f32 %v4694, %v4785
      %v4856 = vadd.f32 %v4695, %v4788
      %v4857 = vadd.f32 %v4696, %v4791
      %v4858 = vadd.f32 %v4697, %v4794
      %v4859 = vadd.f32 %v4698, %v4797
      %v4860 = vadd.f32 %v4699, %v4800
      %v4861 = vadd.f32 %v4700, %v4803
      %v4862 = vadd.f32 %v4701, %v4806
      %v4863 = vadd.f32 %v4702, %v4809
      %v4864 = vadd.f32 %v4703, %v4812
      %v4865 = vadd.f32 %v4704, %v4815
      %v4866 = vadd.f32 %v4705, %v4818
      %v4867 = vadd.f32 %v4706, %v4821
      %v4868 = vadd.f32 %v4707, %v4824
      %v4869 = vadd.f32 %v4708, %v4827
      %v4870 = vadd.f32 %v4709, %v4830
      %v4871 = vadd.f32 %v4710, %v4833
      %v4872 = vadd.f32 %v4711, %v4836
      %v4873 = vadd.f32 %v4712, %v4839
      %v4874 = vadd.f32 %v4713, %v4842
      %v4875 = vperm.slane %v224, 1
      %v4876 = vmul.f32 %v4488, %v4875
      %v4877 = vmul.f32 %v4489, %v4875
      %v4878 = vmul.f32 %v4490, %v4875
      %v4879 = vmul.f32 %v4491, %v4875
      %v4880 = vmul.f32 %v4492, %v4875
      %v4881 = vmul.f32 %v4493, %v4875
      %v4882 = vmul.f32 %v4494, %v4875
      %v4883 = vmul.f32 %v4495, %v4875
      %v4884 = vmul.f32 %v4496, %v4875
      %v4885 = vmul.f32 %v4497, %v4875
      %v4886 = vmul.f32 %v4498, %v4875
      %v4887 = vmul.f32 %v4499, %v4875
      %v4888 = vmul.f32 %v4500, %v4875
      %v4889 = vmul.f32 %v4501, %v4875
      %v4890 = vmul.f32 %v4502, %v4875
      %v4891 = vmul.f32 %v4503, %v4875
      %v4892 = vmul.f32 %v4504, %v4875
      %v4893 = vmul.f32 %v4505, %v4875
      %v4894 = vmul.f32 %v4506, %v4875
      %v4895 = vmul.f32 %v4507, %v4875
      %v4896 = vmul.f32 %v4508, %v4875
      %v4897 = vmul.f32 %v4509, %v4875
      %v4898 = vmul.f32 %v4510, %v4875
      %v4899 = vmul.f32 %v4511, %v4875
      %v4900 = vmul.f32 %v4512, %v4875
      %v4901 = vmul.f32 %v4513, %v4875
      %v4902 = vmul.f32 %v4514, %v4875
      %v4903 = vmul.f32 %v4515, %v4875
      %v4904 = vmul.f32 %v4516, %v4875
      %v4905 = vmul.f32 %v4517, %v4875
      %v4906 = vmul.f32 %v4518, %v4875
      %v4907 = vmul.f32 %v4519, %v4875
      %v4908 = vsel %vm333, %v4876, 0.0
      %4909 = vadd.xlane.f32.xlu0 %v4908
      %v4910 = vpop.xlane.xlu0 %4909
      %v4911 = vsel %vm333, %v4877, 0.0
      %4912 = vadd.xlane.f32.xlu0 %v4911
      %v4913 = vpop.xlane.xlu0 %4912
      %v4914 = vsel %vm333, %v4878, 0.0
      %4915 = vadd.xlane.f32.xlu0 %v4914
      %v4916 = vpop.xlane.xlu0 %4915
      %v4917 = vsel %vm333, %v4879, 0.0
      %4918 = vadd.xlane.f32.xlu0 %v4917
      %v4919 = vpop.xlane.xlu0 %4918
      %v4920 = vsel %vm333, %v4880, 0.0
      %4921 = vadd.xlane.f32.xlu0 %v4920
      %v4922 = vpop.xlane.xlu0 %4921
      %v4923 = vsel %vm333, %v4881, 0.0
      %4924 = vadd.xlane.f32.xlu0 %v4923
      %v4925 = vpop.xlane.xlu0 %4924
      %v4926 = vsel %vm333, %v4882, 0.0
      %4927 = vadd.xlane.f32.xlu0 %v4926
      %v4928 = vpop.xlane.xlu0 %4927
      %v4929 = vsel %vm333, %v4883, 0.0
      %4930 = vadd.xlane.f32.xlu0 %v4929
      %v4931 = vpop.xlane.xlu0 %4930
      %v4932 = vsel %vm333, %v4884, 0.0
      %4933 = vadd.xlane.f32.xlu0 %v4932
      %v4934 = vpop.xlane.xlu0 %4933
      %v4935 = vsel %vm333, %v4885, 0.0
      %4936 = vadd.xlane.f32.xlu0 %v4935
      %v4937 = vpop.xlane.xlu0 %4936
      %v4938 = vsel %vm333, %v4886, 0.0
      %4939 = vadd.xlane.f32.xlu0 %v4938
      %v4940 = vpop.xlane.xlu0 %4939
      %v4941 = vsel %vm333, %v4887, 0.0
      %4942 = vadd.xlane.f32.xlu0 %v4941
      %v4943 = vpop.xlane.xlu0 %4942
      %v4944 = vsel %vm333, %v4888, 0.0
      %4945 = vadd.xlane.f32.xlu0 %v4944
      %v4946 = vpop.xlane.xlu0 %4945
      %v4947 = vsel %vm333, %v4889, 0.0
      %4948 = vadd.xlane.f32.xlu0 %v4947
      %v4949 = vpop.xlane.xlu0 %4948
      %v4950 = vsel %vm333, %v4890, 0.0
      %4951 = vadd.xlane.f32.xlu0 %v4950
      %v4952 = vpop.xlane.xlu0 %4951
      %v4953 = vsel %vm333, %v4891, 0.0
      %4954 = vadd.xlane.f32.xlu0 %v4953
      %v4955 = vpop.xlane.xlu0 %4954
      %v4956 = vsel %vm333, %v4892, 0.0
      %4957 = vadd.xlane.f32.xlu0 %v4956
      %v4958 = vpop.xlane.xlu0 %4957
      %v4959 = vsel %vm333, %v4893, 0.0
      %4960 = vadd.xlane.f32.xlu0 %v4959
      %v4961 = vpop.xlane.xlu0 %4960
      %v4962 = vsel %vm333, %v4894, 0.0
      %4963 = vadd.xlane.f32.xlu0 %v4962
      %v4964 = vpop.xlane.xlu0 %4963
      %v4965 = vsel %vm333, %v4895, 0.0
      %4966 = vadd.xlane.f32.xlu0 %v4965
      %v4967 = vpop.xlane.xlu0 %4966
      %v4968 = vsel %vm333, %v4896, 0.0
      %4969 = vadd.xlane.f32.xlu0 %v4968
      %v4970 = vpop.xlane.xlu0 %4969
      %v4971 = vsel %vm333, %v4897, 0.0
      %4972 = vadd.xlane.f32.xlu0 %v4971
      %v4973 = vpop.xlane.xlu0 %4972
      %v4974 = vsel %vm333, %v4898, 0.0
      %4975 = vadd.xlane.f32.xlu0 %v4974
      %v4976 = vpop.xlane.xlu0 %4975
      %v4977 = vsel %vm333, %v4899, 0.0
      %4978 = vadd.xlane.f32.xlu0 %v4977
      %v4979 = vpop.xlane.xlu0 %4978
      %v4980 = vsel %vm333, %v4900, 0.0
      %4981 = vadd.xlane.f32.xlu0 %v4980
      %v4982 = vpop.xlane.xlu0 %4981
      %v4983 = vsel %vm333, %v4901, 0.0
      %4984 = vadd.xlane.f32.xlu0 %v4983
      %v4985 = vpop.xlane.xlu0 %4984
      %v4986 = vsel %vm333, %v4902, 0.0
      %4987 = vadd.xlane.f32.xlu0 %v4986
      %v4988 = vpop.xlane.xlu0 %4987
      %v4989 = vsel %vm333, %v4903, 0.0
      %4990 = vadd.xlane.f32.xlu0 %v4989
      %v4991 = vpop.xlane.xlu0 %4990
      %v4992 = vsel %vm333, %v4904, 0.0
      %4993 = vadd.xlane.f32.xlu0 %v4992
      %v4994 = vpop.xlane.xlu0 %4993
      %v4995 = vsel %vm333, %v4905, 0.0
      %4996 = vadd.xlane.f32.xlu0 %v4995
      %v4997 = vpop.xlane.xlu0 %4996
      %v4998 = vsel %vm333, %v4906, 0.0
      %4999 = vadd.xlane.f32.xlu0 %v4998
      %v5000 = vpop.xlane.xlu0 %4999
      %v5001 = vsel %vm333, %v4907, 0.0
      %5002 = vadd.xlane.f32.xlu0 %v5001
      %v5003 = vpop.xlane.xlu0 %5002
      %v5004 = vadd.f32 %v4455, %v4910
      %v5005 = vadd.f32 %v4456, %v4913
      %v5006 = vadd.f32 %v4457, %v4916
      %v5007 = vadd.f32 %v4458, %v4919
      %v5008 = vadd.f32 %v4459, %v4922
      %v5009 = vadd.f32 %v4460, %v4925
      %v5010 = vadd.f32 %v4461, %v4928
      %v5011 = vadd.f32 %v4462, %v4931
      %v5012 = vadd.f32 %v4463, %v4934
      %v5013 = vadd.f32 %v4464, %v4937
      %v5014 = vadd.f32 %v4465, %v4940
      %v5015 = vadd.f32 %v4466, %v4943
      %v5016 = vadd.f32 %v4467, %v4946
      %v5017 = vadd.f32 %v4468, %v4949
      %v5018 = vadd.f32 %v4469, %v4952
      %v5019 = vadd.f32 %v4470, %v4955
      %v5020 = vadd.f32 %v4471, %v4958
      %v5021 = vadd.f32 %v4472, %v4961
      %v5022 = vadd.f32 %v4473, %v4964
      %v5023 = vadd.f32 %v4474, %v4967
      %v5024 = vadd.f32 %v4475, %v4970
      %v5025 = vadd.f32 %v4476, %v4973
      %v5026 = vadd.f32 %v4477, %v4976
      %v5027 = vadd.f32 %v4478, %v4979
      %v5028 = vadd.f32 %v4479, %v4982
      %v5029 = vadd.f32 %v4480, %v4985
      %v5030 = vadd.f32 %v4481, %v4988
      %v5031 = vadd.f32 %v4482, %v4991
      %v5032 = vadd.f32 %v4483, %v4994
      %v5033 = vadd.f32 %v4484, %v4997
      %v5034 = vadd.f32 %v4485, %v5000
      %v5035 = vadd.f32 %v4486, %v5003
      %v5036 = vperm.slane %v233, 1
      %v5037 = vmul.f32 %v4521, %v5036
      %v5038 = vmul.f32 %v4522, %v5036
      %v5039 = vmul.f32 %v4523, %v5036
      %v5040 = vmul.f32 %v4524, %v5036
      %v5041 = vmul.f32 %v4525, %v5036
      %v5042 = vmul.f32 %v4526, %v5036
      %v5043 = vmul.f32 %v4527, %v5036
      %v5044 = vmul.f32 %v4528, %v5036
      %v5045 = vmul.f32 %v4529, %v5036
      %v5046 = vmul.f32 %v4530, %v5036
      %v5047 = vmul.f32 %v4531, %v5036
      %v5048 = vmul.f32 %v4532, %v5036
      %v5049 = vmul.f32 %v4533, %v5036
      %v5050 = vmul.f32 %v4534, %v5036
      %v5051 = vmul.f32 %v4535, %v5036
      %v5052 = vmul.f32 %v4536, %v5036
      %v5053 = vmul.f32 %v4537, %v5036
      %v5054 = vmul.f32 %v4538, %v5036
      %v5055 = vmul.f32 %v4539, %v5036
      %v5056 = vmul.f32 %v4540, %v5036
      %v5057 = vmul.f32 %v4541, %v5036
      %v5058 = vmul.f32 %v4542, %v5036
      %v5059 = vmul.f32 %v4543, %v5036
      %v5060 = vmul.f32 %v4544, %v5036
      %v5061 = vmul.f32 %v4545, %v5036
      %v5062 = vmul.f32 %v4546, %v5036
      %v5063 = vmul.f32 %v4547, %v5036
      %v5064 = vmul.f32 %v4548, %v5036
      %v5065 = vmul.f32 %v4549, %v5036
      %v5066 = vmul.f32 %v4550, %v5036
      %v5067 = vmul.f32 %v4551, %v5036
      %v5068 = vmul.f32 %v4552, %v5036
      %v5069 = vsel %vm333, %v5037, 0.0
      %5070 = vadd.xlane.f32.xlu0 %v5069
      %v5071 = vpop.xlane.xlu0 %5070
      %v5072 = vsel %vm333, %v5038, 0.0
      %5073 = vadd.xlane.f32.xlu0 %v5072
      %v5074 = vpop.xlane.xlu0 %5073
      %v5075 = vsel %vm333, %v5039, 0.0
      %5076 = vadd.xlane.f32.xlu0 %v5075
      %v5077 = vpop.xlane.xlu0 %5076
      %v5078 = vsel %vm333, %v5040, 0.0
      %5079 = vadd.xlane.f32.xlu0 %v5078
      %v5080 = vpop.xlane.xlu0 %5079
      %v5081 = vsel %vm333, %v5041, 0.0
      %5082 = vadd.xlane.f32.xlu0 %v5081
      %v5083 = vpop.xlane.xlu0 %5082
      %v5084 = vsel %vm333, %v5042, 0.0
      %5085 = vadd.xlane.f32.xlu0 %v5084
      %v5086 = vpop.xlane.xlu0 %5085
      %v5087 = vsel %vm333, %v5043, 0.0
      %5088 = vadd.xlane.f32.xlu0 %v5087
      %v5089 = vpop.xlane.xlu0 %5088
      %v5090 = vsel %vm333, %v5044, 0.0
      %5091 = vadd.xlane.f32.xlu0 %v5090
      %v5092 = vpop.xlane.xlu0 %5091
      %v5093 = vsel %vm333, %v5045, 0.0
      %5094 = vadd.xlane.f32.xlu0 %v5093
      %v5095 = vpop.xlane.xlu0 %5094
      %v5096 = vsel %vm333, %v5046, 0.0
      %5097 = vadd.xlane.f32.xlu0 %v5096
      %v5098 = vpop.xlane.xlu0 %5097
      %v5099 = vsel %vm333, %v5047, 0.0
      %5100 = vadd.xlane.f32.xlu0 %v5099
      %v5101 = vpop.xlane.xlu0 %5100
      %v5102 = vsel %vm333, %v5048, 0.0
      %5103 = vadd.xlane.f32.xlu0 %v5102
      %v5104 = vpop.xlane.xlu0 %5103
      %v5105 = vsel %vm333, %v5049, 0.0
      %5106 = vadd.xlane.f32.xlu0 %v5105
      %v5107 = vpop.xlane.xlu0 %5106
      %v5108 = vsel %vm333, %v5050, 0.0
      %5109 = vadd.xlane.f32.xlu0 %v5108
      %v5110 = vpop.xlane.xlu0 %5109
      %v5111 = vsel %vm333, %v5051, 0.0
      %5112 = vadd.xlane.f32.xlu0 %v5111
      %v5113 = vpop.xlane.xlu0 %5112
      %v5114 = vsel %vm333, %v5052, 0.0
      %5115 = vadd.xlane.f32.xlu0 %v5114
      %v5116 = vpop.xlane.xlu0 %5115
      %v5117 = vsel %vm333, %v5053, 0.0
      %5118 = vadd.xlane.f32.xlu0 %v5117
      %v5119 = vpop.xlane.xlu0 %5118
      %v5120 = vsel %vm333, %v5054, 0.0
      %5121 = vadd.xlane.f32.xlu0 %v5120
      %v5122 = vpop.xlane.xlu0 %5121
      %v5123 = vsel %vm333, %v5055, 0.0
      %5124 = vadd.xlane.f32.xlu0 %v5123
      %v5125 = vpop.xlane.xlu0 %5124
      %v5126 = vsel %vm333, %v5056, 0.0
      %5127 = vadd.xlane.f32.xlu0 %v5126
      %v5128 = vpop.xlane.xlu0 %5127
      %v5129 = vsel %vm333, %v5057, 0.0
      %5130 = vadd.xlane.f32.xlu0 %v5129
      %v5131 = vpop.xlane.xlu0 %5130
      %v5132 = vsel %vm333, %v5058, 0.0
      %5133 = vadd.xlane.f32.xlu0 %v5132
      %v5134 = vpop.xlane.xlu0 %5133
      %v5135 = vsel %vm333, %v5059, 0.0
      %5136 = vadd.xlane.f32.xlu0 %v5135
      %v5137 = vpop.xlane.xlu0 %5136
      %v5138 = vsel %vm333, %v5060, 0.0
      %5139 = vadd.xlane.f32.xlu0 %v5138
      %v5140 = vpop.xlane.xlu0 %5139
      %v5141 = vsel %vm333, %v5061, 0.0
      %5142 = vadd.xlane.f32.xlu0 %v5141
      %v5143 = vpop.xlane.xlu0 %5142
      %v5144 = vsel %vm333, %v5062, 0.0
      %5145 = vadd.xlane.f32.xlu0 %v5144
      %v5146 = vpop.xlane.xlu0 %5145
      %v5147 = vsel %vm333, %v5063, 0.0
      %5148 = vadd.xlane.f32.xlu0 %v5147
      %v5149 = vpop.xlane.xlu0 %5148
      %v5150 = vsel %vm333, %v5064, 0.0
      %5151 = vadd.xlane.f32.xlu0 %v5150
      %v5152 = vpop.xlane.xlu0 %5151
      %v5153 = vsel %vm333, %v5065, 0.0
      %5154 = vadd.xlane.f32.xlu0 %v5153
      %v5155 = vpop.xlane.xlu0 %5154
      %v5156 = vsel %vm333, %v5066, 0.0
      %5157 = vadd.xlane.f32.xlu0 %v5156
      %v5158 = vpop.xlane.xlu0 %5157
      %v5159 = vsel %vm333, %v5067, 0.0
      %5160 = vadd.xlane.f32.xlu0 %v5159
      %v5161 = vpop.xlane.xlu0 %5160
      %v5162 = vsel %vm333, %v5068, 0.0
      %5163 = vadd.xlane.f32.xlu0 %v5162
      %v5164 = vpop.xlane.xlu0 %5163
      %v5165 = vadd.f32 %v5004, %v5071
      %v5166 = vadd.f32 %v5005, %v5074
      %v5167 = vadd.f32 %v5006, %v5077
      %v5168 = vadd.f32 %v5007, %v5080
      %v5169 = vadd.f32 %v5008, %v5083
      %v5170 = vadd.f32 %v5009, %v5086
      %v5171 = vadd.f32 %v5010, %v5089
      %v5172 = vadd.f32 %v5011, %v5092
      %v5173 = vadd.f32 %v5012, %v5095
      %v5174 = vadd.f32 %v5013, %v5098
      %v5175 = vadd.f32 %v5014, %v5101
      %v5176 = vadd.f32 %v5015, %v5104
      %v5177 = vadd.f32 %v5016, %v5107
      %v5178 = vadd.f32 %v5017, %v5110
      %v5179 = vadd.f32 %v5018, %v5113
      %v5180 = vadd.f32 %v5019, %v5116
      %v5181 = vadd.f32 %v5020, %v5119
      %v5182 = vadd.f32 %v5021, %v5122
      %v5183 = vadd.f32 %v5022, %v5125
      %v5184 = vadd.f32 %v5023, %v5128
      %v5185 = vadd.f32 %v5024, %v5131
      %v5186 = vadd.f32 %v5025, %v5134
      %v5187 = vadd.f32 %v5026, %v5137
      %v5188 = vadd.f32 %v5027, %v5140
      %v5189 = vadd.f32 %v5028, %v5143
      %v5190 = vadd.f32 %v5029, %v5146
      %v5191 = vadd.f32 %v5030, %v5149
      %v5192 = vadd.f32 %v5031, %v5152
      %v5193 = vadd.f32 %v5032, %v5155
      %v5194 = vadd.f32 %v5033, %v5158
      %v5195 = vadd.f32 %v5034, %v5161
      %v5196 = vadd.f32 %v5035, %v5164
      %v5197 = vld [vmem:[%s4487 + $0x1] sm:$0xff]
      %v5198 = vld [vmem:[%s4487 + $0x9] sm:$0xff]
      %v5199 = vld [vmem:[%s4487 + $0x19] sm:$0xff]
      %v5200 = vld [vmem:[%s4487 + $0x21] sm:$0xff]
      %v5201 = vld [vmem:[%s4487 + $0x31] sm:$0xff]
      %v5202 = vld [vmem:[%s4487 + $0x39] sm:$0xff]
      %v5203 = vld [vmem:[%s4487 + $0x49] sm:$0xff]
      %v5204 = vld [vmem:[%s4487 + $0x51] sm:$0xff]
      %v5205 = vld [vmem:[%s4487 + $0x61] sm:$0xff]
      %v5206 = vld [vmem:[%s4487 + $0x69] sm:$0xff]
      %v5207 = vld [vmem:[%s4487 + $0x79] sm:$0xff]
      %v5208 = vld [vmem:[%s4487 + $0x81] sm:$0xff]
      %v5209 = vld [vmem:[%s4487 + $0x91] sm:$0xff]
      %v5210 = vld [vmem:[%s4487 + $0x99] sm:$0xff]
      %v5211 = vld [vmem:[%s4487 + $0xa9] sm:$0xff]
      %v5212 = vld [vmem:[%s4487 + $0xb1] sm:$0xff]
      %v5213 = vld [vmem:[%s4487 + $0xc1] sm:$0xff]
      %v5214 = vld [vmem:[%s4487 + $0xc9] sm:$0xff]
      %v5215 = vld [vmem:[%s4487 + $0xd9] sm:$0xff]
      %v5216 = vld [vmem:[%s4487 + $0xe1] sm:$0xff]
      %v5217 = vld [vmem:[%s4487 + $0xf1] sm:$0xff]
      %v5218 = vld [vmem:[%s4487 + $0xf9] sm:$0xff]
      %v5219 = vld [vmem:[%s4487 + $0x109] sm:$0xff]
      %v5220 = vld [vmem:[%s4487 + $0x111] sm:$0xff]
      %v5221 = vld [vmem:[%s4487 + $0x121] sm:$0xff]
      %v5222 = vld [vmem:[%s4487 + $0x129] sm:$0xff]
      %v5223 = vld [vmem:[%s4487 + $0x139] sm:$0xff]
      %v5224 = vld [vmem:[%s4487 + $0x141] sm:$0xff]
      %v5225 = vld [vmem:[%s4487 + $0x151] sm:$0xff]
      %v5226 = vld [vmem:[%s4487 + $0x159] sm:$0xff]
      %v5227 = vld [vmem:[%s4487 + $0x169] sm:$0xff]
      %v5228 = vld [vmem:[%s4487 + $0x171] sm:$0xff]
      %v5229 = vld [vmem:[%s4520 + $0x1] sm:$0xff]
      %v5230 = vld [vmem:[%s4520 + $0x9] sm:$0xff]
      %v5231 = vld [vmem:[%s4520 + $0x19] sm:$0xff]
      %v5232 = vld [vmem:[%s4520 + $0x21] sm:$0xff]
      %v5233 = vld [vmem:[%s4520 + $0x31] sm:$0xff]
      %v5234 = vld [vmem:[%s4520 + $0x39] sm:$0xff]
      %v5235 = vld [vmem:[%s4520 + $0x49] sm:$0xff]
      %v5236 = vld [vmem:[%s4520 + $0x51] sm:$0xff]
      %v5237 = vld [vmem:[%s4520 + $0x61] sm:$0xff]
      %v5238 = vld [vmem:[%s4520 + $0x69] sm:$0xff]
      %v5239 = vld [vmem:[%s4520 + $0x79] sm:$0xff]
      %v5240 = vld [vmem:[%s4520 + $0x81] sm:$0xff]
      %v5241 = vld [vmem:[%s4520 + $0x91] sm:$0xff]
      %v5242 = vld [vmem:[%s4520 + $0x99] sm:$0xff]
      %v5243 = vld [vmem:[%s4520 + $0xa9] sm:$0xff]
      %v5244 = vld [vmem:[%s4520 + $0xb1] sm:$0xff]
      %v5245 = vld [vmem:[%s4520 + $0xc1] sm:$0xff]
      %v5246 = vld [vmem:[%s4520 + $0xc9] sm:$0xff]
      %v5247 = vld [vmem:[%s4520 + $0xd9] sm:$0xff]
      %v5248 = vld [vmem:[%s4520 + $0xe1] sm:$0xff]
      %v5249 = vld [vmem:[%s4520 + $0xf1] sm:$0xff]
      %v5250 = vld [vmem:[%s4520 + $0xf9] sm:$0xff]
      %v5251 = vld [vmem:[%s4520 + $0x109] sm:$0xff]
      %v5252 = vld [vmem:[%s4520 + $0x111] sm:$0xff]
      %v5253 = vld [vmem:[%s4520 + $0x121] sm:$0xff]
      %v5254 = vld [vmem:[%s4520 + $0x129] sm:$0xff]
      %v5255 = vld [vmem:[%s4520 + $0x139] sm:$0xff]
      %v5256 = vld [vmem:[%s4520 + $0x141] sm:$0xff]
      %v5257 = vld [vmem:[%s4520 + $0x151] sm:$0xff]
      %v5258 = vld [vmem:[%s4520 + $0x159] sm:$0xff]
      %v5259 = vld [vmem:[%s4520 + $0x169] sm:$0xff]
      %v5260 = vld [vmem:[%s4520 + $0x171] sm:$0xff]
      %v5261 = vperm.slane %v225, 0
      %v5262 = vmul.f32 %v5197, %v5261
      %v5263 = vmul.f32 %v5198, %v5261
      %v5264 = vmul.f32 %v5199, %v5261
      %v5265 = vmul.f32 %v5200, %v5261
      %v5266 = vmul.f32 %v5201, %v5261
      %v5267 = vmul.f32 %v5202, %v5261
      %v5268 = vmul.f32 %v5203, %v5261
      %v5269 = vmul.f32 %v5204, %v5261
      %v5270 = vmul.f32 %v5205, %v5261
      %v5271 = vmul.f32 %v5206, %v5261
      %v5272 = vmul.f32 %v5207, %v5261
      %v5273 = vmul.f32 %v5208, %v5261
      %v5274 = vmul.f32 %v5209, %v5261
      %v5275 = vmul.f32 %v5210, %v5261
      %v5276 = vmul.f32 %v5211, %v5261
      %v5277 = vmul.f32 %v5212, %v5261
      %v5278 = vmul.f32 %v5213, %v5261
      %v5279 = vmul.f32 %v5214, %v5261
      %v5280 = vmul.f32 %v5215, %v5261
      %v5281 = vmul.f32 %v5216, %v5261
      %v5282 = vmul.f32 %v5217, %v5261
      %v5283 = vmul.f32 %v5218, %v5261
      %v5284 = vmul.f32 %v5219, %v5261
      %v5285 = vmul.f32 %v5220, %v5261
      %v5286 = vmul.f32 %v5221, %v5261
      %v5287 = vmul.f32 %v5222, %v5261
      %v5288 = vmul.f32 %v5223, %v5261
      %v5289 = vmul.f32 %v5224, %v5261
      %v5290 = vmul.f32 %v5225, %v5261
      %v5291 = vmul.f32 %v5226, %v5261
      %v5292 = vmul.f32 %v5227, %v5261
      %v5293 = vmul.f32 %v5228, %v5261
      %v5294 = vsel %vm333, %v5262, 0.0
      %5295 = vadd.xlane.f32.xlu0 %v5294
      %v5296 = vpop.xlane.xlu0 %5295
      %v5297 = vsel %vm333, %v5263, 0.0
      %5298 = vadd.xlane.f32.xlu0 %v5297
      %v5299 = vpop.xlane.xlu0 %5298
      %v5300 = vsel %vm333, %v5264, 0.0
      %5301 = vadd.xlane.f32.xlu0 %v5300
      %v5302 = vpop.xlane.xlu0 %5301
      %v5303 = vsel %vm333, %v5265, 0.0
      %5304 = vadd.xlane.f32.xlu0 %v5303
      %v5305 = vpop.xlane.xlu0 %5304
      %v5306 = vsel %vm333, %v5266, 0.0
      %5307 = vadd.xlane.f32.xlu0 %v5306
      %v5308 = vpop.xlane.xlu0 %5307
      %v5309 = vsel %vm333, %v5267, 0.0
      %5310 = vadd.xlane.f32.xlu0 %v5309
      %v5311 = vpop.xlane.xlu0 %5310
      %v5312 = vsel %vm333, %v5268, 0.0
      %5313 = vadd.xlane.f32.xlu0 %v5312
      %v5314 = vpop.xlane.xlu0 %5313
      %v5315 = vsel %vm333, %v5269, 0.0
      %5316 = vadd.xlane.f32.xlu0 %v5315
      %v5317 = vpop.xlane.xlu0 %5316
      %v5318 = vsel %vm333, %v5270, 0.0
      %5319 = vadd.xlane.f32.xlu0 %v5318
      %v5320 = vpop.xlane.xlu0 %5319
      %v5321 = vsel %vm333, %v5271, 0.0
      %5322 = vadd.xlane.f32.xlu0 %v5321
      %v5323 = vpop.xlane.xlu0 %5322
      %v5324 = vsel %vm333, %v5272, 0.0
      %5325 = vadd.xlane.f32.xlu0 %v5324
      %v5326 = vpop.xlane.xlu0 %5325
      %v5327 = vsel %vm333, %v5273, 0.0
      %5328 = vadd.xlane.f32.xlu0 %v5327
      %v5329 = vpop.xlane.xlu0 %5328
      %v5330 = vsel %vm333, %v5274, 0.0
      %5331 = vadd.xlane.f32.xlu0 %v5330
      %v5332 = vpop.xlane.xlu0 %5331
      %v5333 = vsel %vm333, %v5275, 0.0
      %5334 = vadd.xlane.f32.xlu0 %v5333
      %v5335 = vpop.xlane.xlu0 %5334
      %v5336 = vsel %vm333, %v5276, 0.0
      %5337 = vadd.xlane.f32.xlu0 %v5336
      %v5338 = vpop.xlane.xlu0 %5337
      %v5339 = vsel %vm333, %v5277, 0.0
      %5340 = vadd.xlane.f32.xlu0 %v5339
      %v5341 = vpop.xlane.xlu0 %5340
      %v5342 = vsel %vm333, %v5278, 0.0
      %5343 = vadd.xlane.f32.xlu0 %v5342
      %v5344 = vpop.xlane.xlu0 %5343
      %v5345 = vsel %vm333, %v5279, 0.0
      %5346 = vadd.xlane.f32.xlu0 %v5345
      %v5347 = vpop.xlane.xlu0 %5346
      %v5348 = vsel %vm333, %v5280, 0.0
      %5349 = vadd.xlane.f32.xlu0 %v5348
      %v5350 = vpop.xlane.xlu0 %5349
      %v5351 = vsel %vm333, %v5281, 0.0
      %5352 = vadd.xlane.f32.xlu0 %v5351
      %v5353 = vpop.xlane.xlu0 %5352
      %v5354 = vsel %vm333, %v5282, 0.0
      %5355 = vadd.xlane.f32.xlu0 %v5354
      %v5356 = vpop.xlane.xlu0 %5355
      %v5357 = vsel %vm333, %v5283, 0.0
      %5358 = vadd.xlane.f32.xlu0 %v5357
      %v5359 = vpop.xlane.xlu0 %5358
      %v5360 = vsel %vm333, %v5284, 0.0
      %5361 = vadd.xlane.f32.xlu0 %v5360
      %v5362 = vpop.xlane.xlu0 %5361
      %v5363 = vsel %vm333, %v5285, 0.0
      %5364 = vadd.xlane.f32.xlu0 %v5363
      %v5365 = vpop.xlane.xlu0 %5364
      %v5366 = vsel %vm333, %v5286, 0.0
      %5367 = vadd.xlane.f32.xlu0 %v5366
      %v5368 = vpop.xlane.xlu0 %5367
      %v5369 = vsel %vm333, %v5287, 0.0
      %5370 = vadd.xlane.f32.xlu0 %v5369
      %v5371 = vpop.xlane.xlu0 %5370
      %v5372 = vsel %vm333, %v5288, 0.0
      %5373 = vadd.xlane.f32.xlu0 %v5372
      %v5374 = vpop.xlane.xlu0 %5373
      %v5375 = vsel %vm333, %v5289, 0.0
      %5376 = vadd.xlane.f32.xlu0 %v5375
      %v5377 = vpop.xlane.xlu0 %5376
      %v5378 = vsel %vm333, %v5290, 0.0
      %5379 = vadd.xlane.f32.xlu0 %v5378
      %v5380 = vpop.xlane.xlu0 %5379
      %v5381 = vsel %vm333, %v5291, 0.0
      %5382 = vadd.xlane.f32.xlu0 %v5381
      %v5383 = vpop.xlane.xlu0 %5382
      %v5384 = vsel %vm333, %v5292, 0.0
      %5385 = vadd.xlane.f32.xlu0 %v5384
      %v5386 = vpop.xlane.xlu0 %5385
      %v5387 = vsel %vm333, %v5293, 0.0
      %5388 = vadd.xlane.f32.xlu0 %v5387
      %v5389 = vpop.xlane.xlu0 %5388
      %v5390 = vadd.f32 %v4843, %v5296
      %v5391 = vadd.f32 %v4844, %v5299
      %v5392 = vadd.f32 %v4845, %v5302
      %v5393 = vadd.f32 %v4846, %v5305
      %v5394 = vadd.f32 %v4847, %v5308
      %v5395 = vadd.f32 %v4848, %v5311
      %v5396 = vadd.f32 %v4849, %v5314
      %v5397 = vadd.f32 %v4850, %v5317
      %v5398 = vadd.f32 %v4851, %v5320
      %v5399 = vadd.f32 %v4852, %v5323
      %v5400 = vadd.f32 %v4853, %v5326
      %v5401 = vadd.f32 %v4854, %v5329
      %v5402 = vadd.f32 %v4855, %v5332
      %v5403 = vadd.f32 %v4856, %v5335
      %v5404 = vadd.f32 %v4857, %v5338
      %v5405 = vadd.f32 %v4858, %v5341
      %v5406 = vadd.f32 %v4859, %v5344
      %v5407 = vadd.f32 %v4860, %v5347
      %v5408 = vadd.f32 %v4861, %v5350
      %v5409 = vadd.f32 %v4862, %v5353
      %v5410 = vadd.f32 %v4863, %v5356
      %v5411 = vadd.f32 %v4864, %v5359
      %v5412 = vadd.f32 %v4865, %v5362
      %v5413 = vadd.f32 %v4866, %v5365
      %v5414 = vadd.f32 %v4867, %v5368
      %v5415 = vadd.f32 %v4868, %v5371
      %v5416 = vadd.f32 %v4869, %v5374
      %v5417 = vadd.f32 %v4870, %v5377
      %v5418 = vadd.f32 %v4871, %v5380
      %v5419 = vadd.f32 %v4872, %v5383
      %v5420 = vadd.f32 %v4873, %v5386
      %v5421 = vadd.f32 %v4874, %v5389
      %v5422 = vperm.slane %v234, 0
      %v5423 = vmul.f32 %v5229, %v5422
      %v5424 = vmul.f32 %v5230, %v5422
      %v5425 = vmul.f32 %v5231, %v5422
      %v5426 = vmul.f32 %v5232, %v5422
      %v5427 = vmul.f32 %v5233, %v5422
      %v5428 = vmul.f32 %v5234, %v5422
      %v5429 = vmul.f32 %v5235, %v5422
      %v5430 = vmul.f32 %v5236, %v5422
      %v5431 = vmul.f32 %v5237, %v5422
      %v5432 = vmul.f32 %v5238, %v5422
      %v5433 = vmul.f32 %v5239, %v5422
      %v5434 = vmul.f32 %v5240, %v5422
      %v5435 = vmul.f32 %v5241, %v5422
      %v5436 = vmul.f32 %v5242, %v5422
      %v5437 = vmul.f32 %v5243, %v5422
      %v5438 = vmul.f32 %v5244, %v5422
      %v5439 = vmul.f32 %v5245, %v5422
      %v5440 = vmul.f32 %v5246, %v5422
      %v5441 = vmul.f32 %v5247, %v5422
      %v5442 = vmul.f32 %v5248, %v5422
      %v5443 = vmul.f32 %v5249, %v5422
      %v5444 = vmul.f32 %v5250, %v5422
      %v5445 = vmul.f32 %v5251, %v5422
      %v5446 = vmul.f32 %v5252, %v5422
      %v5447 = vmul.f32 %v5253, %v5422
      %v5448 = vmul.f32 %v5254, %v5422
      %v5449 = vmul.f32 %v5255, %v5422
      %v5450 = vmul.f32 %v5256, %v5422
      %v5451 = vmul.f32 %v5257, %v5422
      %v5452 = vmul.f32 %v5258, %v5422
      %v5453 = vmul.f32 %v5259, %v5422
      %v5454 = vmul.f32 %v5260, %v5422
      %v5455 = vsel %vm333, %v5423, 0.0
      %5456 = vadd.xlane.f32.xlu0 %v5455
      %v5457 = vpop.xlane.xlu0 %5456
      %v5458 = vsel %vm333, %v5424, 0.0
      %5459 = vadd.xlane.f32.xlu0 %v5458
      %v5460 = vpop.xlane.xlu0 %5459
      %v5461 = vsel %vm333, %v5425, 0.0
      %5462 = vadd.xlane.f32.xlu0 %v5461
      %v5463 = vpop.xlane.xlu0 %5462
      %v5464 = vsel %vm333, %v5426, 0.0
      %5465 = vadd.xlane.f32.xlu0 %v5464
      %v5466 = vpop.xlane.xlu0 %5465
      %v5467 = vsel %vm333, %v5427, 0.0
      %5468 = vadd.xlane.f32.xlu0 %v5467
      %v5469 = vpop.xlane.xlu0 %5468
      %v5470 = vsel %vm333, %v5428, 0.0
      %5471 = vadd.xlane.f32.xlu0 %v5470
      %v5472 = vpop.xlane.xlu0 %5471
      %v5473 = vsel %vm333, %v5429, 0.0
      %5474 = vadd.xlane.f32.xlu0 %v5473
      %v5475 = vpop.xlane.xlu0 %5474
      %v5476 = vsel %vm333, %v5430, 0.0
      %5477 = vadd.xlane.f32.xlu0 %v5476
      %v5478 = vpop.xlane.xlu0 %5477
      %v5479 = vsel %vm333, %v5431, 0.0
      %5480 = vadd.xlane.f32.xlu0 %v5479
      %v5481 = vpop.xlane.xlu0 %5480
      %v5482 = vsel %vm333, %v5432, 0.0
      %5483 = vadd.xlane.f32.xlu0 %v5482
      %v5484 = vpop.xlane.xlu0 %5483
      %v5485 = vsel %vm333, %v5433, 0.0
      %5486 = vadd.xlane.f32.xlu0 %v5485
      %v5487 = vpop.xlane.xlu0 %5486
      %v5488 = vsel %vm333, %v5434, 0.0
      %5489 = vadd.xlane.f32.xlu0 %v5488
      %v5490 = vpop.xlane.xlu0 %5489
      %v5491 = vsel %vm333, %v5435, 0.0
      %5492 = vadd.xlane.f32.xlu0 %v5491
      %v5493 = vpop.xlane.xlu0 %5492
      %v5494 = vsel %vm333, %v5436, 0.0
      %5495 = vadd.xlane.f32.xlu0 %v5494
      %v5496 = vpop.xlane.xlu0 %5495
      %v5497 = vsel %vm333, %v5437, 0.0
      %5498 = vadd.xlane.f32.xlu0 %v5497
      %v5499 = vpop.xlane.xlu0 %5498
      %v5500 = vsel %vm333, %v5438, 0.0
      %5501 = vadd.xlane.f32.xlu0 %v5500
      %v5502 = vpop.xlane.xlu0 %5501
      %v5503 = vsel %vm333, %v5439, 0.0
      %5504 = vadd.xlane.f32.xlu0 %v5503
      %v5505 = vpop.xlane.xlu0 %5504
      %v5506 = vsel %vm333, %v5440, 0.0
      %5507 = vadd.xlane.f32.xlu0 %v5506
      %v5508 = vpop.xlane.xlu0 %5507
      %v5509 = vsel %vm333, %v5441, 0.0
      %5510 = vadd.xlane.f32.xlu0 %v5509
      %v5511 = vpop.xlane.xlu0 %5510
      %v5512 = vsel %vm333, %v5442, 0.0
      %5513 = vadd.xlane.f32.xlu0 %v5512
      %v5514 = vpop.xlane.xlu0 %5513
      %v5515 = vsel %vm333, %v5443, 0.0
      %5516 = vadd.xlane.f32.xlu0 %v5515
      %v5517 = vpop.xlane.xlu0 %5516
      %v5518 = vsel %vm333, %v5444, 0.0
      %5519 = vadd.xlane.f32.xlu0 %v5518
      %v5520 = vpop.xlane.xlu0 %5519
      %v5521 = vsel %vm333, %v5445, 0.0
      %5522 = vadd.xlane.f32.xlu0 %v5521
      %v5523 = vpop.xlane.xlu0 %5522
      %v5524 = vsel %vm333, %v5446, 0.0
      %5525 = vadd.xlane.f32.xlu0 %v5524
      %v5526 = vpop.xlane.xlu0 %5525
      %v5527 = vsel %vm333, %v5447, 0.0
      %5528 = vadd.xlane.f32.xlu0 %v5527
      %v5529 = vpop.xlane.xlu0 %5528
      %v5530 = vsel %vm333, %v5448, 0.0
      %5531 = vadd.xlane.f32.xlu0 %v5530
      %v5532 = vpop.xlane.xlu0 %5531
      %v5533 = vsel %vm333, %v5449, 0.0
      %5534 = vadd.xlane.f32.xlu0 %v5533
      %v5535 = vpop.xlane.xlu0 %5534
      %v5536 = vsel %vm333, %v5450, 0.0
      %5537 = vadd.xlane.f32.xlu0 %v5536
      %v5538 = vpop.xlane.xlu0 %5537
      %v5539 = vsel %vm333, %v5451, 0.0
      %5540 = vadd.xlane.f32.xlu0 %v5539
      %v5541 = vpop.xlane.xlu0 %5540
      %v5542 = vsel %vm333, %v5452, 0.0
      %5543 = vadd.xlane.f32.xlu0 %v5542
      %v5544 = vpop.xlane.xlu0 %5543
      %v5545 = vsel %vm333, %v5453, 0.0
      %5546 = vadd.xlane.f32.xlu0 %v5545
      %v5547 = vpop.xlane.xlu0 %5546
      %v5548 = vsel %vm333, %v5454, 0.0
      %5549 = vadd.xlane.f32.xlu0 %v5548
      %v5550 = vpop.xlane.xlu0 %5549
      %v5551 = vadd.f32 %v5390, %v5457
      %v5552 = vadd.f32 %v5391, %v5460
      %v5553 = vadd.f32 %v5392, %v5463
      %v5554 = vadd.f32 %v5393, %v5466
      %v5555 = vadd.f32 %v5394, %v5469
      %v5556 = vadd.f32 %v5395, %v5472
      %v5557 = vadd.f32 %v5396, %v5475
      %v5558 = vadd.f32 %v5397, %v5478
      %v5559 = vadd.f32 %v5398, %v5481
      %v5560 = vadd.f32 %v5399, %v5484
      %v5561 = vadd.f32 %v5400, %v5487
      %v5562 = vadd.f32 %v5401, %v5490
      %v5563 = vadd.f32 %v5402, %v5493
      %v5564 = vadd.f32 %v5403, %v5496
      %v5565 = vadd.f32 %v5404, %v5499
      %v5566 = vadd.f32 %v5405, %v5502
      %v5567 = vadd.f32 %v5406, %v5505
      %v5568 = vadd.f32 %v5407, %v5508
      %v5569 = vadd.f32 %v5408, %v5511
      %v5570 = vadd.f32 %v5409, %v5514
      %v5571 = vadd.f32 %v5410, %v5517
      %v5572 = vadd.f32 %v5411, %v5520
      %v5573 = vadd.f32 %v5412, %v5523
      %v5574 = vadd.f32 %v5413, %v5526
      %v5575 = vadd.f32 %v5414, %v5529
      %v5576 = vadd.f32 %v5415, %v5532
      %v5577 = vadd.f32 %v5416, %v5535
      %v5578 = vadd.f32 %v5417, %v5538
      %v5579 = vadd.f32 %v5418, %v5541
      %v5580 = vadd.f32 %v5419, %v5544
      %v5581 = vadd.f32 %v5420, %v5547
      %v5582 = vadd.f32 %v5421, %v5550
      %v5583 = vperm.slane %v225, 1
      %v5584 = vmul.f32 %v5197, %v5583
      %v5585 = vmul.f32 %v5198, %v5583
      %v5586 = vmul.f32 %v5199, %v5583
      %v5587 = vmul.f32 %v5200, %v5583
      %v5588 = vmul.f32 %v5201, %v5583
      %v5589 = vmul.f32 %v5202, %v5583
      %v5590 = vmul.f32 %v5203, %v5583
      %v5591 = vmul.f32 %v5204, %v5583
      %v5592 = vmul.f32 %v5205, %v5583
      %v5593 = vmul.f32 %v5206, %v5583
      %v5594 = vmul.f32 %v5207, %v5583
      %v5595 = vmul.f32 %v5208, %v5583
      %v5596 = vmul.f32 %v5209, %v5583
      %v5597 = vmul.f32 %v5210, %v5583
      %v5598 = vmul.f32 %v5211, %v5583
      %v5599 = vmul.f32 %v5212, %v5583
      %v5600 = vmul.f32 %v5213, %v5583
      %v5601 = vmul.f32 %v5214, %v5583
      %v5602 = vmul.f32 %v5215, %v5583
      %v5603 = vmul.f32 %v5216, %v5583
      %v5604 = vmul.f32 %v5217, %v5583
      %v5605 = vmul.f32 %v5218, %v5583
      %v5606 = vmul.f32 %v5219, %v5583
      %v5607 = vmul.f32 %v5220, %v5583
      %v5608 = vmul.f32 %v5221, %v5583
      %v5609 = vmul.f32 %v5222, %v5583
      %v5610 = vmul.f32 %v5223, %v5583
      %v5611 = vmul.f32 %v5224, %v5583
      %v5612 = vmul.f32 %v5225, %v5583
      %v5613 = vmul.f32 %v5226, %v5583
      %v5614 = vmul.f32 %v5227, %v5583
      %v5615 = vmul.f32 %v5228, %v5583
      %v5616 = vsel %vm333, %v5584, 0.0
      %5617 = vadd.xlane.f32.xlu0 %v5616
      %v5618 = vpop.xlane.xlu0 %5617
      %v5619 = vsel %vm333, %v5585, 0.0
      %5620 = vadd.xlane.f32.xlu0 %v5619
      %v5621 = vpop.xlane.xlu0 %5620
      %v5622 = vsel %vm333, %v5586, 0.0
      %5623 = vadd.xlane.f32.xlu0 %v5622
      %v5624 = vpop.xlane.xlu0 %5623
      %v5625 = vsel %vm333, %v5587, 0.0
      %5626 = vadd.xlane.f32.xlu0 %v5625
      %v5627 = vpop.xlane.xlu0 %5626
      %v5628 = vsel %vm333, %v5588, 0.0
      %5629 = vadd.xlane.f32.xlu0 %v5628
      %v5630 = vpop.xlane.xlu0 %5629
      %v5631 = vsel %vm333, %v5589, 0.0
      %5632 = vadd.xlane.f32.xlu0 %v5631
      %v5633 = vpop.xlane.xlu0 %5632
      %v5634 = vsel %vm333, %v5590, 0.0
      %5635 = vadd.xlane.f32.xlu0 %v5634
      %v5636 = vpop.xlane.xlu0 %5635
      %v5637 = vsel %vm333, %v5591, 0.0
      %5638 = vadd.xlane.f32.xlu0 %v5637
      %v5639 = vpop.xlane.xlu0 %5638
      %v5640 = vsel %vm333, %v5592, 0.0
      %5641 = vadd.xlane.f32.xlu0 %v5640
      %v5642 = vpop.xlane.xlu0 %5641
      %v5643 = vsel %vm333, %v5593, 0.0
      %5644 = vadd.xlane.f32.xlu0 %v5643
      %v5645 = vpop.xlane.xlu0 %5644
      %v5646 = vsel %vm333, %v5594, 0.0
      %5647 = vadd.xlane.f32.xlu0 %v5646
      %v5648 = vpop.xlane.xlu0 %5647
      %v5649 = vsel %vm333, %v5595, 0.0
      %5650 = vadd.xlane.f32.xlu0 %v5649
      %v5651 = vpop.xlane.xlu0 %5650
      %v5652 = vsel %vm333, %v5596, 0.0
      %5653 = vadd.xlane.f32.xlu0 %v5652
      %v5654 = vpop.xlane.xlu0 %5653
      %v5655 = vsel %vm333, %v5597, 0.0
      %5656 = vadd.xlane.f32.xlu0 %v5655
      %v5657 = vpop.xlane.xlu0 %5656
      %v5658 = vsel %vm333, %v5598, 0.0
      %5659 = vadd.xlane.f32.xlu0 %v5658
      %v5660 = vpop.xlane.xlu0 %5659
      %v5661 = vsel %vm333, %v5599, 0.0
      %5662 = vadd.xlane.f32.xlu0 %v5661
      %v5663 = vpop.xlane.xlu0 %5662
      %v5664 = vsel %vm333, %v5600, 0.0
      %5665 = vadd.xlane.f32.xlu0 %v5664
      %v5666 = vpop.xlane.xlu0 %5665
      %v5667 = vsel %vm333, %v5601, 0.0
      %5668 = vadd.xlane.f32.xlu0 %v5667
      %v5669 = vpop.xlane.xlu0 %5668
      %v5670 = vsel %vm333, %v5602, 0.0
      %5671 = vadd.xlane.f32.xlu0 %v5670
      %v5672 = vpop.xlane.xlu0 %5671
      %v5673 = vsel %vm333, %v5603, 0.0
      %5674 = vadd.xlane.f32.xlu0 %v5673
      %v5675 = vpop.xlane.xlu0 %5674
      %v5676 = vsel %vm333, %v5604, 0.0
      %5677 = vadd.xlane.f32.xlu0 %v5676
      %v5678 = vpop.xlane.xlu0 %5677
      %v5679 = vsel %vm333, %v5605, 0.0
      %5680 = vadd.xlane.f32.xlu0 %v5679
      %v5681 = vpop.xlane.xlu0 %5680
      %v5682 = vsel %vm333, %v5606, 0.0
      %5683 = vadd.xlane.f32.xlu0 %v5682
      %v5684 = vpop.xlane.xlu0 %5683
      %v5685 = vsel %vm333, %v5607, 0.0
      %5686 = vadd.xlane.f32.xlu0 %v5685
      %v5687 = vpop.xlane.xlu0 %5686
      %v5688 = vsel %vm333, %v5608, 0.0
      %5689 = vadd.xlane.f32.xlu0 %v5688
      %v5690 = vpop.xlane.xlu0 %5689
      %v5691 = vsel %vm333, %v5609, 0.0
      %5692 = vadd.xlane.f32.xlu0 %v5691
      %v5693 = vpop.xlane.xlu0 %5692
      %v5694 = vsel %vm333, %v5610, 0.0
      %5695 = vadd.xlane.f32.xlu0 %v5694
      %v5696 = vpop.xlane.xlu0 %5695
      %v5697 = vsel %vm333, %v5611, 0.0
      %5698 = vadd.xlane.f32.xlu0 %v5697
      %v5699 = vpop.xlane.xlu0 %5698
      %v5700 = vsel %vm333, %v5612, 0.0
      %5701 = vadd.xlane.f32.xlu0 %v5700
      %v5702 = vpop.xlane.xlu0 %5701
      %v5703 = vsel %vm333, %v5613, 0.0
      %5704 = vadd.xlane.f32.xlu0 %v5703
      %v5705 = vpop.xlane.xlu0 %5704
      %v5706 = vsel %vm333, %v5614, 0.0
      %5707 = vadd.xlane.f32.xlu0 %v5706
      %v5708 = vpop.xlane.xlu0 %5707
      %v5709 = vsel %vm333, %v5615, 0.0
      %5710 = vadd.xlane.f32.xlu0 %v5709
      %v5711 = vpop.xlane.xlu0 %5710
      %v5712 = vadd.f32 %v5165, %v5618
      %v5713 = vadd.f32 %v5166, %v5621
      %v5714 = vadd.f32 %v5167, %v5624
      %v5715 = vadd.f32 %v5168, %v5627
      %v5716 = vadd.f32 %v5169, %v5630
      %v5717 = vadd.f32 %v5170, %v5633
      %v5718 = vadd.f32 %v5171, %v5636
      %v5719 = vadd.f32 %v5172, %v5639
      %v5720 = vadd.f32 %v5173, %v5642
      %v5721 = vadd.f32 %v5174, %v5645
      %v5722 = vadd.f32 %v5175, %v5648
      %v5723 = vadd.f32 %v5176, %v5651
      %v5724 = vadd.f32 %v5177, %v5654
      %v5725 = vadd.f32 %v5178, %v5657
      %v5726 = vadd.f32 %v5179, %v5660
      %v5727 = vadd.f32 %v5180, %v5663
      %v5728 = vadd.f32 %v5181, %v5666
      %v5729 = vadd.f32 %v5182, %v5669
      %v5730 = vadd.f32 %v5183, %v5672
      %v5731 = vadd.f32 %v5184, %v5675
      %v5732 = vadd.f32 %v5185, %v5678
      %v5733 = vadd.f32 %v5186, %v5681
      %v5734 = vadd.f32 %v5187, %v5684
      %v5735 = vadd.f32 %v5188, %v5687
      %v5736 = vadd.f32 %v5189, %v5690
      %v5737 = vadd.f32 %v5190, %v5693
      %v5738 = vadd.f32 %v5191, %v5696
      %v5739 = vadd.f32 %v5192, %v5699
      %v5740 = vadd.f32 %v5193, %v5702
      %v5741 = vadd.f32 %v5194, %v5705
      %v5742 = vadd.f32 %v5195, %v5708
      %v5743 = vadd.f32 %v5196, %v5711
      %v5744 = vperm.slane %v234, 1
      %v5745 = vmul.f32 %v5229, %v5744
      %v5746 = vmul.f32 %v5230, %v5744
      %v5747 = vmul.f32 %v5231, %v5744
      %v5748 = vmul.f32 %v5232, %v5744
      %v5749 = vmul.f32 %v5233, %v5744
      %v5750 = vmul.f32 %v5234, %v5744
      %v5751 = vmul.f32 %v5235, %v5744
      %v5752 = vmul.f32 %v5236, %v5744
      %v5753 = vmul.f32 %v5237, %v5744
      %v5754 = vmul.f32 %v5238, %v5744
      %v5755 = vmul.f32 %v5239, %v5744
      %v5756 = vmul.f32 %v5240, %v5744
      %v5757 = vmul.f32 %v5241, %v5744
      %v5758 = vmul.f32 %v5242, %v5744
      %v5759 = vmul.f32 %v5243, %v5744
      %v5760 = vmul.f32 %v5244, %v5744
      %v5761 = vmul.f32 %v5245, %v5744
      %v5762 = vmul.f32 %v5246, %v5744
      %v5763 = vmul.f32 %v5247, %v5744
      %v5764 = vmul.f32 %v5248, %v5744
      %v5765 = vmul.f32 %v5249, %v5744
      %v5766 = vmul.f32 %v5250, %v5744
      %v5767 = vmul.f32 %v5251, %v5744
      %v5768 = vmul.f32 %v5252, %v5744
      %v5769 = vmul.f32 %v5253, %v5744
      %v5770 = vmul.f32 %v5254, %v5744
      %v5771 = vmul.f32 %v5255, %v5744
      %v5772 = vmul.f32 %v5256, %v5744
      %v5773 = vmul.f32 %v5257, %v5744
      %v5774 = vmul.f32 %v5258, %v5744
      %v5775 = vmul.f32 %v5259, %v5744
      %v5776 = vmul.f32 %v5260, %v5744
      %v5777 = vsel %vm333, %v5745, 0.0
      %5778 = vadd.xlane.f32.xlu0 %v5777
      %v5779 = vpop.xlane.xlu0 %5778
      %v5780 = vsel %vm333, %v5746, 0.0
      %5781 = vadd.xlane.f32.xlu0 %v5780
      %v5782 = vpop.xlane.xlu0 %5781
      %v5783 = vsel %vm333, %v5747, 0.0
      %5784 = vadd.xlane.f32.xlu0 %v5783
      %v5785 = vpop.xlane.xlu0 %5784
      %v5786 = vsel %vm333, %v5748, 0.0
      %5787 = vadd.xlane.f32.xlu0 %v5786
      %v5788 = vpop.xlane.xlu0 %5787
      %v5789 = vsel %vm333, %v5749, 0.0
      %5790 = vadd.xlane.f32.xlu0 %v5789
      %v5791 = vpop.xlane.xlu0 %5790
      %v5792 = vsel %vm333, %v5750, 0.0
      %5793 = vadd.xlane.f32.xlu0 %v5792
      %v5794 = vpop.xlane.xlu0 %5793
      %v5795 = vsel %vm333, %v5751, 0.0
      %5796 = vadd.xlane.f32.xlu0 %v5795
      %v5797 = vpop.xlane.xlu0 %5796
      %v5798 = vsel %vm333, %v5752, 0.0
      %5799 = vadd.xlane.f32.xlu0 %v5798
      %v5800 = vpop.xlane.xlu0 %5799
      %v5801 = vsel %vm333, %v5753, 0.0
      %5802 = vadd.xlane.f32.xlu0 %v5801
      %v5803 = vpop.xlane.xlu0 %5802
      %v5804 = vsel %vm333, %v5754, 0.0
      %5805 = vadd.xlane.f32.xlu0 %v5804
      %v5806 = vpop.xlane.xlu0 %5805
      %v5807 = vsel %vm333, %v5755, 0.0
      %5808 = vadd.xlane.f32.xlu0 %v5807
      %v5809 = vpop.xlane.xlu0 %5808
      %v5810 = vsel %vm333, %v5756, 0.0
      %5811 = vadd.xlane.f32.xlu0 %v5810
      %v5812 = vpop.xlane.xlu0 %5811
      %v5813 = vsel %vm333, %v5757, 0.0
      %5814 = vadd.xlane.f32.xlu0 %v5813
      %v5815 = vpop.xlane.xlu0 %5814
      %v5816 = vsel %vm333, %v5758, 0.0
      %5817 = vadd.xlane.f32.xlu0 %v5816
      %v5818 = vpop.xlane.xlu0 %5817
      %v5819 = vsel %vm333, %v5759, 0.0
      %5820 = vadd.xlane.f32.xlu0 %v5819
      %v5821 = vpop.xlane.xlu0 %5820
      %v5822 = vsel %vm333, %v5760, 0.0
      %5823 = vadd.xlane.f32.xlu0 %v5822
      %v5824 = vpop.xlane.xlu0 %5823
      %v5825 = vsel %vm333, %v5761, 0.0
      %5826 = vadd.xlane.f32.xlu0 %v5825
      %v5827 = vpop.xlane.xlu0 %5826
      %v5828 = vsel %vm333, %v5762, 0.0
      %5829 = vadd.xlane.f32.xlu0 %v5828
      %v5830 = vpop.xlane.xlu0 %5829
      %v5831 = vsel %vm333, %v5763, 0.0
      %5832 = vadd.xlane.f32.xlu0 %v5831
      %v5833 = vpop.xlane.xlu0 %5832
      %v5834 = vsel %vm333, %v5764, 0.0
      %5835 = vadd.xlane.f32.xlu0 %v5834
      %v5836 = vpop.xlane.xlu0 %5835
      %v5837 = vsel %vm333, %v5765, 0.0
      %5838 = vadd.xlane.f32.xlu0 %v5837
      %v5839 = vpop.xlane.xlu0 %5838
      %v5840 = vsel %vm333, %v5766, 0.0
      %5841 = vadd.xlane.f32.xlu0 %v5840
      %v5842 = vpop.xlane.xlu0 %5841
      %v5843 = vsel %vm333, %v5767, 0.0
      %5844 = vadd.xlane.f32.xlu0 %v5843
      %v5845 = vpop.xlane.xlu0 %5844
      %v5846 = vsel %vm333, %v5768, 0.0
      %5847 = vadd.xlane.f32.xlu0 %v5846
      %v5848 = vpop.xlane.xlu0 %5847
      %v5849 = vsel %vm333, %v5769, 0.0
      %5850 = vadd.xlane.f32.xlu0 %v5849
      %v5851 = vpop.xlane.xlu0 %5850
      %v5852 = vsel %vm333, %v5770, 0.0
      %5853 = vadd.xlane.f32.xlu0 %v5852
      %v5854 = vpop.xlane.xlu0 %5853
      %v5855 = vsel %vm333, %v5771, 0.0
      %5856 = vadd.xlane.f32.xlu0 %v5855
      %v5857 = vpop.xlane.xlu0 %5856
      %v5858 = vsel %vm333, %v5772, 0.0
      %5859 = vadd.xlane.f32.xlu0 %v5858
      %v5860 = vpop.xlane.xlu0 %5859
      %v5861 = vsel %vm333, %v5773, 0.0
      %5862 = vadd.xlane.f32.xlu0 %v5861
      %v5863 = vpop.xlane.xlu0 %5862
      %v5864 = vsel %vm333, %v5774, 0.0
      %5865 = vadd.xlane.f32.xlu0 %v5864
      %v5866 = vpop.xlane.xlu0 %5865
      %v5867 = vsel %vm333, %v5775, 0.0
      %5868 = vadd.xlane.f32.xlu0 %v5867
      %v5869 = vpop.xlane.xlu0 %5868
      %v5870 = vsel %vm333, %v5776, 0.0
      %5871 = vadd.xlane.f32.xlu0 %v5870
      %v5872 = vpop.xlane.xlu0 %5871
      %v5873 = vadd.f32 %v5712, %v5779
      %v5874 = vadd.f32 %v5713, %v5782
      %v5875 = vadd.f32 %v5714, %v5785
      %v5876 = vadd.f32 %v5715, %v5788
      %v5877 = vadd.f32 %v5716, %v5791
      %v5878 = vadd.f32 %v5717, %v5794
      %v5879 = vadd.f32 %v5718, %v5797
      %v5880 = vadd.f32 %v5719, %v5800
      %v5881 = vadd.f32 %v5720, %v5803
      %v5882 = vadd.f32 %v5721, %v5806
      %v5883 = vadd.f32 %v5722, %v5809
      %v5884 = vadd.f32 %v5723, %v5812
      %v5885 = vadd.f32 %v5724, %v5815
      %v5886 = vadd.f32 %v5725, %v5818
      %v5887 = vadd.f32 %v5726, %v5821
      %v5888 = vadd.f32 %v5727, %v5824
      %v5889 = vadd.f32 %v5728, %v5827
      %v5890 = vadd.f32 %v5729, %v5830
      %v5891 = vadd.f32 %v5730, %v5833
      %v5892 = vadd.f32 %v5731, %v5836
      %v5893 = vadd.f32 %v5732, %v5839
      %v5894 = vadd.f32 %v5733, %v5842
      %v5895 = vadd.f32 %v5734, %v5845
      %v5896 = vadd.f32 %v5735, %v5848
      %v5897 = vadd.f32 %v5736, %v5851
      %v5898 = vadd.f32 %v5737, %v5854
      %v5899 = vadd.f32 %v5738, %v5857
      %v5900 = vadd.f32 %v5739, %v5860
      %v5901 = vadd.f32 %v5740, %v5863
      %v5902 = vadd.f32 %v5741, %v5866
      %v5903 = vadd.f32 %v5742, %v5869
      %v5904 = vadd.f32 %v5743, %v5872
      %v5905 = vld [vmem:[%s4487 + $0x2] sm:$0xff]
      %v5906 = vld [vmem:[%s4487 + $0xa] sm:$0xff]
      %v5907 = vld [vmem:[%s4487 + $0x1a] sm:$0xff]
      %v5908 = vld [vmem:[%s4487 + $0x22] sm:$0xff]
      %v5909 = vld [vmem:[%s4487 + $0x32] sm:$0xff]
      %v5910 = vld [vmem:[%s4487 + $0x3a] sm:$0xff]
      %v5911 = vld [vmem:[%s4487 + $0x4a] sm:$0xff]
      %v5912 = vld [vmem:[%s4487 + $0x52] sm:$0xff]
      %v5913 = vld [vmem:[%s4487 + $0x62] sm:$0xff]
      %v5914 = vld [vmem:[%s4487 + $0x6a] sm:$0xff]
      %v5915 = vld [vmem:[%s4487 + $0x7a] sm:$0xff]
      %v5916 = vld [vmem:[%s4487 + $0x82] sm:$0xff]
      %v5917 = vld [vmem:[%s4487 + $0x92] sm:$0xff]
      %v5918 = vld [vmem:[%s4487 + $0x9a] sm:$0xff]
      %v5919 = vld [vmem:[%s4487 + $0xaa] sm:$0xff]
      %v5920 = vld [vmem:[%s4487 + $0xb2] sm:$0xff]
      %v5921 = vld [vmem:[%s4487 + $0xc2] sm:$0xff]
      %v5922 = vld [vmem:[%s4487 + $0xca] sm:$0xff]
      %v5923 = vld [vmem:[%s4487 + $0xda] sm:$0xff]
      %v5924 = vld [vmem:[%s4487 + $0xe2] sm:$0xff]
      %v5925 = vld [vmem:[%s4487 + $0xf2] sm:$0xff]
      %v5926 = vld [vmem:[%s4487 + $0xfa] sm:$0xff]
      %v5927 = vld [vmem:[%s4487 + $0x10a] sm:$0xff]
      %v5928 = vld [vmem:[%s4487 + $0x112] sm:$0xff]
      %v5929 = vld [vmem:[%s4487 + $0x122] sm:$0xff]
      %v5930 = vld [vmem:[%s4487 + $0x12a] sm:$0xff]
      %v5931 = vld [vmem:[%s4487 + $0x13a] sm:$0xff]
      %v5932 = vld [vmem:[%s4487 + $0x142] sm:$0xff]
      %v5933 = vld [vmem:[%s4487 + $0x152] sm:$0xff]
      %v5934 = vld [vmem:[%s4487 + $0x15a] sm:$0xff]
      %v5935 = vld [vmem:[%s4487 + $0x16a] sm:$0xff]
      %v5936 = vld [vmem:[%s4487 + $0x172] sm:$0xff]
      %v5937 = vld [vmem:[%s4520 + $0x2] sm:$0xff]
      %v5938 = vld [vmem:[%s4520 + $0xa] sm:$0xff]
      %v5939 = vld [vmem:[%s4520 + $0x1a] sm:$0xff]
      %v5940 = vld [vmem:[%s4520 + $0x22] sm:$0xff]
      %v5941 = vld [vmem:[%s4520 + $0x32] sm:$0xff]
      %v5942 = vld [vmem:[%s4520 + $0x3a] sm:$0xff]
      %v5943 = vld [vmem:[%s4520 + $0x4a] sm:$0xff]
      %v5944 = vld [vmem:[%s4520 + $0x52] sm:$0xff]
      %v5945 = vld [vmem:[%s4520 + $0x62] sm:$0xff]
      %v5946 = vld [vmem:[%s4520 + $0x6a] sm:$0xff]
      %v5947 = vld [vmem:[%s4520 + $0x7a] sm:$0xff]
      %v5948 = vld [vmem:[%s4520 + $0x82] sm:$0xff]
      %v5949 = vld [vmem:[%s4520 + $0x92] sm:$0xff]
      %v5950 = vld [vmem:[%s4520 + $0x9a] sm:$0xff]
      %v5951 = vld [vmem:[%s4520 + $0xaa] sm:$0xff]
      %v5952 = vld [vmem:[%s4520 + $0xb2] sm:$0xff]
      %v5953 = vld [vmem:[%s4520 + $0xc2] sm:$0xff]
      %v5954 = vld [vmem:[%s4520 + $0xca] sm:$0xff]
      %v5955 = vld [vmem:[%s4520 + $0xda] sm:$0xff]
      %v5956 = vld [vmem:[%s4520 + $0xe2] sm:$0xff]
      %v5957 = vld [vmem:[%s4520 + $0xf2] sm:$0xff]
      %v5958 = vld [vmem:[%s4520 + $0xfa] sm:$0xff]
      %v5959 = vld [vmem:[%s4520 + $0x10a] sm:$0xff]
      %v5960 = vld [vmem:[%s4520 + $0x112] sm:$0xff]
      %v5961 = vld [vmem:[%s4520 + $0x122] sm:$0xff]
      %v5962 = vld [vmem:[%s4520 + $0x12a] sm:$0xff]
      %v5963 = vld [vmem:[%s4520 + $0x13a] sm:$0xff]
      %v5964 = vld [vmem:[%s4520 + $0x142] sm:$0xff]
      %v5965 = vld [vmem:[%s4520 + $0x152] sm:$0xff]
      %v5966 = vld [vmem:[%s4520 + $0x15a] sm:$0xff]
      %v5967 = vld [vmem:[%s4520 + $0x16a] sm:$0xff]
      %v5968 = vld [vmem:[%s4520 + $0x172] sm:$0xff]
      %v5969 = vperm.slane %v226, 0
      %v5970 = vmul.f32 %v5905, %v5969
      %v5971 = vmul.f32 %v5906, %v5969
      %v5972 = vmul.f32 %v5907, %v5969
      %v5973 = vmul.f32 %v5908, %v5969
      %v5974 = vmul.f32 %v5909, %v5969
      %v5975 = vmul.f32 %v5910, %v5969
      %v5976 = vmul.f32 %v5911, %v5969
      %v5977 = vmul.f32 %v5912, %v5969
      %v5978 = vmul.f32 %v5913, %v5969
      %v5979 = vmul.f32 %v5914, %v5969
      %v5980 = vmul.f32 %v5915, %v5969
      %v5981 = vmul.f32 %v5916, %v5969
      %v5982 = vmul.f32 %v5917, %v5969
      %v5983 = vmul.f32 %v5918, %v5969
      %v5984 = vmul.f32 %v5919, %v5969
      %v5985 = vmul.f32 %v5920, %v5969
      %v5986 = vmul.f32 %v5921, %v5969
      %v5987 = vmul.f32 %v5922, %v5969
      %v5988 = vmul.f32 %v5923, %v5969
      %v5989 = vmul.f32 %v5924, %v5969
      %v5990 = vmul.f32 %v5925, %v5969
      %v5991 = vmul.f32 %v5926, %v5969
      %v5992 = vmul.f32 %v5927, %v5969
      %v5993 = vmul.f32 %v5928, %v5969
      %v5994 = vmul.f32 %v5929, %v5969
      %v5995 = vmul.f32 %v5930, %v5969
      %v5996 = vmul.f32 %v5931, %v5969
      %v5997 = vmul.f32 %v5932, %v5969
      %v5998 = vmul.f32 %v5933, %v5969
      %v5999 = vmul.f32 %v5934, %v5969
      %v6000 = vmul.f32 %v5935, %v5969
      %v6001 = vmul.f32 %v5936, %v5969
      %v6002 = vsel %vm333, %v5970, 0.0
      %6003 = vadd.xlane.f32.xlu0 %v6002
      %v6004 = vpop.xlane.xlu0 %6003
      %v6005 = vsel %vm333, %v5971, 0.0
      %6006 = vadd.xlane.f32.xlu0 %v6005
      %v6007 = vpop.xlane.xlu0 %6006
      %v6008 = vsel %vm333, %v5972, 0.0
      %6009 = vadd.xlane.f32.xlu0 %v6008
      %v6010 = vpop.xlane.xlu0 %6009
      %v6011 = vsel %vm333, %v5973, 0.0
      %6012 = vadd.xlane.f32.xlu0 %v6011
      %v6013 = vpop.xlane.xlu0 %6012
      %v6014 = vsel %vm333, %v5974, 0.0
      %6015 = vadd.xlane.f32.xlu0 %v6014
      %v6016 = vpop.xlane.xlu0 %6015
      %v6017 = vsel %vm333, %v5975, 0.0
      %6018 = vadd.xlane.f32.xlu0 %v6017
      %v6019 = vpop.xlane.xlu0 %6018
      %v6020 = vsel %vm333, %v5976, 0.0
      %6021 = vadd.xlane.f32.xlu0 %v6020
      %v6022 = vpop.xlane.xlu0 %6021
      %v6023 = vsel %vm333, %v5977, 0.0
      %6024 = vadd.xlane.f32.xlu0 %v6023
      %v6025 = vpop.xlane.xlu0 %6024
      %v6026 = vsel %vm333, %v5978, 0.0
      %6027 = vadd.xlane.f32.xlu0 %v6026
      %v6028 = vpop.xlane.xlu0 %6027
      %v6029 = vsel %vm333, %v5979, 0.0
      %6030 = vadd.xlane.f32.xlu0 %v6029
      %v6031 = vpop.xlane.xlu0 %6030
      %v6032 = vsel %vm333, %v5980, 0.0
      %6033 = vadd.xlane.f32.xlu0 %v6032
      %v6034 = vpop.xlane.xlu0 %6033
      %v6035 = vsel %vm333, %v5981, 0.0
      %6036 = vadd.xlane.f32.xlu0 %v6035
      %v6037 = vpop.xlane.xlu0 %6036
      %v6038 = vsel %vm333, %v5982, 0.0
      %6039 = vadd.xlane.f32.xlu0 %v6038
      %v6040 = vpop.xlane.xlu0 %6039
      %v6041 = vsel %vm333, %v5983, 0.0
      %6042 = vadd.xlane.f32.xlu0 %v6041
      %v6043 = vpop.xlane.xlu0 %6042
      %v6044 = vsel %vm333, %v5984, 0.0
      %6045 = vadd.xlane.f32.xlu0 %v6044
      %v6046 = vpop.xlane.xlu0 %6045
      %v6047 = vsel %vm333, %v5985, 0.0
      %6048 = vadd.xlane.f32.xlu0 %v6047
      %v6049 = vpop.xlane.xlu0 %6048
      %v6050 = vsel %vm333, %v5986, 0.0
      %6051 = vadd.xlane.f32.xlu0 %v6050
      %v6052 = vpop.xlane.xlu0 %6051
      %v6053 = vsel %vm333, %v5987, 0.0
      %6054 = vadd.xlane.f32.xlu0 %v6053
      %v6055 = vpop.xlane.xlu0 %6054
      %v6056 = vsel %vm333, %v5988, 0.0
      %6057 = vadd.xlane.f32.xlu0 %v6056
      %v6058 = vpop.xlane.xlu0 %6057
      %v6059 = vsel %vm333, %v5989, 0.0
      %6060 = vadd.xlane.f32.xlu0 %v6059
      %v6061 = vpop.xlane.xlu0 %6060
      %v6062 = vsel %vm333, %v5990, 0.0
      %6063 = vadd.xlane.f32.xlu0 %v6062
      %v6064 = vpop.xlane.xlu0 %6063
      %v6065 = vsel %vm333, %v5991, 0.0
      %6066 = vadd.xlane.f32.xlu0 %v6065
      %v6067 = vpop.xlane.xlu0 %6066
      %v6068 = vsel %vm333, %v5992, 0.0
      %6069 = vadd.xlane.f32.xlu0 %v6068
      %v6070 = vpop.xlane.xlu0 %6069
      %v6071 = vsel %vm333, %v5993, 0.0
      %6072 = vadd.xlane.f32.xlu0 %v6071
      %v6073 = vpop.xlane.xlu0 %6072
      %v6074 = vsel %vm333, %v5994, 0.0
      %6075 = vadd.xlane.f32.xlu0 %v6074
      %v6076 = vpop.xlane.xlu0 %6075
      %v6077 = vsel %vm333, %v5995, 0.0
      %6078 = vadd.xlane.f32.xlu0 %v6077
      %v6079 = vpop.xlane.xlu0 %6078
      %v6080 = vsel %vm333, %v5996, 0.0
      %6081 = vadd.xlane.f32.xlu0 %v6080
      %v6082 = vpop.xlane.xlu0 %6081
      %v6083 = vsel %vm333, %v5997, 0.0
      %6084 = vadd.xlane.f32.xlu0 %v6083
      %v6085 = vpop.xlane.xlu0 %6084
      %v6086 = vsel %vm333, %v5998, 0.0
      %6087 = vadd.xlane.f32.xlu0 %v6086
      %v6088 = vpop.xlane.xlu0 %6087
      %v6089 = vsel %vm333, %v5999, 0.0
      %6090 = vadd.xlane.f32.xlu0 %v6089
      %v6091 = vpop.xlane.xlu0 %6090
      %v6092 = vsel %vm333, %v6000, 0.0
      %6093 = vadd.xlane.f32.xlu0 %v6092
      %v6094 = vpop.xlane.xlu0 %6093
      %v6095 = vsel %vm333, %v6001, 0.0
      %6096 = vadd.xlane.f32.xlu0 %v6095
      %v6097 = vpop.xlane.xlu0 %6096
      %v6098 = vadd.f32 %v5551, %v6004
      %v6099 = vadd.f32 %v5552, %v6007
      %v6100 = vadd.f32 %v5553, %v6010
      %v6101 = vadd.f32 %v5554, %v6013
      %v6102 = vadd.f32 %v5555, %v6016
      %v6103 = vadd.f32 %v5556, %v6019
      %v6104 = vadd.f32 %v5557, %v6022
      %v6105 = vadd.f32 %v5558, %v6025
      %v6106 = vadd.f32 %v5559, %v6028
      %v6107 = vadd.f32 %v5560, %v6031
      %v6108 = vadd.f32 %v5561, %v6034
      %v6109 = vadd.f32 %v5562, %v6037
      %v6110 = vadd.f32 %v5563, %v6040
      %v6111 = vadd.f32 %v5564, %v6043
      %v6112 = vadd.f32 %v5565, %v6046
      %v6113 = vadd.f32 %v5566, %v6049
      %v6114 = vadd.f32 %v5567, %v6052
      %v6115 = vadd.f32 %v5568, %v6055
      %v6116 = vadd.f32 %v5569, %v6058
      %v6117 = vadd.f32 %v5570, %v6061
      %v6118 = vadd.f32 %v5571, %v6064
      %v6119 = vadd.f32 %v5572, %v6067
      %v6120 = vadd.f32 %v5573, %v6070
      %v6121 = vadd.f32 %v5574, %v6073
      %v6122 = vadd.f32 %v5575, %v6076
      %v6123 = vadd.f32 %v5576, %v6079
      %v6124 = vadd.f32 %v5577, %v6082
      %v6125 = vadd.f32 %v5578, %v6085
      %v6126 = vadd.f32 %v5579, %v6088
      %v6127 = vadd.f32 %v5580, %v6091
      %v6128 = vadd.f32 %v5581, %v6094
      %v6129 = vadd.f32 %v5582, %v6097
      %v6130 = vperm.slane %v235, 0
      %v6131 = vmul.f32 %v5937, %v6130
      %v6132 = vmul.f32 %v5938, %v6130
      %v6133 = vmul.f32 %v5939, %v6130
      %v6134 = vmul.f32 %v5940, %v6130
      %v6135 = vmul.f32 %v5941, %v6130
      %v6136 = vmul.f32 %v5942, %v6130
      %v6137 = vmul.f32 %v5943, %v6130
      %v6138 = vmul.f32 %v5944, %v6130
      %v6139 = vmul.f32 %v5945, %v6130
      %v6140 = vmul.f32 %v5946, %v6130
      %v6141 = vmul.f32 %v5947, %v6130
      %v6142 = vmul.f32 %v5948, %v6130
      %v6143 = vmul.f32 %v5949, %v6130
      %v6144 = vmul.f32 %v5950, %v6130
      %v6145 = vmul.f32 %v5951, %v6130
      %v6146 = vmul.f32 %v5952, %v6130
      %v6147 = vmul.f32 %v5953, %v6130
      %v6148 = vmul.f32 %v5954, %v6130
      %v6149 = vmul.f32 %v5955, %v6130
      %v6150 = vmul.f32 %v5956, %v6130
      %v6151 = vmul.f32 %v5957, %v6130
      %v6152 = vmul.f32 %v5958, %v6130
      %v6153 = vmul.f32 %v5959, %v6130
      %v6154 = vmul.f32 %v5960, %v6130
      %v6155 = vmul.f32 %v5961, %v6130
      %v6156 = vmul.f32 %v5962, %v6130
      %v6157 = vmul.f32 %v5963, %v6130
      %v6158 = vmul.f32 %v5964, %v6130
      %v6159 = vmul.f32 %v5965, %v6130
      %v6160 = vmul.f32 %v5966, %v6130
      %v6161 = vmul.f32 %v5967, %v6130
      %v6162 = vmul.f32 %v5968, %v6130
      %v6163 = vsel %vm333, %v6131, 0.0
      %6164 = vadd.xlane.f32.xlu0 %v6163
      %v6165 = vpop.xlane.xlu0 %6164
      %v6166 = vsel %vm333, %v6132, 0.0
      %6167 = vadd.xlane.f32.xlu0 %v6166
      %v6168 = vpop.xlane.xlu0 %6167
      %v6169 = vsel %vm333, %v6133, 0.0
      %6170 = vadd.xlane.f32.xlu0 %v6169
      %v6171 = vpop.xlane.xlu0 %6170
      %v6172 = vsel %vm333, %v6134, 0.0
      %6173 = vadd.xlane.f32.xlu0 %v6172
      %v6174 = vpop.xlane.xlu0 %6173
      %v6175 = vsel %vm333, %v6135, 0.0
      %6176 = vadd.xlane.f32.xlu0 %v6175
      %v6177 = vpop.xlane.xlu0 %6176
      %v6178 = vsel %vm333, %v6136, 0.0
      %6179 = vadd.xlane.f32.xlu0 %v6178
      %v6180 = vpop.xlane.xlu0 %6179
      %v6181 = vsel %vm333, %v6137, 0.0
      %6182 = vadd.xlane.f32.xlu0 %v6181
      %v6183 = vpop.xlane.xlu0 %6182
      %v6184 = vsel %vm333, %v6138, 0.0
      %6185 = vadd.xlane.f32.xlu0 %v6184
      %v6186 = vpop.xlane.xlu0 %6185
      %v6187 = vsel %vm333, %v6139, 0.0
      %6188 = vadd.xlane.f32.xlu0 %v6187
      %v6189 = vpop.xlane.xlu0 %6188
      %v6190 = vsel %vm333, %v6140, 0.0
      %6191 = vadd.xlane.f32.xlu0 %v6190
      %v6192 = vpop.xlane.xlu0 %6191
      %v6193 = vsel %vm333, %v6141, 0.0
      %6194 = vadd.xlane.f32.xlu0 %v6193
      %v6195 = vpop.xlane.xlu0 %6194
      %v6196 = vsel %vm333, %v6142, 0.0
      %6197 = vadd.xlane.f32.xlu0 %v6196
      %v6198 = vpop.xlane.xlu0 %6197
      %v6199 = vsel %vm333, %v6143, 0.0
      %6200 = vadd.xlane.f32.xlu0 %v6199
      %v6201 = vpop.xlane.xlu0 %6200
      %v6202 = vsel %vm333, %v6144, 0.0
      %6203 = vadd.xlane.f32.xlu0 %v6202
      %v6204 = vpop.xlane.xlu0 %6203
      %v6205 = vsel %vm333, %v6145, 0.0
      %6206 = vadd.xlane.f32.xlu0 %v6205
      %v6207 = vpop.xlane.xlu0 %6206
      %v6208 = vsel %vm333, %v6146, 0.0
      %6209 = vadd.xlane.f32.xlu0 %v6208
      %v6210 = vpop.xlane.xlu0 %6209
      %v6211 = vsel %vm333, %v6147, 0.0
      %6212 = vadd.xlane.f32.xlu0 %v6211
      %v6213 = vpop.xlane.xlu0 %6212
      %v6214 = vsel %vm333, %v6148, 0.0
      %6215 = vadd.xlane.f32.xlu0 %v6214
      %v6216 = vpop.xlane.xlu0 %6215
      %v6217 = vsel %vm333, %v6149, 0.0
      %6218 = vadd.xlane.f32.xlu0 %v6217
      %v6219 = vpop.xlane.xlu0 %6218
      %v6220 = vsel %vm333, %v6150, 0.0
      %6221 = vadd.xlane.f32.xlu0 %v6220
      %v6222 = vpop.xlane.xlu0 %6221
      %v6223 = vsel %vm333, %v6151, 0.0
      %6224 = vadd.xlane.f32.xlu0 %v6223
      %v6225 = vpop.xlane.xlu0 %6224
      %v6226 = vsel %vm333, %v6152, 0.0
      %6227 = vadd.xlane.f32.xlu0 %v6226
      %v6228 = vpop.xlane.xlu0 %6227
      %v6229 = vsel %vm333, %v6153, 0.0
      %6230 = vadd.xlane.f32.xlu0 %v6229
      %v6231 = vpop.xlane.xlu0 %6230
      %v6232 = vsel %vm333, %v6154, 0.0
      %6233 = vadd.xlane.f32.xlu0 %v6232
      %v6234 = vpop.xlane.xlu0 %6233
      %v6235 = vsel %vm333, %v6155, 0.0
      %6236 = vadd.xlane.f32.xlu0 %v6235
      %v6237 = vpop.xlane.xlu0 %6236
      %v6238 = vsel %vm333, %v6156, 0.0
      %6239 = vadd.xlane.f32.xlu0 %v6238
      %v6240 = vpop.xlane.xlu0 %6239
      %v6241 = vsel %vm333, %v6157, 0.0
      %6242 = vadd.xlane.f32.xlu0 %v6241
      %v6243 = vpop.xlane.xlu0 %6242
      %v6244 = vsel %vm333, %v6158, 0.0
      %6245 = vadd.xlane.f32.xlu0 %v6244
      %v6246 = vpop.xlane.xlu0 %6245
      %v6247 = vsel %vm333, %v6159, 0.0
      %6248 = vadd.xlane.f32.xlu0 %v6247
      %v6249 = vpop.xlane.xlu0 %6248
      %v6250 = vsel %vm333, %v6160, 0.0
      %6251 = vadd.xlane.f32.xlu0 %v6250
      %v6252 = vpop.xlane.xlu0 %6251
      %v6253 = vsel %vm333, %v6161, 0.0
      %6254 = vadd.xlane.f32.xlu0 %v6253
      %v6255 = vpop.xlane.xlu0 %6254
      %v6256 = vsel %vm333, %v6162, 0.0
      %6257 = vadd.xlane.f32.xlu0 %v6256
      %v6258 = vpop.xlane.xlu0 %6257
      %v6259 = vadd.f32 %v6098, %v6165
      %v6260 = vadd.f32 %v6099, %v6168
      %v6261 = vadd.f32 %v6100, %v6171
      %v6262 = vadd.f32 %v6101, %v6174
      %v6263 = vadd.f32 %v6102, %v6177
      %v6264 = vadd.f32 %v6103, %v6180
      %v6265 = vadd.f32 %v6104, %v6183
      %v6266 = vadd.f32 %v6105, %v6186
      %v6267 = vadd.f32 %v6106, %v6189
      %v6268 = vadd.f32 %v6107, %v6192
      %v6269 = vadd.f32 %v6108, %v6195
      %v6270 = vadd.f32 %v6109, %v6198
      %v6271 = vadd.f32 %v6110, %v6201
      %v6272 = vadd.f32 %v6111, %v6204
      %v6273 = vadd.f32 %v6112, %v6207
      %v6274 = vadd.f32 %v6113, %v6210
      %v6275 = vadd.f32 %v6114, %v6213
      %v6276 = vadd.f32 %v6115, %v6216
      %v6277 = vadd.f32 %v6116, %v6219
      %v6278 = vadd.f32 %v6117, %v6222
      %v6279 = vadd.f32 %v6118, %v6225
      %v6280 = vadd.f32 %v6119, %v6228
      %v6281 = vadd.f32 %v6120, %v6231
      %v6282 = vadd.f32 %v6121, %v6234
      %v6283 = vadd.f32 %v6122, %v6237
      %v6284 = vadd.f32 %v6123, %v6240
      %v6285 = vadd.f32 %v6124, %v6243
      %v6286 = vadd.f32 %v6125, %v6246
      %v6287 = vadd.f32 %v6126, %v6249
      %v6288 = vadd.f32 %v6127, %v6252
      %v6289 = vadd.f32 %v6128, %v6255
      %v6290 = vadd.f32 %v6129, %v6258
      %v6291 = vperm.slane %v226, 1
      %v6292 = vmul.f32 %v5905, %v6291
      %v6293 = vmul.f32 %v5906, %v6291
      %v6294 = vmul.f32 %v5907, %v6291
      %v6295 = vmul.f32 %v5908, %v6291
      %v6296 = vmul.f32 %v5909, %v6291
      %v6297 = vmul.f32 %v5910, %v6291
      %v6298 = vmul.f32 %v5911, %v6291
      %v6299 = vmul.f32 %v5912, %v6291
      %v6300 = vmul.f32 %v5913, %v6291
      %v6301 = vmul.f32 %v5914, %v6291
      %v6302 = vmul.f32 %v5915, %v6291
      %v6303 = vmul.f32 %v5916, %v6291
      %v6304 = vmul.f32 %v5917, %v6291
      %v6305 = vmul.f32 %v5918, %v6291
      %v6306 = vmul.f32 %v5919, %v6291
      %v6307 = vmul.f32 %v5920, %v6291
      %v6308 = vmul.f32 %v5921, %v6291
      %v6309 = vmul.f32 %v5922, %v6291
      %v6310 = vmul.f32 %v5923, %v6291
      %v6311 = vmul.f32 %v5924, %v6291
      %v6312 = vmul.f32 %v5925, %v6291
      %v6313 = vmul.f32 %v5926, %v6291
      %v6314 = vmul.f32 %v5927, %v6291
      %v6315 = vmul.f32 %v5928, %v6291
      %v6316 = vmul.f32 %v5929, %v6291
      %v6317 = vmul.f32 %v5930, %v6291
      %v6318 = vmul.f32 %v5931, %v6291
      %v6319 = vmul.f32 %v5932, %v6291
      %v6320 = vmul.f32 %v5933, %v6291
      %v6321 = vmul.f32 %v5934, %v6291
      %v6322 = vmul.f32 %v5935, %v6291
      %v6323 = vmul.f32 %v5936, %v6291
      %v6324 = vsel %vm333, %v6292, 0.0
      %6325 = vadd.xlane.f32.xlu0 %v6324
      %v6326 = vpop.xlane.xlu0 %6325
      %v6327 = vsel %vm333, %v6293, 0.0
      %6328 = vadd.xlane.f32.xlu0 %v6327
      %v6329 = vpop.xlane.xlu0 %6328
      %v6330 = vsel %vm333, %v6294, 0.0
      %6331 = vadd.xlane.f32.xlu0 %v6330
      %v6332 = vpop.xlane.xlu0 %6331
      %v6333 = vsel %vm333, %v6295, 0.0
      %6334 = vadd.xlane.f32.xlu0 %v6333
      %v6335 = vpop.xlane.xlu0 %6334
      %v6336 = vsel %vm333, %v6296, 0.0
      %6337 = vadd.xlane.f32.xlu0 %v6336
      %v6338 = vpop.xlane.xlu0 %6337
      %v6339 = vsel %vm333, %v6297, 0.0
      %6340 = vadd.xlane.f32.xlu0 %v6339
      %v6341 = vpop.xlane.xlu0 %6340
      %v6342 = vsel %vm333, %v6298, 0.0
      %6343 = vadd.xlane.f32.xlu0 %v6342
      %v6344 = vpop.xlane.xlu0 %6343
      %v6345 = vsel %vm333, %v6299, 0.0
      %6346 = vadd.xlane.f32.xlu0 %v6345
      %v6347 = vpop.xlane.xlu0 %6346
      %v6348 = vsel %vm333, %v6300, 0.0
      %6349 = vadd.xlane.f32.xlu0 %v6348
      %v6350 = vpop.xlane.xlu0 %6349
      %v6351 = vsel %vm333, %v6301, 0.0
      %6352 = vadd.xlane.f32.xlu0 %v6351
      %v6353 = vpop.xlane.xlu0 %6352
      %v6354 = vsel %vm333, %v6302, 0.0
      %6355 = vadd.xlane.f32.xlu0 %v6354
      %v6356 = vpop.xlane.xlu0 %6355
      %v6357 = vsel %vm333, %v6303, 0.0
      %6358 = vadd.xlane.f32.xlu0 %v6357
      %v6359 = vpop.xlane.xlu0 %6358
      %v6360 = vsel %vm333, %v6304, 0.0
      %6361 = vadd.xlane.f32.xlu0 %v6360
      %v6362 = vpop.xlane.xlu0 %6361
      %v6363 = vsel %vm333, %v6305, 0.0
      %6364 = vadd.xlane.f32.xlu0 %v6363
      %v6365 = vpop.xlane.xlu0 %6364
      %v6366 = vsel %vm333, %v6306, 0.0
      %6367 = vadd.xlane.f32.xlu0 %v6366
      %v6368 = vpop.xlane.xlu0 %6367
      %v6369 = vsel %vm333, %v6307, 0.0
      %6370 = vadd.xlane.f32.xlu0 %v6369
      %v6371 = vpop.xlane.xlu0 %6370
      %v6372 = vsel %vm333, %v6308, 0.0
      %6373 = vadd.xlane.f32.xlu0 %v6372
      %v6374 = vpop.xlane.xlu0 %6373
      %v6375 = vsel %vm333, %v6309, 0.0
      %6376 = vadd.xlane.f32.xlu0 %v6375
      %v6377 = vpop.xlane.xlu0 %6376
      %v6378 = vsel %vm333, %v6310, 0.0
      %6379 = vadd.xlane.f32.xlu0 %v6378
      %v6380 = vpop.xlane.xlu0 %6379
      %v6381 = vsel %vm333, %v6311, 0.0
      %6382 = vadd.xlane.f32.xlu0 %v6381
      %v6383 = vpop.xlane.xlu0 %6382
      %v6384 = vsel %vm333, %v6312, 0.0
      %6385 = vadd.xlane.f32.xlu0 %v6384
      %v6386 = vpop.xlane.xlu0 %6385
      %v6387 = vsel %vm333, %v6313, 0.0
      %6388 = vadd.xlane.f32.xlu0 %v6387
      %v6389 = vpop.xlane.xlu0 %6388
      %v6390 = vsel %vm333, %v6314, 0.0
      %6391 = vadd.xlane.f32.xlu0 %v6390
      %v6392 = vpop.xlane.xlu0 %6391
      %v6393 = vsel %vm333, %v6315, 0.0
      %6394 = vadd.xlane.f32.xlu0 %v6393
      %v6395 = vpop.xlane.xlu0 %6394
      %v6396 = vsel %vm333, %v6316, 0.0
      %6397 = vadd.xlane.f32.xlu0 %v6396
      %v6398 = vpop.xlane.xlu0 %6397
      %v6399 = vsel %vm333, %v6317, 0.0
      %6400 = vadd.xlane.f32.xlu0 %v6399
      %v6401 = vpop.xlane.xlu0 %6400
      %v6402 = vsel %vm333, %v6318, 0.0
      %6403 = vadd.xlane.f32.xlu0 %v6402
      %v6404 = vpop.xlane.xlu0 %6403
      %v6405 = vsel %vm333, %v6319, 0.0
      %6406 = vadd.xlane.f32.xlu0 %v6405
      %v6407 = vpop.xlane.xlu0 %6406
      %v6408 = vsel %vm333, %v6320, 0.0
      %6409 = vadd.xlane.f32.xlu0 %v6408
      %v6410 = vpop.xlane.xlu0 %6409
      %v6411 = vsel %vm333, %v6321, 0.0
      %6412 = vadd.xlane.f32.xlu0 %v6411
      %v6413 = vpop.xlane.xlu0 %6412
      %v6414 = vsel %vm333, %v6322, 0.0
      %6415 = vadd.xlane.f32.xlu0 %v6414
      %v6416 = vpop.xlane.xlu0 %6415
      %v6417 = vsel %vm333, %v6323, 0.0
      %6418 = vadd.xlane.f32.xlu0 %v6417
      %v6419 = vpop.xlane.xlu0 %6418
      %v6420 = vadd.f32 %v5873, %v6326
      %v6421 = vadd.f32 %v5874, %v6329
      %v6422 = vadd.f32 %v5875, %v6332
      %v6423 = vadd.f32 %v5876, %v6335
      %v6424 = vadd.f32 %v5877, %v6338
      %v6425 = vadd.f32 %v5878, %v6341
      %v6426 = vadd.f32 %v5879, %v6344
      %v6427 = vadd.f32 %v5880, %v6347
      %v6428 = vadd.f32 %v5881, %v6350
      %v6429 = vadd.f32 %v5882, %v6353
      %v6430 = vadd.f32 %v5883, %v6356
      %v6431 = vadd.f32 %v5884, %v6359
      %v6432 = vadd.f32 %v5885, %v6362
      %v6433 = vadd.f32 %v5886, %v6365
      %v6434 = vadd.f32 %v5887, %v6368
      %v6435 = vadd.f32 %v5888, %v6371
      %v6436 = vadd.f32 %v5889, %v6374
      %v6437 = vadd.f32 %v5890, %v6377
      %v6438 = vadd.f32 %v5891, %v6380
      %v6439 = vadd.f32 %v5892, %v6383
      %v6440 = vadd.f32 %v5893, %v6386
      %v6441 = vadd.f32 %v5894, %v6389
      %v6442 = vadd.f32 %v5895, %v6392
      %v6443 = vadd.f32 %v5896, %v6395
      %v6444 = vadd.f32 %v5897, %v6398
      %v6445 = vadd.f32 %v5898, %v6401
      %v6446 = vadd.f32 %v5899, %v6404
      %v6447 = vadd.f32 %v5900, %v6407
      %v6448 = vadd.f32 %v5901, %v6410
      %v6449 = vadd.f32 %v5902, %v6413
      %v6450 = vadd.f32 %v5903, %v6416
      %v6451 = vadd.f32 %v5904, %v6419
      %v6452 = vperm.slane %v235, 1
      %v6453 = vmul.f32 %v5937, %v6452
      %v6454 = vmul.f32 %v5938, %v6452
      %v6455 = vmul.f32 %v5939, %v6452
      %v6456 = vmul.f32 %v5940, %v6452
      %v6457 = vmul.f32 %v5941, %v6452
      %v6458 = vmul.f32 %v5942, %v6452
      %v6459 = vmul.f32 %v5943, %v6452
      %v6460 = vmul.f32 %v5944, %v6452
      %v6461 = vmul.f32 %v5945, %v6452
      %v6462 = vmul.f32 %v5946, %v6452
      %v6463 = vmul.f32 %v5947, %v6452
      %v6464 = vmul.f32 %v5948, %v6452
      %v6465 = vmul.f32 %v5949, %v6452
      %v6466 = vmul.f32 %v5950, %v6452
      %v6467 = vmul.f32 %v5951, %v6452
      %v6468 = vmul.f32 %v5952, %v6452
      %v6469 = vmul.f32 %v5953, %v6452
      %v6470 = vmul.f32 %v5954, %v6452
      %v6471 = vmul.f32 %v5955, %v6452
      %v6472 = vmul.f32 %v5956, %v6452
      %v6473 = vmul.f32 %v5957, %v6452
      %v6474 = vmul.f32 %v5958, %v6452
      %v6475 = vmul.f32 %v5959, %v6452
      %v6476 = vmul.f32 %v5960, %v6452
      %v6477 = vmul.f32 %v5961, %v6452
      %v6478 = vmul.f32 %v5962, %v6452
      %v6479 = vmul.f32 %v5963, %v6452
      %v6480 = vmul.f32 %v5964, %v6452
      %v6481 = vmul.f32 %v5965, %v6452
      %v6482 = vmul.f32 %v5966, %v6452
      %v6483 = vmul.f32 %v5967, %v6452
      %v6484 = vmul.f32 %v5968, %v6452
      %v6485 = vsel %vm333, %v6453, 0.0
      %6486 = vadd.xlane.f32.xlu0 %v6485
      %v6487 = vpop.xlane.xlu0 %6486
      %v6488 = vsel %vm333, %v6454, 0.0
      %6489 = vadd.xlane.f32.xlu0 %v6488
      %v6490 = vpop.xlane.xlu0 %6489
      %v6491 = vsel %vm333, %v6455, 0.0
      %6492 = vadd.xlane.f32.xlu0 %v6491
      %v6493 = vpop.xlane.xlu0 %6492
      %v6494 = vsel %vm333, %v6456, 0.0
      %6495 = vadd.xlane.f32.xlu0 %v6494
      %v6496 = vpop.xlane.xlu0 %6495
      %v6497 = vsel %vm333, %v6457, 0.0
      %6498 = vadd.xlane.f32.xlu0 %v6497
      %v6499 = vpop.xlane.xlu0 %6498
      %v6500 = vsel %vm333, %v6458, 0.0
      %6501 = vadd.xlane.f32.xlu0 %v6500
      %v6502 = vpop.xlane.xlu0 %6501
      %v6503 = vsel %vm333, %v6459, 0.0
      %6504 = vadd.xlane.f32.xlu0 %v6503
      %v6505 = vpop.xlane.xlu0 %6504
      %v6506 = vsel %vm333, %v6460, 0.0
      %6507 = vadd.xlane.f32.xlu0 %v6506
      %v6508 = vpop.xlane.xlu0 %6507
      %v6509 = vsel %vm333, %v6461, 0.0
      %6510 = vadd.xlane.f32.xlu0 %v6509
      %v6511 = vpop.xlane.xlu0 %6510
      %v6512 = vsel %vm333, %v6462, 0.0
      %6513 = vadd.xlane.f32.xlu0 %v6512
      %v6514 = vpop.xlane.xlu0 %6513
      %v6515 = vsel %vm333, %v6463, 0.0
      %6516 = vadd.xlane.f32.xlu0 %v6515
      %v6517 = vpop.xlane.xlu0 %6516
      %v6518 = vsel %vm333, %v6464, 0.0
      %6519 = vadd.xlane.f32.xlu0 %v6518
      %v6520 = vpop.xlane.xlu0 %6519
      %v6521 = vsel %vm333, %v6465, 0.0
      %6522 = vadd.xlane.f32.xlu0 %v6521
      %v6523 = vpop.xlane.xlu0 %6522
      %v6524 = vsel %vm333, %v6466, 0.0
      %6525 = vadd.xlane.f32.xlu0 %v6524
      %v6526 = vpop.xlane.xlu0 %6525
      %v6527 = vsel %vm333, %v6467, 0.0
      %6528 = vadd.xlane.f32.xlu0 %v6527
      %v6529 = vpop.xlane.xlu0 %6528
      %v6530 = vsel %vm333, %v6468, 0.0
      %6531 = vadd.xlane.f32.xlu0 %v6530
      %v6532 = vpop.xlane.xlu0 %6531
      %v6533 = vsel %vm333, %v6469, 0.0
      %6534 = vadd.xlane.f32.xlu0 %v6533
      %v6535 = vpop.xlane.xlu0 %6534
      %v6536 = vsel %vm333, %v6470, 0.0
      %6537 = vadd.xlane.f32.xlu0 %v6536
      %v6538 = vpop.xlane.xlu0 %6537
      %v6539 = vsel %vm333, %v6471, 0.0
      %6540 = vadd.xlane.f32.xlu0 %v6539
      %v6541 = vpop.xlane.xlu0 %6540
      %v6542 = vsel %vm333, %v6472, 0.0
      %6543 = vadd.xlane.f32.xlu0 %v6542
      %v6544 = vpop.xlane.xlu0 %6543
      %v6545 = vsel %vm333, %v6473, 0.0
      %6546 = vadd.xlane.f32.xlu0 %v6545
      %v6547 = vpop.xlane.xlu0 %6546
      %v6548 = vsel %vm333, %v6474, 0.0
      %6549 = vadd.xlane.f32.xlu0 %v6548
      %v6550 = vpop.xlane.xlu0 %6549
      %v6551 = vsel %vm333, %v6475, 0.0
      %6552 = vadd.xlane.f32.xlu0 %v6551
      %v6553 = vpop.xlane.xlu0 %6552
      %v6554 = vsel %vm333, %v6476, 0.0
      %6555 = vadd.xlane.f32.xlu0 %v6554
      %v6556 = vpop.xlane.xlu0 %6555
      %v6557 = vsel %vm333, %v6477, 0.0
      %6558 = vadd.xlane.f32.xlu0 %v6557
      %v6559 = vpop.xlane.xlu0 %6558
      %v6560 = vsel %vm333, %v6478, 0.0
      %6561 = vadd.xlane.f32.xlu0 %v6560
      %v6562 = vpop.xlane.xlu0 %6561
      %v6563 = vsel %vm333, %v6479, 0.0
      %6564 = vadd.xlane.f32.xlu0 %v6563
      %v6565 = vpop.xlane.xlu0 %6564
      %v6566 = vsel %vm333, %v6480, 0.0
      %6567 = vadd.xlane.f32.xlu0 %v6566
      %v6568 = vpop.xlane.xlu0 %6567
      %v6569 = vsel %vm333, %v6481, 0.0
      %6570 = vadd.xlane.f32.xlu0 %v6569
      %v6571 = vpop.xlane.xlu0 %6570
      %v6572 = vsel %vm333, %v6482, 0.0
      %6573 = vadd.xlane.f32.xlu0 %v6572
      %v6574 = vpop.xlane.xlu0 %6573
      %v6575 = vsel %vm333, %v6483, 0.0
      %6576 = vadd.xlane.f32.xlu0 %v6575
      %v6577 = vpop.xlane.xlu0 %6576
      %v6578 = vsel %vm333, %v6484, 0.0
      %6579 = vadd.xlane.f32.xlu0 %v6578
      %v6580 = vpop.xlane.xlu0 %6579
      %v6581 = vadd.f32 %v6420, %v6487
      %v6582 = vadd.f32 %v6421, %v6490
      %v6583 = vadd.f32 %v6422, %v6493
      %v6584 = vadd.f32 %v6423, %v6496
      %v6585 = vadd.f32 %v6424, %v6499
      %v6586 = vadd.f32 %v6425, %v6502
      %v6587 = vadd.f32 %v6426, %v6505
      %v6588 = vadd.f32 %v6427, %v6508
      %v6589 = vadd.f32 %v6428, %v6511
      %v6590 = vadd.f32 %v6429, %v6514
      %v6591 = vadd.f32 %v6430, %v6517
      %v6592 = vadd.f32 %v6431, %v6520
      %v6593 = vadd.f32 %v6432, %v6523
      %v6594 = vadd.f32 %v6433, %v6526
      %v6595 = vadd.f32 %v6434, %v6529
      %v6596 = vadd.f32 %v6435, %v6532
      %v6597 = vadd.f32 %v6436, %v6535
      %v6598 = vadd.f32 %v6437, %v6538
      %v6599 = vadd.f32 %v6438, %v6541
      %v6600 = vadd.f32 %v6439, %v6544
      %v6601 = vadd.f32 %v6440, %v6547
      %v6602 = vadd.f32 %v6441, %v6550
      %v6603 = vadd.f32 %v6442, %v6553
      %v6604 = vadd.f32 %v6443, %v6556
      %v6605 = vadd.f32 %v6444, %v6559
      %v6606 = vadd.f32 %v6445, %v6562
      %v6607 = vadd.f32 %v6446, %v6565
      %v6608 = vadd.f32 %v6447, %v6568
      %v6609 = vadd.f32 %v6448, %v6571
      %v6610 = vadd.f32 %v6449, %v6574
      %v6611 = vadd.f32 %v6450, %v6577
      %v6612 = vadd.f32 %v6451, %v6580
      %v6645 = vlaneseq
      %v6646 = vand.u32 %v6645, 127
      %v6647 = vperm.slane %v6259, %v6646
      %v6648 = vadd.s32 %v6646, 4294967288
      %v6649 = vperm.slane %v6260, %v6648
      %vm6650 = vcmask 130112
      %v6651 = vsel %vm6650, %v6649, %v6647
      %v6652 = vperm.slane %v6261, %v6646
      %v6653 = vperm.slane %v6262, %v6648
      %v6654 = vsel %vm6650, %v6653, %v6652
      %v6655 = vperm.slane %v6263, %v6646
      %v6656 = vperm.slane %v6264, %v6648
      %v6657 = vsel %vm6650, %v6656, %v6655
      %v6658 = vperm.slane %v6265, %v6646
      %v6659 = vperm.slane %v6266, %v6648
      %v6660 = vsel %vm6650, %v6659, %v6658
      %v6661 = vperm.slane %v6267, %v6646
      %v6662 = vperm.slane %v6268, %v6648
      %v6663 = vsel %vm6650, %v6662, %v6661
      %v6664 = vperm.slane %v6269, %v6646
      %v6665 = vperm.slane %v6270, %v6648
      %v6666 = vsel %vm6650, %v6665, %v6664
      %v6667 = vperm.slane %v6271, %v6646
      %v6668 = vperm.slane %v6272, %v6648
      %v6669 = vsel %vm6650, %v6668, %v6667
      %v6670 = vperm.slane %v6273, %v6646
      %v6671 = vperm.slane %v6274, %v6648
      %v6672 = vsel %vm6650, %v6671, %v6670
      %v6673 = vperm.slane %v6275, %v6646
      %v6674 = vperm.slane %v6276, %v6648
      %v6675 = vsel %vm6650, %v6674, %v6673
      %v6676 = vperm.slane %v6277, %v6646
      %v6677 = vperm.slane %v6278, %v6648
      %v6678 = vsel %vm6650, %v6677, %v6676
      %v6679 = vperm.slane %v6279, %v6646
      %v6680 = vperm.slane %v6280, %v6648
      %v6681 = vsel %vm6650, %v6680, %v6679
      %v6682 = vperm.slane %v6281, %v6646
      %v6683 = vperm.slane %v6282, %v6648
      %v6684 = vsel %vm6650, %v6683, %v6682
      %v6685 = vperm.slane %v6283, %v6646
      %v6686 = vperm.slane %v6284, %v6648
      %v6687 = vsel %vm6650, %v6686, %v6685
      %v6688 = vperm.slane %v6285, %v6646
      %v6689 = vperm.slane %v6286, %v6648
      %v6690 = vsel %vm6650, %v6689, %v6688
      %v6691 = vperm.slane %v6287, %v6646
      %v6692 = vperm.slane %v6288, %v6648
      %v6693 = vsel %vm6650, %v6692, %v6691
      %v6694 = vperm.slane %v6289, %v6646
      %v6695 = vperm.slane %v6290, %v6648
      %v6696 = vsel %vm6650, %v6695, %v6694
      %vm6697 = vcmask 1041409
      %v6698 = vsel %vm6697, %v6654, %v6651
      %vm6699 = vcmask 1042434
      %v6700 = vsel %vm6699, %v6657, %v6698
      %vm6701 = vcmask 1043459
      %v6702 = vsel %vm6701, %v6660, %v6700
      %vm6703 = vcmask 1044484
      %v6704 = vsel %vm6703, %v6663, %v6702
      %vm6705 = vcmask 1045509
      %v6706 = vsel %vm6705, %v6666, %v6704
      %vm6707 = vcmask 1046534
      %v6708 = vsel %vm6707, %v6669, %v6706
      %vm6709 = vcmask 1047559
      %v6710 = vsel %vm6709, %v6672, %v6708
      %v6711 = vsel %vm6697, %v6678, %v6675
      %v6712 = vsel %vm6699, %v6681, %v6711
      %v6713 = vsel %vm6701, %v6684, %v6712
      %v6714 = vsel %vm6703, %v6687, %v6713
      %v6715 = vsel %vm6705, %v6690, %v6714
      %v6716 = vsel %vm6707, %v6693, %v6715
      %v6717 = vsel %vm6709, %v6696, %v6716
      %vm6720 = vcmask 130048
      %6721 = vst.msk [vmem:[%s217] sm:$0xff] %vm6720, %v6710
      %6722 = vst.msk [vmem:[%s217 + $0x8] sm:$0xff] %vm6720, %v6717
      %v6755 = vperm.slane %v6581, %v6646
      %v6756 = vperm.slane %v6582, %v6648
      %v6757 = vsel %vm6650, %v6756, %v6755
      %v6758 = vperm.slane %v6583, %v6646
      %v6759 = vperm.slane %v6584, %v6648
      %v6760 = vsel %vm6650, %v6759, %v6758
      %v6761 = vperm.slane %v6585, %v6646
      %v6762 = vperm.slane %v6586, %v6648
      %v6763 = vsel %vm6650, %v6762, %v6761
      %v6764 = vperm.slane %v6587, %v6646
      %v6765 = vperm.slane %v6588, %v6648
      %v6766 = vsel %vm6650, %v6765, %v6764
      %v6767 = vperm.slane %v6589, %v6646
      %v6768 = vperm.slane %v6590, %v6648
      %v6769 = vsel %vm6650, %v6768, %v6767
      %v6770 = vperm.slane %v6591, %v6646
      %v6771 = vperm.slane %v6592, %v6648
      %v6772 = vsel %vm6650, %v6771, %v6770
      %v6773 = vperm.slane %v6593, %v6646
      %v6774 = vperm.slane %v6594, %v6648
      %v6775 = vsel %vm6650, %v6774, %v6773
      %v6776 = vperm.slane %v6595, %v6646
      %v6777 = vperm.slane %v6596, %v6648
      %v6778 = vsel %vm6650, %v6777, %v6776
      %v6779 = vperm.slane %v6597, %v6646
      %v6780 = vperm.slane %v6598, %v6648
      %v6781 = vsel %vm6650, %v6780, %v6779
      %v6782 = vperm.slane %v6599, %v6646
      %v6783 = vperm.slane %v6600, %v6648
      %v6784 = vsel %vm6650, %v6783, %v6782
      %v6785 = vperm.slane %v6601, %v6646
      %v6786 = vperm.slane %v6602, %v6648
      %v6787 = vsel %vm6650, %v6786, %v6785
      %v6788 = vperm.slane %v6603, %v6646
      %v6789 = vperm.slane %v6604, %v6648
      %v6790 = vsel %vm6650, %v6789, %v6788
      %v6791 = vperm.slane %v6605, %v6646
      %v6792 = vperm.slane %v6606, %v6648
      %v6793 = vsel %vm6650, %v6792, %v6791
      %v6794 = vperm.slane %v6607, %v6646
      %v6795 = vperm.slane %v6608, %v6648
      %v6796 = vsel %vm6650, %v6795, %v6794
      %v6797 = vperm.slane %v6609, %v6646
      %v6798 = vperm.slane %v6610, %v6648
      %v6799 = vsel %vm6650, %v6798, %v6797
      %v6800 = vperm.slane %v6611, %v6646
      %v6801 = vperm.slane %v6612, %v6648
      %v6802 = vsel %vm6650, %v6801, %v6800
      %v6803 = vsel %vm6697, %v6760, %v6757
      %v6804 = vsel %vm6699, %v6763, %v6803
      %v6805 = vsel %vm6701, %v6766, %v6804
      %v6806 = vsel %vm6703, %v6769, %v6805
      %v6807 = vsel %vm6705, %v6772, %v6806
      %v6808 = vsel %vm6707, %v6775, %v6807
      %v6809 = vsel %vm6709, %v6778, %v6808
      %v6810 = vsel %vm6697, %v6784, %v6781
      %v6811 = vsel %vm6699, %v6787, %v6810
      %v6812 = vsel %vm6701, %v6790, %v6811
      %v6813 = vsel %vm6703, %v6793, %v6812
      %v6814 = vsel %vm6705, %v6796, %v6813
      %v6815 = vsel %vm6707, %v6799, %v6814
      %v6816 = vsel %vm6709, %v6802, %v6815
      %s6819 = scalar_lea.vmem %s217, 16
      %6820 = vst.msk [vmem:[%s6819] sm:$0xff] %vm6720, %v6809
      %6821 = vst.msk [vmem:[%s6819 + $0x8] sm:$0xff] %vm6720, %v6816
      %p6822 = scmp.lt.s32.totalorder %s15, 1
      %s6823 = scalar_select %p6822, %s15, 1
      %s6824 = smul.addr %s6823, 4
      %s6825 = smul.addr %s6824, 8
      %s6826 = scalar_lea.vmem %s4, %s6825
      // Predicated region
      $region37: #{ds_forward.6} parent=35 // pred_check
        %p6827 = pneg %p127
      $region38: #{ds_forward.6} parent=35 // pred_check_branch
        %6829 = sbr.rel (%p6827) target = $region40
      $region39: #{ds_forward.6} parent=35 // pred_region
        _
      $region40: #{ds_forward.6} parent=35 // pred_fallthru
        _
    $region36: #{ds_forward.6} parent=5 // pred_fallthru
      _
    %p6830 = scmp.le.s32.totalorder 2, %s10
    // Predicated region
    $region41: #{ds_forward.6} parent=5 // pred_check
      %p6831 = pneg %p6830
    $region42: #{ds_forward.6} parent=5 // pred_check_branch
      %6833 = sbr.rel (%p6831) target = $region44
    $region43: #{ds_forward.6} parent=5 // pred_region
      %s6834 = ssub.s32 %s10, 2
      // Predicated region
      $region45: #{ds_forward.6} parent=43 // pred_check
        %p6835 = pneg %p133
      $region46: #{ds_forward.6} parent=43 // pred_check_branch
        %6837 = sbr.rel (%p6835) target = $region48
      $region47: #{ds_forward.6} parent=43 // pred_region
        %p6838 = scmp.lt.s32.totalorder %s16, 1
        %s6839 = scalar_select %p6838, %s16, 1
        %s6840 = smul.addr %s6839, 4
        %s6841 = smul.addr %s6840, 8
        %s6842 = scalar_lea.vmem %s4, %s6841
      $region48: #{ds_forward.6} parent=43 // pred_fallthru
        _
    $region44: #{ds_forward.6} parent=5 // pred_fallthru
      _
  $region6: #{ds_forward.6} parent=0 // loop_footer
    %s14 = sadd.s32 1, %s10
  $region7: #{ds_forward.6} parent=0 // loop_footer_branch
    %9 = sbr.rel target = $region3
  $region8: #{ds_forward.6} parent=0 // loop_exit
    _

</llo_original>
